<compile_context>
chip_gen: v7x
topology: tpu7x:2x2x1
jax: 0.10.0
libtpu: 0.0.40
codegen_flags: <defaults>
</compile_context>

<pallas_src>
import math

import jax
import jax.numpy as jnp
from jax import lax
from jax.experimental import pallas as pl
from jax.experimental.pallas import tpu as pltpu

BN_EPS = 1e-5

# Packed feature slab layout (lane offsets inside the 448-wide intermediate):
#   [ f2 (0:128) | f3 (128:384) | f1 (384:448) ]
# every boundary is 128-lane aligned, so the per-layer slice stores in kernel 1
# are lane-group aligned.  enc.mlp2's first-layer weight rows are permuted to
# match in preprocess_params().
_F_SLOTS = ((384, 448), (0, 128), (128, 384))   # layer li -> (lo, hi) of f_{li+1}


# ---------------------------------------------------------------------------
# In-kernel helpers (operate on VMEM-resident values / refs)
# ---------------------------------------------------------------------------
def _bn_relu(y, g2d, be2d):
    """Training-mode BatchNorm1d over the point channel + ReLU, single pass.

    y: (B, tN, F) f32; g2d/be2d: (tN, 1) gamma/beta slices for this tile.
    Stats per point channel over (batch, feature), biased variance, eps=1e-5.
    Fused: one sum + sum-of-squares reduce, then a single scale+shift FMA.
    """
    cnt = y.shape[0] * y.shape[2]
    s = jnp.sum(y, axis=(0, 2), keepdims=True)                 # (1, tN, 1)
    ss = jnp.sum(y * y, axis=(0, 2), keepdims=True)            # (1, tN, 1)
    mean = s * (1.0 / cnt)
    var = jnp.maximum(ss * (1.0 / cnt) - mean * mean, 0.0)
    scale = g2d[None] * lax.rsqrt(var + BN_EPS)                # (1, tN, 1)
    shift = be2d[None] - mean * scale
    return jnp.maximum(y * scale + shift, 0.0)


def _linear_bn_relu(h, w_ref, b_ref, g_ref, be_ref):
    """h: (B, tN, Fin) f32 -> ReLU(BN(h @ W + b)); bf16 MXU operands, f32 acc."""
    B, n, fin = h.shape
    w = w_ref[...]                                             # bf16 (Fin, Fout)
    y = jnp.dot(h.reshape(B * n, fin).astype(jnp.bfloat16), w,
                preferred_element_type=jnp.float32)
    y = (y + b_ref[...]).reshape(B, n, w.shape[1])
    return _bn_relu(y, g_ref[...], be_ref[...])


# ---------------------------------------------------------------------------
# Kernel 1: encoder.mlp1 (3 x Linear+BN+ReLU) -> packed bf16 feature slab
#           fused with the per-split running max-pool over points
# ---------------------------------------------------------------------------
def _enc1_kernel(*refs):
    x_ref = refs[0]
    layer_refs = refs[1:13]                      # (w, b, gamma, beta) x 3
    f_ref, pool_ref = refs[13], refs[14]

    @pl.when(pl.program_id(1) == 0)
    def _():
        pool_ref[...] = jnp.full(pool_ref.shape, -jnp.inf, dtype=pool_ref.dtype)

    h = x_ref[...]
    for li in range(3):
        w, b, g, be = layer_refs[4 * li: 4 * li + 4]
        h = _linear_bn_relu(h, w, b, g, be)
        lo, hi = _F_SLOTS[li]
        # store each feature level immediately (short live ranges) into the
        # packed (B, tN, 448) bf16 slab at a 128-lane-aligned offset.
        f_ref[:, :, lo:hi] = h.astype(f_ref.dtype)

    # running max over the point dim (accumulated across the inner tile axis)
    pool_ref[...] = jnp.maximum(pool_ref[...], jnp.max(h, axis=1)[None])


# ---------------------------------------------------------------------------
# Kernel 2: encoder.mlp2 on implicit concat [pooled|f1|f2|f3]:
#   pooled@W_pool (+bias) is hoisted to the wrapper; the packed feature slab
#   hits the MXU as ONE K=448 bf16 matmul.  Fused with the codeword max-pool.
# ---------------------------------------------------------------------------
def _enc2_kernel(rep_ref, f_ref, wf_ref, g0_ref, be0_ref,
                 w1_ref, b1_ref, g1_ref, be1_ref, code_ref):
    @pl.when(pl.program_id(1) == 0)
    def _():
        code_ref[...] = jnp.full(code_ref.shape, -jnp.inf, dtype=code_ref.dtype)

    B, n, fin = f_ref.shape
    y = jnp.dot(f_ref[...].reshape(B * n, fin), wf_ref[...],     # bf16 x bf16
                preferred_element_type=jnp.float32)
    y = y.reshape(B, n, -1) + rep_ref[...][:, None, :]           # + pooled@W + b
    h = _bn_relu(y, g0_ref[...], be0_ref[...])
    h = _linear_bn_relu(h, w1_ref, b1_ref, g1_ref, be1_ref)
    code_ref[...] = jnp.maximum(code_ref[...], jnp.max(h, axis=1)[None])


# ---------------------------------------------------------------------------
# Kernel 3: both decoder folds (2 x 5-layer MLP) fused; per-tile over m.
#   code@W_code (+bias) matmuls are hoisted to the wrapper; grid@W_grid (+bias)
#   is precomputed, so fold-1's first layer is add + BN + ReLU only.
# ---------------------------------------------------------------------------
def _dec_kernel(*refs):
    rep1_ref, rep2_ref, gy_ref = refs[0], refs[1], refs[2]
    g10_ref, be10_ref = refs[3], refs[4]
    d1_rest = refs[5:21]                          # (w, b, gamma, beta) x 4
    wfold_ref, g20_ref, be20_ref = refs[21], refs[22], refs[23]
    d2_rest = refs[24:40]
    out_ref = refs[40]

    B = rep1_ref.shape[0]
    n = gy_ref.shape[0]

    # ---- fold 1: [codeword | grid] -> mlp1 (both first-layer matmuls hoisted)
    y = rep1_ref[...][:, None, :] + gy_ref[...][None]            # (B, n, 256)
    h = _bn_relu(y, g10_ref[...], be10_ref[...])
    for li in range(4):
        w, b, g, be = d1_rest[4 * li: 4 * li + 4]
        h = _linear_bn_relu(h, w, b, g, be)
    fold1 = h                                                    # (B, n, 4) f32

    # ---- fold 2: [codeword | fold1] -> mlp2 (codeword matmul hoisted)
    fy = jnp.dot(fold1.reshape(B * n, fold1.shape[2]).astype(jnp.bfloat16),
                 wfold_ref[...], preferred_element_type=jnp.float32)
    y = fy.reshape(B, n, -1) + rep2_ref[...][:, None, :]
    h = _bn_relu(y, g20_ref[...], be20_ref[...])
    for li in range(4):
        w, b, g, be = d2_rest[4 * li: 4 * li + 4]
        h = _linear_bn_relu(h, w, b, g, be)
    out_ref[...] = h.astype(out_ref.dtype)


# ---------------------------------------------------------------------------
# Spec / argument packing helpers
# ---------------------------------------------------------------------------
def _nbytes(a):
    return int(a.size) * a.dtype.itemsize


def _full_spec(arr):
    nd = arr.ndim
    return pl.BlockSpec(arr.shape, lambda *_, nd=nd: (0,) * nd)


def _plain_layer_args(layer, chan_spec):
    args = [layer["w"], layer["b"], layer["gamma"], layer["beta"]]
    specs = [_full_spec(layer["w"]), _full_spec(layer["b"]), chan_spec, chan_spec]
    return args, specs


def _compiler_params(semantics, tile_bytes, resident_bytes):
    # Double-buffered working tiles + resident weights/reps + headroom, clamped
    # to a ceiling that stays safely inside v7x's 64 MiB physical VMEM.
    budget = 2 * int(tile_bytes) + int(resident_bytes) + (16 << 20)
    budget = int(min(max(budget, 32 << 20), 48 << 20))
    return pltpu.CompilerParams(dimension_semantics=semantics,
                                vmem_limit_bytes=budget)


def _pick_tile(n, max_tile=512):
    """Largest 128-multiple divisor of n (<= max_tile); else largest
    multiple-of-8 divisor; else n itself (full dim).

    TODO(synk): for N not divisible by any friendly tile, padding N up to a
    128-multiple (masking padded rows to -inf before the max-pools) would be
    faster than falling back to odd tiles.
    """
    for step in (128, 8):
        best = 0
        t = step
        while t <= min(n, max_tile):
            if n % t == 0:
                best = t
            t += step
        if best:
            return best
    return n


# ---------------------------------------------------------------------------
# Parameter construction (deterministic, synthetic) + preprocessing
# ---------------------------------------------------------------------------
def _make_block(key, fin, fout, n_channels):
    k1, k2 = jax.random.split(key)
    return dict(
        w=jax.random.normal(k1, (fin, fout), jnp.float32) / jnp.sqrt(float(fin)),
        b=jax.random.normal(k2, (fout,), jnp.float32) * 0.01,
        gamma=jnp.ones((n_channels,), jnp.float32),
        beta=jnp.zeros((n_channels,), jnp.float32),
    )


def _make_mlp(key, layer_dims, n_channels):
    keys = jax.random.split(key, len(layer_dims) - 1)
    return [
        _make_block(k, fin, fout, n_channels)
        for k, fin, fout in zip(keys, layer_dims[:-1], layer_dims[1:])
    ]


def init_params(key, num_pts_per_patch):
    m_root = int(math.sqrt(num_pts_per_patch))
    m = m_root ** 2
    k_e1, k_e2, k_d1, k_d2 = jax.random.split(key, 4)
    params = dict(
        enc_mlp1=_make_mlp(k_e1, [4, 64, 128, 256], num_pts_per_patch),
        enc_mlp2=_make_mlp(k_e2, [704, 512, 512], num_pts_per_patch),
        dec_mlp1=_make_mlp(k_d1, [514, 256, 128, 64, 32, 4], m),
        dec_mlp2=_make_mlp(k_d2, [516, 256, 128, 64, 32, 4], m),
    )
    # Decoder fold grid: meshgrid(indexing='ij') of linspace(0, pi, m_root).
    d = jnp.linspace(0.0, math.pi, m_root, dtype=jnp.float32)
    gi, gj = jnp.meshgrid(d, d, indexing="ij")
    params["grid"] = jnp.stack([gi, gj], axis=2).reshape(-1, 2)       # (m, 2)
    return params, m


def _prep_plain(layer):
    return dict(
        w=layer["w"].astype(jnp.bfloat16),
        b=layer["b"].reshape(1, -1).astype(jnp.float32),
        gamma=layer["gamma"].reshape(-1, 1),
        beta=layer["beta"].reshape(-1, 1),
    )


def preprocess_params(params):
    p = {}
    # --- encoder mlp1: 3 plain layers ---
    p["enc_mlp1"] = [_prep_plain(l) for l in params["enc_mlp1"]]

    # --- encoder mlp2 layer 0 (704 -> 512): split [pooled(256)|f1|f2|f3(448)].
    # Pooled part + bias go to the wrapper; the feature part is row-permuted to
    # the packed [f2|f3|f1] slab layout used by kernel 1.
    l0, l1 = params["enc_mlp2"]
    p["enc2_rep_w"] = l0["w"][:256]                                   # f32 (256,512)
    p["enc2_rep_b"] = l0["b"]                                         # f32 (512,)
    wf = l0["w"][256:]                         # rows ordered [f1(64)|f2(128)|f3(256)]
    wf_packed = jnp.concatenate([wf[64:192], wf[192:448], wf[0:64]], axis=0)
    p["enc2_l0"] = dict(w_f=wf_packed.astype(jnp.bfloat16),           # (448, 512)
                        gamma=l0["gamma"].reshape(-1, 1),
                        beta=l0["beta"].reshape(-1, 1))
    p["enc2_l1"] = _prep_plain(l1)

    # --- decoder fold 1 layer 0 (514 -> 256): split [code(512)|grid(2)] ---
    d0 = params["dec_mlp1"][0]
    p["dec1_rep_w"] = d0["w"][:512]                                   # f32 (512,256)
    p["dec1_gy"] = params["grid"] @ d0["w"][512:] + d0["b"]           # f32 (m, 256)
    p["dec1_l0"] = dict(gamma=d0["gamma"].reshape(-1, 1),
                        beta=d0["beta"].reshape(-1, 1))
    p["dec1_rest"] = [_prep_plain(l) for l in params["dec_mlp1"][1:]]

    # --- decoder fold 2 layer 0 (516 -> 256): split [code(512)|fold1(4)] ---
    e0 = params["dec_mlp2"][0]
    p["dec2_rep_w"] = e0["w"][:512]                                   # f32 (512,256)
    p["dec2_rep_b"] = e0["b"]                                         # f32 (256,)
    p["dec2_l0"] = dict(w_fold=e0["w"][512:].astype(jnp.bfloat16),    # (4, 256)
                        gamma=e0["gamma"].reshape(-1, 1),
                        beta=e0["beta"].reshape(-1, 1))
    p["dec2_rest"] = [_prep_plain(l) for l in params["dec_mlp2"][1:]]
    return p


# ---------------------------------------------------------------------------
# Forward pass wrappers (3 pallas_calls total)
# ---------------------------------------------------------------------------
def _split_grid(n_tiles):
    n_split = 2 if n_tiles % 2 == 0 else 1        # 2-way split feeds both v7x TCs
    return n_split, n_tiles // n_split


def encoder_stage1(x, p, tile_n):
    B, N, cin = x.shape
    assert N % tile_n == 0
    n_split, n_inner = _split_grid(N // tile_n)

    def act(f):
        return pl.BlockSpec((B, tile_n, f), lambda c, i: (0, c * n_inner + i, 0))

    chan = pl.BlockSpec((tile_n, 1), lambda c, i: (c * n_inner + i, 0))

    in_args, in_specs = [x], [act(cin)]
    for layer in p["enc_mlp1"]:
        a, s = _plain_layer_args(layer, chan)
        in_args += a; in_specs += s

    tile_bytes = B * tile_n * (cin * 4 + 448 * 2)
    resident = sum(_nbytes(l["w"]) for l in p["enc_mlp1"])

    f_packed, pool_parts = pl.pallas_call(
        _enc1_kernel,
        grid=(n_split, n_inner),
        in_specs=in_specs,
        out_specs=(act(448),
                   pl.BlockSpec((1, B, 256), lambda c, i: (c, 0, 0))),
        out_shape=(jax.ShapeDtypeStruct((B, N, 448), jnp.bfloat16),
                   jax.ShapeDtypeStruct((n_split, B, 256), jnp.float32)),
        compiler_params=_compiler_params(("parallel", "arbitrary"),
                                         tile_bytes, resident),
    )(*in_args)
    return f_packed, pool_parts


def encoder_stage2(rep, f_packed, p, tile_n):
    B, N, _ = f_packed.shape
    n_split, n_inner = _split_grid(N // tile_n)

    chan = pl.BlockSpec((tile_n, 1), lambda c, i: (c * n_inner + i, 0))
    f_spec = pl.BlockSpec((B, tile_n, 448), lambda c, i: (0, c * n_inner + i, 0))

    l0, l1 = p["enc2_l0"], p["enc2_l1"]
    in_args = [rep, f_packed, l0["w_f"], l0["gamma"], l0["beta"],
               l1["w"], l1["b"], l1["gamma"], l1["beta"]]
    in_specs = [_full_spec(rep), f_spec, _full_spec(l0["w_f"]), chan, chan,
                _full_spec(l1["w"]), _full_spec(l1["b"]), chan, chan]

    tile_bytes = B * tile_n * 448 * 2
    resident = _nbytes(l0["w_f"]) + _nbytes(l1["w"]) + _nbytes(rep)

    return pl.pallas_call(
        _enc2_kernel,
        grid=(n_split, n_inner),
        in_specs=in_specs,
        out_specs=pl.BlockSpec((1, B, 512), lambda c, i: (c, 0, 0)),
        out_shape=jax.ShapeDtypeStruct((n_split, B, 512), jnp.float32),
        compiler_params=_compiler_params(("parallel", "arbitrary"),
                                         tile_bytes, resident),
    )(*in_args)


def decoder_forward(rep1, rep2, p, m, tile_m):
    B = rep1.shape[0]
    assert m % tile_m == 0
    n_tiles = m // tile_m

    chan = pl.BlockSpec((tile_m, 1), lambda i: (i, 0))

    in_args = [rep1, rep2, p["dec1_gy"]]
    in_specs = [_full_spec(rep1), _full_spec(rep2),
                pl.BlockSpec((tile_m, 256), lambda i: (i, 0))]
    in_args += [p["dec1_l0"]["gamma"], p["dec1_l0"]["beta"]]
    in_specs += [chan, chan]
    for layer in p["dec1_rest"]:
        a, s = _plain_layer_args(layer, chan)
        in_args += a; in_specs += s
    in_args += [p["dec2_l0"]["w_fold"], p["dec2_l0"]["gamma"], p["dec2_l0"]["beta"]]
    in_specs += [_full_spec(p["dec2_l0"]["w_fold"]), chan, chan]
    for layer in p["dec2_rest"]:
        a, s = _plain_layer_args(layer, chan)
        in_args += a; in_specs += s

    tile_bytes = tile_m * 256 * 4 + B * tile_m * 4 * 4
    resident = (sum(_nbytes(l["w"]) for l in p["dec1_rest"] + p["dec2_rest"])
                + _nbytes(p["dec2_l0"]["w_fold"]) + _nbytes(rep1) + _nbytes(rep2))

    return pl.pallas_call(
        _dec_kernel,
        grid=(n_tiles,),
        in_specs=in_specs,
        out_specs=pl.BlockSpec((B, tile_m, 4), lambda i: (0, i, 0)),
        out_shape=jax.ShapeDtypeStruct((B, m, 4), jnp.float32),
        compiler_params=_compiler_params(("parallel",), tile_bytes, resident),
    )(*in_args)


def autoencoder_forward(x, p, m, tile_n=None, tile_m=None):
    N = x.shape[1]
    tile_n = tile_n if tile_n is not None else _pick_tile(N)
    tile_m = tile_m if tile_m is not None else _pick_tile(m)

    # ---- encoder ----
    f_packed, pool_parts = encoder_stage1(x, p, tile_n)
    pooled = jnp.max(pool_parts, axis=0)                              # (B, 256)
    # grid-invariant first-layer part of enc.mlp2, hoisted out of the kernel
    rep_enc2 = pooled @ p["enc2_rep_w"] + p["enc2_rep_b"]             # (B, 512)
    code_parts = encoder_stage2(rep_enc2, f_packed, p, tile_n)
    code = jnp.max(code_parts, axis=0)                                # (B, 512)

    # ---- decoder (grid-invariant codeword matmuls hoisted) ----
    rep_d1 = code @ p["dec1_rep_w"]                                   # (B, 256)
    rep_d2 = code @ p["dec2_rep_w"] + p["dec2_rep_b"]                 # (B, 256)
    return decoder_forward(rep_d1, rep_d2, p, m, tile_m)


# ---------------------------------------------------------------------------
# Driver
# ---------------------------------------------------------------------------
if __name__ == "__main__":
    num_pts_per_patch = 64    # perfect square -> decoder m == num_pts
    batch = 2

    params, m = init_params(jax.random.PRNGKey(42), num_pts_per_patch)
    p = preprocess_params(params)

    x = jax.random.normal(jax.random.PRNGKey(0),
                          (batch, num_pts_per_patch, 4), jnp.float32)

    # tile=16 gives 4 point-tiles so both the 2-way parallel split and the
    # cross-tile max-pool accumulation path are exercised; at realistic N,
    # _pick_tile() selects a 128-aligned tile automatically.
    fwd = jax.jit(lambda xx, pp: autoencoder_forward(xx, pp, m,
                                                     tile_n=16, tile_m=16))
    out = jax.block_until_ready(fwd(x, p))

    assert out.shape == (batch, m, 4), out.shape
    assert out.dtype == jnp.float32
    assert bool(jnp.all(jnp.isfinite(out)))
    print("KERNEL_OK")
</pallas_src>

<mosaic_0001>
module attributes {stable_mosaic.version = 11 : i64} {
  func.func @_enc1_kernel(%arg0: i32, %arg1: i32, %arg2: memref<2x16x4xf32, #tpu.memory_space<vmem>>, %arg3: memref<4x64xbf16, #tpu.memory_space<vmem>>, %arg4: memref<1x64xf32, #tpu.memory_space<vmem>>, %arg5: memref<16x1xf32, #tpu.memory_space<vmem>>, %arg6: memref<16x1xf32, #tpu.memory_space<vmem>>, %arg7: memref<64x128xbf16, #tpu.memory_space<vmem>>, %arg8: memref<1x128xf32, #tpu.memory_space<vmem>>, %arg9: memref<16x1xf32, #tpu.memory_space<vmem>>, %arg10: memref<16x1xf32, #tpu.memory_space<vmem>>, %arg11: memref<128x256xbf16, #tpu.memory_space<vmem>>, %arg12: memref<1x256xf32, #tpu.memory_space<vmem>>, %arg13: memref<16x1xf32, #tpu.memory_space<vmem>>, %arg14: memref<16x1xf32, #tpu.memory_space<vmem>>, %arg15: memref<2x16x448xbf16, #tpu.memory_space<vmem>>, %arg16: memref<1x2x256xf32, #tpu.memory_space<vmem>>) attributes {dimension_semantics = [#tpu.dimension_semantics<parallel>, #tpu.dimension_semantics<arbitrary>], iteration_bounds = array<i64: 2, 2>, scalar_prefetch = 0 : i64, scratch_operands = 0 : i64, tpu.core_type = #tpu.core_type<tc>, window_params = [{transform_indices = @transform_0, window_bounds = array<i64: 2, 16, 4>}, {pipeline_mode = #tpu.pipeline_mode<synchronous>, transform_indices = @transform_1, window_bounds = array<i64: 4, 64>}, {pipeline_mode = #tpu.pipeline_mode<synchronous>, transform_indices = @transform_2, window_bounds = array<i64: 1, 64>}, {transform_indices = @transform_3, window_bounds = array<i64: 16, 1>}, {transform_indices = @transform_4, window_bounds = array<i64: 16, 1>}, {pipeline_mode = #tpu.pipeline_mode<synchronous>, transform_indices = @transform_5, window_bounds = array<i64: 64, 128>}, {pipeline_mode = #tpu.pipeline_mode<synchronous>, transform_indices = @transform_6, window_bounds = array<i64: 1, 128>}, {transform_indices = @transform_7, window_bounds = array<i64: 16, 1>}, {transform_indices = @transform_8, window_bounds = array<i64: 16, 1>}, {pipeline_mode = #tpu.pipeline_mode<synchronous>, transform_indices = @transform_9, window_bounds = array<i64: 128, 256>}, {pipeline_mode = #tpu.pipeline_mode<synchronous>, transform_indices = @transform_10, window_bounds = array<i64: 1, 256>}, {transform_indices = @transform_11, window_bounds = array<i64: 16, 1>}, {transform_indices = @transform_12, window_bounds = array<i64: 16, 1>}, {transform_indices = @transform_13, window_bounds = array<i64: 2, 16, 448>}, {transform_indices = @transform_14, window_bounds = array<i64: 1, 2, 256>}]} {
    %c0_i32 = arith.constant 0 : i32
    %0 = arith.cmpi eq, %arg1, %c0_i32 : i32
    %1 = arith.extui %0 : i1 to i32
    %c0_i32_0 = arith.constant 0 : i32
    %2 = arith.cmpi ne, %1, %c0_i32_0 : i32
    scf.if %2 {
      %cst_64 = arith.constant 0xFF800000 : f32
      %126 = vector.broadcast %cst_64 : f32 to vector<1x2x256xf32>
      %c0_65 = arith.constant 0 : index
      %c0_66 = arith.constant 0 : index
      %c0_67 = arith.constant 0 : index
      %127 = vector.load %arg16[%c0_65, %c0_66, %c0_67] : memref<1x2x256xf32, #tpu.memory_space<vmem>>, vector<1x2x256xf32>
      tpu.vector_store %arg16[%c0_65, %c0_66, %c0_67], %126 {strides = array<i32>} : memref<1x2x256xf32, #tpu.memory_space<vmem>>, vector<1x2x256xf32>,
    } else {
    }
    %c0 = arith.constant 0 : index
    %c0_1 = arith.constant 0 : index
    %c0_2 = arith.constant 0 : index
    %3 = vector.load %arg2[%c0, %c0_1, %c0_2] : memref<2x16x4xf32, #tpu.memory_space<vmem>>, vector<2x16x4xf32>
    %c0_3 = arith.constant 0 : index
    %c0_4 = arith.constant 0 : index
    %4 = vector.load %arg3[%c0_3, %c0_4] : memref<4x64xbf16, #tpu.memory_space<vmem>>, vector<4x64xbf16>
    %5 = vector.shape_cast %3 : vector<2x16x4xf32> to vector<32x4xf32>
    %6 = arith.truncf %5 : vector<32x4xf32> to vector<32x4xbf16>
    %cst = arith.constant dense<0.000000e+00> : vector<32x64xf32>
    %7 = tpu.matmul %6, %4, %cst {dimension_numbers = #tpu.dot_dimension_numbers<[1], [0], [0], [1], [0, 0, 1, 1], [], []>} : vector<32x4xbf16>, vector<4x64xbf16>, vector<32x64xf32> -> vector<32x64xf32>
    %c0_5 = arith.constant 0 : index
    %c0_6 = arith.constant 0 : index
    %8 = vector.load %arg4[%c0_5, %c0_6] : memref<1x64xf32, #tpu.memory_space<vmem>>, vector<1x64xf32>
    %9 = vector.broadcast %8 : vector<1x64xf32> to vector<32x64xf32>
    %10 = arith.addf %7, %9 : vector<32x64xf32>
    %11 = vector.shape_cast %10 : vector<32x64xf32> to vector<2x16x64xf32>
    %c0_7 = arith.constant 0 : index
    %c0_8 = arith.constant 0 : index
    %12 = vector.load %arg5[%c0_7, %c0_8] : memref<16x1xf32, #tpu.memory_space<vmem>>, vector<16x1xf32>
    %c0_9 = arith.constant 0 : index
    %c0_10 = arith.constant 0 : index
    %13 = vector.load %arg6[%c0_9, %c0_10] : memref<16x1xf32, #tpu.memory_space<vmem>>, vector<16x1xf32>
    %cst_11 = arith.constant dense<0.000000e+00> : vector<16xf32>
    %14 = vector.multi_reduction <add>, %11, %cst_11 [0, 2] : vector<2x16x64xf32> to vector<16xf32>
    %15 = vector.shape_cast %14 : vector<16xf32> to vector<1x16x1xf32>
    %16 = arith.mulf %11, %11 : vector<2x16x64xf32>
    %cst_12 = arith.constant dense<0.000000e+00> : vector<16xf32>
    %17 = vector.multi_reduction <add>, %16, %cst_12 [0, 2] : vector<2x16x64xf32> to vector<16xf32>
    %18 = vector.shape_cast %17 : vector<16xf32> to vector<1x16x1xf32>
    %cst_13 = arith.constant 7.812500e-03 : f32
    %19 = vector.broadcast %cst_13 : f32 to vector<1x16x1xf32>
    %20 = arith.mulf %15, %19 : vector<1x16x1xf32>
    %cst_14 = arith.constant 7.812500e-03 : f32
    %21 = vector.broadcast %cst_14 : f32 to vector<1x16x1xf32>
    %22 = arith.mulf %18, %21 : vector<1x16x1xf32>
    %23 = arith.mulf %20, %20 : vector<1x16x1xf32>
    %24 = arith.subf %22, %23 : vector<1x16x1xf32>
    %cst_15 = arith.constant 0.000000e+00 : f32
    %25 = vector.broadcast %cst_15 : f32 to vector<1x16x1xf32>
    %26 = arith.maximumf %24, %25 : vector<1x16x1xf32>
    %27 = vector.shape_cast %12 : vector<16x1xf32> to vector<1x16x1xf32>
    %cst_16 = arith.constant 9.99999974E-6 : f32
    %28 = vector.broadcast %cst_16 : f32 to vector<1x16x1xf32>
    %29 = arith.addf %26, %28 : vector<1x16x1xf32>
    %30 = math.rsqrt %29 : vector<1x16x1xf32>
    %31 = arith.mulf %27, %30 : vector<1x16x1xf32>
    %32 = vector.shape_cast %13 : vector<16x1xf32> to vector<1x16x1xf32>
    %33 = arith.mulf %20, %31 : vector<1x16x1xf32>
    %34 = arith.subf %32, %33 : vector<1x16x1xf32>
    %35 = vector.broadcast %31 : vector<1x16x1xf32> to vector<2x16x64xf32>
    %36 = arith.mulf %11, %35 : vector<2x16x64xf32>
    %37 = vector.broadcast %34 : vector<1x16x1xf32> to vector<2x16x64xf32>
    %38 = arith.addf %36, %37 : vector<2x16x64xf32>
    %cst_17 = arith.constant 0.000000e+00 : f32
    %39 = vector.broadcast %cst_17 : f32 to vector<2x16x64xf32>
    %40 = arith.maximumf %38, %39 : vector<2x16x64xf32>
    %41 = arith.truncf %40 : vector<2x16x64xf32> to vector<2x16x64xbf16>
    %c0_18 = arith.constant 0 : index
    %c0_19 = arith.constant 0 : index
    %c384 = arith.constant 384 : index
    %42 = vector.load %arg15[%c0_18, %c0_19, %c384] : memref<2x16x448xbf16, #tpu.memory_space<vmem>>, vector<2x16x64xbf16>
    tpu.vector_store %arg15[%c0_18, %c0_19, %c384], %41 {strides = array<i32>} : memref<2x16x448xbf16, #tpu.memory_space<vmem>>, vector<2x16x64xbf16>,
    %c0_20 = arith.constant 0 : index
    %c0_21 = arith.constant 0 : index
    %43 = vector.load %arg7[%c0_20, %c0_21] : memref<64x128xbf16, #tpu.memory_space<vmem>>, vector<64x128xbf16>
    %44 = vector.shape_cast %40 : vector<2x16x64xf32> to vector<32x64xf32>
    %45 = arith.truncf %44 : vector<32x64xf32> to vector<32x64xbf16>
    %cst_22 = arith.constant dense<0.000000e+00> : vector<32x128xf32>
    %46 = tpu.matmul %45, %43, %cst_22 {dimension_numbers = #tpu.dot_dimension_numbers<[1], [0], [0], [1], [0, 0, 1, 1], [], []>} : vector<32x64xbf16>, vector<64x128xbf16>, vector<32x128xf32> -> vector<32x128xf32>
    %c0_23 = arith.constant 0 : index
    %c0_24 = arith.constant 0 : index
    %47 = vector.load %arg8[%c0_23, %c0_24] : memref<1x128xf32, #tpu.memory_space<vmem>>, vector<1x128xf32>
    %48 = vector.broadcast %47 : vector<1x128xf32> to vector<32x128xf32>
    %49 = arith.addf %46, %48 : vector<32x128xf32>
    %50 = vector.shape_cast %49 : vector<32x128xf32> to vector<2x16x128xf32>
    %c0_25 = arith.constant 0 : index
    %c0_26 = arith.constant 0 : index
    %51 = vector.load %arg9[%c0_25, %c0_26] : memref<16x1xf32, #tpu.memory_space<vmem>>, vector<16x1xf32>
    %c0_27 = arith.constant 0 : index
    %c0_28 = arith.constant 0 : index
    %52 = vector.load %arg10[%c0_27, %c0_28] : memref<16x1xf32, #tpu.memory_space<vmem>>, vector<16x1xf32>
    %cst_29 = arith.constant dense<0.000000e+00> : vector<16xf32>
    %53 = vector.multi_reduction <add>, %50, %cst_29 [0, 2] : vector<2x16x128xf32> to vector<16xf32>
    %54 = vector.shape_cast %53 : vector<16xf32> to vector<1x16x1xf32>
    %55 = arith.mulf %50, %50 : vector<2x16x128xf32>
    %cst_30 = arith.constant dense<0.000000e+00> : vector<16xf32>
    %56 = vector.multi_reduction <add>, %55, %cst_30 [0, 2] : vector<2x16x128xf32> to vector<16xf32>
    %57 = vector.shape_cast %56 : vector<16xf32> to vector<1x16x1xf32>
    %cst_31 = arith.constant 3.906250e-03 : f32
    %58 = vector.broadcast %cst_31 : f32 to vector<1x16x1xf32>
    %59 = arith.mulf %54, %58 : vector<1x16x1xf32>
    %cst_32 = arith.constant 3.906250e-03 : f32
    %60 = vector.broadcast %cst_32 : f32 to vector<1x16x1xf32>
    %61 = arith.mulf %57, %60 : vector<1x16x1xf32>
    %62 = arith.mulf %59, %59 : vector<1x16x1xf32>
    %63 = arith.subf %61, %62 : vector<1x16x1xf32>
    %cst_33 = arith.constant 0.000000e+00 : f32
    %64 = vector.broadcast %cst_33 : f32 to vector<1x16x1xf32>
    %65 = arith.maximumf %63, %64 : vector<1x16x1xf32>
    %66 = vector.shape_cast %51 : vector<16x1xf32> to vector<1x16x1xf32>
    %cst_34 = arith.constant 9.99999974E-6 : f32
    %67 = vector.broadcast %cst_34 : f32 to vector<1x16x1xf32>
    %68 = arith.addf %65, %67 : vector<1x16x1xf32>
    %69 = math.rsqrt %68 : vector<1x16x1xf32>
    %70 = arith.mulf %66, %69 : vector<1x16x1xf32>
    %71 = vector.shape_cast %52 : vector<16x1xf32> to vector<1x16x1xf32>
    %72 = arith.mulf %59, %70 : vector<1x16x1xf32>
    %73 = arith.subf %71, %72 : vector<1x16x1xf32>
    %74 = vector.broadcast %70 : vector<1x16x1xf32> to vector<2x16x128xf32>
    %75 = arith.mulf %50, %74 : vector<2x16x128xf32>
    %76 = vector.broadcast %73 : vector<1x16x1xf32> to vector<2x16x128xf32>
    %77 = arith.addf %75, %76 : vector<2x16x128xf32>
    %cst_35 = arith.constant 0.000000e+00 : f32
    %78 = vector.broadcast %cst_35 : f32 to vector<2x16x128xf32>
    %79 = arith.maximumf %77, %78 : vector<2x16x128xf32>
    %80 = arith.truncf %79 : vector<2x16x128xf32> to vector<2x16x128xbf16>
    %c0_36 = arith.constant 0 : index
    %c0_37 = arith.constant 0 : index
    %c0_38 = arith.constant 0 : index
    %81 = vector.load %arg15[%c0_36, %c0_37, %c0_38] : memref<2x16x448xbf16, #tpu.memory_space<vmem>>, vector<2x16x128xbf16>
    tpu.vector_store %arg15[%c0_36, %c0_37, %c0_38], %80 {strides = array<i32>} : memref<2x16x448xbf16, #tpu.memory_space<vmem>>, vector<2x16x128xbf16>,
    %c0_39 = arith.constant 0 : index
    %c0_40 = arith.constant 0 : index
    %82 = vector.load %arg11[%c0_39, %c0_40] : memref<128x256xbf16, #tpu.memory_space<vmem>>, vector<128x256xbf16>
    %83 = vector.shape_cast %79 : vector<2x16x128xf32> to vector<32x128xf32>
    %84 = arith.truncf %83 : vector<32x128xf32> to vector<32x128xbf16>
    %cst_41 = arith.constant dense<0.000000e+00> : vector<32x256xf32>
    %85 = tpu.matmul %84, %82, %cst_41 {dimension_numbers = #tpu.dot_dimension_numbers<[1], [0], [0], [1], [0, 0, 1, 1], [], []>} : vector<32x128xbf16>, vector<128x256xbf16>, vector<32x256xf32> -> vector<32x256xf32>
    %c0_42 = arith.constant 0 : index
    %c0_43 = arith.constant 0 : index
    %86 = vector.load %arg12[%c0_42, %c0_43] : memref<1x256xf32, #tpu.memory_space<vmem>>, vector<1x256xf32>
    %87 = vector.broadcast %86 : vector<1x256xf32> to vector<32x256xf32>
    %88 = arith.addf %85, %87 : vector<32x256xf32>
    %89 = vector.shape_cast %88 : vector<32x256xf32> to vector<2x16x256xf32>
    %c0_44 = arith.constant 0 : index
    %c0_45 = arith.constant 0 : index
    %90 = vector.load %arg13[%c0_44, %c0_45] : memref<16x1xf32, #tpu.memory_space<vmem>>, vector<16x1xf32>
    %c0_46 = arith.constant 0 : index
    %c0_47 = arith.constant 0 : index
    %91 = vector.load %arg14[%c0_46, %c0_47] : memref<16x1xf32, #tpu.memory_space<vmem>>, vector<16x1xf32>
    %cst_48 = arith.constant dense<0.000000e+00> : vector<16xf32>
    %92 = vector.multi_reduction <add>, %89, %cst_48 [0, 2] : vector<2x16x256xf32> to vector<16xf32>
    %93 = vector.shape_cast %92 : vector<16xf32> to vector<1x16x1xf32>
    %94 = arith.mulf %89, %89 : vector<2x16x256xf32>
    %cst_49 = arith.constant dense<0.000000e+00> : vector<16xf32>
    %95 = vector.multi_reduction <add>, %94, %cst_49 [0, 2] : vector<2x16x256xf32> to vector<16xf32>
    %96 = vector.shape_cast %95 : vector<16xf32> to vector<1x16x1xf32>
    %cst_50 = arith.constant 0.001953125 : f32
    %97 = vector.broadcast %cst_50 : f32 to vector<1x16x1xf32>
    %98 = arith.mulf %93, %97 : vector<1x16x1xf32>
    %cst_51 = arith.constant 0.001953125 : f32
    %99 = vector.broadcast %cst_51 : f32 to vector<1x16x1xf32>
    %100 = arith.mulf %96, %99 : vector<1x16x1xf32>
    %101 = arith.mulf %98, %98 : vector<1x16x1xf32>
    %102 = arith.subf %100, %101 : vector<1x16x1xf32>
    %cst_52 = arith.constant 0.000000e+00 : f32
    %103 = vector.broadcast %cst_52 : f32 to vector<1x16x1xf32>
    %104 = arith.maximumf %102, %103 : vector<1x16x1xf32>
    %105 = vector.shape_cast %90 : vector<16x1xf32> to vector<1x16x1xf32>
    %cst_53 = arith.constant 9.99999974E-6 : f32
    %106 = vector.broadcast %cst_53 : f32 to vector<1x16x1xf32>
    %107 = arith.addf %104, %106 : vector<1x16x1xf32>
    %108 = math.rsqrt %107 : vector<1x16x1xf32>
    %109 = arith.mulf %105, %108 : vector<1x16x1xf32>
    %110 = vector.shape_cast %91 : vector<16x1xf32> to vector<1x16x1xf32>
    %111 = arith.mulf %98, %109 : vector<1x16x1xf32>
    %112 = arith.subf %110, %111 : vector<1x16x1xf32>
    %113 = vector.broadcast %109 : vector<1x16x1xf32> to vector<2x16x256xf32>
    %114 = arith.mulf %89, %113 : vector<2x16x256xf32>
    %115 = vector.broadcast %112 : vector<1x16x1xf32> to vector<2x16x256xf32>
    %116 = arith.addf %114, %115 : vector<2x16x256xf32>
    %cst_54 = arith.constant 0.000000e+00 : f32
    %117 = vector.broadcast %cst_54 : f32 to vector<2x16x256xf32>
    %118 = arith.maximumf %116, %117 : vector<2x16x256xf32>
    %119 = arith.truncf %118 : vector<2x16x256xf32> to vector<2x16x256xbf16>
    %c0_55 = arith.constant 0 : index
    %c0_56 = arith.constant 0 : index
    %c128 = arith.constant 128 : index
    %120 = vector.load %arg15[%c0_55, %c0_56, %c128] : memref<2x16x448xbf16, #tpu.memory_space<vmem>>, vector<2x16x256xbf16>
    tpu.vector_store %arg15[%c0_55, %c0_56, %c128], %119 {strides = array<i32>} : memref<2x16x448xbf16, #tpu.memory_space<vmem>>, vector<2x16x256xbf16>,
    %c0_57 = arith.constant 0 : index
    %c0_58 = arith.constant 0 : index
    %c0_59 = arith.constant 0 : index
    %121 = vector.load %arg16[%c0_57, %c0_58, %c0_59] : memref<1x2x256xf32, #tpu.memory_space<vmem>>, vector<1x2x256xf32>
    %cst_60 = arith.constant dense<0xFF800000> : vector<2x256xf32>
    %122 = vector.multi_reduction <maximumf>, %118, %cst_60 [1] : vector<2x16x256xf32> to vector<2x256xf32>
    %123 = vector.shape_cast %122 : vector<2x256xf32> to vector<1x2x256xf32>
    %124 = arith.maximumf %121, %123 : vector<1x2x256xf32>
    %c0_61 = arith.constant 0 : index
    %c0_62 = arith.constant 0 : index
    %c0_63 = arith.constant 0 : index
    %125 = vector.load %arg16[%c0_61, %c0_62, %c0_63] : memref<1x2x256xf32, #tpu.memory_space<vmem>>, vector<1x2x256xf32>
    tpu.vector_store %arg16[%c0_61, %c0_62, %c0_63], %124 {strides = array<i32>} : memref<1x2x256xf32, #tpu.memory_space<vmem>>, vector<1x2x256xf32>,
    return
  }
  func.func @transform_0(%arg0: i32, %arg1: i32) -> (i32, i32, i32) {
    %c2_i32 = arith.constant 2 : i32
    %0 = arith.muli %arg0, %c2_i32 : i32
    %1 = arith.addi %0, %arg1 : i32
    %c0_i32 = arith.constant 0 : i32
    %c0_i32_0 = arith.constant 0 : i32
    %c0_i32_1 = arith.constant 0 : i32
    return %c0_i32, %1, %c0_i32_0 : i32, i32, i32
  }
  func.func @transform_1(%arg0: i32, %arg1: i32) -> (i32, i32) {
    %c0_i32 = arith.constant 0 : i32
    %c0_i32_0 = arith.constant 0 : i32
    %c0_i32_1 = arith.constant 0 : i32
    return %c0_i32, %c0_i32_0 : i32, i32
  }
  func.func @transform_2(%arg0: i32, %arg1: i32) -> (i32, i32) {
    %c0_i32 = arith.constant 0 : i32
    %c0_i32_0 = arith.constant 0 : i32
    %c0_i32_1 = arith.constant 0 : i32
    return %c0_i32, %c0_i32_0 : i32, i32
  }
  func.func @transform_3(%arg0: i32, %arg1: i32) -> (i32, i32) {
    %c2_i32 = arith.constant 2 : i32
    %0 = arith.muli %arg0, %c2_i32 : i32
    %1 = arith.addi %0, %arg1 : i32
    %c0_i32 = arith.constant 0 : i32
    %c0_i32_0 = arith.constant 0 : i32
    return %1, %c0_i32 : i32, i32
  }
  func.func @transform_4(%arg0: i32, %arg1: i32) -> (i32, i32) {
    %c2_i32 = arith.constant 2 : i32
    %0 = arith.muli %arg0, %c2_i32 : i32
    %1 = arith.addi %0, %arg1 : i32
    %c0_i32 = arith.constant 0 : i32
    %c0_i32_0 = arith.constant 0 : i32
    return %1, %c0_i32 : i32, i32
  }
  func.func @transform_5(%arg0: i32, %arg1: i32) -> (i32, i32) {
    %c0_i32 = arith.constant 0 : i32
    %c0_i32_0 = arith.constant 0 : i32
    %c0_i32_1 = arith.constant 0 : i32
    return %c0_i32, %c0_i32_0 : i32, i32
  }
  func.func @transform_6(%arg0: i32, %arg1: i32) -> (i32, i32) {
    %c0_i32 = arith.constant 0 : i32
    %c0_i32_0 = arith.constant 0 : i32
    %c0_i32_1 = arith.constant 0 : i32
    return %c0_i32, %c0_i32_0 : i32, i32
  }
  func.func @transform_7(%arg0: i32, %arg1: i32) -> (i32, i32) {
    %c2_i32 = arith.constant 2 : i32
    %0 = arith.muli %arg0, %c2_i32 : i32
    %1 = arith.addi %0, %arg1 : i32
    %c0_i32 = arith.constant 0 : i32
    %c0_i32_0 = arith.constant 0 : i32
    return %1, %c0_i32 : i32, i32
  }
  func.func @transform_8(%arg0: i32, %arg1: i32) -> (i32, i32) {
    %c2_i32 = arith.constant 2 : i32
    %0 = arith.muli %arg0, %c2_i32 : i32
    %1 = arith.addi %0, %arg1 : i32
    %c0_i32 = arith.constant 0 : i32
    %c0_i32_0 = arith.constant 0 : i32
    return %1, %c0_i32 : i32, i32
  }
  func.func @transform_9(%arg0: i32, %arg1: i32) -> (i32, i32) {
    %c0_i32 = arith.constant 0 : i32
    %c0_i32_0 = arith.constant 0 : i32
    %c0_i32_1 = arith.constant 0 : i32
    return %c0_i32, %c0_i32_0 : i32, i32
  }
  func.func @transform_10(%arg0: i32, %arg1: i32) -> (i32, i32) {
    %c0_i32 = arith.constant 0 : i32
    %c0_i32_0 = arith.constant 0 : i32
    %c0_i32_1 = arith.constant 0 : i32
    return %c0_i32, %c0_i32_0 : i32, i32
  }
  func.func @transform_11(%arg0: i32, %arg1: i32) -> (i32, i32) {
    %c2_i32 = arith.constant 2 : i32
    %0 = arith.muli %arg0, %c2_i32 : i32
    %1 = arith.addi %0, %arg1 : i32
    %c0_i32 = arith.constant 0 : i32
    %c0_i32_0 = arith.constant 0 : i32
    return %1, %c0_i32 : i32, i32
  }
  func.func @transform_12(%arg0: i32, %arg1: i32) -> (i32, i32) {
    %c2_i32 = arith.constant 2 : i32
    %0 = arith.muli %arg0, %c2_i32 : i32
    %1 = arith.addi %0, %arg1 : i32
    %c0_i32 = arith.constant 0 : i32
    %c0_i32_0 = arith.constant 0 : i32
    return %1, %c0_i32 : i32, i32
  }
  func.func @transform_13(%arg0: i32, %arg1: i32) -> (i32, i32, i32) {
    %c2_i32 = arith.constant 2 : i32
    %0 = arith.muli %arg0, %c2_i32 : i32
    %1 = arith.addi %0, %arg1 : i32
    %c0_i32 = arith.constant 0 : i32
    %c0_i32_0 = arith.constant 0 : i32
    %c0_i32_1 = arith.constant 0 : i32
    return %c0_i32, %1, %c0_i32_0 : i32, i32, i32
  }
  func.func @transform_14(%arg0: i32, %arg1: i32) -> (i32, i32, i32) {
    %c0_i32 = arith.constant 0 : i32
    %c0_i32_0 = arith.constant 0 : i32
    %c0_i32_1 = arith.constant 0 : i32
    return %arg0, %c0_i32, %c0_i32_0 : i32, i32, i32
  }
}

module attributes {stable_mosaic.version = 11 : i64} {
  func.func @_enc2_kernel(%arg0: i32, %arg1: i32, %arg2: memref<2x512xf32, #tpu.memory_space<vmem>>, %arg3: memref<2x16x448xbf16, #tpu.memory_space<vmem>>, %arg4: memref<448x512xbf16, #tpu.memory_space<vmem>>, %arg5: memref<16x1xf32, #tpu.memory_space<vmem>>, %arg6: memref<16x1xf32, #tpu.memory_space<vmem>>, %arg7: memref<512x512xbf16, #tpu.memory_space<vmem>>, %arg8: memref<1x512xf32, #tpu.memory_space<vmem>>, %arg9: memref<16x1xf32, #tpu.memory_space<vmem>>, %arg10: memref<16x1xf32, #tpu.memory_space<vmem>>, %arg11: memref<1x2x512xf32, #tpu.memory_space<vmem>>) attributes {dimension_semantics = [#tpu.dimension_semantics<parallel>, #tpu.dimension_semantics<arbitrary>], iteration_bounds = array<i64: 2, 2>, scalar_prefetch = 0 : i64, scratch_operands = 0 : i64, tpu.core_type = #tpu.core_type<tc>, window_params = [{pipeline_mode = #tpu.pipeline_mode<synchronous>, transform_indices = @transform_0, window_bounds = array<i64: 2, 512>}, {transform_indices = @transform_1, window_bounds = array<i64: 2, 16, 448>}, {pipeline_mode = #tpu.pipeline_mode<synchronous>, transform_indices = @transform_2, window_bounds = array<i64: 448, 512>}, {transform_indices = @transform_3, window_bounds = array<i64: 16, 1>}, {transform_indices = @transform_4, window_bounds = array<i64: 16, 1>}, {pipeline_mode = #tpu.pipeline_mode<synchronous>, transform_indices = @transform_5, window_bounds = array<i64: 512, 512>}, {pipeline_mode = #tpu.pipeline_mode<synchronous>, transform_indices = @transform_6, window_bounds = array<i64: 1, 512>}, {transform_indices = @transform_7, window_bounds = array<i64: 16, 1>}, {transform_indices = @transform_8, window_bounds = array<i64: 16, 1>}, {transform_indices = @transform_9, window_bounds = array<i64: 1, 2, 512>}]} {
    %c0_i32 = arith.constant 0 : i32
    %0 = arith.cmpi eq, %arg1, %c0_i32 : i32
    %1 = arith.extui %0 : i1 to i32
    %c0_i32_0 = arith.constant 0 : i32
    %2 = arith.cmpi ne, %1, %c0_i32_0 : i32
    scf.if %2 {
      %cst_41 = arith.constant 0xFF800000 : f32
      %83 = vector.broadcast %cst_41 : f32 to vector<1x2x512xf32>
      %c0_42 = arith.constant 0 : index
      %c0_43 = arith.constant 0 : index
      %c0_44 = arith.constant 0 : index
      %84 = vector.load %arg11[%c0_42, %c0_43, %c0_44] : memref<1x2x512xf32, #tpu.memory_space<vmem>>, vector<1x2x512xf32>
      tpu.vector_store %arg11[%c0_42, %c0_43, %c0_44], %83 {strides = array<i32>} : memref<1x2x512xf32, #tpu.memory_space<vmem>>, vector<1x2x512xf32>,
    } else {
    }
    %c0 = arith.constant 0 : index
    %c0_1 = arith.constant 0 : index
    %c0_2 = arith.constant 0 : index
    %3 = vector.load %arg3[%c0, %c0_1, %c0_2] : memref<2x16x448xbf16, #tpu.memory_space<vmem>>, vector<2x16x448xbf16>
    %4 = vector.shape_cast %3 : vector<2x16x448xbf16> to vector<32x448xbf16>
    %c0_3 = arith.constant 0 : index
    %c0_4 = arith.constant 0 : index
    %5 = vector.load %arg4[%c0_3, %c0_4] : memref<448x512xbf16, #tpu.memory_space<vmem>>, vector<448x512xbf16>
    %cst = arith.constant dense<0.000000e+00> : vector<32x512xf32>
    %6 = tpu.matmul %4, %5, %cst {dimension_numbers = #tpu.dot_dimension_numbers<[1], [0], [0], [1], [0, 0, 1, 1], [], []>} : vector<32x448xbf16>, vector<448x512xbf16>, vector<32x512xf32> -> vector<32x512xf32>
    %7 = vector.shape_cast %6 : vector<32x512xf32> to vector<2x16x512xf32>
    %c0_5 = arith.constant 0 : index
    %c0_6 = arith.constant 0 : index
    %8 = vector.load %arg2[%c0_5, %c0_6] : memref<2x512xf32, #tpu.memory_space<vmem>>, vector<2x512xf32>
    %9 = vector.shape_cast %8 : vector<2x512xf32> to vector<2x1x512xf32>
    %10 = vector.broadcast %9 : vector<2x1x512xf32> to vector<2x16x512xf32>
    %11 = arith.addf %7, %10 : vector<2x16x512xf32>
    %c0_7 = arith.constant 0 : index
    %c0_8 = arith.constant 0 : index
    %12 = vector.load %arg5[%c0_7, %c0_8] : memref<16x1xf32, #tpu.memory_space<vmem>>, vector<16x1xf32>
    %c0_9 = arith.constant 0 : index
    %c0_10 = arith.constant 0 : index
    %13 = vector.load %arg6[%c0_9, %c0_10] : memref<16x1xf32, #tpu.memory_space<vmem>>, vector<16x1xf32>
    %cst_11 = arith.constant dense<0.000000e+00> : vector<16xf32>
    %14 = vector.multi_reduction <add>, %11, %cst_11 [0, 2] : vector<2x16x512xf32> to vector<16xf32>
    %15 = vector.shape_cast %14 : vector<16xf32> to vector<1x16x1xf32>
    %16 = arith.mulf %11, %11 : vector<2x16x512xf32>
    %cst_12 = arith.constant dense<0.000000e+00> : vector<16xf32>
    %17 = vector.multi_reduction <add>, %16, %cst_12 [0, 2] : vector<2x16x512xf32> to vector<16xf32>
    %18 = vector.shape_cast %17 : vector<16xf32> to vector<1x16x1xf32>
    %cst_13 = arith.constant 9.765625E-4 : f32
    %19 = vector.broadcast %cst_13 : f32 to vector<1x16x1xf32>
    %20 = arith.mulf %15, %19 : vector<1x16x1xf32>
    %cst_14 = arith.constant 9.765625E-4 : f32
    %21 = vector.broadcast %cst_14 : f32 to vector<1x16x1xf32>
    %22 = arith.mulf %18, %21 : vector<1x16x1xf32>
    %23 = arith.mulf %20, %20 : vector<1x16x1xf32>
    %24 = arith.subf %22, %23 : vector<1x16x1xf32>
    %cst_15 = arith.constant 0.000000e+00 : f32
    %25 = vector.broadcast %cst_15 : f32 to vector<1x16x1xf32>
    %26 = arith.maximumf %24, %25 : vector<1x16x1xf32>
    %27 = vector.shape_cast %12 : vector<16x1xf32> to vector<1x16x1xf32>
    %cst_16 = arith.constant 9.99999974E-6 : f32
    %28 = vector.broadcast %cst_16 : f32 to vector<1x16x1xf32>
    %29 = arith.addf %26, %28 : vector<1x16x1xf32>
    %30 = math.rsqrt %29 : vector<1x16x1xf32>
    %31 = arith.mulf %27, %30 : vector<1x16x1xf32>
    %32 = vector.shape_cast %13 : vector<16x1xf32> to vector<1x16x1xf32>
    %33 = arith.mulf %20, %31 : vector<1x16x1xf32>
    %34 = arith.subf %32, %33 : vector<1x16x1xf32>
    %35 = vector.broadcast %31 : vector<1x16x1xf32> to vector<2x16x512xf32>
    %36 = arith.mulf %11, %35 : vector<2x16x512xf32>
    %37 = vector.broadcast %34 : vector<1x16x1xf32> to vector<2x16x512xf32>
    %38 = arith.addf %36, %37 : vector<2x16x512xf32>
    %cst_17 = arith.constant 0.000000e+00 : f32
    %39 = vector.broadcast %cst_17 : f32 to vector<2x16x512xf32>
    %40 = arith.maximumf %38, %39 : vector<2x16x512xf32>
    %c0_18 = arith.constant 0 : index
    %c0_19 = arith.constant 0 : index
    %41 = vector.load %arg7[%c0_18, %c0_19] : memref<512x512xbf16, #tpu.memory_space<vmem>>, vector<512x512xbf16>
    %42 = vector.shape_cast %40 : vector<2x16x512xf32> to vector<32x512xf32>
    %43 = arith.truncf %42 : vector<32x512xf32> to vector<32x512xbf16>
    %cst_20 = arith.constant dense<0.000000e+00> : vector<32x512xf32>
    %44 = tpu.matmul %43, %41, %cst_20 {dimension_numbers = #tpu.dot_dimension_numbers<[1], [0], [0], [1], [0, 0, 1, 1], [], []>} : vector<32x512xbf16>, vector<512x512xbf16>, vector<32x512xf32> -> vector<32x512xf32>
    %c0_21 = arith.constant 0 : index
    %c0_22 = arith.constant 0 : index
    %45 = vector.load %arg8[%c0_21, %c0_22] : memref<1x512xf32, #tpu.memory_space<vmem>>, vector<1x512xf32>
    %46 = vector.broadcast %45 : vector<1x512xf32> to vector<32x512xf32>
    %47 = arith.addf %44, %46 : vector<32x512xf32>
    %48 = vector.shape_cast %47 : vector<32x512xf32> to vector<2x16x512xf32>
    %c0_23 = arith.constant 0 : index
    %c0_24 = arith.constant 0 : index
    %49 = vector.load %arg9[%c0_23, %c0_24] : memref<16x1xf32, #tpu.memory_space<vmem>>, vector<16x1xf32>
    %c0_25 = arith.constant 0 : index
    %c0_26 = arith.constant 0 : index
    %50 = vector.load %arg10[%c0_25, %c0_26] : memref<16x1xf32, #tpu.memory_space<vmem>>, vector<16x1xf32>
    %cst_27 = arith.constant dense<0.000000e+00> : vector<16xf32>
    %51 = vector.multi_reduction <add>, %48, %cst_27 [0, 2] : vector<2x16x512xf32> to vector<16xf32>
    %52 = vector.shape_cast %51 : vector<16xf32> to vector<1x16x1xf32>
    %53 = arith.mulf %48, %48 : vector<2x16x512xf32>
    %cst_28 = arith.constant dense<0.000000e+00> : vector<16xf32>
    %54 = vector.multi_reduction <add>, %53, %cst_28 [0, 2] : vector<2x16x512xf32> to vector<16xf32>
    %55 = vector.shape_cast %54 : vector<16xf32> to vector<1x16x1xf32>
    %cst_29 = arith.constant 9.765625E-4 : f32
    %56 = vector.broadcast %cst_29 : f32 to vector<1x16x1xf32>
    %57 = arith.mulf %52, %56 : vector<1x16x1xf32>
    %cst_30 = arith.constant 9.765625E-4 : f32
    %58 = vector.broadcast %cst_30 : f32 to vector<1x16x1xf32>
    %59 = arith.mulf %55, %58 : vector<1x16x1xf32>
    %60 = arith.mulf %57, %57 : vector<1x16x1xf32>
    %61 = arith.subf %59, %60 : vector<1x16x1xf32>
    %cst_31 = arith.constant 0.000000e+00 : f32
    %62 = vector.broadcast %cst_31 : f32 to vector<1x16x1xf32>
    %63 = arith.maximumf %61, %62 : vector<1x16x1xf32>
    %64 = vector.shape_cast %49 : vector<16x1xf32> to vector<1x16x1xf32>
    %cst_32 = arith.constant 9.99999974E-6 : f32
    %65 = vector.broadcast %cst_32 : f32 to vector<1x16x1xf32>
    %66 = arith.addf %63, %65 : vector<1x16x1xf32>
    %67 = math.rsqrt %66 : vector<1x16x1xf32>
    %68 = arith.mulf %64, %67 : vector<1x16x1xf32>
    %69 = vector.shape_cast %50 : vector<16x1xf32> to vector<1x16x1xf32>
    %70 = arith.mulf %57, %68 : vector<1x16x1xf32>
    %71 = arith.subf %69, %70 : vector<1x16x1xf32>
    %72 = vector.broadcast %68 : vector<1x16x1xf32> to vector<2x16x512xf32>
    %73 = arith.mulf %48, %72 : vector<2x16x512xf32>
    %74 = vector.broadcast %71 : vector<1x16x1xf32> to vector<2x16x512xf32>
    %75 = arith.addf %73, %74 : vector<2x16x512xf32>
    %cst_33 = arith.constant 0.000000e+00 : f32
    %76 = vector.broadcast %cst_33 : f32 to vector<2x16x512xf32>
    %77 = arith.maximumf %75, %76 : vector<2x16x512xf32>
    %c0_34 = arith.constant 0 : index
    %c0_35 = arith.constant 0 : index
    %c0_36 = arith.constant 0 : index
    %78 = vector.load %arg11[%c0_34, %c0_35, %c0_36] : memref<1x2x512xf32, #tpu.memory_space<vmem>>, vector<1x2x512xf32>
    %cst_37 = arith.constant dense<0xFF800000> : vector<2x512xf32>
    %79 = vector.multi_reduction <maximumf>, %77, %cst_37 [1] : vector<2x16x512xf32> to vector<2x512xf32>
    %80 = vector.shape_cast %79 : vector<2x512xf32> to vector<1x2x512xf32>
    %81 = arith.maximumf %78, %80 : vector<1x2x512xf32>
    %c0_38 = arith.constant 0 : index
    %c0_39 = arith.constant 0 : index
    %c0_40 = arith.constant 0 : index
    %82 = vector.load %arg11[%c0_38, %c0_39, %c0_40] : memref<1x2x512xf32, #tpu.memory_space<vmem>>, vector<1x2x512xf32>
    tpu.vector_store %arg11[%c0_38, %c0_39, %c0_40], %81 {strides = array<i32>} : memref<1x2x512xf32, #tpu.memory_space<vmem>>, vector<1x2x512xf32>,
    return
  }
  func.func @transform_0(%arg0: i32, %arg1: i32) -> (i32, i32) {
    %c0_i32 = arith.constant 0 : i32
    %c0_i32_0 = arith.constant 0 : i32
    %c0_i32_1 = arith.constant 0 : i32
    return %c0_i32, %c0_i32_0 : i32, i32
  }
  func.func @transform_1(%arg0: i32, %arg1: i32) -> (i32, i32, i32) {
    %c2_i32 = arith.constant 2 : i32
    %0 = arith.muli %arg0, %c2_i32 : i32
    %1 = arith.addi %0, %arg1 : i32
    %c0_i32 = arith.constant 0 : i32
    %c0_i32_0 = arith.constant 0 : i32
    %c0_i32_1 = arith.constant 0 : i32
    return %c0_i32, %1, %c0_i32_0 : i32, i32, i32
  }
  func.func @transform_2(%arg0: i32, %arg1: i32) -> (i32, i32) {
    %c0_i32 = arith.constant 0 : i32
    %c0_i32_0 = arith.constant 0 : i32
    %c0_i32_1 = arith.constant 0 : i32
    return %c0_i32, %c0_i32_0 : i32, i32
  }
  func.func @transform_3(%arg0: i32, %arg1: i32) -> (i32, i32) {
    %c2_i32 = arith.constant 2 : i32
    %0 = arith.muli %arg0, %c2_i32 : i32
    %1 = arith.addi %0, %arg1 : i32
    %c0_i32 = arith.constant 0 : i32
    %c0_i32_0 = arith.constant 0 : i32
    return %1, %c0_i32 : i32, i32
  }
  func.func @transform_4(%arg0: i32, %arg1: i32) -> (i32, i32) {
    %c2_i32 = arith.constant 2 : i32
    %0 = arith.muli %arg0, %c2_i32 : i32
    %1 = arith.addi %0, %arg1 : i32
    %c0_i32 = arith.constant 0 : i32
    %c0_i32_0 = arith.constant 0 : i32
    return %1, %c0_i32 : i32, i32
  }
  func.func @transform_5(%arg0: i32, %arg1: i32) -> (i32, i32) {
    %c0_i32 = arith.constant 0 : i32
    %c0_i32_0 = arith.constant 0 : i32
    %c0_i32_1 = arith.constant 0 : i32
    return %c0_i32, %c0_i32_0 : i32, i32
  }
  func.func @transform_6(%arg0: i32, %arg1: i32) -> (i32, i32) {
    %c0_i32 = arith.constant 0 : i32
    %c0_i32_0 = arith.constant 0 : i32
    %c0_i32_1 = arith.constant 0 : i32
    return %c0_i32, %c0_i32_0 : i32, i32
  }
  func.func @transform_7(%arg0: i32, %arg1: i32) -> (i32, i32) {
    %c2_i32 = arith.constant 2 : i32
    %0 = arith.muli %arg0, %c2_i32 : i32
    %1 = arith.addi %0, %arg1 : i32
    %c0_i32 = arith.constant 0 : i32
    %c0_i32_0 = arith.constant 0 : i32
    return %1, %c0_i32 : i32, i32
  }
  func.func @transform_8(%arg0: i32, %arg1: i32) -> (i32, i32) {
    %c2_i32 = arith.constant 2 : i32
    %0 = arith.muli %arg0, %c2_i32 : i32
    %1 = arith.addi %0, %arg1 : i32
    %c0_i32 = arith.constant 0 : i32
    %c0_i32_0 = arith.constant 0 : i32
    return %1, %c0_i32 : i32, i32
  }
  func.func @transform_9(%arg0: i32, %arg1: i32) -> (i32, i32, i32) {
    %c0_i32 = arith.constant 0 : i32
    %c0_i32_0 = arith.constant 0 : i32
    %c0_i32_1 = arith.constant 0 : i32
    return %arg0, %c0_i32, %c0_i32_0 : i32, i32, i32
  }
}

module attributes {stable_mosaic.version = 11 : i64} {
  func.func @_dec_kernel(%arg0: i32, %arg1: memref<2x256xf32, #tpu.memory_space<vmem>>, %arg2: memref<2x256xf32, #tpu.memory_space<vmem>>, %arg3: memref<16x256xf32, #tpu.memory_space<vmem>>, %arg4: memref<16x1xf32, #tpu.memory_space<vmem>>, %arg5: memref<16x1xf32, #tpu.memory_space<vmem>>, %arg6: memref<256x128xbf16, #tpu.memory_space<vmem>>, %arg7: memref<1x128xf32, #tpu.memory_space<vmem>>, %arg8: memref<16x1xf32, #tpu.memory_space<vmem>>, %arg9: memref<16x1xf32, #tpu.memory_space<vmem>>, %arg10: memref<128x64xbf16, #tpu.memory_space<vmem>>, %arg11: memref<1x64xf32, #tpu.memory_space<vmem>>, %arg12: memref<16x1xf32, #tpu.memory_space<vmem>>, %arg13: memref<16x1xf32, #tpu.memory_space<vmem>>, %arg14: memref<64x32xbf16, #tpu.memory_space<vmem>>, %arg15: memref<1x32xf32, #tpu.memory_space<vmem>>, %arg16: memref<16x1xf32, #tpu.memory_space<vmem>>, %arg17: memref<16x1xf32, #tpu.memory_space<vmem>>, %arg18: memref<32x4xbf16, #tpu.memory_space<vmem>>, %arg19: memref<1x4xf32, #tpu.memory_space<vmem>>, %arg20: memref<16x1xf32, #tpu.memory_space<vmem>>, %arg21: memref<16x1xf32, #tpu.memory_space<vmem>>, %arg22: memref<4x256xbf16, #tpu.memory_space<vmem>>, %arg23: memref<16x1xf32, #tpu.memory_space<vmem>>, %arg24: memref<16x1xf32, #tpu.memory_space<vmem>>, %arg25: memref<256x128xbf16, #tpu.memory_space<vmem>>, %arg26: memref<1x128xf32, #tpu.memory_space<vmem>>, %arg27: memref<16x1xf32, #tpu.memory_space<vmem>>, %arg28: memref<16x1xf32, #tpu.memory_space<vmem>>, %arg29: memref<128x64xbf16, #tpu.memory_space<vmem>>, %arg30: memref<1x64xf32, #tpu.memory_space<vmem>>, %arg31: memref<16x1xf32, #tpu.memory_space<vmem>>, %arg32: memref<16x1xf32, #tpu.memory_space<vmem>>, %arg33: memref<64x32xbf16, #tpu.memory_space<vmem>>, %arg34: memref<1x32xf32, #tpu.memory_space<vmem>>, %arg35: memref<16x1xf32, #tpu.memory_space<vmem>>, %arg36: memref<16x1xf32, #tpu.memory_space<vmem>>, %arg37: memref<32x4xbf16, #tpu.memory_space<vmem>>, %arg38: memref<1x4xf32, #tpu.memory_space<vmem>>, %arg39: memref<16x1xf32, #tpu.memory_space<vmem>>, %arg40: memref<16x1xf32, #tpu.memory_space<vmem>>, %arg41: memref<2x16x4xf32, #tpu.memory_space<vmem>>) attributes {dimension_semantics = [#tpu.dimension_semantics<parallel>], iteration_bounds = array<i64: 4>, scalar_prefetch = 0 : i64, scratch_operands = 0 : i64, tpu.core_type = #tpu.core_type<tc>, window_params = [{pipeline_mode = #tpu.pipeline_mode<synchronous>, transform_indices = @transform_0, window_bounds = array<i64: 2, 256>}, {pipeline_mode = #tpu.pipeline_mode<synchronous>, transform_indices = @transform_1, window_bounds = array<i64: 2, 256>}, {transform_indices = @transform_2, window_bounds = array<i64: 16, 256>}, {transform_indices = @transform_3, window_bounds = array<i64: 16, 1>}, {transform_indices = @transform_4, window_bounds = array<i64: 16, 1>}, {pipeline_mode = #tpu.pipeline_mode<synchronous>, transform_indices = @transform_5, window_bounds = array<i64: 256, 128>}, {pipeline_mode = #tpu.pipeline_mode<synchronous>, transform_indices = @transform_6, window_bounds = array<i64: 1, 128>}, {transform_indices = @transform_7, window_bounds = array<i64: 16, 1>}, {transform_indices = @transform_8, window_bounds = array<i64: 16, 1>}, {pipeline_mode = #tpu.pipeline_mode<synchronous>, transform_indices = @transform_9, window_bounds = array<i64: 128, 64>}, {pipeline_mode = #tpu.pipeline_mode<synchronous>, transform_indices = @transform_10, window_bounds = array<i64: 1, 64>}, {transform_indices = @transform_11, window_bounds = array<i64: 16, 1>}, {transform_indices = @transform_12, window_bounds = array<i64: 16, 1>}, {pipeline_mode = #tpu.pipeline_mode<synchronous>, transform_indices = @transform_13, window_bounds = array<i64: 64, 32>}, {pipeline_mode = #tpu.pipeline_mode<synchronous>, transform_indices = @transform_14, window_bounds = array<i64: 1, 32>}, {transform_indices = @transform_15, window_bounds = array<i64: 16, 1>}, {transform_indices = @transform_16, window_bounds = array<i64: 16, 1>}, {pipeline_mode = #tpu.pipeline_mode<synchronous>, transform_indices = @transform_17, window_bounds = array<i64: 32, 4>}, {pipeline_mode = #tpu.pipeline_mode<synchronous>, transform_indices = @transform_18, window_bounds = array<i64: 1, 4>}, {transform_indices = @transform_19, window_bounds = array<i64: 16, 1>}, {transform_indices = @transform_20, window_bounds = array<i64: 16, 1>}, {pipeline_mode = #tpu.pipeline_mode<synchronous>, transform_indices = @transform_21, window_bounds = array<i64: 4, 256>}, {transform_indices = @transform_22, window_bounds = array<i64: 16, 1>}, {transform_indices = @transform_23, window_bounds = array<i64: 16, 1>}, {pipeline_mode = #tpu.pipeline_mode<synchronous>, transform_indices = @transform_24, window_bounds = array<i64: 256, 128>}, {pipeline_mode = #tpu.pipeline_mode<synchronous>, transform_indices = @transform_25, window_bounds = array<i64: 1, 128>}, {transform_indices = @transform_26, window_bounds = array<i64: 16, 1>}, {transform_indices = @transform_27, window_bounds = array<i64: 16, 1>}, {pipeline_mode = #tpu.pipeline_mode<synchronous>, transform_indices = @transform_28, window_bounds = array<i64: 128, 64>}, {pipeline_mode = #tpu.pipeline_mode<synchronous>, transform_indices = @transform_29, window_bounds = array<i64: 1, 64>}, {transform_indices = @transform_30, window_bounds = array<i64: 16, 1>}, {transform_indices = @transform_31, window_bounds = array<i64: 16, 1>}, {pipeline_mode = #tpu.pipeline_mode<synchronous>, transform_indices = @transform_32, window_bounds = array<i64: 64, 32>}, {pipeline_mode = #tpu.pipeline_mode<synchronous>, transform_indices = @transform_33, window_bounds = array<i64: 1, 32>}, {transform_indices = @transform_34, window_bounds = array<i64: 16, 1>}, {transform_indices = @transform_35, window_bounds = array<i64: 16, 1>}, {pipeline_mode = #tpu.pipeline_mode<synchronous>, transform_indices = @transform_36, window_bounds = array<i64: 32, 4>}, {pipeline_mode = #tpu.pipeline_mode<synchronous>, transform_indices = @transform_37, window_bounds = array<i64: 1, 4>}, {transform_indices = @transform_38, window_bounds = array<i64: 16, 1>}, {transform_indices = @transform_39, window_bounds = array<i64: 16, 1>}, {transform_indices = @transform_40, window_bounds = array<i64: 2, 16, 4>}]} {
    %c0 = arith.constant 0 : index
    %c0_0 = arith.constant 0 : index
    %0 = vector.load %arg1[%c0, %c0_0] : memref<2x256xf32, #tpu.memory_space<vmem>>, vector<2x256xf32>
    %1 = vector.shape_cast %0 : vector<2x256xf32> to vector<2x1x256xf32>
    %c0_1 = arith.constant 0 : index
    %c0_2 = arith.constant 0 : index
    %2 = vector.load %arg3[%c0_1, %c0_2] : memref<16x256xf32, #tpu.memory_space<vmem>>, vector<16x256xf32>
    %3 = vector.shape_cast %2 : vector<16x256xf32> to vector<1x16x256xf32>
    %4 = vector.broadcast %1 : vector<2x1x256xf32> to vector<2x16x256xf32>
    %5 = vector.broadcast %3 : vector<1x16x256xf32> to vector<2x16x256xf32>
    %6 = arith.addf %4, %5 : vector<2x16x256xf32>
    %c0_3 = arith.constant 0 : index
    %c0_4 = arith.constant 0 : index
    %7 = vector.load %arg4[%c0_3, %c0_4] : memref<16x1xf32, #tpu.memory_space<vmem>>, vector<16x1xf32>
    %c0_5 = arith.constant 0 : index
    %c0_6 = arith.constant 0 : index
    %8 = vector.load %arg5[%c0_5, %c0_6] : memref<16x1xf32, #tpu.memory_space<vmem>>, vector<16x1xf32>
    %cst = arith.constant dense<0.000000e+00> : vector<16xf32>
    %9 = vector.multi_reduction <add>, %6, %cst [0, 2] : vector<2x16x256xf32> to vector<16xf32>
    %10 = vector.shape_cast %9 : vector<16xf32> to vector<1x16x1xf32>
    %11 = arith.mulf %6, %6 : vector<2x16x256xf32>
    %cst_7 = arith.constant dense<0.000000e+00> : vector<16xf32>
    %12 = vector.multi_reduction <add>, %11, %cst_7 [0, 2] : vector<2x16x256xf32> to vector<16xf32>
    %13 = vector.shape_cast %12 : vector<16xf32> to vector<1x16x1xf32>
    %cst_8 = arith.constant 0.001953125 : f32
    %14 = vector.broadcast %cst_8 : f32 to vector<1x16x1xf32>
    %15 = arith.mulf %10, %14 : vector<1x16x1xf32>
    %cst_9 = arith.constant 0.001953125 : f32
    %16 = vector.broadcast %cst_9 : f32 to vector<1x16x1xf32>
    %17 = arith.mulf %13, %16 : vector<1x16x1xf32>
    %18 = arith.mulf %15, %15 : vector<1x16x1xf32>
    %19 = arith.subf %17, %18 : vector<1x16x1xf32>
    %cst_10 = arith.constant 0.000000e+00 : f32
    %20 = vector.broadcast %cst_10 : f32 to vector<1x16x1xf32>
    %21 = arith.maximumf %19, %20 : vector<1x16x1xf32>
    %22 = vector.shape_cast %7 : vector<16x1xf32> to vector<1x16x1xf32>
    %cst_11 = arith.constant 9.99999974E-6 : f32
    %23 = vector.broadcast %cst_11 : f32 to vector<1x16x1xf32>
    %24 = arith.addf %21, %23 : vector<1x16x1xf32>
    %25 = math.rsqrt %24 : vector<1x16x1xf32>
    %26 = arith.mulf %22, %25 : vector<1x16x1xf32>
    %27 = vector.shape_cast %8 : vector<16x1xf32> to vector<1x16x1xf32>
    %28 = arith.mulf %15, %26 : vector<1x16x1xf32>
    %29 = arith.subf %27, %28 : vector<1x16x1xf32>
    %30 = vector.broadcast %26 : vector<1x16x1xf32> to vector<2x16x256xf32>
    %31 = arith.mulf %6, %30 : vector<2x16x256xf32>
    %32 = vector.broadcast %29 : vector<1x16x1xf32> to vector<2x16x256xf32>
    %33 = arith.addf %31, %32 : vector<2x16x256xf32>
    %cst_12 = arith.constant 0.000000e+00 : f32
    %34 = vector.broadcast %cst_12 : f32 to vector<2x16x256xf32>
    %35 = arith.maximumf %33, %34 : vector<2x16x256xf32>
    %c0_13 = arith.constant 0 : index
    %c0_14 = arith.constant 0 : index
    %36 = vector.load %arg6[%c0_13, %c0_14] : memref<256x128xbf16, #tpu.memory_space<vmem>>, vector<256x128xbf16>
    %37 = vector.shape_cast %35 : vector<2x16x256xf32> to vector<32x256xf32>
    %38 = arith.truncf %37 : vector<32x256xf32> to vector<32x256xbf16>
    %cst_15 = arith.constant dense<0.000000e+00> : vector<32x128xf32>
    %39 = tpu.matmul %38, %36, %cst_15 {dimension_numbers = #tpu.dot_dimension_numbers<[1], [0], [0], [1], [0, 0, 1, 1], [], []>} : vector<32x256xbf16>, vector<256x128xbf16>, vector<32x128xf32> -> vector<32x128xf32>
    %c0_16 = arith.constant 0 : index
    %c0_17 = arith.constant 0 : index
    %40 = vector.load %arg7[%c0_16, %c0_17] : memref<1x128xf32, #tpu.memory_space<vmem>>, vector<1x128xf32>
    %41 = vector.broadcast %40 : vector<1x128xf32> to vector<32x128xf32>
    %42 = arith.addf %39, %41 : vector<32x128xf32>
    %43 = vector.shape_cast %42 : vector<32x128xf32> to vector<2x16x128xf32>
    %c0_18 = arith.constant 0 : index
    %c0_19 = arith.constant 0 : index
    %44 = vector.load %arg8[%c0_18, %c0_19] : memref<16x1xf32, #tpu.memory_space<vmem>>, vector<16x1xf32>
    %c0_20 = arith.constant 0 : index
    %c0_21 = arith.constant 0 : index
    %45 = vector.load %arg9[%c0_20, %c0_21] : memref<16x1xf32, #tpu.memory_space<vmem>>, vector<16x1xf32>
    %cst_22 = arith.constant dense<0.000000e+00> : vector<16xf32>
    %46 = vector.multi_reduction <add>, %43, %cst_22 [0, 2] : vector<2x16x128xf32> to vector<16xf32>
    %47 = vector.shape_cast %46 : vector<16xf32> to vector<1x16x1xf32>
    %48 = arith.mulf %43, %43 : vector<2x16x128xf32>
    %cst_23 = arith.constant dense<0.000000e+00> : vector<16xf32>
    %49 = vector.multi_reduction <add>, %48, %cst_23 [0, 2] : vector<2x16x128xf32> to vector<16xf32>
    %50 = vector.shape_cast %49 : vector<16xf32> to vector<1x16x1xf32>
    %cst_24 = arith.constant 3.906250e-03 : f32
    %51 = vector.broadcast %cst_24 : f32 to vector<1x16x1xf32>
    %52 = arith.mulf %47, %51 : vector<1x16x1xf32>
    %cst_25 = arith.constant 3.906250e-03 : f32
    %53 = vector.broadcast %cst_25 : f32 to vector<1x16x1xf32>
    %54 = arith.mulf %50, %53 : vector<1x16x1xf32>
    %55 = arith.mulf %52, %52 : vector<1x16x1xf32>
    %56 = arith.subf %54, %55 : vector<1x16x1xf32>
    %cst_26 = arith.constant 0.000000e+00 : f32
    %57 = vector.broadcast %cst_26 : f32 to vector<1x16x1xf32>
    %58 = arith.maximumf %56, %57 : vector<1x16x1xf32>
    %59 = vector.shape_cast %44 : vector<16x1xf32> to vector<1x16x1xf32>
    %cst_27 = arith.constant 9.99999974E-6 : f32
    %60 = vector.broadcast %cst_27 : f32 to vector<1x16x1xf32>
    %61 = arith.addf %58, %60 : vector<1x16x1xf32>
    %62 = math.rsqrt %61 : vector<1x16x1xf32>
    %63 = arith.mulf %59, %62 : vector<1x16x1xf32>
    %64 = vector.shape_cast %45 : vector<16x1xf32> to vector<1x16x1xf32>
    %65 = arith.mulf %52, %63 : vector<1x16x1xf32>
    %66 = arith.subf %64, %65 : vector<1x16x1xf32>
    %67 = vector.broadcast %63 : vector<1x16x1xf32> to vector<2x16x128xf32>
    %68 = arith.mulf %43, %67 : vector<2x16x128xf32>
    %69 = vector.broadcast %66 : vector<1x16x1xf32> to vector<2x16x128xf32>
    %70 = arith.addf %68, %69 : vector<2x16x128xf32>
    %cst_28 = arith.constant 0.000000e+00 : f32
    %71 = vector.broadcast %cst_28 : f32 to vector<2x16x128xf32>
    %72 = arith.maximumf %70, %71 : vector<2x16x128xf32>
    %c0_29 = arith.constant 0 : index
    %c0_30 = arith.constant 0 : index
    %73 = vector.load %arg10[%c0_29, %c0_30] : memref<128x64xbf16, #tpu.memory_space<vmem>>, vector<128x64xbf16>
    %74 = vector.shape_cast %72 : vector<2x16x128xf32> to vector<32x128xf32>
    %75 = arith.truncf %74 : vector<32x128xf32> to vector<32x128xbf16>
    %cst_31 = arith.constant dense<0.000000e+00> : vector<32x64xf32>
    %76 = tpu.matmul %75, %73, %cst_31 {dimension_numbers = #tpu.dot_dimension_numbers<[1], [0], [0], [1], [0, 0, 1, 1], [], []>} : vector<32x128xbf16>, vector<128x64xbf16>, vector<32x64xf32> -> vector<32x64xf32>
    %c0_32 = arith.constant 0 : index
    %c0_33 = arith.constant 0 : index
    %77 = vector.load %arg11[%c0_32, %c0_33] : memref<1x64xf32, #tpu.memory_space<vmem>>, vector<1x64xf32>
    %78 = vector.broadcast %77 : vector<1x64xf32> to vector<32x64xf32>
    %79 = arith.addf %76, %78 : vector<32x64xf32>
    %80 = vector.shape_cast %79 : vector<32x64xf32> to vector<2x16x64xf32>
    %c0_34 = arith.constant 0 : index
    %c0_35 = arith.constant 0 : index
    %81 = vector.load %arg12[%c0_34, %c0_35] : memref<16x1xf32, #tpu.memory_space<vmem>>, vector<16x1xf32>
    %c0_36 = arith.constant 0 : index
    %c0_37 = arith.constant 0 : index
    %82 = vector.load %arg13[%c0_36, %c0_37] : memref<16x1xf32, #tpu.memory_space<vmem>>, vector<16x1xf32>
    %cst_38 = arith.constant dense<0.000000e+00> : vector<16xf32>
    %83 = vector.multi_reduction <add>, %80, %cst_38 [0, 2] : vector<2x16x64xf32> to vector<16xf32>
    %84 = vector.shape_cast %83 : vector<16xf32> to vector<1x16x1xf32>
    %85 = arith.mulf %80, %80 : vector<2x16x64xf32>
    %cst_39 = arith.constant dense<0.000000e+00> : vector<16xf32>
    %86 = vector.multi_reduction <add>, %85, %cst_39 [0, 2] : vector<2x16x64xf32> to vector<16xf32>
    %87 = vector.shape_cast %86 : vector<16xf32> to vector<1x16x1xf32>
    %cst_40 = arith.constant 7.812500e-03 : f32
    %88 = vector.broadcast %cst_40 : f32 to vector<1x16x1xf32>
    %89 = arith.mulf %84, %88 : vector<1x16x1xf32>
    %cst_41 = arith.constant 7.812500e-03 : f32
    %90 = vector.broadcast %cst_41 : f32 to vector<1x16x1xf32>
    %91 = arith.mulf %87, %90 : vector<1x16x1xf32>
    %92 = arith.mulf %89, %89 : vector<1x16x1xf32>
    %93 = arith.subf %91, %92 : vector<1x16x1xf32>
    %cst_42 = arith.constant 0.000000e+00 : f32
    %94 = vector.broadcast %cst_42 : f32 to vector<1x16x1xf32>
    %95 = arith.maximumf %93, %94 : vector<1x16x1xf32>
    %96 = vector.shape_cast %81 : vector<16x1xf32> to vector<1x16x1xf32>
    %cst_43 = arith.constant 9.99999974E-6 : f32
    %97 = vector.broadcast %cst_43 : f32 to vector<1x16x1xf32>
    %98 = arith.addf %95, %97 : vector<1x16x1xf32>
    %99 = math.rsqrt %98 : vector<1x16x1xf32>
    %100 = arith.mulf %96, %99 : vector<1x16x1xf32>
    %101 = vector.shape_cast %82 : vector<16x1xf32> to vector<1x16x1xf32>
    %102 = arith.mulf %89, %100 : vector<1x16x1xf32>
    %103 = arith.subf %101, %102 : vector<1x16x1xf32>
    %104 = vector.broadcast %100 : vector<1x16x1xf32> to vector<2x16x64xf32>
    %105 = arith.mulf %80, %104 : vector<2x16x64xf32>
    %106 = vector.broadcast %103 : vector<1x16x1xf32> to vector<2x16x64xf32>
    %107 = arith.addf %105, %106 : vector<2x16x64xf32>
    %cst_44 = arith.constant 0.000000e+00 : f32
    %108 = vector.broadcast %cst_44 : f32 to vector<2x16x64xf32>
    %109 = arith.maximumf %107, %108 : vector<2x16x64xf32>
    %c0_45 = arith.constant 0 : index
    %c0_46 = arith.constant 0 : index
    %110 = vector.load %arg14[%c0_45, %c0_46] : memref<64x32xbf16, #tpu.memory_space<vmem>>, vector<64x32xbf16>
    %111 = vector.shape_cast %109 : vector<2x16x64xf32> to vector<32x64xf32>
    %112 = arith.truncf %111 : vector<32x64xf32> to vector<32x64xbf16>
    %cst_47 = arith.constant dense<0.000000e+00> : vector<32x32xf32>
    %113 = tpu.matmul %112, %110, %cst_47 {dimension_numbers = #tpu.dot_dimension_numbers<[1], [0], [0], [1], [0, 0, 1, 1], [], []>} : vector<32x64xbf16>, vector<64x32xbf16>, vector<32x32xf32> -> vector<32x32xf32>
    %c0_48 = arith.constant 0 : index
    %c0_49 = arith.constant 0 : index
    %114 = vector.load %arg15[%c0_48, %c0_49] : memref<1x32xf32, #tpu.memory_space<vmem>>, vector<1x32xf32>
    %115 = vector.broadcast %114 : vector<1x32xf32> to vector<32x32xf32>
    %116 = arith.addf %113, %115 : vector<32x32xf32>
    %117 = vector.shape_cast %116 : vector<32x32xf32> to vector<2x16x32xf32>
    %c0_50 = arith.constant 0 : index
    %c0_51 = arith.constant 0 : index
    %118 = vector.load %arg16[%c0_50, %c0_51] : memref<16x1xf32, #tpu.memory_space<vmem>>, vector<16x1xf32>
    %c0_52 = arith.constant 0 : index
    %c0_53 = arith.constant 0 : index
    %119 = vector.load %arg17[%c0_52, %c0_53] : memref<16x1xf32, #tpu.memory_space<vmem>>, vector<16x1xf32>
    %cst_54 = arith.constant dense<0.000000e+00> : vector<16xf32>
    %120 = vector.multi_reduction <add>, %117, %cst_54 [0, 2] : vector<2x16x32xf32> to vector<16xf32>
    %121 = vector.shape_cast %120 : vector<16xf32> to vector<1x16x1xf32>
    %122 = arith.mulf %117, %117 : vector<2x16x32xf32>
    %cst_55 = arith.constant dense<0.000000e+00> : vector<16xf32>
    %123 = vector.multi_reduction <add>, %122, %cst_55 [0, 2] : vector<2x16x32xf32> to vector<16xf32>
    %124 = vector.shape_cast %123 : vector<16xf32> to vector<1x16x1xf32>
    %cst_56 = arith.constant 1.562500e-02 : f32
    %125 = vector.broadcast %cst_56 : f32 to vector<1x16x1xf32>
    %126 = arith.mulf %121, %125 : vector<1x16x1xf32>
    %cst_57 = arith.constant 1.562500e-02 : f32
    %127 = vector.broadcast %cst_57 : f32 to vector<1x16x1xf32>
    %128 = arith.mulf %124, %127 : vector<1x16x1xf32>
    %129 = arith.mulf %126, %126 : vector<1x16x1xf32>
    %130 = arith.subf %128, %129 : vector<1x16x1xf32>
    %cst_58 = arith.constant 0.000000e+00 : f32
    %131 = vector.broadcast %cst_58 : f32 to vector<1x16x1xf32>
    %132 = arith.maximumf %130, %131 : vector<1x16x1xf32>
    %133 = vector.shape_cast %118 : vector<16x1xf32> to vector<1x16x1xf32>
    %cst_59 = arith.constant 9.99999974E-6 : f32
    %134 = vector.broadcast %cst_59 : f32 to vector<1x16x1xf32>
    %135 = arith.addf %132, %134 : vector<1x16x1xf32>
    %136 = math.rsqrt %135 : vector<1x16x1xf32>
    %137 = arith.mulf %133, %136 : vector<1x16x1xf32>
    %138 = vector.shape_cast %119 : vector<16x1xf32> to vector<1x16x1xf32>
    %139 = arith.mulf %126, %137 : vector<1x16x1xf32>
    %140 = arith.subf %138, %139 : vector<1x16x1xf32>
    %141 = vector.broadcast %137 : vector<1x16x1xf32> to vector<2x16x32xf32>
    %142 = arith.mulf %117, %141 : vector<2x16x32xf32>
    %143 = vector.broadcast %140 : vector<1x16x1xf32> to vector<2x16x32xf32>
    %144 = arith.addf %142, %143 : vector<2x16x32xf32>
    %cst_60 = arith.constant 0.000000e+00 : f32
    %145 = vector.broadcast %cst_60 : f32 to vector<2x16x32xf32>
    %146 = arith.maximumf %144, %145 : vector<2x16x32xf32>
    %c0_61 = arith.constant 0 : index
    %c0_62 = arith.constant 0 : index
    %147 = vector.load %arg18[%c0_61, %c0_62] : memref<32x4xbf16, #tpu.memory_space<vmem>>, vector<32x4xbf16>
    %148 = vector.shape_cast %146 : vector<2x16x32xf32> to vector<32x32xf32>
    %149 = arith.truncf %148 : vector<32x32xf32> to vector<32x32xbf16>
    %cst_63 = arith.constant dense<0.000000e+00> : vector<32x4xf32>
    %150 = tpu.matmul %149, %147, %cst_63 {dimension_numbers = #tpu.dot_dimension_numbers<[1], [0], [0], [1], [0, 0, 1, 1], [], []>} : vector<32x32xbf16>, vector<32x4xbf16>, vector<32x4xf32> -> vector<32x4xf32>
    %c0_64 = arith.constant 0 : index
    %c0_65 = arith.constant 0 : index
    %151 = vector.load %arg19[%c0_64, %c0_65] : memref<1x4xf32, #tpu.memory_space<vmem>>, vector<1x4xf32>
    %152 = vector.broadcast %151 : vector<1x4xf32> to vector<32x4xf32>
    %153 = arith.addf %150, %152 : vector<32x4xf32>
    %154 = vector.shape_cast %153 : vector<32x4xf32> to vector<2x16x4xf32>
    %c0_66 = arith.constant 0 : index
    %c0_67 = arith.constant 0 : index
    %155 = vector.load %arg20[%c0_66, %c0_67] : memref<16x1xf32, #tpu.memory_space<vmem>>, vector<16x1xf32>
    %c0_68 = arith.constant 0 : index
    %c0_69 = arith.constant 0 : index
    %156 = vector.load %arg21[%c0_68, %c0_69] : memref<16x1xf32, #tpu.memory_space<vmem>>, vector<16x1xf32>
    %cst_70 = arith.constant dense<0.000000e+00> : vector<16xf32>
    %157 = vector.multi_reduction <add>, %154, %cst_70 [0, 2] : vector<2x16x4xf32> to vector<16xf32>
    %158 = vector.shape_cast %157 : vector<16xf32> to vector<1x16x1xf32>
    %159 = arith.mulf %154, %154 : vector<2x16x4xf32>
    %cst_71 = arith.constant dense<0.000000e+00> : vector<16xf32>
    %160 = vector.multi_reduction <add>, %159, %cst_71 [0, 2] : vector<2x16x4xf32> to vector<16xf32>
    %161 = vector.shape_cast %160 : vector<16xf32> to vector<1x16x1xf32>
    %cst_72 = arith.constant 1.250000e-01 : f32
    %162 = vector.broadcast %cst_72 : f32 to vector<1x16x1xf32>
    %163 = arith.mulf %158, %162 : vector<1x16x1xf32>
    %cst_73 = arith.constant 1.250000e-01 : f32
    %164 = vector.broadcast %cst_73 : f32 to vector<1x16x1xf32>
    %165 = arith.mulf %161, %164 : vector<1x16x1xf32>
    %166 = arith.mulf %163, %163 : vector<1x16x1xf32>
    %167 = arith.subf %165, %166 : vector<1x16x1xf32>
    %cst_74 = arith.constant 0.000000e+00 : f32
    %168 = vector.broadcast %cst_74 : f32 to vector<1x16x1xf32>
    %169 = arith.maximumf %167, %168 : vector<1x16x1xf32>
    %170 = vector.shape_cast %155 : vector<16x1xf32> to vector<1x16x1xf32>
    %cst_75 = arith.constant 9.99999974E-6 : f32
    %171 = vector.broadcast %cst_75 : f32 to vector<1x16x1xf32>
    %172 = arith.addf %169, %171 : vector<1x16x1xf32>
    %173 = math.rsqrt %172 : vector<1x16x1xf32>
    %174 = arith.mulf %170, %173 : vector<1x16x1xf32>
    %175 = vector.shape_cast %156 : vector<16x1xf32> to vector<1x16x1xf32>
    %176 = arith.mulf %163, %174 : vector<1x16x1xf32>
    %177 = arith.subf %175, %176 : vector<1x16x1xf32>
    %178 = vector.broadcast %174 : vector<1x16x1xf32> to vector<2x16x4xf32>
    %179 = arith.mulf %154, %178 : vector<2x16x4xf32>
    %180 = vector.broadcast %177 : vector<1x16x1xf32> to vector<2x16x4xf32>
    %181 = arith.addf %179, %180 : vector<2x16x4xf32>
    %cst_76 = arith.constant 0.000000e+00 : f32
    %182 = vector.broadcast %cst_76 : f32 to vector<2x16x4xf32>
    %183 = arith.maximumf %181, %182 : vector<2x16x4xf32>
    %184 = vector.shape_cast %183 : vector<2x16x4xf32> to vector<32x4xf32>
    %185 = arith.truncf %184 : vector<32x4xf32> to vector<32x4xbf16>
    %c0_77 = arith.constant 0 : index
    %c0_78 = arith.constant 0 : index
    %186 = vector.load %arg22[%c0_77, %c0_78] : memref<4x256xbf16, #tpu.memory_space<vmem>>, vector<4x256xbf16>
    %cst_79 = arith.constant dense<0.000000e+00> : vector<32x256xf32>
    %187 = tpu.matmul %185, %186, %cst_79 {dimension_numbers = #tpu.dot_dimension_numbers<[1], [0], [0], [1], [0, 0, 1, 1], [], []>} : vector<32x4xbf16>, vector<4x256xbf16>, vector<32x256xf32> -> vector<32x256xf32>
    %188 = vector.shape_cast %187 : vector<32x256xf32> to vector<2x16x256xf32>
    %c0_80 = arith.constant 0 : index
    %c0_81 = arith.constant 0 : index
    %189 = vector.load %arg2[%c0_80, %c0_81] : memref<2x256xf32, #tpu.memory_space<vmem>>, vector<2x256xf32>
    %190 = vector.shape_cast %189 : vector<2x256xf32> to vector<2x1x256xf32>
    %191 = vector.broadcast %190 : vector<2x1x256xf32> to vector<2x16x256xf32>
    %192 = arith.addf %188, %191 : vector<2x16x256xf32>
    %c0_82 = arith.constant 0 : index
    %c0_83 = arith.constant 0 : index
    %193 = vector.load %arg23[%c0_82, %c0_83] : memref<16x1xf32, #tpu.memory_space<vmem>>, vector<16x1xf32>
    %c0_84 = arith.constant 0 : index
    %c0_85 = arith.constant 0 : index
    %194 = vector.load %arg24[%c0_84, %c0_85] : memref<16x1xf32, #tpu.memory_space<vmem>>, vector<16x1xf32>
    %cst_86 = arith.constant dense<0.000000e+00> : vector<16xf32>
    %195 = vector.multi_reduction <add>, %192, %cst_86 [0, 2] : vector<2x16x256xf32> to vector<16xf32>
    %196 = vector.shape_cast %195 : vector<16xf32> to vector<1x16x1xf32>
    %197 = arith.mulf %192, %192 : vector<2x16x256xf32>
    %cst_87 = arith.constant dense<0.000000e+00> : vector<16xf32>
    %198 = vector.multi_reduction <add>, %197, %cst_87 [0, 2] : vector<2x16x256xf32> to vector<16xf32>
    %199 = vector.shape_cast %198 : vector<16xf32> to vector<1x16x1xf32>
    %cst_88 = arith.constant 0.001953125 : f32
    %200 = vector.broadcast %cst_88 : f32 to vector<1x16x1xf32>
    %201 = arith.mulf %196, %200 : vector<1x16x1xf32>
    %cst_89 = arith.constant 0.001953125 : f32
    %202 = vector.broadcast %cst_89 : f32 to vector<1x16x1xf32>
    %203 = arith.mulf %199, %202 : vector<1x16x1xf32>
    %204 = arith.mulf %201, %201 : vector<1x16x1xf32>
    %205 = arith.subf %203, %204 : vector<1x16x1xf32>
    %cst_90 = arith.constant 0.000000e+00 : f32
    %206 = vector.broadcast %cst_90 : f32 to vector<1x16x1xf32>
    %207 = arith.maximumf %205, %206 : vector<1x16x1xf32>
    %208 = vector.shape_cast %193 : vector<16x1xf32> to vector<1x16x1xf32>
    %cst_91 = arith.constant 9.99999974E-6 : f32
    %209 = vector.broadcast %cst_91 : f32 to vector<1x16x1xf32>
    %210 = arith.addf %207, %209 : vector<1x16x1xf32>
    %211 = math.rsqrt %210 : vector<1x16x1xf32>
    %212 = arith.mulf %208, %211 : vector<1x16x1xf32>
    %213 = vector.shape_cast %194 : vector<16x1xf32> to vector<1x16x1xf32>
    %214 = arith.mulf %201, %212 : vector<1x16x1xf32>
    %215 = arith.subf %213, %214 : vector<1x16x1xf32>
    %216 = vector.broadcast %212 : vector<1x16x1xf32> to vector<2x16x256xf32>
    %217 = arith.mulf %192, %216 : vector<2x16x256xf32>
    %218 = vector.broadcast %215 : vector<1x16x1xf32> to vector<2x16x256xf32>
    %219 = arith.addf %217, %218 : vector<2x16x256xf32>
    %cst_92 = arith.constant 0.000000e+00 : f32
    %220 = vector.broadcast %cst_92 : f32 to vector<2x16x256xf32>
    %221 = arith.maximumf %219, %220 : vector<2x16x256xf32>
    %c0_93 = arith.constant 0 : index
    %c0_94 = arith.constant 0 : index
    %222 = vector.load %arg25[%c0_93, %c0_94] : memref<256x128xbf16, #tpu.memory_space<vmem>>, vector<256x128xbf16>
    %223 = vector.shape_cast %221 : vector<2x16x256xf32> to vector<32x256xf32>
    %224 = arith.truncf %223 : vector<32x256xf32> to vector<32x256xbf16>
    %cst_95 = arith.constant dense<0.000000e+00> : vector<32x128xf32>
    %225 = tpu.matmul %224, %222, %cst_95 {dimension_numbers = #tpu.dot_dimension_numbers<[1], [0], [0], [1], [0, 0, 1, 1], [], []>} : vector<32x256xbf16>, vector<256x128xbf16>, vector<32x128xf32> -> vector<32x128xf32>
    %c0_96 = arith.constant 0 : index
    %c0_97 = arith.constant 0 : index
    %226 = vector.load %arg26[%c0_96, %c0_97] : memref<1x128xf32, #tpu.memory_space<vmem>>, vector<1x128xf32>
    %227 = vector.broadcast %226 : vector<1x128xf32> to vector<32x128xf32>
    %228 = arith.addf %225, %227 : vector<32x128xf32>
    %229 = vector.shape_cast %228 : vector<32x128xf32> to vector<2x16x128xf32>
    %c0_98 = arith.constant 0 : index
    %c0_99 = arith.constant 0 : index
    %230 = vector.load %arg27[%c0_98, %c0_99] : memref<16x1xf32, #tpu.memory_space<vmem>>, vector<16x1xf32>
    %c0_100 = arith.constant 0 : index
    %c0_101 = arith.constant 0 : index
    %231 = vector.load %arg28[%c0_100, %c0_101] : memref<16x1xf32, #tpu.memory_space<vmem>>, vector<16x1xf32>
    %cst_102 = arith.constant dense<0.000000e+00> : vector<16xf32>
    %232 = vector.multi_reduction <add>, %229, %cst_102 [0, 2] : vector<2x16x128xf32> to vector<16xf32>
    %233 = vector.shape_cast %232 : vector<16xf32> to vector<1x16x1xf32>
    %234 = arith.mulf %229, %229 : vector<2x16x128xf32>
    %cst_103 = arith.constant dense<0.000000e+00> : vector<16xf32>
    %235 = vector.multi_reduction <add>, %234, %cst_103 [0, 2] : vector<2x16x128xf32> to vector<16xf32>
    %236 = vector.shape_cast %235 : vector<16xf32> to vector<1x16x1xf32>
    %cst_104 = arith.constant 3.906250e-03 : f32
    %237 = vector.broadcast %cst_104 : f32 to vector<1x16x1xf32>
    %238 = arith.mulf %233, %237 : vector<1x16x1xf32>
    %cst_105 = arith.constant 3.906250e-03 : f32
    %239 = vector.broadcast %cst_105 : f32 to vector<1x16x1xf32>
    %240 = arith.mulf %236, %239 : vector<1x16x1xf32>
    %241 = arith.mulf %238, %238 : vector<1x16x1xf32>
    %242 = arith.subf %240, %241 : vector<1x16x1xf32>
    %cst_106 = arith.constant 0.000000e+00 : f32
    %243 = vector.broadcast %cst_106 : f32 to vector<1x16x1xf32>
    %244 = arith.maximumf %242, %243 : vector<1x16x1xf32>
    %245 = vector.shape_cast %230 : vector<16x1xf32> to vector<1x16x1xf32>
    %cst_107 = arith.constant 9.99999974E-6 : f32
    %246 = vector.broadcast %cst_107 : f32 to vector<1x16x1xf32>
    %247 = arith.addf %244, %246 : vector<1x16x1xf32>
    %248 = math.rsqrt %247 : vector<1x16x1xf32>
    %249 = arith.mulf %245, %248 : vector<1x16x1xf32>
    %250 = vector.shape_cast %231 : vector<16x1xf32> to vector<1x16x1xf32>
    %251 = arith.mulf %238, %249 : vector<1x16x1xf32>
    %252 = arith.subf %250, %251 : vector<1x16x1xf32>
    %253 = vector.broadcast %249 : vector<1x16x1xf32> to vector<2x16x128xf32>
    %254 = arith.mulf %229, %253 : vector<2x16x128xf32>
    %255 = vector.broadcast %252 : vector<1x16x1xf32> to vector<2x16x128xf32>
    %256 = arith.addf %254, %255 : vector<2x16x128xf32>
    %cst_108 = arith.constant 0.000000e+00 : f32
    %257 = vector.broadcast %cst_108 : f32 to vector<2x16x128xf32>
    %258 = arith.maximumf %256, %257 : vector<2x16x128xf32>
    %c0_109 = arith.constant 0 : index
    %c0_110 = arith.constant 0 : index
    %259 = vector.load %arg29[%c0_109, %c0_110] : memref<128x64xbf16, #tpu.memory_space<vmem>>, vector<128x64xbf16>
    %260 = vector.shape_cast %258 : vector<2x16x128xf32> to vector<32x128xf32>
    %261 = arith.truncf %260 : vector<32x128xf32> to vector<32x128xbf16>
    %cst_111 = arith.constant dense<0.000000e+00> : vector<32x64xf32>
    %262 = tpu.matmul %261, %259, %cst_111 {dimension_numbers = #tpu.dot_dimension_numbers<[1], [0], [0], [1], [0, 0, 1, 1], [], []>} : vector<32x128xbf16>, vector<128x64xbf16>, vector<32x64xf32> -> vector<32x64xf32>
    %c0_112 = arith.constant 0 : index
    %c0_113 = arith.constant 0 : index
    %263 = vector.load %arg30[%c0_112, %c0_113] : memref<1x64xf32, #tpu.memory_space<vmem>>, vector<1x64xf32>
    %264 = vector.broadcast %263 : vector<1x64xf32> to vector<32x64xf32>
    %265 = arith.addf %262, %264 : vector<32x64xf32>
    %266 = vector.shape_cast %265 : vector<32x64xf32> to vector<2x16x64xf32>
    %c0_114 = arith.constant 0 : index
    %c0_115 = arith.constant 0 : index
    %267 = vector.load %arg31[%c0_114, %c0_115] : memref<16x1xf32, #tpu.memory_space<vmem>>, vector<16x1xf32>
    %c0_116 = arith.constant 0 : index
    %c0_117 = arith.constant 0 : index
    %268 = vector.load %arg32[%c0_116, %c0_117] : memref<16x1xf32, #tpu.memory_space<vmem>>, vector<16x1xf32>
    %cst_118 = arith.constant dense<0.000000e+00> : vector<16xf32>
    %269 = vector.multi_reduction <add>, %266, %cst_118 [0, 2] : vector<2x16x64xf32> to vector<16xf32>
    %270 = vector.shape_cast %269 : vector<16xf32> to vector<1x16x1xf32>
    %271 = arith.mulf %266, %266 : vector<2x16x64xf32>
    %cst_119 = arith.constant dense<0.000000e+00> : vector<16xf32>
    %272 = vector.multi_reduction <add>, %271, %cst_119 [0, 2] : vector<2x16x64xf32> to vector<16xf32>
    %273 = vector.shape_cast %272 : vector<16xf32> to vector<1x16x1xf32>
    %cst_120 = arith.constant 7.812500e-03 : f32
    %274 = vector.broadcast %cst_120 : f32 to vector<1x16x1xf32>
    %275 = arith.mulf %270, %274 : vector<1x16x1xf32>
    %cst_121 = arith.constant 7.812500e-03 : f32
    %276 = vector.broadcast %cst_121 : f32 to vector<1x16x1xf32>
    %277 = arith.mulf %273, %276 : vector<1x16x1xf32>
    %278 = arith.mulf %275, %275 : vector<1x16x1xf32>
    %279 = arith.subf %277, %278 : vector<1x16x1xf32>
    %cst_122 = arith.constant 0.000000e+00 : f32
    %280 = vector.broadcast %cst_122 : f32 to vector<1x16x1xf32>
    %281 = arith.maximumf %279, %280 : vector<1x16x1xf32>
    %282 = vector.shape_cast %267 : vector<16x1xf32> to vector<1x16x1xf32>
    %cst_123 = arith.constant 9.99999974E-6 : f32
    %283 = vector.broadcast %cst_123 : f32 to vector<1x16x1xf32>
    %284 = arith.addf %281, %283 : vector<1x16x1xf32>
    %285 = math.rsqrt %284 : vector<1x16x1xf32>
    %286 = arith.mulf %282, %285 : vector<1x16x1xf32>
    %287 = vector.shape_cast %268 : vector<16x1xf32> to vector<1x16x1xf32>
    %288 = arith.mulf %275, %286 : vector<1x16x1xf32>
    %289 = arith.subf %287, %288 : vector<1x16x1xf32>
    %290 = vector.broadcast %286 : vector<1x16x1xf32> to vector<2x16x64xf32>
    %291 = arith.mulf %266, %290 : vector<2x16x64xf32>
    %292 = vector.broadcast %289 : vector<1x16x1xf32> to vector<2x16x64xf32>
    %293 = arith.addf %291, %292 : vector<2x16x64xf32>
    %cst_124 = arith.constant 0.000000e+00 : f32
    %294 = vector.broadcast %cst_124 : f32 to vector<2x16x64xf32>
    %295 = arith.maximumf %293, %294 : vector<2x16x64xf32>
    %c0_125 = arith.constant 0 : index
    %c0_126 = arith.constant 0 : index
    %296 = vector.load %arg33[%c0_125, %c0_126] : memref<64x32xbf16, #tpu.memory_space<vmem>>, vector<64x32xbf16>
    %297 = vector.shape_cast %295 : vector<2x16x64xf32> to vector<32x64xf32>
    %298 = arith.truncf %297 : vector<32x64xf32> to vector<32x64xbf16>
    %cst_127 = arith.constant dense<0.000000e+00> : vector<32x32xf32>
    %299 = tpu.matmul %298, %296, %cst_127 {dimension_numbers = #tpu.dot_dimension_numbers<[1], [0], [0], [1], [0, 0, 1, 1], [], []>} : vector<32x64xbf16>, vector<64x32xbf16>, vector<32x32xf32> -> vector<32x32xf32>
    %c0_128 = arith.constant 0 : index
    %c0_129 = arith.constant 0 : index
    %300 = vector.load %arg34[%c0_128, %c0_129] : memref<1x32xf32, #tpu.memory_space<vmem>>, vector<1x32xf32>
    %301 = vector.broadcast %300 : vector<1x32xf32> to vector<32x32xf32>
    %302 = arith.addf %299, %301 : vector<32x32xf32>
    %303 = vector.shape_cast %302 : vector<32x32xf32> to vector<2x16x32xf32>
    %c0_130 = arith.constant 0 : index
    %c0_131 = arith.constant 0 : index
    %304 = vector.load %arg35[%c0_130, %c0_131] : memref<16x1xf32, #tpu.memory_space<vmem>>, vector<16x1xf32>
    %c0_132 = arith.constant 0 : index
    %c0_133 = arith.constant 0 : index
    %305 = vector.load %arg36[%c0_132, %c0_133] : memref<16x1xf32, #tpu.memory_space<vmem>>, vector<16x1xf32>
    %cst_134 = arith.constant dense<0.000000e+00> : vector<16xf32>
    %306 = vector.multi_reduction <add>, %303, %cst_134 [0, 2] : vector<2x16x32xf32> to vector<16xf32>
    %307 = vector.shape_cast %306 : vector<16xf32> to vector<1x16x1xf32>
    %308 = arith.mulf %303, %303 : vector<2x16x32xf32>
    %cst_135 = arith.constant dense<0.000000e+00> : vector<16xf32>
    %309 = vector.multi_reduction <add>, %308, %cst_135 [0, 2] : vector<2x16x32xf32> to vector<16xf32>
    %310 = vector.shape_cast %309 : vector<16xf32> to vector<1x16x1xf32>
    %cst_136 = arith.constant 1.562500e-02 : f32
    %311 = vector.broadcast %cst_136 : f32 to vector<1x16x1xf32>
    %312 = arith.mulf %307, %311 : vector<1x16x1xf32>
    %cst_137 = arith.constant 1.562500e-02 : f32
    %313 = vector.broadcast %cst_137 : f32 to vector<1x16x1xf32>
    %314 = arith.mulf %310, %313 : vector<1x16x1xf32>
    %315 = arith.mulf %312, %312 : vector<1x16x1xf32>
    %316 = arith.subf %314, %315 : vector<1x16x1xf32>
    %cst_138 = arith.constant 0.000000e+00 : f32
    %317 = vector.broadcast %cst_138 : f32 to vector<1x16x1xf32>
    %318 = arith.maximumf %316, %317 : vector<1x16x1xf32>
    %319 = vector.shape_cast %304 : vector<16x1xf32> to vector<1x16x1xf32>
    %cst_139 = arith.constant 9.99999974E-6 : f32
    %320 = vector.broadcast %cst_139 : f32 to vector<1x16x1xf32>
    %321 = arith.addf %318, %320 : vector<1x16x1xf32>
    %322 = math.rsqrt %321 : vector<1x16x1xf32>
    %323 = arith.mulf %319, %322 : vector<1x16x1xf32>
    %324 = vector.shape_cast %305 : vector<16x1xf32> to vector<1x16x1xf32>
    %325 = arith.mulf %312, %323 : vector<1x16x1xf32>
    %326 = arith.subf %324, %325 : vector<1x16x1xf32>
    %327 = vector.broadcast %323 : vector<1x16x1xf32> to vector<2x16x32xf32>
    %328 = arith.mulf %303, %327 : vector<2x16x32xf32>
    %329 = vector.broadcast %326 : vector<1x16x1xf32> to vector<2x16x32xf32>
    %330 = arith.addf %328, %329 : vector<2x16x32xf32>
    %cst_140 = arith.constant 0.000000e+00 : f32
    %331 = vector.broadcast %cst_140 : f32 to vector<2x16x32xf32>
    %332 = arith.maximumf %330, %331 : vector<2x16x32xf32>
    %c0_141 = arith.constant 0 : index
    %c0_142 = arith.constant 0 : index
    %333 = vector.load %arg37[%c0_141, %c0_142] : memref<32x4xbf16, #tpu.memory_space<vmem>>, vector<32x4xbf16>
    %334 = vector.shape_cast %332 : vector<2x16x32xf32> to vector<32x32xf32>
    %335 = arith.truncf %334 : vector<32x32xf32> to vector<32x32xbf16>
    %cst_143 = arith.constant dense<0.000000e+00> : vector<32x4xf32>
    %336 = tpu.matmul %335, %333, %cst_143 {dimension_numbers = #tpu.dot_dimension_numbers<[1], [0], [0], [1], [0, 0, 1, 1], [], []>} : vector<32x32xbf16>, vector<32x4xbf16>, vector<32x4xf32> -> vector<32x4xf32>
    %c0_144 = arith.constant 0 : index
    %c0_145 = arith.constant 0 : index
    %337 = vector.load %arg38[%c0_144, %c0_145] : memref<1x4xf32, #tpu.memory_space<vmem>>, vector<1x4xf32>
    %338 = vector.broadcast %337 : vector<1x4xf32> to vector<32x4xf32>
    %339 = arith.addf %336, %338 : vector<32x4xf32>
    %340 = vector.shape_cast %339 : vector<32x4xf32> to vector<2x16x4xf32>
    %c0_146 = arith.constant 0 : index
    %c0_147 = arith.constant 0 : index
    %341 = vector.load %arg39[%c0_146, %c0_147] : memref<16x1xf32, #tpu.memory_space<vmem>>, vector<16x1xf32>
    %c0_148 = arith.constant 0 : index
    %c0_149 = arith.constant 0 : index
    %342 = vector.load %arg40[%c0_148, %c0_149] : memref<16x1xf32, #tpu.memory_space<vmem>>, vector<16x1xf32>
    %cst_150 = arith.constant dense<0.000000e+00> : vector<16xf32>
    %343 = vector.multi_reduction <add>, %340, %cst_150 [0, 2] : vector<2x16x4xf32> to vector<16xf32>
    %344 = vector.shape_cast %343 : vector<16xf32> to vector<1x16x1xf32>
    %345 = arith.mulf %340, %340 : vector<2x16x4xf32>
    %cst_151 = arith.constant dense<0.000000e+00> : vector<16xf32>
    %346 = vector.multi_reduction <add>, %345, %cst_151 [0, 2] : vector<2x16x4xf32> to vector<16xf32>
    %347 = vector.shape_cast %346 : vector<16xf32> to vector<1x16x1xf32>
    %cst_152 = arith.constant 1.250000e-01 : f32
    %348 = vector.broadcast %cst_152 : f32 to vector<1x16x1xf32>
    %349 = arith.mulf %344, %348 : vector<1x16x1xf32>
    %cst_153 = arith.constant 1.250000e-01 : f32
    %350 = vector.broadcast %cst_153 : f32 to vector<1x16x1xf32>
    %351 = arith.mulf %347, %350 : vector<1x16x1xf32>
    %352 = arith.mulf %349, %349 : vector<1x16x1xf32>
    %353 = arith.subf %351, %352 : vector<1x16x1xf32>
    %cst_154 = arith.constant 0.000000e+00 : f32
    %354 = vector.broadcast %cst_154 : f32 to vector<1x16x1xf32>
    %355 = arith.maximumf %353, %354 : vector<1x16x1xf32>
    %356 = vector.shape_cast %341 : vector<16x1xf32> to vector<1x16x1xf32>
    %cst_155 = arith.constant 9.99999974E-6 : f32
    %357 = vector.broadcast %cst_155 : f32 to vector<1x16x1xf32>
    %358 = arith.addf %355, %357 : vector<1x16x1xf32>
    %359 = math.rsqrt %358 : vector<1x16x1xf32>
    %360 = arith.mulf %356, %359 : vector<1x16x1xf32>
    %361 = vector.shape_cast %342 : vector<16x1xf32> to vector<1x16x1xf32>
    %362 = arith.mulf %349, %360 : vector<1x16x1xf32>
    %363 = arith.subf %361, %362 : vector<1x16x1xf32>
    %364 = vector.broadcast %360 : vector<1x16x1xf32> to vector<2x16x4xf32>
    %365 = arith.mulf %340, %364 : vector<2x16x4xf32>
    %366 = vector.broadcast %363 : vector<1x16x1xf32> to vector<2x16x4xf32>
    %367 = arith.addf %365, %366 : vector<2x16x4xf32>
    %cst_156 = arith.constant 0.000000e+00 : f32
    %368 = vector.broadcast %cst_156 : f32 to vector<2x16x4xf32>
    %369 = arith.maximumf %367, %368 : vector<2x16x4xf32>
    %c0_157 = arith.constant 0 : index
    %c0_158 = arith.constant 0 : index
    %c0_159 = arith.constant 0 : index
    %370 = vector.load %arg41[%c0_157, %c0_158, %c0_159] : memref<2x16x4xf32, #tpu.memory_space<vmem>>, vector<2x16x4xf32>
    tpu.vector_store %arg41[%c0_157, %c0_158, %c0_159], %369 {strides = array<i32>} : memref<2x16x4xf32, #tpu.memory_space<vmem>>, vector<2x16x4xf32>,
    return
  }
  func.func @transform_0(%arg0: i32) -> (i32, i32) {
    %c0_i32 = arith.constant 0 : i32
    %c0_i32_0 = arith.constant 0 : i32
    %c0_i32_1 = arith.constant 0 : i32
    return %c0_i32, %c0_i32_0 : i32, i32
  }
  func.func @transform_1(%arg0: i32) -> (i32, i32) {
    %c0_i32 = arith.constant 0 : i32
    %c0_i32_0 = arith.constant 0 : i32
    %c0_i32_1 = arith.constant 0 : i32
    return %c0_i32, %c0_i32_0 : i32, i32
  }
  func.func @transform_2(%arg0: i32) -> (i32, i32) {
    %c0_i32 = arith.constant 0 : i32
    %c0_i32_0 = arith.constant 0 : i32
    return %arg0, %c0_i32 : i32, i32
  }
  func.func @transform_3(%arg0: i32) -> (i32, i32) {
    %c0_i32 = arith.constant 0 : i32
    %c0_i32_0 = arith.constant 0 : i32
    return %arg0, %c0_i32 : i32, i32
  }
  func.func @transform_4(%arg0: i32) -> (i32, i32) {
    %c0_i32 = arith.constant 0 : i32
    %c0_i32_0 = arith.constant 0 : i32
    return %arg0, %c0_i32 : i32, i32
  }
  func.func @transform_5(%arg0: i32) -> (i32, i32) {
    %c0_i32 = arith.constant 0 : i32
    %c0_i32_0 = arith.constant 0 : i32
    %c0_i32_1 = arith.constant 0 : i32
    return %c0_i32, %c0_i32_0 : i32, i32
  }
  func.func @transform_6(%arg0: i32) -> (i32, i32) {
    %c0_i32 = arith.constant 0 : i32
    %c0_i32_0 = arith.constant 0 : i32
    %c0_i32_1 = arith.constant 0 : i32
    return %c0_i32, %c0_i32_0 : i32, i32
  }
  func.func @transform_7(%arg0: i32) -> (i32, i32) {
    %c0_i32 = arith.constant 0 : i32
    %c0_i32_0 = arith.constant 0 : i32
    return %arg0, %c0_i32 : i32, i32
  }
  func.func @transform_8(%arg0: i32) -> (i32, i32) {
    %c0_i32 = arith.constant 0 : i32
    %c0_i32_0 = arith.constant 0 : i32
    return %arg0, %c0_i32 : i32, i32
  }
  func.func @transform_9(%arg0: i32) -> (i32, i32) {
    %c0_i32 = arith.constant 0 : i32
    %c0_i32_0 = arith.constant 0 : i32
    %c0_i32_1 = arith.constant 0 : i32
    return %c0_i32, %c0_i32_0 : i32, i32
  }
  func.func @transform_10(%arg0: i32) -> (i32, i32) {
    %c0_i32 = arith.constant 0 : i32
    %c0_i32_0 = arith.constant 0 : i32
    %c0_i32_1 = arith.constant 0 : i32
    return %c0_i32, %c0_i32_0 : i32, i32
  }
  func.func @transform_11(%arg0: i32) -> (i32, i32) {
    %c0_i32 = arith.constant 0 : i32
    %c0_i32_0 = arith.constant 0 : i32
    return %arg0, %c0_i32 : i32, i32
  }
  func.func @transform_12(%arg0: i32) -> (i32, i32) {
    %c0_i32 = arith.constant 0 : i32
    %c0_i32_0 = arith.constant 0 : i32
    return %arg0, %c0_i32 : i32, i32
  }
  func.func @transform_13(%arg0: i32) -> (i32, i32) {
    %c0_i32 = arith.constant 0 : i32
    %c0_i32_0 = arith.constant 0 : i32
    %c0_i32_1 = arith.constant 0 : i32
    return %c0_i32, %c0_i32_0 : i32, i32
  }
  func.func @transform_14(%arg0: i32) -> (i32, i32) {
    %c0_i32 = arith.constant 0 : i32
    %c0_i32_0 = arith.constant 0 : i32
    %c0_i32_1 = arith.constant 0 : i32
    return %c0_i32, %c0_i32_0 : i32, i32
  }
  func.func @transform_15(%arg0: i32) -> (i32, i32) {
    %c0_i32 = arith.constant 0 : i32
    %c0_i32_0 = arith.constant 0 : i32
    return %arg0, %c0_i32 : i32, i32
  }
  func.func @transform_16(%arg0: i32) -> (i32, i32) {
    %c0_i32 = arith.constant 0 : i32
    %c0_i32_0 = arith.constant 0 : i32
    return %arg0, %c0_i32 : i32, i32
  }
  func.func @transform_17(%arg0: i32) -> (i32, i32) {
    %c0_i32 = arith.constant 0 : i32
    %c0_i32_0 = arith.constant 0 : i32
    %c0_i32_1 = arith.constant 0 : i32
    return %c0_i32, %c0_i32_0 : i32, i32
  }
  func.func @transform_18(%arg0: i32) -> (i32, i32) {
    %c0_i32 = arith.constant 0 : i32
    %c0_i32_0 = arith.constant 0 : i32
    %c0_i32_1 = arith.constant 0 : i32
    return %c0_i32, %c0_i32_0 : i32, i32
  }
  func.func @transform_19(%arg0: i32) -> (i32, i32) {
    %c0_i32 = arith.constant 0 : i32
    %c0_i32_0 = arith.constant 0 : i32
    return %arg0, %c0_i32 : i32, i32
  }
  func.func @transform_20(%arg0: i32) -> (i32, i32) {
    %c0_i32 = arith.constant 0 : i32
    %c0_i32_0 = arith.constant 0 : i32
    return %arg0, %c0_i32 : i32, i32
  }
  func.func @transform_21(%arg0: i32) -> (i32, i32) {
    %c0_i32 = arith.constant 0 : i32
    %c0_i32_0 = arith.constant 0 : i32
    %c0_i32_1 = arith.constant 0 : i32
    return %c0_i32, %c0_i32_0 : i32, i32
  }
  func.func @transform_22(%arg0: i32) -> (i32, i32) {
    %c0_i32 = arith.constant 0 : i32
    %c0_i32_0 = arith.constant 0 : i32
    return %arg0, %c0_i32 : i32, i32
  }
  func.func @transform_23(%arg0: i32) -> (i32, i32) {
    %c0_i32 = arith.constant 0 : i32
    %c0_i32_0 = arith.constant 0 : i32
    return %arg0, %c0_i32 : i32, i32
  }
  func.func @transform_24(%arg0: i32) -> (i32, i32) {
    %c0_i32 = arith.constant 0 : i32
    %c0_i32_0 = arith.constant 0 : i32
    %c0_i32_1 = arith.constant 0 : i32
    return %c0_i32, %c0_i32_0 : i32, i32
  }
  func.func @transform_25(%arg0: i32) -> (i32, i32) {
    %c0_i32 = arith.constant 0 : i32
    %c0_i32_0 = arith.constant 0 : i32
    %c0_i32_1 = arith.constant 0 : i32
    return %c0_i32, %c0_i32_0 : i32, i32
  }
  func.func @transform_26(%arg0: i32) -> (i32, i32) {
    %c0_i32 = arith.constant 0 : i32
    %c0_i32_0 = arith.constant 0 : i32
    return %arg0, %c0_i32 : i32, i32
  }
  func.func @transform_27(%arg0: i32) -> (i32, i32) {
    %c0_i32 = arith.constant 0 : i32
    %c0_i32_0 = arith.constant 0 : i32
    return %arg0, %c0_i32 : i32, i32
  }
  func.func @transform_28(%arg0: i32) -> (i32, i32) {
    %c0_i32 = arith.constant 0 : i32
    %c0_i32_0 = arith.constant 0 : i32
    %c0_i32_1 = arith.constant 0 : i32
    return %c0_i32, %c0_i32_0 : i32, i32
  }
  func.func @transform_29(%arg0: i32) -> (i32, i32) {
    %c0_i32 = arith.constant 0 : i32
    %c0_i32_0 = arith.constant 0 : i32
    %c0_i32_1 = arith.constant 0 : i32
    return %c0_i32, %c0_i32_0 : i32, i32
  }
  func.func @transform_30(%arg0: i32) -> (i32, i32) {
    %c0_i32 = arith.constant 0 : i32
    %c0_i32_0 = arith.constant 0 : i32
    return %arg0, %c0_i32 : i32, i32
  }
  func.func @transform_31(%arg0: i32) -> (i32, i32) {
    %c0_i32 = arith.constant 0 : i32
    %c0_i32_0 = arith.constant 0 : i32
    return %arg0, %c0_i32 : i32, i32
  }
  func.func @transform_32(%arg0: i32) -> (i32, i32) {
    %c0_i32 = arith.constant 0 : i32
    %c0_i32_0 = arith.constant 0 : i32
    %c0_i32_1 = arith.constant 0 : i32
    return %c0_i32, %c0_i32_0 : i32, i32
  }
  func.func @transform_33(%arg0: i32) -> (i32, i32) {
    %c0_i32 = arith.constant 0 : i32
    %c0_i32_0 = arith.constant 0 : i32
    %c0_i32_1 = arith.constant 0 : i32
    return %c0_i32, %c0_i32_0 : i32, i32
  }
  func.func @transform_34(%arg0: i32) -> (i32, i32) {
    %c0_i32 = arith.constant 0 : i32
    %c0_i32_0 = arith.constant 0 : i32
    return %arg0, %c0_i32 : i32, i32
  }
  func.func @transform_35(%arg0: i32) -> (i32, i32) {
    %c0_i32 = arith.constant 0 : i32
    %c0_i32_0 = arith.constant 0 : i32
    return %arg0, %c0_i32 : i32, i32
  }
  func.func @transform_36(%arg0: i32) -> (i32, i32) {
    %c0_i32 = arith.constant 0 : i32
    %c0_i32_0 = arith.constant 0 : i32
    %c0_i32_1 = arith.constant 0 : i32
    return %c0_i32, %c0_i32_0 : i32, i32
  }
  func.func @transform_37(%arg0: i32) -> (i32, i32) {
    %c0_i32 = arith.constant 0 : i32
    %c0_i32_0 = arith.constant 0 : i32
    %c0_i32_1 = arith.constant 0 : i32
    return %c0_i32, %c0_i32_0 : i32, i32
  }
  func.func @transform_38(%arg0: i32) -> (i32, i32) {
    %c0_i32 = arith.constant 0 : i32
    %c0_i32_0 = arith.constant 0 : i32
    return %arg0, %c0_i32 : i32, i32
  }
  func.func @transform_39(%arg0: i32) -> (i32, i32) {
    %c0_i32 = arith.constant 0 : i32
    %c0_i32_0 = arith.constant 0 : i32
    return %arg0, %c0_i32 : i32, i32
  }
  func.func @transform_40(%arg0: i32) -> (i32, i32, i32) {
    %c0_i32 = arith.constant 0 : i32
    %c0_i32_0 = arith.constant 0 : i32
    %c0_i32_1 = arith.constant 0 : i32
    return %c0_i32, %arg0, %c0_i32_0 : i32, i32, i32
  }
}

</mosaic_0001>

<llo_original>
// kernel: _lambda_.3
$region0: #{_lambda_.3}
  #allocation0 [shape = 'u32[]', space=smem, size = 0x4, offset = 0x4, fixed_abs, tag = 'smem constant byte address 0x4 - core index']
  #allocation1 [shape = 'u32[144,128]{1,0:T(1,128)}', space=vmem, size = 0x12000, scoped, tag = 'internal scratch']
  %s0 = inlined_call_operand.vmem [shape: f32[2,64,4], index: 0, kind: input, shape index: {}]
  %s1 = inlined_call_operand.vmem [shape: bf16[4,64], index: 1, kind: input, shape index: {}]
  %s2 = inlined_call_operand.vmem [shape: f32[1,64], index: 2, kind: input, shape index: {}]
  %s3 = inlined_call_operand.vmem [shape: f32[64,1], index: 3, kind: input, shape index: {}]
  %s4 = inlined_call_operand.vmem [shape: f32[64,1], index: 4, kind: input, shape index: {}]
  %s5 = inlined_call_operand.vmem [shape: bf16[64,128], index: 5, kind: input, shape index: {}]
  %s6 = inlined_call_operand.vmem [shape: f32[1,128], index: 6, kind: input, shape index: {}]
  %s7 = inlined_call_operand.vmem [shape: f32[64,1], index: 7, kind: input, shape index: {}]
  %s8 = inlined_call_operand.vmem [shape: f32[64,1], index: 8, kind: input, shape index: {}]
  %s9 = inlined_call_operand.vmem [shape: bf16[128,256], index: 9, kind: input, shape index: {}]
  %s10 = inlined_call_operand.vmem [shape: f32[1,256], index: 10, kind: input, shape index: {}]
  %s11 = inlined_call_operand.vmem [shape: f32[64,1], index: 11, kind: input, shape index: {}]
  %s12 = inlined_call_operand.vmem [shape: f32[64,1], index: 12, kind: input, shape index: {}]
  %s13 = inlined_call_operand.vmem [shape: bf16[2,64,448], index: 13, kind: output, shape index: {0}]
  %s14 = inlined_call_operand.vmem [shape: f32[2,2,256], index: 14, kind: output, shape index: {1}]
  %15 = xla_tuple %s13, %s14
  %s16 = sld [smem:[#allocation0]]
  $region154: #{_lambda_.3} parent=0
    _
  %s18 = ssub.s32 1, %s16
  %s19 = scalar_select 0, %s18, %s16
  $region1: #{_lambda_.3} parent=0
    #allocation2 [shape = 'u8[32768]{0}', space=vmem, size = 0x8000, scoped, tag = 'input window, operand 0']
    #allocation3 [shape = 'u8[65536]{0}', space=vmem, size = 0x10000, scoped, tag = 'output window, operand 0']
    loop: start=0, step=1, limit=6
    $region2: #{_lambda_.3} parent=1 // loop_pre_header
      _
    $region3: #{_lambda_.3} parent=1 // loop_header
      %s21 = sphi 0, %s25
      %p22 = scmp.ge.s32.totalorder %s21, 6
      %s28 = sphi 0, %s40
      %s29 = sphi 0, %s36
      %s30 = sphi 0, %s28
      %s31 = sphi 0, %s29
      %s32 = sphi 0, %s30
      %s33 = sphi 0, %s31
      %s47 = sphi 0, %s49
      %s50 = sphi 0, %s47
      %s51 = sphi 0, %s50
      %s67 = sphi 0, %s51
      %s71 = sphi 0, %s71
      %s73 = sphi 0, %s71
      %s74 = sphi 0, %s73
      %s88 = sphi 0, %s74
      %s92 = sphi 0, %s92
      %s94 = sphi 0, %s92
      %s95 = sphi 0, %s94
      %s109 = sphi 0, %s95
      %s119 = sphi 0, %s121
      %s122 = sphi 0, %s119
      %s123 = sphi 0, %s122
      %s139 = sphi 0, %s123
      %s149 = sphi 0, %s151
      %s152 = sphi 0, %s149
      %s153 = sphi 0, %s152
      %s169 = sphi 0, %s153
      %s173 = sphi 0, %s173
      %s175 = sphi 0, %s173
      %s176 = sphi 0, %s175
      %s190 = sphi 0, %s176
      %s194 = sphi 0, %s194
      %s196 = sphi 0, %s194
      %s197 = sphi 0, %s196
      %s211 = sphi 0, %s197
      %s221 = sphi 0, %s223
      %s224 = sphi 0, %s221
      %s225 = sphi 0, %s224
      %s241 = sphi 0, %s225
      %s251 = sphi 0, %s253
      %s254 = sphi 0, %s251
      %s255 = sphi 0, %s254
      %s271 = sphi 0, %s255
      %s275 = sphi 0, %s275
      %s277 = sphi 0, %s275
      %s278 = sphi 0, %s277
      %s292 = sphi 0, %s278
      %s296 = sphi 0, %s296
      %s298 = sphi 0, %s296
      %s299 = sphi 0, %s298
      %s313 = sphi 0, %s299
      %s323 = sphi 0, %s325
      %s326 = sphi 0, %s323
      %s327 = sphi 0, %s326
      %s343 = sphi 0, %s327
      %s353 = sphi 0, %s355
      %s356 = sphi 0, %s353
      %s357 = sphi 0, %s356
      %s373 = sphi 0, %s357
      %s383 = sphi 0, %s385
      %s386 = sphi 0, %s383
      %s387 = sphi 0, %s386
      %s403 = sphi 0, %s387
      %s409 = sphi 0, %s411
      %s412 = sphi 0, %s409
      %s413 = sphi 0, %s412
      %s429 = sphi 0, %s413
    $region4: #{_lambda_.3} parent=1 // loop_header_branch
      %24 = sbr.rel (%p22) target = $region8
    $region5: #{_lambda_.3} parent=1 // loop_body
      %s26 = ssub.s32 %s21, 1
      %s27 = ssub.s32 %s21, 2
      %s34 = sadd.s32 1, %s29
      %p35 = scmp.ge.s32.totalorder %s34, 2
      %s36 = scalar_select %p35, 0, %s34
      %s37 = sadd.s32 1, %s28
      %s38 = scalar_select %p35, %s37, %s28
      %p39 = scmp.ge.s32.totalorder %s38, 2
      %s40 = scalar_select %p39, 0, %s38
      %s41 = smul.u32 %s28, 2
      %s42 = sadd.s32 %s41, %s29
      %s43 = smul.u32 %s40, 2
      %s44 = sadd.s32 %s43, %s36
      %s45 = ssub.s32 %s42, %s44
      %p46 = scmp.eq.s32.totalorder %s45, 0
      %s48 = sadd.s32 %s47, 1
      %s49 = scalar_select %p46, %s47, %s48
      %p52 = pneg %p46
      %p53 = scmp.eq.s32.totalorder %s21, 3
      %p54 = por %p52, %p53
      %p55 = scmp.ne.s32.totalorder %s47, %s50
      %p56 = scmp.eq.s32.totalorder %s21, 0
      %p57 = por %p55, %p56
      %p58 = scmp.ne.s32.totalorder %s47, %s50
      %p59 = scmp.eq.s32.totalorder %s26, 3
      %p60 = por %p58, %p59
      %p61 = scmp.ne.s32.totalorder %s50, %s51
      %p62 = scmp.eq.s32.totalorder %s26, 0
      %p63 = por %p61, %p62
      %p64 = scmp.ne.s32.totalorder %s50, %s51
      %p65 = scmp.eq.s32.totalorder %s27, 3
      %p66 = por %p64, %p65
      %p68 = scmp.ne.s32.totalorder %s51, %s67
      %p69 = scmp.eq.s32.totalorder %s27, 0
      %p70 = por %p68, %p69
      %s72 = sadd.s32 %s71, 1
      %p75 = scmp.eq.s32.totalorder %s21, 3
      %p76 = scmp.ne.s32.totalorder %s71, %s73
      %p77 = scmp.eq.s32.totalorder %s21, 0
      %p78 = por %p76, %p77
      %p79 = scmp.ne.s32.totalorder %s71, %s73
      %p80 = scmp.eq.s32.totalorder %s26, 3
      %p81 = por %p79, %p80
      %p82 = scmp.ne.s32.totalorder %s73, %s74
      %p83 = scmp.eq.s32.totalorder %s26, 0
      %p84 = por %p82, %p83
      %p85 = scmp.ne.s32.totalorder %s73, %s74
      %p86 = scmp.eq.s32.totalorder %s27, 3
      %p87 = por %p85, %p86
      %p89 = scmp.ne.s32.totalorder %s74, %s88
      %p90 = scmp.eq.s32.totalorder %s27, 0
      %p91 = por %p89, %p90
      %s93 = sadd.s32 %s92, 1
      %p96 = scmp.eq.s32.totalorder %s21, 3
      %p97 = scmp.ne.s32.totalorder %s92, %s94
      %p98 = scmp.eq.s32.totalorder %s21, 0
      %p99 = por %p97, %p98
      %p100 = scmp.ne.s32.totalorder %s92, %s94
      %p101 = scmp.eq.s32.totalorder %s26, 3
      %p102 = por %p100, %p101
      %p103 = scmp.ne.s32.totalorder %s94, %s95
      %p104 = scmp.eq.s32.totalorder %s26, 0
      %p105 = por %p103, %p104
      %p106 = scmp.ne.s32.totalorder %s94, %s95
      %p107 = scmp.eq.s32.totalorder %s27, 3
      %p108 = por %p106, %p107
      %p110 = scmp.ne.s32.totalorder %s95, %s109
      %p111 = scmp.eq.s32.totalorder %s27, 0
      %p112 = por %p110, %p111
      %s113 = smul.u32 %s28, 2
      %s114 = sadd.s32 %s113, %s29
      %s115 = smul.u32 %s40, 2
      %s116 = sadd.s32 %s115, %s36
      %s117 = ssub.s32 %s114, %s116
      %p118 = scmp.eq.s32.totalorder %s117, 0
      %s120 = sadd.s32 %s119, 1
      %s121 = scalar_select %p118, %s119, %s120
      %p124 = pneg %p118
      %p125 = scmp.eq.s32.totalorder %s21, 3
      %p126 = por %p124, %p125
      %p127 = scmp.ne.s32.totalorder %s119, %s122
      %p128 = scmp.eq.s32.totalorder %s21, 0
      %p129 = por %p127, %p128
      %p130 = scmp.ne.s32.totalorder %s119, %s122
      %p131 = scmp.eq.s32.totalorder %s26, 3
      %p132 = por %p130, %p131
      %p133 = scmp.ne.s32.totalorder %s122, %s123
      %p134 = scmp.eq.s32.totalorder %s26, 0
      %p135 = por %p133, %p134
      %p136 = scmp.ne.s32.totalorder %s122, %s123
      %p137 = scmp.eq.s32.totalorder %s27, 3
      %p138 = por %p136, %p137
      %p140 = scmp.ne.s32.totalorder %s123, %s139
      %p141 = scmp.eq.s32.totalorder %s27, 0
      %p142 = por %p140, %p141
      %s143 = smul.u32 %s28, 2
      %s144 = sadd.s32 %s143, %s29
      %s145 = smul.u32 %s40, 2
      %s146 = sadd.s32 %s145, %s36
      %s147 = ssub.s32 %s144, %s146
      %p148 = scmp.eq.s32.totalorder %s147, 0
      %s150 = sadd.s32 %s149, 1
      %s151 = scalar_select %p148, %s149, %s150
      %p154 = pneg %p148
      %p155 = scmp.eq.s32.totalorder %s21, 3
      %p156 = por %p154, %p155
      %p157 = scmp.ne.s32.totalorder %s149, %s152
      %p158 = scmp.eq.s32.totalorder %s21, 0
      %p159 = por %p157, %p158
      %p160 = scmp.ne.s32.totalorder %s149, %s152
      %p161 = scmp.eq.s32.totalorder %s26, 3
      %p162 = por %p160, %p161
      %p163 = scmp.ne.s32.totalorder %s152, %s153
      %p164 = scmp.eq.s32.totalorder %s26, 0
      %p165 = por %p163, %p164
      %p166 = scmp.ne.s32.totalorder %s152, %s153
      %p167 = scmp.eq.s32.totalorder %s27, 3
      %p168 = por %p166, %p167
      %p170 = scmp.ne.s32.totalorder %s153, %s169
      %p171 = scmp.eq.s32.totalorder %s27, 0
      %p172 = por %p170, %p171
      %s174 = sadd.s32 %s173, 1
      %p177 = scmp.eq.s32.totalorder %s21, 3
      %p178 = scmp.ne.s32.totalorder %s173, %s175
      %p179 = scmp.eq.s32.totalorder %s21, 0
      %p180 = por %p178, %p179
      %p181 = scmp.ne.s32.totalorder %s173, %s175
      %p182 = scmp.eq.s32.totalorder %s26, 3
      %p183 = por %p181, %p182
      %p184 = scmp.ne.s32.totalorder %s175, %s176
      %p185 = scmp.eq.s32.totalorder %s26, 0
      %p186 = por %p184, %p185
      %p187 = scmp.ne.s32.totalorder %s175, %s176
      %p188 = scmp.eq.s32.totalorder %s27, 3
      %p189 = por %p187, %p188
      %p191 = scmp.ne.s32.totalorder %s176, %s190
      %p192 = scmp.eq.s32.totalorder %s27, 0
      %p193 = por %p191, %p192
      %s195 = sadd.s32 %s194, 1
      %p198 = scmp.eq.s32.totalorder %s21, 3
      %p199 = scmp.ne.s32.totalorder %s194, %s196
      %p200 = scmp.eq.s32.totalorder %s21, 0
      %p201 = por %p199, %p200
      %p202 = scmp.ne.s32.totalorder %s194, %s196
      %p203 = scmp.eq.s32.totalorder %s26, 3
      %p204 = por %p202, %p203
      %p205 = scmp.ne.s32.totalorder %s196, %s197
      %p206 = scmp.eq.s32.totalorder %s26, 0
      %p207 = por %p205, %p206
      %p208 = scmp.ne.s32.totalorder %s196, %s197
      %p209 = scmp.eq.s32.totalorder %s27, 3
      %p210 = por %p208, %p209
      %p212 = scmp.ne.s32.totalorder %s197, %s211
      %p213 = scmp.eq.s32.totalorder %s27, 0
      %p214 = por %p212, %p213
      %s215 = smul.u32 %s28, 2
      %s216 = sadd.s32 %s215, %s29
      %s217 = smul.u32 %s40, 2
      %s218 = sadd.s32 %s217, %s36
      %s219 = ssub.s32 %s216, %s218
      %p220 = scmp.eq.s32.totalorder %s219, 0
      %s222 = sadd.s32 %s221, 1
      %s223 = scalar_select %p220, %s221, %s222
      %p226 = pneg %p220
      %p227 = scmp.eq.s32.totalorder %s21, 3
      %p228 = por %p226, %p227
      %p229 = scmp.ne.s32.totalorder %s221, %s224
      %p230 = scmp.eq.s32.totalorder %s21, 0
      %p231 = por %p229, %p230
      %p232 = scmp.ne.s32.totalorder %s221, %s224
      %p233 = scmp.eq.s32.totalorder %s26, 3
      %p234 = por %p232, %p233
      %p235 = scmp.ne.s32.totalorder %s224, %s225
      %p236 = scmp.eq.s32.totalorder %s26, 0
      %p237 = por %p235, %p236
      %p238 = scmp.ne.s32.totalorder %s224, %s225
      %p239 = scmp.eq.s32.totalorder %s27, 3
      %p240 = por %p238, %p239
      %p242 = scmp.ne.s32.totalorder %s225, %s241
      %p243 = scmp.eq.s32.totalorder %s27, 0
      %p244 = por %p242, %p243
      %s245 = smul.u32 %s28, 2
      %s246 = sadd.s32 %s245, %s29
      %s247 = smul.u32 %s40, 2
      %s248 = sadd.s32 %s247, %s36
      %s249 = ssub.s32 %s246, %s248
      %p250 = scmp.eq.s32.totalorder %s249, 0
      %s252 = sadd.s32 %s251, 1
      %s253 = scalar_select %p250, %s251, %s252
      %p256 = pneg %p250
      %p257 = scmp.eq.s32.totalorder %s21, 3
      %p258 = por %p256, %p257
      %p259 = scmp.ne.s32.totalorder %s251, %s254
      %p260 = scmp.eq.s32.totalorder %s21, 0
      %p261 = por %p259, %p260
      %p262 = scmp.ne.s32.totalorder %s251, %s254
      %p263 = scmp.eq.s32.totalorder %s26, 3
      %p264 = por %p262, %p263
      %p265 = scmp.ne.s32.totalorder %s254, %s255
      %p266 = scmp.eq.s32.totalorder %s26, 0
      %p267 = por %p265, %p266
      %p268 = scmp.ne.s32.totalorder %s254, %s255
      %p269 = scmp.eq.s32.totalorder %s27, 3
      %p270 = por %p268, %p269
      %p272 = scmp.ne.s32.totalorder %s255, %s271
      %p273 = scmp.eq.s32.totalorder %s27, 0
      %p274 = por %p272, %p273
      %s276 = sadd.s32 %s275, 1
      %p279 = scmp.eq.s32.totalorder %s21, 3
      %p280 = scmp.ne.s32.totalorder %s275, %s277
      %p281 = scmp.eq.s32.totalorder %s21, 0
      %p282 = por %p280, %p281
      %p283 = scmp.ne.s32.totalorder %s275, %s277
      %p284 = scmp.eq.s32.totalorder %s26, 3
      %p285 = por %p283, %p284
      %p286 = scmp.ne.s32.totalorder %s277, %s278
      %p287 = scmp.eq.s32.totalorder %s26, 0
      %p288 = por %p286, %p287
      %p289 = scmp.ne.s32.totalorder %s277, %s278
      %p290 = scmp.eq.s32.totalorder %s27, 3
      %p291 = por %p289, %p290
      %p293 = scmp.ne.s32.totalorder %s278, %s292
      %p294 = scmp.eq.s32.totalorder %s27, 0
      %p295 = por %p293, %p294
      %s297 = sadd.s32 %s296, 1
      %p300 = scmp.eq.s32.totalorder %s21, 3
      %p301 = scmp.ne.s32.totalorder %s296, %s298
      %p302 = scmp.eq.s32.totalorder %s21, 0
      %p303 = por %p301, %p302
      %p304 = scmp.ne.s32.totalorder %s296, %s298
      %p305 = scmp.eq.s32.totalorder %s26, 3
      %p306 = por %p304, %p305
      %p307 = scmp.ne.s32.totalorder %s298, %s299
      %p308 = scmp.eq.s32.totalorder %s26, 0
      %p309 = por %p307, %p308
      %p310 = scmp.ne.s32.totalorder %s298, %s299
      %p311 = scmp.eq.s32.totalorder %s27, 3
      %p312 = por %p310, %p311
      %p314 = scmp.ne.s32.totalorder %s299, %s313
      %p315 = scmp.eq.s32.totalorder %s27, 0
      %p316 = por %p314, %p315
      %s317 = smul.u32 %s28, 2
      %s318 = sadd.s32 %s317, %s29
      %s319 = smul.u32 %s40, 2
      %s320 = sadd.s32 %s319, %s36
      %s321 = ssub.s32 %s318, %s320
      %p322 = scmp.eq.s32.totalorder %s321, 0
      %s324 = sadd.s32 %s323, 1
      %s325 = scalar_select %p322, %s323, %s324
      %p328 = pneg %p322
      %p329 = scmp.eq.s32.totalorder %s21, 3
      %p330 = por %p328, %p329
      %p331 = scmp.ne.s32.totalorder %s323, %s326
      %p332 = scmp.eq.s32.totalorder %s21, 0
      %p333 = por %p331, %p332
      %p334 = scmp.ne.s32.totalorder %s323, %s326
      %p335 = scmp.eq.s32.totalorder %s26, 3
      %p336 = por %p334, %p335
      %p337 = scmp.ne.s32.totalorder %s326, %s327
      %p338 = scmp.eq.s32.totalorder %s26, 0
      %p339 = por %p337, %p338
      %p340 = scmp.ne.s32.totalorder %s326, %s327
      %p341 = scmp.eq.s32.totalorder %s27, 3
      %p342 = por %p340, %p341
      %p344 = scmp.ne.s32.totalorder %s327, %s343
      %p345 = scmp.eq.s32.totalorder %s27, 0
      %p346 = por %p344, %p345
      %s347 = smul.u32 %s28, 2
      %s348 = sadd.s32 %s347, %s29
      %s349 = smul.u32 %s40, 2
      %s350 = sadd.s32 %s349, %s36
      %s351 = ssub.s32 %s348, %s350
      %p352 = scmp.eq.s32.totalorder %s351, 0
      %s354 = sadd.s32 %s353, 1
      %s355 = scalar_select %p352, %s353, %s354
      %p358 = pneg %p352
      %p359 = scmp.eq.s32.totalorder %s21, 3
      %p360 = por %p358, %p359
      %p361 = scmp.ne.s32.totalorder %s353, %s356
      %p362 = scmp.eq.s32.totalorder %s21, 0
      %p363 = por %p361, %p362
      %p364 = scmp.ne.s32.totalorder %s353, %s356
      %p365 = scmp.eq.s32.totalorder %s26, 3
      %p366 = por %p364, %p365
      %p367 = scmp.ne.s32.totalorder %s356, %s357
      %p368 = scmp.eq.s32.totalorder %s26, 0
      %p369 = por %p367, %p368
      %p370 = scmp.ne.s32.totalorder %s356, %s357
      %p371 = scmp.eq.s32.totalorder %s27, 3
      %p372 = por %p370, %p371
      %p374 = scmp.ne.s32.totalorder %s357, %s373
      %p375 = scmp.eq.s32.totalorder %s27, 0
      %p376 = por %p374, %p375
      %s377 = smul.u32 %s28, 2
      %s378 = sadd.s32 %s377, %s29
      %s379 = smul.u32 %s40, 2
      %s380 = sadd.s32 %s379, %s36
      %s381 = ssub.s32 %s378, %s380
      %p382 = scmp.eq.s32.totalorder %s381, 0
      %s384 = sadd.s32 %s383, 1
      %s385 = scalar_select %p382, %s383, %s384
      %p388 = pneg %p382
      %p389 = scmp.eq.s32.totalorder %s21, 3
      %p390 = por %p388, %p389
      %p391 = scmp.ne.s32.totalorder %s383, %s386
      %p392 = scmp.eq.s32.totalorder %s21, 0
      %p393 = por %p391, %p392
      %p394 = scmp.ne.s32.totalorder %s383, %s386
      %p395 = scmp.eq.s32.totalorder %s26, 3
      %p396 = por %p394, %p395
      %p397 = scmp.ne.s32.totalorder %s386, %s387
      %p398 = scmp.eq.s32.totalorder %s26, 0
      %p399 = por %p397, %p398
      %p400 = scmp.ne.s32.totalorder %s386, %s387
      %p401 = scmp.eq.s32.totalorder %s27, 3
      %p402 = por %p400, %p401
      %p404 = scmp.ne.s32.totalorder %s387, %s403
      %p405 = scmp.eq.s32.totalorder %s27, 0
      %p406 = por %p404, %p405
      %s407 = ssub.s32 %s28, %s40
      %p408 = scmp.eq.s32.totalorder %s407, 0
      %s410 = sadd.s32 %s409, 1
      %s411 = scalar_select %p408, %s409, %s410
      %p414 = pneg %p408
      %p415 = scmp.eq.s32.totalorder %s21, 3
      %p416 = por %p414, %p415
      %p417 = scmp.ne.s32.totalorder %s409, %s412
      %p418 = scmp.eq.s32.totalorder %s21, 0
      %p419 = por %p417, %p418
      %p420 = scmp.ne.s32.totalorder %s409, %s412
      %p421 = scmp.eq.s32.totalorder %s26, 3
      %p422 = por %p420, %p421
      %p423 = scmp.ne.s32.totalorder %s412, %s413
      %p424 = scmp.eq.s32.totalorder %s26, 0
      %p425 = por %p423, %p424
      %p426 = scmp.ne.s32.totalorder %s412, %s413
      %p427 = scmp.eq.s32.totalorder %s27, 3
      %p428 = por %p426, %p427
      %p430 = scmp.ne.s32.totalorder %s413, %s429
      %p431 = scmp.eq.s32.totalorder %s27, 0
      %p432 = por %p430, %p431
      %p433 = scmp.le.s32.totalorder 1, %s21
      %p434 = scmp.lt.s32.totalorder %s21, 5
      %p435 = pnand %p433, %p434
      %p436 = pneg %p435
      // Predicated region
      $region9: #{_lambda_.3} parent=5 // pred_check
        _
      $region10: #{_lambda_.3} parent=5 // pred_check_branch
        %438 = sbr.rel (%p435) target = $region12
      $region11: #{_lambda_.3} parent=5 // pred_region
        %s439 = ssub.s32 %s21, 1
        // Predicated region
        $region13: #{_lambda_.3} parent=11 // pred_check
          %p440 = pneg %p84
        $region14: #{_lambda_.3} parent=11 // pred_check_branch
          %442 = sbr.rel (%p440) target = $region16
        $region15: #{_lambda_.3} parent=11 // pred_region
          _
        $region16: #{_lambda_.3} parent=11 // pred_fallthru
          _
        // Predicated region
        $region17: #{_lambda_.3} parent=11 // pred_check
          %p443 = pneg %p105
        $region18: #{_lambda_.3} parent=11 // pred_check_branch
          %445 = sbr.rel (%p443) target = $region20
        $region19: #{_lambda_.3} parent=11 // pred_region
          _
        $region20: #{_lambda_.3} parent=11 // pred_fallthru
          _
        // Predicated region
        $region21: #{_lambda_.3} parent=11 // pred_check
          %p446 = pneg %p186
        $region22: #{_lambda_.3} parent=11 // pred_check_branch
          %448 = sbr.rel (%p446) target = $region24
        $region23: #{_lambda_.3} parent=11 // pred_region
          _
        $region24: #{_lambda_.3} parent=11 // pred_fallthru
          _
        // Predicated region
        $region25: #{_lambda_.3} parent=11 // pred_check
          %p449 = pneg %p207
        $region26: #{_lambda_.3} parent=11 // pred_check_branch
          %451 = sbr.rel (%p449) target = $region28
        $region27: #{_lambda_.3} parent=11 // pred_region
          _
        $region28: #{_lambda_.3} parent=11 // pred_fallthru
          _
        // Predicated region
        $region29: #{_lambda_.3} parent=11 // pred_check
          %p452 = pneg %p288
        $region30: #{_lambda_.3} parent=11 // pred_check_branch
          %454 = sbr.rel (%p452) target = $region32
        $region31: #{_lambda_.3} parent=11 // pred_region
          _
        $region32: #{_lambda_.3} parent=11 // pred_fallthru
          _
        // Predicated region
        $region33: #{_lambda_.3} parent=11 // pred_check
          %p455 = pneg %p309
        $region34: #{_lambda_.3} parent=11 // pred_check_branch
          %457 = sbr.rel (%p455) target = $region36
        $region35: #{_lambda_.3} parent=11 // pred_region
          _
        $region36: #{_lambda_.3} parent=11 // pred_fallthru
          _
      $region12: #{_lambda_.3} parent=5 // pred_fallthru
        _
      %p458 = scmp.lt.s32.totalorder %s21, 4
      // Predicated region
      $region37: #{_lambda_.3} parent=5 // pred_check
        %p459 = pneg %p458
      $region38: #{_lambda_.3} parent=5 // pred_check_branch
        %461 = sbr.rel (%p459) target = $region40
      $region39: #{_lambda_.3} parent=5 // pred_region
        // Predicated region
        $region41: #{_lambda_.3} parent=39 // pred_check
          %p462 = pneg %p57
        $region42: #{_lambda_.3} parent=39 // pred_check_branch
          %464 = sbr.rel (%p462) target = $region44
        $region43: #{_lambda_.3} parent=39 // pred_region
          %s465 = sand.u32 %s47, 1
          %s466 = sand.u32 %s47, 1
          %s467 = smul.addr %s466, 32
          %s468 = scalar_lea.vmem [#allocation2], %s467
          %s469 = smul.u32 %s28, 2
          %s470 = sadd.s32 %s469, %s29
          %s471 = smul.u32 2, %s470
          %s472 = smul.addr %s471, 8
          %s473 = scalar_lea.vmem %s0, %s472
          // Predicated region
          $region45: #{_lambda_.3} parent=43 // pred_check
            _
          $region46: #{_lambda_.3} parent=43 // pred_check_branch
            %475 = sbr.rel (0) target = $region48
          $region47: #{_lambda_.3} parent=43 // pred_region
            // Predicated region
            $region49: #{_lambda_.3} parent=47 // pred_check
              _
            $region50: #{_lambda_.3} parent=47 // pred_check_branch
              %477 = sbr.rel (0) target = $region52
            $region51: #{_lambda_.3} parent=47 // pred_region
              // Predicated region
              $region64: #{_lambda_.3} parent=51 // pred_check
                _
              $region65: #{_lambda_.3} parent=51 // pred_check_branch
                %498 = sbr.rel (0) target = $region67
              $region66: #{_lambda_.3} parent=51 // pred_region
                loop: start=0, step=1, limit=1
                $region68: #{_lambda_.3} parent=66 // loop_pre_header
                  _
                $region69: #{_lambda_.3} parent=66 // loop_header
                  %s500 = sphi 0, %s504
                  %p501 = scmp.ge.s32.totalorder %s500, 1
                  %s505 = sphi %s473, %s473
                  %s506 = sphi %s468, %s468
                $region70: #{_lambda_.3} parent=66 // loop_header_branch
                  %503 = sbr.rel (%p501) target = $region74
                $region71: #{_lambda_.3} parent=66 // loop_body
                  %v507 = vld [vmem:[%s505] sm:$0xff]
                  %508 = vst [vmem:[%s506] sm:$0xff] %v507
                  %v509 = vld [vmem:[%s505 + $0x8] sm:$0xff]
                  %510 = vst [vmem:[%s506 + $0x8] sm:$0xff] %v509
                  %v511 = vld [vmem:[%s505 + $0x40] sm:$0xff]
                  %512 = vst [vmem:[%s506 + $0x10] sm:$0xff] %v511
                  %v513 = vld [vmem:[%s505 + $0x48] sm:$0xff]
                  %514 = vst [vmem:[%s506 + $0x18] sm:$0xff] %v513
                $region72: #{_lambda_.3} parent=66 // loop_footer
                  %s504 = sadd.s32 1, %s500
                $region73: #{_lambda_.3} parent=66 // loop_footer_branch
                  %499 = sbr.rel target = $region69
                $region74: #{_lambda_.3} parent=66 // loop_exit
                  _
              $region67: #{_lambda_.3} parent=51 // pred_fallthru
                _
              // Predicated region
              $region75: #{_lambda_.3} parent=51 // pred_check
                _
              $region76: #{_lambda_.3} parent=51 // pred_check_branch
                %516 = sbr.rel target = $region78
              $region77: #{_lambda_.3} parent=51 // pred_region
                _
              $region78: #{_lambda_.3} parent=51 // pred_fallthru
                _
            $region52: #{_lambda_.3} parent=47 // pred_fallthru
              _
            // Predicated region
            $region53: #{_lambda_.3} parent=47 // pred_check
              _
            $region54: #{_lambda_.3} parent=47 // pred_check_branch
              %479 = sbr.rel target = $region56
            $region55: #{_lambda_.3} parent=47 // pred_region
              loop: start=0, step=1, limit=1
              $region57: #{_lambda_.3} parent=55 // loop_pre_header
                _
              $region58: #{_lambda_.3} parent=55 // loop_header
                %s482 = sphi 0, %s486
                %p483 = scmp.ge.s32.totalorder %s482, 1
                %s487 = sphi %s473, %s473
                %s488 = sphi %s468, %s468
              $region59: #{_lambda_.3} parent=55 // loop_header_branch
                %485 = sbr.rel (%p483) target = $region63
              $region60: #{_lambda_.3} parent=55 // loop_body
                %v489 = vld [vmem:[%s487] sm:$0xff]
                %490 = vst [vmem:[%s488] sm:$0xff] %v489
                %v491 = vld [vmem:[%s487 + $0x8] sm:$0xff]
                %492 = vst [vmem:[%s488 + $0x8] sm:$0xff] %v491
                %v493 = vld [vmem:[%s487 + $0x40] sm:$0xff]
                %494 = vst [vmem:[%s488 + $0x10] sm:$0xff] %v493
                %v495 = vld [vmem:[%s487 + $0x48] sm:$0xff]
                %496 = vst [vmem:[%s488 + $0x18] sm:$0xff] %v495
              $region61: #{_lambda_.3} parent=55 // loop_footer
                %s486 = sadd.s32 1, %s482
              $region62: #{_lambda_.3} parent=55 // loop_footer_branch
                %481 = sbr.rel target = $region58
              $region63: #{_lambda_.3} parent=55 // loop_exit
                _
            $region56: #{_lambda_.3} parent=47 // pred_fallthru
              _
          $region48: #{_lambda_.3} parent=43 // pred_fallthru
            _
          %517 = vnop
        $region44: #{_lambda_.3} parent=39 // pred_fallthru
          _
        // Predicated region
        $region79: #{_lambda_.3} parent=39 // pred_check
          %p518 = pneg %p129
        $region80: #{_lambda_.3} parent=39 // pred_check_branch
          %520 = sbr.rel (%p518) target = $region82
        $region81: #{_lambda_.3} parent=39 // pred_region
          %s521 = smul.u32 %s28, 2
          %s522 = sadd.s32 %s521, %s29
          %s523 = smul.u32 2, %s522
          %p524 = scmp.lt.s32.totalorder %s523, 7
          %s525 = scalar_select %p524, %s523, 7
          %s526 = smul.addr %s525, 8
          %s527 = scalar_lea.vmem %s3, %s526
          %s528 = smul.u32 %s28, 2
          %s529 = sadd.s32 %s528, %s29
          %s530 = smul.u32 2, %s529
        $region82: #{_lambda_.3} parent=39 // pred_fallthru
          _
        // Predicated region
        $region83: #{_lambda_.3} parent=39 // pred_check
          %p531 = pneg %p159
        $region84: #{_lambda_.3} parent=39 // pred_check_branch
          %533 = sbr.rel (%p531) target = $region86
        $region85: #{_lambda_.3} parent=39 // pred_region
          %s534 = smul.u32 %s28, 2
          %s535 = sadd.s32 %s534, %s29
          %s536 = smul.u32 2, %s535
          %p537 = scmp.lt.s32.totalorder %s536, 7
          %s538 = scalar_select %p537, %s536, 7
          %s539 = smul.addr %s538, 8
          %s540 = scalar_lea.vmem %s4, %s539
          %s541 = smul.u32 %s28, 2
          %s542 = sadd.s32 %s541, %s29
          %s543 = smul.u32 2, %s542
        $region86: #{_lambda_.3} parent=39 // pred_fallthru
          _
        // Predicated region
        $region87: #{_lambda_.3} parent=39 // pred_check
          %p544 = pneg %p231
        $region88: #{_lambda_.3} parent=39 // pred_check_branch
          %546 = sbr.rel (%p544) target = $region90
        $region89: #{_lambda_.3} parent=39 // pred_region
          %s547 = smul.u32 %s28, 2
          %s548 = sadd.s32 %s547, %s29
          %s549 = smul.u32 2, %s548
          %p550 = scmp.lt.s32.totalorder %s549, 7
          %s551 = scalar_select %p550, %s549, 7
          %s552 = smul.addr %s551, 8
          %s553 = scalar_lea.vmem %s7, %s552
          %s554 = smul.u32 %s28, 2
          %s555 = sadd.s32 %s554, %s29
          %s556 = smul.u32 2, %s555
        $region90: #{_lambda_.3} parent=39 // pred_fallthru
          _
        // Predicated region
        $region91: #{_lambda_.3} parent=39 // pred_check
          %p557 = pneg %p261
        $region92: #{_lambda_.3} parent=39 // pred_check_branch
          %559 = sbr.rel (%p557) target = $region94
        $region93: #{_lambda_.3} parent=39 // pred_region
          %s560 = smul.u32 %s28, 2
          %s561 = sadd.s32 %s560, %s29
          %s562 = smul.u32 2, %s561
          %p563 = scmp.lt.s32.totalorder %s562, 7
          %s564 = scalar_select %p563, %s562, 7
          %s565 = smul.addr %s564, 8
          %s566 = scalar_lea.vmem %s8, %s565
          %s567 = smul.u32 %s28, 2
          %s568 = sadd.s32 %s567, %s29
          %s569 = smul.u32 2, %s568
        $region94: #{_lambda_.3} parent=39 // pred_fallthru
          _
        // Predicated region
        $region95: #{_lambda_.3} parent=39 // pred_check
          %p570 = pneg %p333
        $region96: #{_lambda_.3} parent=39 // pred_check_branch
          %572 = sbr.rel (%p570) target = $region98
        $region97: #{_lambda_.3} parent=39 // pred_region
          %s573 = smul.u32 %s28, 2
          %s574 = sadd.s32 %s573, %s29
          %s575 = smul.u32 2, %s574
          %p576 = scmp.lt.s32.totalorder %s575, 7
          %s577 = scalar_select %p576, %s575, 7
          %s578 = smul.addr %s577, 8
          %s579 = scalar_lea.vmem %s11, %s578
          %s580 = smul.u32 %s28, 2
          %s581 = sadd.s32 %s580, %s29
          %s582 = smul.u32 2, %s581
        $region98: #{_lambda_.3} parent=39 // pred_fallthru
          _
        // Predicated region
        $region99: #{_lambda_.3} parent=39 // pred_check
          %p583 = pneg %p363
        $region100: #{_lambda_.3} parent=39 // pred_check_branch
          %585 = sbr.rel (%p583) target = $region102
        $region101: #{_lambda_.3} parent=39 // pred_region
          %s586 = smul.u32 %s28, 2
          %s587 = sadd.s32 %s586, %s29
          %s588 = smul.u32 2, %s587
          %p589 = scmp.lt.s32.totalorder %s588, 7
          %s590 = scalar_select %p589, %s588, 7
          %s591 = smul.addr %s590, 8
          %s592 = scalar_lea.vmem %s12, %s591
          %s593 = smul.u32 %s28, 2
          %s594 = sadd.s32 %s593, %s29
          %s595 = smul.u32 2, %s594
        $region102: #{_lambda_.3} parent=39 // pred_fallthru
          _
      $region40: #{_lambda_.3} parent=5 // pred_fallthru
        _
      %p596 = scmp.le.s32.totalorder 1, %s21
      %p597 = scmp.lt.s32.totalorder %s21, 5
      %p598 = pnand %p596, %p597
      %p599 = pneg %p598
      // Predicated region
      $region103: #{_lambda_.3} parent=5 // pred_check
        _
      $region104: #{_lambda_.3} parent=5 // pred_check_branch
        %601 = sbr.rel (%p598) target = $region106
      $region105: #{_lambda_.3} parent=5 // pred_region
        %s602 = ssub.s32 %s21, 1
        %s603 = sand.u32 %s50, 1
        %s604 = sand.u32 %s50, 1
        %s605 = smul.addr %s604, 32
        %s606 = scalar_lea.vmem [#allocation2], %s605
        // Predicated region
        $region107: #{_lambda_.3} parent=105 // pred_check
          %p607 = pneg %p63
        $region108: #{_lambda_.3} parent=105 // pred_check_branch
          %609 = sbr.rel (%p607) target = $region110
        $region109: #{_lambda_.3} parent=105 // pred_region
          _
        $region110: #{_lambda_.3} parent=105 // pred_fallthru
          _
        %s610 = sand.u32 %s50, 1
        %s611 = sand.u32 %s50, 1
        %s612 = smul.addr %s611, 32
        %s613 = scalar_lea.vmem [#allocation2], %s612
        %p614 = pneg %p63
        %p615 = pneg %p60
        %p616 = pneg %p84
        %p617 = pneg %p81
        %p618 = pneg %p105
        %p619 = pneg %p102
        %s620 = smul.u32 %s30, 2
        %s621 = sadd.s32 %s620, %s31
        %s622 = smul.u32 2, %s621
        %p623 = scmp.lt.s32.totalorder %s622, 7
        %s624 = scalar_select %p623, %s622, 7
        %s625 = smul.addr %s624, 8
        %s626 = scalar_lea.vmem %s3, %s625
        %p627 = pneg %p135
        %p628 = pneg %p132
        %s629 = smul.u32 %s30, 2
        %s630 = sadd.s32 %s629, %s31
        %s631 = smul.u32 2, %s630
        %p632 = scmp.lt.s32.totalorder %s631, 7
        %s633 = scalar_select %p632, %s631, 7
        %s634 = smul.addr %s633, 8
        %s635 = scalar_lea.vmem %s4, %s634
        %p636 = pneg %p165
        %p637 = pneg %p162
        %p638 = pneg %p186
        %p639 = pneg %p183
        %p640 = pneg %p207
        %p641 = pneg %p204
        %s642 = smul.u32 %s30, 2
        %s643 = sadd.s32 %s642, %s31
        %s644 = smul.u32 2, %s643
        %p645 = scmp.lt.s32.totalorder %s644, 7
        %s646 = scalar_select %p645, %s644, 7
        %s647 = smul.addr %s646, 8
        %s648 = scalar_lea.vmem %s7, %s647
        %p649 = pneg %p237
        %p650 = pneg %p234
        %s651 = smul.u32 %s30, 2
        %s652 = sadd.s32 %s651, %s31
        %s653 = smul.u32 2, %s652
        %p654 = scmp.lt.s32.totalorder %s653, 7
        %s655 = scalar_select %p654, %s653, 7
        %s656 = smul.addr %s655, 8
        %s657 = scalar_lea.vmem %s8, %s656
        %p658 = pneg %p267
        %p659 = pneg %p264
        %p660 = pneg %p288
        %p661 = pneg %p285
        %p662 = pneg %p309
        %p663 = pneg %p306
        %s664 = smul.u32 %s30, 2
        %s665 = sadd.s32 %s664, %s31
        %s666 = smul.u32 2, %s665
        %p667 = scmp.lt.s32.totalorder %s666, 7
        %s668 = scalar_select %p667, %s666, 7
        %s669 = smul.addr %s668, 8
        %s670 = scalar_lea.vmem %s11, %s669
        %p671 = pneg %p339
        %p672 = pneg %p336
        %s673 = smul.u32 %s30, 2
        %s674 = sadd.s32 %s673, %s31
        %s675 = smul.u32 2, %s674
        %p676 = scmp.lt.s32.totalorder %s675, 7
        %s677 = scalar_select %p676, %s675, 7
        %s678 = smul.addr %s677, 8
        %s679 = scalar_lea.vmem %s12, %s678
        %p680 = pneg %p369
        %p681 = pneg %p366
        %p682 = pneg %p399
        %p683 = pneg %p396
        %s684 = sand.u32 %s386, 1
        %s685 = sand.u32 %s386, 1
        %s686 = smul.addr %s685, 64
        %s687 = scalar_lea.vmem [#allocation3], %s686
        %p688 = pneg %p425
        %p689 = pneg %p422
        %p690 = scmp.lt.s32.totalorder %s30, 1
        %s691 = scalar_select %p690, %s30, 1
        %s692 = smul.addr %s691, 2
        %s693 = smul.addr %s692, 2
        %s694 = scalar_lea.vmem %s14, %s693
        %s695 = smul.u32 %s30, 2
        %s696 = sadd.s32 %s695, %s31
        %s697 = smul.u32 2, %s696
        %s698 = smul.u32 %s30, 2
        %s699 = sadd.s32 %s698, %s31
        %s700 = smul.u32 2, %s699
        %p701 = scmp.lt.s32.totalorder %s700, 7
        %s702 = scalar_select %p701, %s700, 7
        %s703 = smul.addr %s702, 8
        %s704 = scalar_lea.vmem %s3, %s703
        %s705 = smul.u32 %s30, 2
        %s706 = sadd.s32 %s705, %s31
        %s707 = smul.u32 2, %s706
        %s708 = smul.u32 %s30, 2
        %s709 = sadd.s32 %s708, %s31
        %s710 = smul.u32 2, %s709
        %p711 = scmp.lt.s32.totalorder %s710, 7
        %s712 = scalar_select %p711, %s710, 7
        %s713 = smul.addr %s712, 8
        %s714 = scalar_lea.vmem %s4, %s713
        %s715 = smul.u32 %s30, 2
        %s716 = sadd.s32 %s715, %s31
        %s717 = smul.u32 2, %s716
        %s718 = smul.u32 %s30, 2
        %s719 = sadd.s32 %s718, %s31
        %s720 = smul.u32 2, %s719
        %p721 = scmp.lt.s32.totalorder %s720, 7
        %s722 = scalar_select %p721, %s720, 7
        %s723 = smul.addr %s722, 8
        %s724 = scalar_lea.vmem %s7, %s723
        %s725 = smul.u32 %s30, 2
        %s726 = sadd.s32 %s725, %s31
        %s727 = smul.u32 2, %s726
        %s728 = smul.u32 %s30, 2
        %s729 = sadd.s32 %s728, %s31
        %s730 = smul.u32 2, %s729
        %p731 = scmp.lt.s32.totalorder %s730, 7
        %s732 = scalar_select %p731, %s730, 7
        %s733 = smul.addr %s732, 8
        %s734 = scalar_lea.vmem %s8, %s733
        %s735 = smul.u32 %s30, 2
        %s736 = sadd.s32 %s735, %s31
        %s737 = smul.u32 2, %s736
        %s738 = smul.u32 %s30, 2
        %s739 = sadd.s32 %s738, %s31
        %s740 = smul.u32 2, %s739
        %p741 = scmp.lt.s32.totalorder %s740, 7
        %s742 = scalar_select %p741, %s740, 7
        %s743 = smul.addr %s742, 8
        %s744 = scalar_lea.vmem %s11, %s743
        %s745 = smul.u32 %s30, 2
        %s746 = sadd.s32 %s745, %s31
        %s747 = smul.u32 2, %s746
        %s748 = smul.u32 %s30, 2
        %s749 = sadd.s32 %s748, %s31
        %s750 = smul.u32 2, %s749
        %p751 = scmp.lt.s32.totalorder %s750, 7
        %s752 = scalar_select %p751, %s750, 7
        %s753 = smul.addr %s752, 8
        %s754 = scalar_lea.vmem %s12, %s753
        %s755 = smul.u32 %s30, 2
        %s756 = sadd.s32 %s755, %s31
        %s757 = smul.u32 2, %s756
        %s758 = smul.u32 %s30, 2
        %s759 = sadd.s32 %s758, %s31
        %s760 = smul.u32 2, %s759
        %p761 = scmp.lt.s32.totalorder %s30, 1
        %s762 = scalar_select %p761, %s30, 1
        %s763 = smul.addr %s762, 2
        %s764 = smul.addr %s763, 2
        %s765 = scalar_lea.vmem %s14, %s764
        %p767 = scmp.eq.s32.totalorder %s31, 0
        // Predicated region
        $region111: #{_lambda_.3} parent=105 // pred_check
          %p768 = pneg %p767
        $region112: #{_lambda_.3} parent=105 // pred_check_branch
          %770 = sbr.rel (%p768) target = $region114
        $region113: #{_lambda_.3} parent=105 // pred_region
          %771 = vst [vmem:[%s765] sm:$0xf] -inf
        $region114: #{_lambda_.3} parent=105 // pred_fallthru
          _
        %v772 = vld [vmem:[%s606] sm:$0xff]
        %v773 = vld [vmem:[%s606 + $0x8] sm:$0xff]
        %v774 = vld [vmem:[%s606 + $0x10] sm:$0xff]
        %v775 = vld [vmem:[%s606 + $0x18] sm:$0xff]
        %v776 = vld [vmem:[%s1] sm:$0x3]
        %v777 = vpack.c.bf16 %v773, %v772
        %v778 = vpack.c.bf16 %v775, %v774
        %v779 = vld [vmem:[%s2] sm:$0x1]
        %v781 = vlaneseq
        %v782 = vshrl.u32 %v781, 7
        %v783 = vsub.s32 0, %v782
        %v784 = vrot.slane %v779, %v783
        %vm786 = vcmask 31744
        %v788 = vsel %vm786, %v777, 0
        %v791 = vsel %vm786, %v778, 0
        %vm793 = vcmask 1041408
        %v795 = vsel %vm793, %v776, 0
        %797 = vmatprep.subr.bf16.mxu0 0
        %798 = vmatpush1.bf16.msra.mxu0 %v795
        %799 = vmatprep.subr.bf16.mxu0 0
        %800 = vmatpush1.bf16.msra.mxu0 0
        %801 = vmatprep.subr.bf16.mxu0 0
        %802 = vmatpush1.bf16.msra.mxu0 0
        %803 = vmatprep.subr.bf16.mxu0 0
        %804 = vmatpush1.bf16.msra.mxu0 0
        %805 = vmatprep.subr.bf16.mxu0 0
        %806 = vmatpush1.bf16.msra.mxu0 0
        %807 = vmatprep.subr.bf16.mxu0 0
        %808 = vmatpush1.bf16.msra.mxu0 0
        %809 = vmatprep.subr.bf16.mxu0 0
        %810 = vmatpush1.bf16.msra.mxu0 0
        %811 = vmatprep.subr.bf16.mxu0 0
        %812 = vmatpush1.bf16.msra.mxu0 0
        %813 = vmatprep.subr.bf16.mxu0 0
        %814 = vmatpush1.bf16.msra.mxu0 0
        %815 = vmatprep.subr.bf16.mxu0 0
        %816 = vmatpush1.bf16.msra.mxu0 0
        %817 = vmatprep.subr.bf16.mxu0 0
        %818 = vmatpush1.bf16.msra.mxu0 0
        %819 = vmatprep.subr.bf16.mxu0 0
        %820 = vmatpush1.bf16.msra.mxu0 0
        %821 = vmatprep.subr.bf16.mxu0 0
        %822 = vmatpush1.bf16.msra.mxu0 0
        %823 = vmatprep.subr.bf16.mxu0 0
        %824 = vmatpush1.bf16.msra.mxu0 0
        %825 = vmatprep.subr.bf16.mxu0 0
        %826 = vmatpush1.bf16.msra.mxu0 0
        %827 = vmatprep.subr.bf16.mxu0 0
        %828 = vmatpush1.bf16.msra.mxu0 0
        %829 = vmatprep.mubr.bf16.mxu0 0
        %830 = vmatmul.mubr.bf16.gmra.mrb[0].mxu0 %v788
        %v831 = vpop.f32.mrb[0].mxu0
        %v832 = vadd.f32 %v784, %v831
        %v833 = vpop.f32.mrb[0].mxu0
        %v834 = vpop.f32.mrb[0].mxu0
        %v835 = vadd.f32 %v784, %v834
        %v836 = vpop.f32.mrb[0].mxu0
        %837 = vmatprep.mubr.bf16.mxu0 0
        %838 = vmatmul.mubr.bf16.gmra.mrb[0].mxu0 %v791
        %v839 = vpop.f32.mrb[0].mxu0
        %v840 = vadd.f32 %v784, %v839
        %v841 = vpop.f32.mrb[0].mxu0
        %v842 = vpop.f32.mrb[0].mxu0
        %v843 = vadd.f32 %v784, %v842
        %v844 = vpop.f32.mrb[0].mxu0
        %845 = vdwg.mxu0
        %v846 = vld [vmem:[%s704] sm:$0xff]
        %v847 = vld [vmem:[%s704 + $0x8] sm:$0xff]
        %v848 = vld [vmem:[%s714] sm:$0xff]
        %v849 = vld [vmem:[%s714 + $0x8] sm:$0xff]
        %vm850 = vcmask 523264
        %v851 = vsel %vm850, %v832, 0.0
        %v852 = vsel %vm850, %v840, 0.0
        %v853 = vadd.f32 %v851, %v852
        %854 = vadd.xlane.f32.xlu0 %v853
        %v855 = vpop.xlane.xlu0 %854
        %v856 = vsel %vm850, %v835, 0.0
        %v857 = vsel %vm850, %v843, 0.0
        %v858 = vadd.f32 %v856, %v857
        %859 = vadd.xlane.f32.xlu0 %v858
        %v860 = vpop.xlane.xlu0 %859
        %v861 = vmul.f32 %v832, %v832
        %v862 = vmul.f32 %v835, %v835
        %v863 = vmul.f32 %v840, %v840
        %v864 = vmul.f32 %v843, %v843
        %v865 = vsel %vm850, %v861, 0.0
        %v866 = vsel %vm850, %v863, 0.0
        %v867 = vadd.f32 %v865, %v866
        %868 = vadd.xlane.f32.xlu0 %v867
        %v869 = vpop.xlane.xlu0 %868
        %v870 = vsel %vm850, %v862, 0.0
        %v871 = vsel %vm850, %v864, 0.0
        %v872 = vadd.f32 %v870, %v871
        %873 = vadd.xlane.f32.xlu0 %v872
        %v874 = vpop.xlane.xlu0 %873
        %v875 = vmul.f32 %v855, 0.0078125
        %v876 = vmul.f32 %v860, 0.0078125
        %v877 = vmul.f32 %v869, 0.0078125
        %v878 = vmul.f32 %v874, 0.0078125
        %v879 = vmul.f32 %v875, %v875
        %v880 = vmul.f32 %v876, %v876
        %v881 = vsub.f32 %v877, %v879
        %v882 = vsub.f32 %v878, %v880
        %v883 = vmax.f32 %v881, 0.0
        %v884 = vmax.f32 %v882, 0.0
        %v885 = vadd.f32 %v883, 1e-05
        %v886 = vadd.f32 %v884, 1e-05
        %v887 = vrsqrt.pop %v885
        %v888 = vrsqrt.pop %v886
        %v889 = vmul.f32 %v846, %v887
        %v890 = vmul.f32 %v847, %v888
        %v891 = vmul.f32 %v875, %v889
        %v892 = vmul.f32 %v876, %v890
        %v893 = vsub.f32 %v848, %v891
        %v894 = vsub.f32 %v849, %v892
        %896 = vset.pattern.permute.xlu0 0
        %897 = vperm.xlu0 %896, %v889
        %v898 = vpop.permute.xlu0 %897
        %901 = vset.pattern.permute.xlu0 0
        %902 = vperm.xlu0 %901, %v890
        %v903 = vpop.permute.xlu0 %902
        %v905 = vmul.f32 %v832, %v898
        %v906 = vmul.f32 %v835, %v903
        %v907 = vmul.f32 %v840, %v898
        %v908 = vmul.f32 %v843, %v903
        %910 = vset.pattern.permute.xlu0 0
        %911 = vperm.xlu0 %910, %v893
        %v912 = vpop.permute.xlu0 %911
        %915 = vset.pattern.permute.xlu0 0
        %916 = vperm.xlu0 %915, %v894
        %v917 = vpop.permute.xlu0 %916
        %v919 = vadd.f32 %v905, %v912
        %v920 = vadd.f32 %v906, %v917
        %v921 = vadd.f32 %v907, %v912
        %v922 = vadd.f32 %v908, %v917
        %v923 = vmax.f32 %v919, 0.0
        %v924 = vmax.f32 %v920, 0.0
        %v925 = vmax.f32 %v921, 0.0
        %v926 = vmax.f32 %v922, 0.0
        %v927 = vpack.c.bf16 %v924, %v923
        %v928 = vpack.c.bf16 %v926, %v925
        %v931 = vunpack.c.l.b16 %v927
        %v932 = vunpack.c.h.b16 %v927
        %v933 = vunpack.c.l.b16 %v928
        %v934 = vunpack.c.h.b16 %v928
        %v935 = vpack.c.b16 %v931, %v931
        %v936 = vpack.c.b16 %v932, %v932
        %v937 = vpack.c.b16 %v933, %v933
        %v938 = vpack.c.b16 %v934, %v934
        %vm943 = vcmask 519168
        %944 = vst.msk [vmem:[%s687 + $0xc] sm:$0xf] %vm943, %v935
        %945 = vst.msk [vmem:[%s687 + $0x1c] sm:$0xf] %vm943, %v936
        %946 = vst.msk [vmem:[%s687 + $0x2c] sm:$0xf] %vm943, %v937
        %947 = vst.msk [vmem:[%s687 + $0x3c] sm:$0xf] %vm943, %v938
        %v948 = vld [vmem:[%s5] sm:$0xf]
        %v949 = vld [vmem:[%s5 + $0x4] sm:$0xf]
        %v950 = vld [vmem:[%s5 + $0x8] sm:$0xf]
        %v951 = vld [vmem:[%s5 + $0xc] sm:$0xf]
        %v952 = vld [vmem:[%s5 + $0x10] sm:$0xf]
        %v953 = vld [vmem:[%s5 + $0x14] sm:$0xf]
        %v954 = vld [vmem:[%s5 + $0x18] sm:$0xf]
        %v955 = vld [vmem:[%s5 + $0x1c] sm:$0xf]
        %v956 = vld [vmem:[%s6] sm:$0x1]
        %v958 = vlaneseq
        %v959 = vshrl.u32 %v958, 7
        %v960 = vsub.s32 0, %v959
        %v961 = vrot.slane %v956, %v960
        %v971 = vunpack.c.l.b16 %v948
        %v972 = vunpack.c.l.b16 %v949
        %v973 = vunpack.c.l.b16 %v950
        %v974 = vunpack.c.l.b16 %v951
        %v975 = vunpack.c.l.b16 %v952
        %v976 = vunpack.c.l.b16 %v953
        %v977 = vunpack.c.l.b16 %v954
        %v978 = vunpack.c.l.b16 %v955
        %v979 = vpack.c.b16 %v972, %v971
        %v980 = vpack.c.b16 %v974, %v973
        %v981 = vpack.c.b16 %v976, %v975
        %v982 = vpack.c.b16 %v978, %v977
        %v988 = vsel %vm850, %v927, 0
        %v991 = vsel %vm850, %v928, 0
        %993 = vmatprep.subr.bf16.mxu0 0
        %994 = vmatpush1.bf16.msra.mxu0 %v979
        %995 = vmatprep.subr.bf16.mxu0 0
        %996 = vmatpush1.bf16.msra.mxu0 %v980
        %997 = vmatprep.subr.bf16.mxu0 0
        %998 = vmatpush1.bf16.msra.mxu0 %v981
        %999 = vmatprep.subr.bf16.mxu0 0
        %1000 = vmatpush1.bf16.msra.mxu0 %v982
        %1001 = vmatprep.subr.bf16.mxu0 0
        %1002 = vmatpush1.bf16.msra.mxu0 0
        %1003 = vmatprep.subr.bf16.mxu0 0
        %1004 = vmatpush1.bf16.msra.mxu0 0
        %1005 = vmatprep.subr.bf16.mxu0 0
        %1006 = vmatpush1.bf16.msra.mxu0 0
        %1007 = vmatprep.subr.bf16.mxu0 0
        %1008 = vmatpush1.bf16.msra.mxu0 0
        %1009 = vmatprep.subr.bf16.mxu0 0
        %1010 = vmatpush1.bf16.msra.mxu0 0
        %1011 = vmatprep.subr.bf16.mxu0 0
        %1012 = vmatpush1.bf16.msra.mxu0 0
        %1013 = vmatprep.subr.bf16.mxu0 0
        %1014 = vmatpush1.bf16.msra.mxu0 0
        %1015 = vmatprep.subr.bf16.mxu0 0
        %1016 = vmatpush1.bf16.msra.mxu0 0
        %1017 = vmatprep.subr.bf16.mxu0 0
        %1018 = vmatpush1.bf16.msra.mxu0 0
        %1019 = vmatprep.subr.bf16.mxu0 0
        %1020 = vmatpush1.bf16.msra.mxu0 0
        %1021 = vmatprep.subr.bf16.mxu0 0
        %1022 = vmatpush1.bf16.msra.mxu0 0
        %1023 = vmatprep.subr.bf16.mxu0 0
        %1024 = vmatpush1.bf16.msra.mxu0 0
        %1025 = vmatprep.mubr.bf16.mxu0 0
        %1026 = vmatmul.mubr.bf16.gmra.mrb[0].mxu0 %v988
        %v1027 = vpop.f32.mrb[0].mxu0
        %v1028 = vadd.f32 %v961, %v1027
        %v1029 = vpop.f32.mrb[0].mxu0
        %v1030 = vpop.f32.mrb[0].mxu0
        %v1031 = vadd.f32 %v961, %v1030
        %v1032 = vpop.f32.mrb[0].mxu0
        %1033 = vmatprep.mubr.bf16.mxu0 0
        %1034 = vmatmul.mubr.bf16.gmra.mrb[0].mxu0 %v991
        %v1035 = vpop.f32.mrb[0].mxu0
        %v1036 = vadd.f32 %v961, %v1035
        %v1037 = vpop.f32.mrb[0].mxu0
        %v1038 = vpop.f32.mrb[0].mxu0
        %v1039 = vadd.f32 %v961, %v1038
        %v1040 = vpop.f32.mrb[0].mxu0
        %1041 = vdwg.mxu0
        %v1042 = vld [vmem:[%s724] sm:$0xff]
        %v1043 = vld [vmem:[%s724 + $0x8] sm:$0xff]
        %v1044 = vld [vmem:[%s734] sm:$0xff]
        %v1045 = vld [vmem:[%s734 + $0x8] sm:$0xff]
        %v1046 = vadd.f32 %v1028, %v1036
        %1047 = vadd.xlane.f32.xlu0 %v1046
        %v1048 = vpop.xlane.xlu0 %1047
        %v1049 = vadd.f32 %v1031, %v1039
        %1050 = vadd.xlane.f32.xlu0 %v1049
        %v1051 = vpop.xlane.xlu0 %1050
        %v1052 = vmul.f32 %v1028, %v1028
        %v1053 = vmul.f32 %v1031, %v1031
        %v1054 = vmul.f32 %v1036, %v1036
        %v1055 = vmul.f32 %v1039, %v1039
        %v1056 = vadd.f32 %v1052, %v1054
        %1057 = vadd.xlane.f32.xlu0 %v1056
        %v1058 = vpop.xlane.xlu0 %1057
        %v1059 = vadd.f32 %v1053, %v1055
        %1060 = vadd.xlane.f32.xlu0 %v1059
        %v1061 = vpop.xlane.xlu0 %1060
        %v1062 = vmul.f32 %v1048, 0.00390625
        %v1063 = vmul.f32 %v1051, 0.00390625
        %v1064 = vmul.f32 %v1058, 0.00390625
        %v1065 = vmul.f32 %v1061, 0.00390625
        %v1066 = vmul.f32 %v1062, %v1062
        %v1067 = vmul.f32 %v1063, %v1063
        %v1068 = vsub.f32 %v1064, %v1066
        %v1069 = vsub.f32 %v1065, %v1067
        %v1070 = vmax.f32 %v1068, 0.0
        %v1071 = vmax.f32 %v1069, 0.0
        %v1072 = vadd.f32 %v1070, 1e-05
        %v1073 = vadd.f32 %v1071, 1e-05
        %v1074 = vrsqrt.pop %v1072
        %v1075 = vrsqrt.pop %v1073
        %v1076 = vmul.f32 %v1042, %v1074
        %v1077 = vmul.f32 %v1043, %v1075
        %v1078 = vmul.f32 %v1062, %v1076
        %v1079 = vmul.f32 %v1063, %v1077
        %v1080 = vsub.f32 %v1044, %v1078
        %v1081 = vsub.f32 %v1045, %v1079
        %1083 = vset.pattern.permute.xlu0 0
        %1084 = vperm.xlu0 %1083, %v1076
        %v1085 = vpop.permute.xlu0 %1084
        %1088 = vset.pattern.permute.xlu0 0
        %1089 = vperm.xlu0 %1088, %v1077
        %v1090 = vpop.permute.xlu0 %1089
        %v1092 = vmul.f32 %v1028, %v1085
        %v1093 = vmul.f32 %v1031, %v1090
        %v1094 = vmul.f32 %v1036, %v1085
        %v1095 = vmul.f32 %v1039, %v1090
        %1097 = vset.pattern.permute.xlu0 0
        %1098 = vperm.xlu0 %1097, %v1080
        %v1099 = vpop.permute.xlu0 %1098
        %1102 = vset.pattern.permute.xlu0 0
        %1103 = vperm.xlu0 %1102, %v1081
        %v1104 = vpop.permute.xlu0 %1103
        %v1106 = vadd.f32 %v1092, %v1099
        %v1107 = vadd.f32 %v1093, %v1104
        %v1108 = vadd.f32 %v1094, %v1099
        %v1109 = vadd.f32 %v1095, %v1104
        %v1110 = vmax.f32 %v1106, 0.0
        %v1111 = vmax.f32 %v1107, 0.0
        %v1112 = vmax.f32 %v1108, 0.0
        %v1113 = vmax.f32 %v1109, 0.0
        %v1114 = vpack.c.bf16 %v1111, %v1110
        %v1115 = vpack.c.bf16 %v1113, %v1112
        %v1118 = vunpack.c.l.b16 %v1114
        %v1119 = vunpack.c.h.b16 %v1114
        %v1120 = vunpack.c.l.b16 %v1115
        %v1121 = vunpack.c.h.b16 %v1115
        %v1122 = vpack.c.b16 %v1118, %v1118
        %v1123 = vpack.c.b16 %v1119, %v1119
        %v1124 = vpack.c.b16 %v1120, %v1120
        %v1125 = vpack.c.b16 %v1121, %v1121
        %1130 = vst [vmem:[%s687] sm:$0xf] %v1122
        %1131 = vst [vmem:[%s687 + $0x10] sm:$0xf] %v1123
        %1132 = vst [vmem:[%s687 + $0x20] sm:$0xf] %v1124
        %1133 = vst [vmem:[%s687 + $0x30] sm:$0xf] %v1125
        %v1134 = vld [vmem:[%s9] sm:$0xff]
        %v1135 = vld [vmem:[%s9 + $0x8] sm:$0xff]
        %v1136 = vld [vmem:[%s9 + $0x10] sm:$0xff]
        %v1137 = vld [vmem:[%s9 + $0x18] sm:$0xff]
        %v1138 = vld [vmem:[%s9 + $0x20] sm:$0xff]
        %v1139 = vld [vmem:[%s9 + $0x28] sm:$0xff]
        %v1140 = vld [vmem:[%s9 + $0x30] sm:$0xff]
        %v1141 = vld [vmem:[%s9 + $0x38] sm:$0xff]
        %v1142 = vld [vmem:[%s9 + $0x40] sm:$0xff]
        %v1143 = vld [vmem:[%s9 + $0x48] sm:$0xff]
        %v1144 = vld [vmem:[%s9 + $0x50] sm:$0xff]
        %v1145 = vld [vmem:[%s9 + $0x58] sm:$0xff]
        %v1146 = vld [vmem:[%s9 + $0x60] sm:$0xff]
        %v1147 = vld [vmem:[%s9 + $0x68] sm:$0xff]
        %v1148 = vld [vmem:[%s9 + $0x70] sm:$0xff]
        %v1149 = vld [vmem:[%s9 + $0x78] sm:$0xff]
        %v1150 = vld [vmem:[%s10] sm:$0x3]
        %v1152 = vlaneseq
        %v1153 = vshrl.u32 %v1152, 7
        %v1154 = vsub.s32 0, %v1153
        %v1155 = vrot.slane %v1150, %v1154
        %v1156 = vlaneseq
        %v1157 = vshrl.u32 %v1156, 7
        %v1158 = vsub.s32 1, %v1157
        %v1159 = vrot.slane %v1150, %v1158
        %v1178 = vunpack.c.l.b16 %v1134
        %v1179 = vunpack.c.h.b16 %v1134
        %v1180 = vunpack.c.l.b16 %v1135
        %v1181 = vunpack.c.h.b16 %v1135
        %v1182 = vunpack.c.l.b16 %v1136
        %v1183 = vunpack.c.h.b16 %v1136
        %v1184 = vunpack.c.l.b16 %v1137
        %v1185 = vunpack.c.h.b16 %v1137
        %v1186 = vunpack.c.l.b16 %v1138
        %v1187 = vunpack.c.h.b16 %v1138
        %v1188 = vunpack.c.l.b16 %v1139
        %v1189 = vunpack.c.h.b16 %v1139
        %v1190 = vunpack.c.l.b16 %v1140
        %v1191 = vunpack.c.h.b16 %v1140
        %v1192 = vunpack.c.l.b16 %v1141
        %v1193 = vunpack.c.h.b16 %v1141
        %v1194 = vunpack.c.l.b16 %v1142
        %v1195 = vunpack.c.h.b16 %v1142
        %v1196 = vunpack.c.l.b16 %v1143
        %v1197 = vunpack.c.h.b16 %v1143
        %v1198 = vunpack.c.l.b16 %v1144
        %v1199 = vunpack.c.h.b16 %v1144
        %v1200 = vunpack.c.l.b16 %v1145
        %v1201 = vunpack.c.h.b16 %v1145
        %v1202 = vunpack.c.l.b16 %v1146
        %v1203 = vunpack.c.h.b16 %v1146
        %v1204 = vunpack.c.l.b16 %v1147
        %v1205 = vunpack.c.h.b16 %v1147
        %v1206 = vunpack.c.l.b16 %v1148
        %v1207 = vunpack.c.h.b16 %v1148
        %v1208 = vunpack.c.l.b16 %v1149
        %v1209 = vunpack.c.h.b16 %v1149
        %v1210 = vpack.c.b16 %v1180, %v1178
        %v1211 = vpack.c.b16 %v1181, %v1179
        %v1212 = vpack.c.b16 %v1184, %v1182
        %v1213 = vpack.c.b16 %v1185, %v1183
        %v1214 = vpack.c.b16 %v1188, %v1186
        %v1215 = vpack.c.b16 %v1189, %v1187
        %v1216 = vpack.c.b16 %v1192, %v1190
        %v1217 = vpack.c.b16 %v1193, %v1191
        %v1218 = vpack.c.b16 %v1196, %v1194
        %v1219 = vpack.c.b16 %v1197, %v1195
        %v1220 = vpack.c.b16 %v1200, %v1198
        %v1221 = vpack.c.b16 %v1201, %v1199
        %v1222 = vpack.c.b16 %v1204, %v1202
        %v1223 = vpack.c.b16 %v1205, %v1203
        %v1224 = vpack.c.b16 %v1208, %v1206
        %v1225 = vpack.c.b16 %v1209, %v1207
        %1242 = vmatprep.subr.bf16.mxu0 %v1211
        %1243 = vmatpush1.bf16.msra.mxu0 %v1210
        %1244 = vmatprep.subr.bf16.mxu0 %v1213
        %1245 = vmatpush1.bf16.msra.mxu0 %v1212
        %1246 = vmatprep.subr.bf16.mxu0 %v1215
        %1247 = vmatpush1.bf16.msra.mxu0 %v1214
        %1248 = vmatprep.subr.bf16.mxu0 %v1217
        %1249 = vmatpush1.bf16.msra.mxu0 %v1216
        %1250 = vmatprep.subr.bf16.mxu0 %v1219
        %1251 = vmatpush1.bf16.msra.mxu0 %v1218
        %1252 = vmatprep.subr.bf16.mxu0 %v1221
        %1253 = vmatpush1.bf16.msra.mxu0 %v1220
        %1254 = vmatprep.subr.bf16.mxu0 %v1223
        %1255 = vmatpush1.bf16.msra.mxu0 %v1222
        %1256 = vmatprep.subr.bf16.mxu0 %v1225
        %1257 = vmatpush1.bf16.msra.mxu0 %v1224
        %1258 = vmatprep.subr.bf16.mxu0 0
        %1259 = vmatpush1.bf16.msra.mxu0 0
        %1260 = vmatprep.subr.bf16.mxu0 0
        %1261 = vmatpush1.bf16.msra.mxu0 0
        %1262 = vmatprep.subr.bf16.mxu0 0
        %1263 = vmatpush1.bf16.msra.mxu0 0
        %1264 = vmatprep.subr.bf16.mxu0 0
        %1265 = vmatpush1.bf16.msra.mxu0 0
        %1266 = vmatprep.subr.bf16.mxu0 0
        %1267 = vmatpush1.bf16.msra.mxu0 0
        %1268 = vmatprep.subr.bf16.mxu0 0
        %1269 = vmatpush1.bf16.msra.mxu0 0
        %1270 = vmatprep.subr.bf16.mxu0 0
        %1271 = vmatpush1.bf16.msra.mxu0 0
        %1272 = vmatprep.subr.bf16.mxu0 0
        %1273 = vmatpush1.bf16.msra.mxu0 0
        %1274 = vmatprep.mubr.bf16.mxu0 0
        %1275 = vmatmul.mubr.bf16.gmra.mrb[0].mxu0 %v1114
        %v1276 = vpop.f32.mrb[0].mxu0
        %v1277 = vadd.f32 %v1155, %v1276
        %v1278 = vpop.f32.mrb[0].mxu0
        %v1279 = vadd.f32 %v1159, %v1278
        %v1280 = vpop.f32.mrb[0].mxu0
        %v1281 = vadd.f32 %v1155, %v1280
        %v1282 = vpop.f32.mrb[0].mxu0
        %v1283 = vadd.f32 %v1159, %v1282
        %1284 = vmatprep.mubr.bf16.mxu0 0
        %1285 = vmatmul.mubr.bf16.gmra.mrb[0].mxu0 %v1115
        %v1286 = vpop.f32.mrb[0].mxu0
        %v1287 = vadd.f32 %v1155, %v1286
        %v1288 = vpop.f32.mrb[0].mxu0
        %v1289 = vadd.f32 %v1159, %v1288
        %v1290 = vpop.f32.mrb[0].mxu0
        %v1291 = vadd.f32 %v1155, %v1290
        %v1292 = vpop.f32.mrb[0].mxu0
        %v1293 = vadd.f32 %v1159, %v1292
        %1294 = vdwg.mxu0
        %v1295 = vld [vmem:[%s744] sm:$0xff]
        %v1296 = vld [vmem:[%s744 + $0x8] sm:$0xff]
        %v1297 = vld [vmem:[%s754] sm:$0xff]
        %v1298 = vld [vmem:[%s754 + $0x8] sm:$0xff]
        %v1299 = vadd.f32 %v1277, %v1279
        %v1300 = vadd.f32 %v1299, %v1287
        %v1301 = vadd.f32 %v1300, %v1289
        %1302 = vadd.xlane.f32.xlu0 %v1301
        %v1303 = vpop.xlane.xlu0 %1302
        %v1304 = vadd.f32 %v1281, %v1283
        %v1305 = vadd.f32 %v1304, %v1291
        %v1306 = vadd.f32 %v1305, %v1293
        %1307 = vadd.xlane.f32.xlu0 %v1306
        %v1308 = vpop.xlane.xlu0 %1307
        %v1309 = vmul.f32 %v1277, %v1277
        %v1310 = vmul.f32 %v1279, %v1279
        %v1311 = vmul.f32 %v1281, %v1281
        %v1312 = vmul.f32 %v1283, %v1283
        %v1313 = vmul.f32 %v1287, %v1287
        %v1314 = vmul.f32 %v1289, %v1289
        %v1315 = vmul.f32 %v1291, %v1291
        %v1316 = vmul.f32 %v1293, %v1293
        %v1317 = vadd.f32 %v1309, %v1310
        %v1318 = vadd.f32 %v1317, %v1313
        %v1319 = vadd.f32 %v1318, %v1314
        %1320 = vadd.xlane.f32.xlu0 %v1319
        %v1321 = vpop.xlane.xlu0 %1320
        %v1322 = vadd.f32 %v1311, %v1312
        %v1323 = vadd.f32 %v1322, %v1315
        %v1324 = vadd.f32 %v1323, %v1316
        %1325 = vadd.xlane.f32.xlu0 %v1324
        %v1326 = vpop.xlane.xlu0 %1325
        %v1327 = vmul.f32 %v1303, 0.001953125
        %v1328 = vmul.f32 %v1308, 0.001953125
        %v1329 = vmul.f32 %v1321, 0.001953125
        %v1330 = vmul.f32 %v1326, 0.001953125
        %v1331 = vmul.f32 %v1327, %v1327
        %v1332 = vmul.f32 %v1328, %v1328
        %v1333 = vsub.f32 %v1329, %v1331
        %v1334 = vsub.f32 %v1330, %v1332
        %v1335 = vmax.f32 %v1333, 0.0
        %v1336 = vmax.f32 %v1334, 0.0
        %v1337 = vadd.f32 %v1335, 1e-05
        %v1338 = vadd.f32 %v1336, 1e-05
        %v1339 = vrsqrt.pop %v1337
        %v1340 = vrsqrt.pop %v1338
        %v1341 = vmul.f32 %v1295, %v1339
        %v1342 = vmul.f32 %v1296, %v1340
        %v1343 = vmul.f32 %v1327, %v1341
        %v1344 = vmul.f32 %v1328, %v1342
        %v1345 = vsub.f32 %v1297, %v1343
        %v1346 = vsub.f32 %v1298, %v1344
        %1348 = vset.pattern.permute.xlu0 0
        %1349 = vperm.xlu0 %1348, %v1341
        %v1350 = vpop.permute.xlu0 %1349
        %1353 = vset.pattern.permute.xlu0 0
        %1354 = vperm.xlu0 %1353, %v1342
        %v1355 = vpop.permute.xlu0 %1354
        %v1357 = vmul.f32 %v1277, %v1350
        %v1358 = vmul.f32 %v1279, %v1350
        %v1359 = vmul.f32 %v1281, %v1355
        %v1360 = vmul.f32 %v1283, %v1355
        %v1361 = vmul.f32 %v1287, %v1350
        %v1362 = vmul.f32 %v1289, %v1350
        %v1363 = vmul.f32 %v1291, %v1355
        %v1364 = vmul.f32 %v1293, %v1355
        %1366 = vset.pattern.permute.xlu0 0
        %1367 = vperm.xlu0 %1366, %v1345
        %v1368 = vpop.permute.xlu0 %1367
        %1371 = vset.pattern.permute.xlu0 0
        %1372 = vperm.xlu0 %1371, %v1346
        %v1373 = vpop.permute.xlu0 %1372
        %v1375 = vadd.f32 %v1357, %v1368
        %v1376 = vadd.f32 %v1358, %v1368
        %v1377 = vadd.f32 %v1359, %v1373
        %v1378 = vadd.f32 %v1360, %v1373
        %v1379 = vadd.f32 %v1361, %v1368
        %v1380 = vadd.f32 %v1362, %v1368
        %v1381 = vadd.f32 %v1363, %v1373
        %v1382 = vadd.f32 %v1364, %v1373
        %v1383 = vmax.f32 %v1375, 0.0
        %v1384 = vmax.f32 %v1376, 0.0
        %v1385 = vmax.f32 %v1377, 0.0
        %v1386 = vmax.f32 %v1378, 0.0
        %v1387 = vmax.f32 %v1379, 0.0
        %v1388 = vmax.f32 %v1380, 0.0
        %v1389 = vmax.f32 %v1381, 0.0
        %v1390 = vmax.f32 %v1382, 0.0
        %v1391 = vpack.c.bf16 %v1385, %v1383
        %v1392 = vpack.c.bf16 %v1386, %v1384
        %v1393 = vpack.c.bf16 %v1389, %v1387
        %v1394 = vpack.c.bf16 %v1390, %v1388
        %v1399 = vunpack.c.l.b16 %v1391
        %v1400 = vunpack.c.l.b16 %v1392
        %v1401 = vunpack.c.h.b16 %v1391
        %v1402 = vunpack.c.h.b16 %v1392
        %v1403 = vunpack.c.l.b16 %v1393
        %v1404 = vunpack.c.l.b16 %v1394
        %v1405 = vunpack.c.h.b16 %v1393
        %v1406 = vunpack.c.h.b16 %v1394
        %v1407 = vpack.c.b16 %v1400, %v1399
        %v1408 = vpack.c.b16 %v1402, %v1401
        %v1409 = vpack.c.b16 %v1404, %v1403
        %v1410 = vpack.c.b16 %v1406, %v1405
        %1415 = vst [vmem:[%s687 + $0x4] sm:$0xff] %v1407
        %1416 = vst [vmem:[%s687 + $0x14] sm:$0xff] %v1408
        %1417 = vst [vmem:[%s687 + $0x24] sm:$0xff] %v1409
        %1418 = vst [vmem:[%s687 + $0x34] sm:$0xff] %v1410
        %v1419 = vld [vmem:[%s765] sm:$0xf]
        %v1420 = vmax.f32 %v1383, %v1385
        %v1421 = vrot.slane %v1420, 4
        %v1422 = vmax.f32 %v1420, %v1421
        %v1423 = vrot.slane %v1422, 2
        %v1424 = vmax.f32 %v1422, %v1423
        %v1425 = vrot.slane %v1424, 1
        %v1426 = vmax.f32 %v1424, %v1425
        %v1427 = vmax.f32 %v1384, %v1386
        %v1428 = vrot.slane %v1427, 4
        %v1429 = vmax.f32 %v1427, %v1428
        %v1430 = vrot.slane %v1429, 2
        %v1431 = vmax.f32 %v1429, %v1430
        %v1432 = vrot.slane %v1431, 1
        %v1433 = vmax.f32 %v1431, %v1432
        %v1434 = vmax.f32 %v1387, %v1389
        %v1435 = vrot.slane %v1434, 4
        %v1436 = vmax.f32 %v1434, %v1435
        %v1437 = vrot.slane %v1436, 2
        %v1438 = vmax.f32 %v1436, %v1437
        %v1439 = vrot.slane %v1438, 1
        %v1440 = vmax.f32 %v1438, %v1439
        %v1441 = vmax.f32 %v1388, %v1390
        %v1442 = vrot.slane %v1441, 4
        %v1443 = vmax.f32 %v1441, %v1442
        %v1444 = vrot.slane %v1443, 2
        %v1445 = vmax.f32 %v1443, %v1444
        %v1446 = vrot.slane %v1445, 1
        %v1447 = vmax.f32 %v1445, %v1446
        %v1452 = vcombine.low %v1426, %v1433
        %v1454 = vunpack.c.l.s4 1983009808
        %v1455 = vunpack.c.0.s8 %v1454
        %v1456 = vlaneseq
        %v1457 = vshrl.u32 %v1456, 7
        %v1458 = vsub.s32 %v1455, %v1457
        %v1459 = vrot.slane %v1452, %v1458
        %v1460 = vcombine.low %v1440, %v1447
        %v1462 = vunpack.c.l.s4 1983009808
        %v1463 = vunpack.c.0.s8 %v1462
        %v1464 = vlaneseq
        %v1465 = vshrl.u32 %v1464, 7
        %v1466 = vsub.s32 %v1463, %v1465
        %v1467 = vrot.slane %v1460, %v1466
        %vm1468 = vcmask 1044484
        %v1469 = vsel %vm1468, %v1459, %v1459
        %vm1470 = vcmask 1046534
        %v1471 = vsel %vm1470, %v1459, %v1469
        %v1472 = vrot.slane %v1467, 7
        %vm1473 = vcmask 1041409
        %v1474 = vsel %vm1473, %v1472, %v1471
        %vm1475 = vcmask 1043459
        %v1476 = vsel %vm1475, %v1472, %v1474
        %vm1477 = vcmask 1045509
        %v1478 = vsel %vm1477, %v1472, %v1476
        %vm1479 = vcmask 1047559
        %v1480 = vsel %vm1479, %v1472, %v1478
        %v1482 = vmax.f32 %v1419, %v1480
        %1483 = vst [vmem:[%s765] sm:$0xf] %v1482
        %s1484 = sand.u32 %s386, 1
        %s1485 = sand.u32 %s386, 1
        %s1486 = smul.addr %s1485, 64
        %s1487 = scalar_lea.vmem [#allocation3], %s1486
        %p1488 = scmp.lt.s32.totalorder %s30, 1
        %s1489 = scalar_select %p1488, %s30, 1
        %s1490 = smul.addr %s1489, 2
        %s1491 = smul.addr %s1490, 2
        %s1492 = scalar_lea.vmem %s14, %s1491
        // Predicated region
        $region115: #{_lambda_.3} parent=105 // pred_check
          %p1493 = pneg %p396
        $region116: #{_lambda_.3} parent=105 // pred_check_branch
          %1495 = sbr.rel (%p1493) target = $region118
        $region117: #{_lambda_.3} parent=105 // pred_region
          %s1496 = smul.u32 %s30, 2
          %s1497 = sadd.s32 %s1496, %s31
          %s1498 = smul.u32 2, %s1497
          %s1499 = smul.addr %s1498, 4
          %s1500 = smul.addr %s1499, 4
          %s1501 = scalar_lea.vmem %s13, %s1500
          // Predicated region
          $region119: #{_lambda_.3} parent=117 // pred_check
            _
          $region120: #{_lambda_.3} parent=117 // pred_check_branch
            %1503 = sbr.rel (0) target = $region122
          $region121: #{_lambda_.3} parent=117 // pred_region
            // Predicated region
            $region123: #{_lambda_.3} parent=121 // pred_check
              _
            $region124: #{_lambda_.3} parent=121 // pred_check_branch
              %1505 = sbr.rel (0) target = $region126
            $region125: #{_lambda_.3} parent=121 // pred_region
              loop: start=0, step=1, limit=1
              $region127: #{_lambda_.3} parent=125 // loop_pre_header
                _
              $region128: #{_lambda_.3} parent=125 // loop_header
                %s1507 = sphi 0, %s1511
                %p1508 = scmp.ge.s32.totalorder %s1507, 1
                %s1512 = sphi %s1487, %s1487
                %s1513 = sphi %s1501, %s1501
              $region129: #{_lambda_.3} parent=125 // loop_header_branch
                %1510 = sbr.rel (%p1508) target = $region133
              $region130: #{_lambda_.3} parent=125 // loop_body
                %v1514 = vld [vmem:[%s1512] sm:$0xff]
                %1515 = vst [vmem:[%s1513] sm:$0xff] %v1514
                %v1516 = vld [vmem:[%s1512 + $0x8] sm:$0xff]
                %1517 = vst [vmem:[%s1513 + $0x8] sm:$0xff] %v1516
                %v1518 = vld [vmem:[%s1512 + $0x10] sm:$0xff]
                %1519 = vst [vmem:[%s1513 + $0x10] sm:$0xff] %v1518
                %v1520 = vld [vmem:[%s1512 + $0x18] sm:$0xff]
                %1521 = vst [vmem:[%s1513 + $0x18] sm:$0xff] %v1520
                %v1522 = vld [vmem:[%s1512 + $0x20] sm:$0xff]
                %1523 = vst [vmem:[%s1513 + $0x80] sm:$0xff] %v1522
                %v1524 = vld [vmem:[%s1512 + $0x28] sm:$0xff]
                %1525 = vst [vmem:[%s1513 + $0x88] sm:$0xff] %v1524
                %v1526 = vld [vmem:[%s1512 + $0x30] sm:$0xff]
                %1527 = vst [vmem:[%s1513 + $0x90] sm:$0xff] %v1526
                %v1528 = vld [vmem:[%s1512 + $0x38] sm:$0xff]
                %1529 = vst [vmem:[%s1513 + $0x98] sm:$0xff] %v1528
              $region131: #{_lambda_.3} parent=125 // loop_footer
                %s1511 = sadd.s32 1, %s1507
              $region132: #{_lambda_.3} parent=125 // loop_footer_branch
                %1506 = sbr.rel target = $region128
              $region133: #{_lambda_.3} parent=125 // loop_exit
                _
            $region126: #{_lambda_.3} parent=121 // pred_fallthru
              _
            // Predicated region
            $region134: #{_lambda_.3} parent=121 // pred_check
              _
            $region135: #{_lambda_.3} parent=121 // pred_check_branch
              %1531 = sbr.rel target = $region137
            $region136: #{_lambda_.3} parent=121 // pred_region
              _
            $region137: #{_lambda_.3} parent=121 // pred_fallthru
              _
          $region122: #{_lambda_.3} parent=117 // pred_fallthru
            _
          %1532 = vnop
        $region118: #{_lambda_.3} parent=105 // pred_fallthru
          _
        // Predicated region
        $region138: #{_lambda_.3} parent=105 // pred_check
          %p1533 = pneg %p422
        $region139: #{_lambda_.3} parent=105 // pred_check_branch
          %1535 = sbr.rel (%p1533) target = $region141
        $region140: #{_lambda_.3} parent=105 // pred_region
          _
        $region141: #{_lambda_.3} parent=105 // pred_fallthru
          _
      $region106: #{_lambda_.3} parent=5 // pred_fallthru
        _
      %p1536 = scmp.le.s32.totalorder 2, %s21
      // Predicated region
      $region142: #{_lambda_.3} parent=5 // pred_check
        %p1537 = pneg %p1536
      $region143: #{_lambda_.3} parent=5 // pred_check_branch
        %1539 = sbr.rel (%p1537) target = $region145
      $region144: #{_lambda_.3} parent=5 // pred_region
        %s1540 = ssub.s32 %s21, 2
        // Predicated region
        $region146: #{_lambda_.3} parent=144 // pred_check
          %p1541 = pneg %p402
        $region147: #{_lambda_.3} parent=144 // pred_check_branch
          %1543 = sbr.rel (%p1541) target = $region149
        $region148: #{_lambda_.3} parent=144 // pred_region
          %s1544 = sand.u32 %s387, 1
          %s1545 = sand.u32 %s387, 1
          %s1546 = smul.addr %s1545, 64
          %s1547 = scalar_lea.vmem [#allocation3], %s1546
        $region149: #{_lambda_.3} parent=144 // pred_fallthru
          _
        // Predicated region
        $region150: #{_lambda_.3} parent=144 // pred_check
          %p1548 = pneg %p428
        $region151: #{_lambda_.3} parent=144 // pred_check_branch
          %1550 = sbr.rel (%p1548) target = $region153
        $region152: #{_lambda_.3} parent=144 // pred_region
          %p1551 = scmp.lt.s32.totalorder %s32, 1
          %s1552 = scalar_select %p1551, %s32, 1
          %s1553 = smul.addr %s1552, 2
          %s1554 = smul.addr %s1553, 2
          %s1555 = scalar_lea.vmem %s14, %s1554
        $region153: #{_lambda_.3} parent=144 // pred_fallthru
          _
      $region145: #{_lambda_.3} parent=5 // pred_fallthru
        _
    $region6: #{_lambda_.3} parent=1 // loop_footer
      %s25 = sadd.s32 1, %s21
    $region7: #{_lambda_.3} parent=1 // loop_footer_branch
      %20 = sbr.rel target = $region3
    $region8: #{_lambda_.3} parent=1 // loop_exit
      _

// kernel: _lambda_.4
$region0: #{_lambda_.4}
  #allocation0 [shape = 'u32[]', space=smem, size = 0x4, offset = 0x4, fixed_abs, tag = 'smem constant byte address 0x4 - core index']
  #allocation1 [shape = 'u32[144,128]{1,0:T(1,128)}', space=vmem, size = 0x12000, scoped, tag = 'internal scratch']
  %s0 = inlined_call_operand.vmem [shape: f32[2,512], index: 0, kind: input, shape index: {}]
  %s1 = inlined_call_operand.vmem [shape: bf16[2,64,448], index: 1, kind: input, shape index: {}]
  %s2 = inlined_call_operand.vmem [shape: bf16[448,512], index: 2, kind: input, shape index: {}]
  %s3 = inlined_call_operand.vmem [shape: f32[64,1], index: 3, kind: input, shape index: {}]
  %s4 = inlined_call_operand.vmem [shape: f32[64,1], index: 4, kind: input, shape index: {}]
  %s5 = inlined_call_operand.vmem [shape: bf16[512,512], index: 5, kind: input, shape index: {}]
  %s6 = inlined_call_operand.vmem [shape: f32[1,512], index: 6, kind: input, shape index: {}]
  %s7 = inlined_call_operand.vmem [shape: f32[64,1], index: 7, kind: input, shape index: {}]
  %s8 = inlined_call_operand.vmem [shape: f32[64,1], index: 8, kind: input, shape index: {}]
  %s9 = inlined_call_operand.vmem [shape: f32[2,2,512], index: 9, kind: output, shape index: {}]
  %s10 = sld [smem:[#allocation0]]
  $region96: #{_lambda_.4} parent=0
    _
  %s12 = ssub.s32 1, %s10
  %s13 = scalar_select 0, %s12, %s10
  $region1: #{_lambda_.4} parent=0
    #allocation2 [shape = 'u8[65536]{0}', space=vmem, size = 0x10000, scoped, tag = 'input window, operand 1']
    loop: start=0, step=1, limit=6
    $region2: #{_lambda_.4} parent=1 // loop_pre_header
      _
    $region3: #{_lambda_.4} parent=1 // loop_header
      %s15 = sphi 0, %s19
      %p16 = scmp.ge.s32.totalorder %s15, 6
      %s22 = sphi 0, %s34
      %s23 = sphi 0, %s30
      %s24 = sphi 0, %s22
      %s25 = sphi 0, %s23
      %s26 = sphi 0, %s24
      %s27 = sphi 0, %s25
      %s35 = sphi 0, %s35
      %s37 = sphi 0, %s35
      %s38 = sphi 0, %s37
      %s52 = sphi 0, %s38
      %s62 = sphi 0, %s64
      %s65 = sphi 0, %s62
      %s66 = sphi 0, %s65
      %s82 = sphi 0, %s66
      %s86 = sphi 0, %s86
      %s88 = sphi 0, %s86
      %s89 = sphi 0, %s88
      %s103 = sphi 0, %s89
      %s113 = sphi 0, %s115
      %s116 = sphi 0, %s113
      %s117 = sphi 0, %s116
      %s133 = sphi 0, %s117
      %s143 = sphi 0, %s145
      %s146 = sphi 0, %s143
      %s147 = sphi 0, %s146
      %s163 = sphi 0, %s147
      %s167 = sphi 0, %s167
      %s169 = sphi 0, %s167
      %s170 = sphi 0, %s169
      %s184 = sphi 0, %s170
      %s188 = sphi 0, %s188
      %s190 = sphi 0, %s188
      %s191 = sphi 0, %s190
      %s205 = sphi 0, %s191
      %s215 = sphi 0, %s217
      %s218 = sphi 0, %s215
      %s219 = sphi 0, %s218
      %s235 = sphi 0, %s219
      %s245 = sphi 0, %s247
      %s248 = sphi 0, %s245
      %s249 = sphi 0, %s248
      %s265 = sphi 0, %s249
      %s271 = sphi 0, %s273
      %s274 = sphi 0, %s271
      %s275 = sphi 0, %s274
      %s291 = sphi 0, %s275
    $region4: #{_lambda_.4} parent=1 // loop_header_branch
      %18 = sbr.rel (%p16) target = $region8
    $region5: #{_lambda_.4} parent=1 // loop_body
      %s20 = ssub.s32 %s15, 1
      %s21 = ssub.s32 %s15, 2
      %s28 = sadd.s32 1, %s23
      %p29 = scmp.ge.s32.totalorder %s28, 2
      %s30 = scalar_select %p29, 0, %s28
      %s31 = sadd.s32 1, %s22
      %s32 = scalar_select %p29, %s31, %s22
      %p33 = scmp.ge.s32.totalorder %s32, 2
      %s34 = scalar_select %p33, 0, %s32
      %s36 = sadd.s32 %s35, 1
      %p39 = scmp.eq.s32.totalorder %s15, 3
      %p40 = scmp.ne.s32.totalorder %s35, %s37
      %p41 = scmp.eq.s32.totalorder %s15, 0
      %p42 = por %p40, %p41
      %p43 = scmp.ne.s32.totalorder %s35, %s37
      %p44 = scmp.eq.s32.totalorder %s20, 3
      %p45 = por %p43, %p44
      %p46 = scmp.ne.s32.totalorder %s37, %s38
      %p47 = scmp.eq.s32.totalorder %s20, 0
      %p48 = por %p46, %p47
      %p49 = scmp.ne.s32.totalorder %s37, %s38
      %p50 = scmp.eq.s32.totalorder %s21, 3
      %p51 = por %p49, %p50
      %p53 = scmp.ne.s32.totalorder %s38, %s52
      %p54 = scmp.eq.s32.totalorder %s21, 0
      %p55 = por %p53, %p54
      %s56 = smul.u32 %s22, 2
      %s57 = sadd.s32 %s56, %s23
      %s58 = smul.u32 %s34, 2
      %s59 = sadd.s32 %s58, %s30
      %s60 = ssub.s32 %s57, %s59
      %p61 = scmp.eq.s32.totalorder %s60, 0
      %s63 = sadd.s32 %s62, 1
      %s64 = scalar_select %p61, %s62, %s63
      %p67 = pneg %p61
      %p68 = scmp.eq.s32.totalorder %s15, 3
      %p69 = por %p67, %p68
      %p70 = scmp.ne.s32.totalorder %s62, %s65
      %p71 = scmp.eq.s32.totalorder %s15, 0
      %p72 = por %p70, %p71
      %p73 = scmp.ne.s32.totalorder %s62, %s65
      %p74 = scmp.eq.s32.totalorder %s20, 3
      %p75 = por %p73, %p74
      %p76 = scmp.ne.s32.totalorder %s65, %s66
      %p77 = scmp.eq.s32.totalorder %s20, 0
      %p78 = por %p76, %p77
      %p79 = scmp.ne.s32.totalorder %s65, %s66
      %p80 = scmp.eq.s32.totalorder %s21, 3
      %p81 = por %p79, %p80
      %p83 = scmp.ne.s32.totalorder %s66, %s82
      %p84 = scmp.eq.s32.totalorder %s21, 0
      %p85 = por %p83, %p84
      %s87 = sadd.s32 %s86, 1
      %p90 = scmp.eq.s32.totalorder %s15, 3
      %p91 = scmp.ne.s32.totalorder %s86, %s88
      %p92 = scmp.eq.s32.totalorder %s15, 0
      %p93 = por %p91, %p92
      %p94 = scmp.ne.s32.totalorder %s86, %s88
      %p95 = scmp.eq.s32.totalorder %s20, 3
      %p96 = por %p94, %p95
      %p97 = scmp.ne.s32.totalorder %s88, %s89
      %p98 = scmp.eq.s32.totalorder %s20, 0
      %p99 = por %p97, %p98
      %p100 = scmp.ne.s32.totalorder %s88, %s89
      %p101 = scmp.eq.s32.totalorder %s21, 3
      %p102 = por %p100, %p101
      %p104 = scmp.ne.s32.totalorder %s89, %s103
      %p105 = scmp.eq.s32.totalorder %s21, 0
      %p106 = por %p104, %p105
      %s107 = smul.u32 %s22, 2
      %s108 = sadd.s32 %s107, %s23
      %s109 = smul.u32 %s34, 2
      %s110 = sadd.s32 %s109, %s30
      %s111 = ssub.s32 %s108, %s110
      %p112 = scmp.eq.s32.totalorder %s111, 0
      %s114 = sadd.s32 %s113, 1
      %s115 = scalar_select %p112, %s113, %s114
      %p118 = pneg %p112
      %p119 = scmp.eq.s32.totalorder %s15, 3
      %p120 = por %p118, %p119
      %p121 = scmp.ne.s32.totalorder %s113, %s116
      %p122 = scmp.eq.s32.totalorder %s15, 0
      %p123 = por %p121, %p122
      %p124 = scmp.ne.s32.totalorder %s113, %s116
      %p125 = scmp.eq.s32.totalorder %s20, 3
      %p126 = por %p124, %p125
      %p127 = scmp.ne.s32.totalorder %s116, %s117
      %p128 = scmp.eq.s32.totalorder %s20, 0
      %p129 = por %p127, %p128
      %p130 = scmp.ne.s32.totalorder %s116, %s117
      %p131 = scmp.eq.s32.totalorder %s21, 3
      %p132 = por %p130, %p131
      %p134 = scmp.ne.s32.totalorder %s117, %s133
      %p135 = scmp.eq.s32.totalorder %s21, 0
      %p136 = por %p134, %p135
      %s137 = smul.u32 %s22, 2
      %s138 = sadd.s32 %s137, %s23
      %s139 = smul.u32 %s34, 2
      %s140 = sadd.s32 %s139, %s30
      %s141 = ssub.s32 %s138, %s140
      %p142 = scmp.eq.s32.totalorder %s141, 0
      %s144 = sadd.s32 %s143, 1
      %s145 = scalar_select %p142, %s143, %s144
      %p148 = pneg %p142
      %p149 = scmp.eq.s32.totalorder %s15, 3
      %p150 = por %p148, %p149
      %p151 = scmp.ne.s32.totalorder %s143, %s146
      %p152 = scmp.eq.s32.totalorder %s15, 0
      %p153 = por %p151, %p152
      %p154 = scmp.ne.s32.totalorder %s143, %s146
      %p155 = scmp.eq.s32.totalorder %s20, 3
      %p156 = por %p154, %p155
      %p157 = scmp.ne.s32.totalorder %s146, %s147
      %p158 = scmp.eq.s32.totalorder %s20, 0
      %p159 = por %p157, %p158
      %p160 = scmp.ne.s32.totalorder %s146, %s147
      %p161 = scmp.eq.s32.totalorder %s21, 3
      %p162 = por %p160, %p161
      %p164 = scmp.ne.s32.totalorder %s147, %s163
      %p165 = scmp.eq.s32.totalorder %s21, 0
      %p166 = por %p164, %p165
      %s168 = sadd.s32 %s167, 1
      %p171 = scmp.eq.s32.totalorder %s15, 3
      %p172 = scmp.ne.s32.totalorder %s167, %s169
      %p173 = scmp.eq.s32.totalorder %s15, 0
      %p174 = por %p172, %p173
      %p175 = scmp.ne.s32.totalorder %s167, %s169
      %p176 = scmp.eq.s32.totalorder %s20, 3
      %p177 = por %p175, %p176
      %p178 = scmp.ne.s32.totalorder %s169, %s170
      %p179 = scmp.eq.s32.totalorder %s20, 0
      %p180 = por %p178, %p179
      %p181 = scmp.ne.s32.totalorder %s169, %s170
      %p182 = scmp.eq.s32.totalorder %s21, 3
      %p183 = por %p181, %p182
      %p185 = scmp.ne.s32.totalorder %s170, %s184
      %p186 = scmp.eq.s32.totalorder %s21, 0
      %p187 = por %p185, %p186
      %s189 = sadd.s32 %s188, 1
      %p192 = scmp.eq.s32.totalorder %s15, 3
      %p193 = scmp.ne.s32.totalorder %s188, %s190
      %p194 = scmp.eq.s32.totalorder %s15, 0
      %p195 = por %p193, %p194
      %p196 = scmp.ne.s32.totalorder %s188, %s190
      %p197 = scmp.eq.s32.totalorder %s20, 3
      %p198 = por %p196, %p197
      %p199 = scmp.ne.s32.totalorder %s190, %s191
      %p200 = scmp.eq.s32.totalorder %s20, 0
      %p201 = por %p199, %p200
      %p202 = scmp.ne.s32.totalorder %s190, %s191
      %p203 = scmp.eq.s32.totalorder %s21, 3
      %p204 = por %p202, %p203
      %p206 = scmp.ne.s32.totalorder %s191, %s205
      %p207 = scmp.eq.s32.totalorder %s21, 0
      %p208 = por %p206, %p207
      %s209 = smul.u32 %s22, 2
      %s210 = sadd.s32 %s209, %s23
      %s211 = smul.u32 %s34, 2
      %s212 = sadd.s32 %s211, %s30
      %s213 = ssub.s32 %s210, %s212
      %p214 = scmp.eq.s32.totalorder %s213, 0
      %s216 = sadd.s32 %s215, 1
      %s217 = scalar_select %p214, %s215, %s216
      %p220 = pneg %p214
      %p221 = scmp.eq.s32.totalorder %s15, 3
      %p222 = por %p220, %p221
      %p223 = scmp.ne.s32.totalorder %s215, %s218
      %p224 = scmp.eq.s32.totalorder %s15, 0
      %p225 = por %p223, %p224
      %p226 = scmp.ne.s32.totalorder %s215, %s218
      %p227 = scmp.eq.s32.totalorder %s20, 3
      %p228 = por %p226, %p227
      %p229 = scmp.ne.s32.totalorder %s218, %s219
      %p230 = scmp.eq.s32.totalorder %s20, 0
      %p231 = por %p229, %p230
      %p232 = scmp.ne.s32.totalorder %s218, %s219
      %p233 = scmp.eq.s32.totalorder %s21, 3
      %p234 = por %p232, %p233
      %p236 = scmp.ne.s32.totalorder %s219, %s235
      %p237 = scmp.eq.s32.totalorder %s21, 0
      %p238 = por %p236, %p237
      %s239 = smul.u32 %s22, 2
      %s240 = sadd.s32 %s239, %s23
      %s241 = smul.u32 %s34, 2
      %s242 = sadd.s32 %s241, %s30
      %s243 = ssub.s32 %s240, %s242
      %p244 = scmp.eq.s32.totalorder %s243, 0
      %s246 = sadd.s32 %s245, 1
      %s247 = scalar_select %p244, %s245, %s246
      %p250 = pneg %p244
      %p251 = scmp.eq.s32.totalorder %s15, 3
      %p252 = por %p250, %p251
      %p253 = scmp.ne.s32.totalorder %s245, %s248
      %p254 = scmp.eq.s32.totalorder %s15, 0
      %p255 = por %p253, %p254
      %p256 = scmp.ne.s32.totalorder %s245, %s248
      %p257 = scmp.eq.s32.totalorder %s20, 3
      %p258 = por %p256, %p257
      %p259 = scmp.ne.s32.totalorder %s248, %s249
      %p260 = scmp.eq.s32.totalorder %s20, 0
      %p261 = por %p259, %p260
      %p262 = scmp.ne.s32.totalorder %s248, %s249
      %p263 = scmp.eq.s32.totalorder %s21, 3
      %p264 = por %p262, %p263
      %p266 = scmp.ne.s32.totalorder %s249, %s265
      %p267 = scmp.eq.s32.totalorder %s21, 0
      %p268 = por %p266, %p267
      %s269 = ssub.s32 %s22, %s34
      %p270 = scmp.eq.s32.totalorder %s269, 0
      %s272 = sadd.s32 %s271, 1
      %s273 = scalar_select %p270, %s271, %s272
      %p276 = pneg %p270
      %p277 = scmp.eq.s32.totalorder %s15, 3
      %p278 = por %p276, %p277
      %p279 = scmp.ne.s32.totalorder %s271, %s274
      %p280 = scmp.eq.s32.totalorder %s15, 0
      %p281 = por %p279, %p280
      %p282 = scmp.ne.s32.totalorder %s271, %s274
      %p283 = scmp.eq.s32.totalorder %s20, 3
      %p284 = por %p282, %p283
      %p285 = scmp.ne.s32.totalorder %s274, %s275
      %p286 = scmp.eq.s32.totalorder %s20, 0
      %p287 = por %p285, %p286
      %p288 = scmp.ne.s32.totalorder %s274, %s275
      %p289 = scmp.eq.s32.totalorder %s21, 3
      %p290 = por %p288, %p289
      %p292 = scmp.ne.s32.totalorder %s275, %s291
      %p293 = scmp.eq.s32.totalorder %s21, 0
      %p294 = por %p292, %p293
      %p295 = scmp.le.s32.totalorder 1, %s15
      %p296 = scmp.lt.s32.totalorder %s15, 5
      %p297 = pnand %p295, %p296
      %p298 = pneg %p297
      // Predicated region
      $region9: #{_lambda_.4} parent=5 // pred_check
        _
      $region10: #{_lambda_.4} parent=5 // pred_check_branch
        %300 = sbr.rel (%p297) target = $region12
      $region11: #{_lambda_.4} parent=5 // pred_region
        %s301 = ssub.s32 %s15, 1
        // Predicated region
        $region13: #{_lambda_.4} parent=11 // pred_check
          %p302 = pneg %p48
        $region14: #{_lambda_.4} parent=11 // pred_check_branch
          %304 = sbr.rel (%p302) target = $region16
        $region15: #{_lambda_.4} parent=11 // pred_region
          _
        $region16: #{_lambda_.4} parent=11 // pred_fallthru
          _
        // Predicated region
        $region17: #{_lambda_.4} parent=11 // pred_check
          %p305 = pneg %p99
        $region18: #{_lambda_.4} parent=11 // pred_check_branch
          %307 = sbr.rel (%p305) target = $region20
        $region19: #{_lambda_.4} parent=11 // pred_region
          _
        $region20: #{_lambda_.4} parent=11 // pred_fallthru
          _
        // Predicated region
        $region21: #{_lambda_.4} parent=11 // pred_check
          %p308 = pneg %p180
        $region22: #{_lambda_.4} parent=11 // pred_check_branch
          %310 = sbr.rel (%p308) target = $region24
        $region23: #{_lambda_.4} parent=11 // pred_region
          _
        $region24: #{_lambda_.4} parent=11 // pred_fallthru
          _
        // Predicated region
        $region25: #{_lambda_.4} parent=11 // pred_check
          %p311 = pneg %p201
        $region26: #{_lambda_.4} parent=11 // pred_check_branch
          %313 = sbr.rel (%p311) target = $region28
        $region27: #{_lambda_.4} parent=11 // pred_region
          _
        $region28: #{_lambda_.4} parent=11 // pred_fallthru
          _
      $region12: #{_lambda_.4} parent=5 // pred_fallthru
        _
      %p314 = scmp.lt.s32.totalorder %s15, 4
      // Predicated region
      $region29: #{_lambda_.4} parent=5 // pred_check
        %p315 = pneg %p314
      $region30: #{_lambda_.4} parent=5 // pred_check_branch
        %317 = sbr.rel (%p315) target = $region32
      $region31: #{_lambda_.4} parent=5 // pred_region
        // Predicated region
        $region33: #{_lambda_.4} parent=31 // pred_check
          %p318 = pneg %p72
        $region34: #{_lambda_.4} parent=31 // pred_check_branch
          %320 = sbr.rel (%p318) target = $region36
        $region35: #{_lambda_.4} parent=31 // pred_region
          %s321 = sand.u32 %s62, 1
          %s322 = sand.u32 %s62, 1
          %s323 = smul.addr %s322, 64
          %s324 = scalar_lea.vmem [#allocation2], %s323
          %s325 = smul.u32 %s22, 2
          %s326 = sadd.s32 %s325, %s23
          %s327 = smul.u32 2, %s326
          %s328 = smul.addr %s327, 4
          %s329 = smul.addr %s328, 4
          %s330 = scalar_lea.vmem %s1, %s329
          // Predicated region
          $region37: #{_lambda_.4} parent=35 // pred_check
            _
          $region38: #{_lambda_.4} parent=35 // pred_check_branch
            %332 = sbr.rel (0) target = $region40
          $region39: #{_lambda_.4} parent=35 // pred_region
            // Predicated region
            $region41: #{_lambda_.4} parent=39 // pred_check
              _
            $region42: #{_lambda_.4} parent=39 // pred_check_branch
              %334 = sbr.rel (0) target = $region44
            $region43: #{_lambda_.4} parent=39 // pred_region
              loop: start=0, step=1, limit=1
              $region45: #{_lambda_.4} parent=43 // loop_pre_header
                _
              $region46: #{_lambda_.4} parent=43 // loop_header
                %s336 = sphi 0, %s340
                %p337 = scmp.ge.s32.totalorder %s336, 1
                %s341 = sphi %s330, %s330
                %s342 = sphi %s324, %s324
              $region47: #{_lambda_.4} parent=43 // loop_header_branch
                %339 = sbr.rel (%p337) target = $region51
              $region48: #{_lambda_.4} parent=43 // loop_body
                %v343 = vld [vmem:[%s341] sm:$0xff]
                %344 = vst [vmem:[%s342] sm:$0xff] %v343
                %v345 = vld [vmem:[%s341 + $0x8] sm:$0xff]
                %346 = vst [vmem:[%s342 + $0x8] sm:$0xff] %v345
                %v347 = vld [vmem:[%s341 + $0x10] sm:$0xff]
                %348 = vst [vmem:[%s342 + $0x10] sm:$0xff] %v347
                %v349 = vld [vmem:[%s341 + $0x18] sm:$0xff]
                %350 = vst [vmem:[%s342 + $0x18] sm:$0xff] %v349
                %v351 = vld [vmem:[%s341 + $0x80] sm:$0xff]
                %352 = vst [vmem:[%s342 + $0x20] sm:$0xff] %v351
                %v353 = vld [vmem:[%s341 + $0x88] sm:$0xff]
                %354 = vst [vmem:[%s342 + $0x28] sm:$0xff] %v353
                %v355 = vld [vmem:[%s341 + $0x90] sm:$0xff]
                %356 = vst [vmem:[%s342 + $0x30] sm:$0xff] %v355
                %v357 = vld [vmem:[%s341 + $0x98] sm:$0xff]
                %358 = vst [vmem:[%s342 + $0x38] sm:$0xff] %v357
              $region49: #{_lambda_.4} parent=43 // loop_footer
                %s340 = sadd.s32 1, %s336
              $region50: #{_lambda_.4} parent=43 // loop_footer_branch
                %335 = sbr.rel target = $region46
              $region51: #{_lambda_.4} parent=43 // loop_exit
                _
            $region44: #{_lambda_.4} parent=39 // pred_fallthru
              _
            // Predicated region
            $region52: #{_lambda_.4} parent=39 // pred_check
              _
            $region53: #{_lambda_.4} parent=39 // pred_check_branch
              %360 = sbr.rel target = $region55
            $region54: #{_lambda_.4} parent=39 // pred_region
              _
            $region55: #{_lambda_.4} parent=39 // pred_fallthru
              _
          $region40: #{_lambda_.4} parent=35 // pred_fallthru
            _
          %361 = vnop
        $region36: #{_lambda_.4} parent=31 // pred_fallthru
          _
        // Predicated region
        $region56: #{_lambda_.4} parent=31 // pred_check
          %p362 = pneg %p123
        $region57: #{_lambda_.4} parent=31 // pred_check_branch
          %364 = sbr.rel (%p362) target = $region59
        $region58: #{_lambda_.4} parent=31 // pred_region
          %s365 = smul.u32 %s22, 2
          %s366 = sadd.s32 %s365, %s23
          %s367 = smul.u32 2, %s366
          %p368 = scmp.lt.s32.totalorder %s367, 7
          %s369 = scalar_select %p368, %s367, 7
          %s370 = smul.addr %s369, 8
          %s371 = scalar_lea.vmem %s3, %s370
          %s372 = smul.u32 %s22, 2
          %s373 = sadd.s32 %s372, %s23
          %s374 = smul.u32 2, %s373
        $region59: #{_lambda_.4} parent=31 // pred_fallthru
          _
        // Predicated region
        $region60: #{_lambda_.4} parent=31 // pred_check
          %p375 = pneg %p153
        $region61: #{_lambda_.4} parent=31 // pred_check_branch
          %377 = sbr.rel (%p375) target = $region63
        $region62: #{_lambda_.4} parent=31 // pred_region
          %s378 = smul.u32 %s22, 2
          %s379 = sadd.s32 %s378, %s23
          %s380 = smul.u32 2, %s379
          %p381 = scmp.lt.s32.totalorder %s380, 7
          %s382 = scalar_select %p381, %s380, 7
          %s383 = smul.addr %s382, 8
          %s384 = scalar_lea.vmem %s4, %s383
          %s385 = smul.u32 %s22, 2
          %s386 = sadd.s32 %s385, %s23
          %s387 = smul.u32 2, %s386
        $region63: #{_lambda_.4} parent=31 // pred_fallthru
          _
        // Predicated region
        $region64: #{_lambda_.4} parent=31 // pred_check
          %p388 = pneg %p225
        $region65: #{_lambda_.4} parent=31 // pred_check_branch
          %390 = sbr.rel (%p388) target = $region67
        $region66: #{_lambda_.4} parent=31 // pred_region
          %s391 = smul.u32 %s22, 2
          %s392 = sadd.s32 %s391, %s23
          %s393 = smul.u32 2, %s392
          %p394 = scmp.lt.s32.totalorder %s393, 7
          %s395 = scalar_select %p394, %s393, 7
          %s396 = smul.addr %s395, 8
          %s397 = scalar_lea.vmem %s7, %s396
          %s398 = smul.u32 %s22, 2
          %s399 = sadd.s32 %s398, %s23
          %s400 = smul.u32 2, %s399
        $region67: #{_lambda_.4} parent=31 // pred_fallthru
          _
        // Predicated region
        $region68: #{_lambda_.4} parent=31 // pred_check
          %p401 = pneg %p255
        $region69: #{_lambda_.4} parent=31 // pred_check_branch
          %403 = sbr.rel (%p401) target = $region71
        $region70: #{_lambda_.4} parent=31 // pred_region
          %s404 = smul.u32 %s22, 2
          %s405 = sadd.s32 %s404, %s23
          %s406 = smul.u32 2, %s405
          %p407 = scmp.lt.s32.totalorder %s406, 7
          %s408 = scalar_select %p407, %s406, 7
          %s409 = smul.addr %s408, 8
          %s410 = scalar_lea.vmem %s8, %s409
          %s411 = smul.u32 %s22, 2
          %s412 = sadd.s32 %s411, %s23
          %s413 = smul.u32 2, %s412
        $region71: #{_lambda_.4} parent=31 // pred_fallthru
          _
      $region32: #{_lambda_.4} parent=5 // pred_fallthru
        _
      %p414 = scmp.le.s32.totalorder 1, %s15
      %p415 = scmp.lt.s32.totalorder %s15, 5
      %p416 = pnand %p414, %p415
      %p417 = pneg %p416
      // Predicated region
      $region72: #{_lambda_.4} parent=5 // pred_check
        _
      $region73: #{_lambda_.4} parent=5 // pred_check_branch
        %419 = sbr.rel (%p416) target = $region75
      $region74: #{_lambda_.4} parent=5 // pred_region
        %s420 = ssub.s32 %s15, 1
        %s421 = sand.u32 %s65, 1
        %s422 = sand.u32 %s65, 1
        %s423 = smul.addr %s422, 64
        %s424 = scalar_lea.vmem [#allocation2], %s423
        // Predicated region
        $region76: #{_lambda_.4} parent=74 // pred_check
          %p425 = pneg %p78
        $region77: #{_lambda_.4} parent=74 // pred_check_branch
          %427 = sbr.rel (%p425) target = $region79
        $region78: #{_lambda_.4} parent=74 // pred_region
          _
        $region79: #{_lambda_.4} parent=74 // pred_fallthru
          _
        %p428 = pneg %p48
        %p429 = pneg %p45
        %s430 = sand.u32 %s65, 1
        %s431 = sand.u32 %s65, 1
        %s432 = smul.addr %s431, 64
        %s433 = scalar_lea.vmem [#allocation2], %s432
        %p434 = pneg %p78
        %p435 = pneg %p75
        %p436 = pneg %p99
        %p437 = pneg %p96
        %s438 = smul.u32 %s24, 2
        %s439 = sadd.s32 %s438, %s25
        %s440 = smul.u32 2, %s439
        %p441 = scmp.lt.s32.totalorder %s440, 7
        %s442 = scalar_select %p441, %s440, 7
        %s443 = smul.addr %s442, 8
        %s444 = scalar_lea.vmem %s3, %s443
        %p445 = pneg %p129
        %p446 = pneg %p126
        %s447 = smul.u32 %s24, 2
        %s448 = sadd.s32 %s447, %s25
        %s449 = smul.u32 2, %s448
        %p450 = scmp.lt.s32.totalorder %s449, 7
        %s451 = scalar_select %p450, %s449, 7
        %s452 = smul.addr %s451, 8
        %s453 = scalar_lea.vmem %s4, %s452
        %p454 = pneg %p159
        %p455 = pneg %p156
        %p456 = pneg %p180
        %p457 = pneg %p177
        %p458 = pneg %p201
        %p459 = pneg %p198
        %s460 = smul.u32 %s24, 2
        %s461 = sadd.s32 %s460, %s25
        %s462 = smul.u32 2, %s461
        %p463 = scmp.lt.s32.totalorder %s462, 7
        %s464 = scalar_select %p463, %s462, 7
        %s465 = smul.addr %s464, 8
        %s466 = scalar_lea.vmem %s7, %s465
        %p467 = pneg %p231
        %p468 = pneg %p228
        %s469 = smul.u32 %s24, 2
        %s470 = sadd.s32 %s469, %s25
        %s471 = smul.u32 2, %s470
        %p472 = scmp.lt.s32.totalorder %s471, 7
        %s473 = scalar_select %p472, %s471, 7
        %s474 = smul.addr %s473, 8
        %s475 = scalar_lea.vmem %s8, %s474
        %p476 = pneg %p261
        %p477 = pneg %p258
        %p478 = pneg %p287
        %p479 = pneg %p284
        %p480 = scmp.lt.s32.totalorder %s24, 1
        %s481 = scalar_select %p480, %s24, 1
        %s482 = smul.addr %s481, 4
        %s483 = smul.addr %s482, 2
        %s484 = scalar_lea.vmem %s9, %s483
        %s485 = smul.u32 %s24, 2
        %s486 = sadd.s32 %s485, %s25
        %s487 = smul.u32 2, %s486
        %s488 = smul.u32 %s24, 2
        %s489 = sadd.s32 %s488, %s25
        %s490 = smul.u32 2, %s489
        %p491 = scmp.lt.s32.totalorder %s490, 7
        %s492 = scalar_select %p491, %s490, 7
        %s493 = smul.addr %s492, 8
        %s494 = scalar_lea.vmem %s3, %s493
        %s495 = smul.u32 %s24, 2
        %s496 = sadd.s32 %s495, %s25
        %s497 = smul.u32 2, %s496
        %s498 = smul.u32 %s24, 2
        %s499 = sadd.s32 %s498, %s25
        %s500 = smul.u32 2, %s499
        %p501 = scmp.lt.s32.totalorder %s500, 7
        %s502 = scalar_select %p501, %s500, 7
        %s503 = smul.addr %s502, 8
        %s504 = scalar_lea.vmem %s4, %s503
        %s505 = smul.u32 %s24, 2
        %s506 = sadd.s32 %s505, %s25
        %s507 = smul.u32 2, %s506
        %s508 = smul.u32 %s24, 2
        %s509 = sadd.s32 %s508, %s25
        %s510 = smul.u32 2, %s509
        %p511 = scmp.lt.s32.totalorder %s510, 7
        %s512 = scalar_select %p511, %s510, 7
        %s513 = smul.addr %s512, 8
        %s514 = scalar_lea.vmem %s7, %s513
        %s515 = smul.u32 %s24, 2
        %s516 = sadd.s32 %s515, %s25
        %s517 = smul.u32 2, %s516
        %s518 = smul.u32 %s24, 2
        %s519 = sadd.s32 %s518, %s25
        %s520 = smul.u32 2, %s519
        %p521 = scmp.lt.s32.totalorder %s520, 7
        %s522 = scalar_select %p521, %s520, 7
        %s523 = smul.addr %s522, 8
        %s524 = scalar_lea.vmem %s8, %s523
        %s525 = smul.u32 %s24, 2
        %s526 = sadd.s32 %s525, %s25
        %s527 = smul.u32 2, %s526
        %p528 = scmp.lt.s32.totalorder %s24, 1
        %s529 = scalar_select %p528, %s24, 1
        %s530 = smul.addr %s529, 4
        %s531 = smul.addr %s530, 2
        %s532 = scalar_lea.vmem %s9, %s531
        %p534 = scmp.eq.s32.totalorder %s25, 0
        // Predicated region
        $region80: #{_lambda_.4} parent=74 // pred_check
          %p535 = pneg %p534
        $region81: #{_lambda_.4} parent=74 // pred_check_branch
          %537 = sbr.rel (%p535) target = $region83
        $region82: #{_lambda_.4} parent=74 // pred_region
          %538 = vst [vmem:[%s532] sm:$0xff] -inf
        $region83: #{_lambda_.4} parent=74 // pred_fallthru
          _
        %v539 = vld [vmem:[%s424] sm:$0xff]
        %v540 = vld [vmem:[%s424 + $0x8] sm:$0xff]
        %v541 = vld [vmem:[%s424 + $0x10] sm:$0xff]
        %v542 = vld [vmem:[%s424 + $0x18] sm:$0xff]
        %v543 = vld [vmem:[%s424 + $0x20] sm:$0xff]
        %v544 = vld [vmem:[%s424 + $0x28] sm:$0xff]
        %v545 = vld [vmem:[%s424 + $0x30] sm:$0xff]
        %v546 = vld [vmem:[%s424 + $0x38] sm:$0xff]
        %v547 = vld [vmem:[%s2] sm:$0xff]
        %v548 = vld [vmem:[%s2 + $0x8] sm:$0xff]
        %v549 = vld [vmem:[%s2 + $0x10] sm:$0xff]
        %v550 = vld [vmem:[%s2 + $0x18] sm:$0xff]
        %v551 = vld [vmem:[%s2 + $0x20] sm:$0xff]
        %v552 = vld [vmem:[%s2 + $0x28] sm:$0xff]
        %v553 = vld [vmem:[%s2 + $0x30] sm:$0xff]
        %v554 = vld [vmem:[%s2 + $0x38] sm:$0xff]
        %v555 = vld [vmem:[%s2 + $0x40] sm:$0xff]
        %v556 = vld [vmem:[%s2 + $0x48] sm:$0xff]
        %v557 = vld [vmem:[%s2 + $0x50] sm:$0xff]
        %v558 = vld [vmem:[%s2 + $0x58] sm:$0xff]
        %v559 = vld [vmem:[%s2 + $0x60] sm:$0xff]
        %v560 = vld [vmem:[%s2 + $0x68] sm:$0xff]
        %v561 = vld [vmem:[%s2 + $0x70] sm:$0xff]
        %v562 = vld [vmem:[%s2 + $0x78] sm:$0xff]
        %v563 = vld [vmem:[%s2 + $0x80] sm:$0xff]
        %v564 = vld [vmem:[%s2 + $0x88] sm:$0xff]
        %v565 = vld [vmem:[%s2 + $0x90] sm:$0xff]
        %v566 = vld [vmem:[%s2 + $0x98] sm:$0xff]
        %v567 = vld [vmem:[%s2 + $0xa0] sm:$0xff]
        %v568 = vld [vmem:[%s2 + $0xa8] sm:$0xff]
        %v569 = vld [vmem:[%s2 + $0xb0] sm:$0xff]
        %v570 = vld [vmem:[%s2 + $0xb8] sm:$0xff]
        %v571 = vld [vmem:[%s2 + $0xc0] sm:$0xff]
        %v572 = vld [vmem:[%s2 + $0xc8] sm:$0xff]
        %v573 = vld [vmem:[%s2 + $0xd0] sm:$0xff]
        %v574 = vld [vmem:[%s2 + $0xd8] sm:$0xff]
        %v575 = vld [vmem:[%s2 + $0xe0] sm:$0xff]
        %v576 = vld [vmem:[%s2 + $0xe8] sm:$0xff]
        %v577 = vld [vmem:[%s2 + $0xf0] sm:$0xff]
        %v578 = vld [vmem:[%s2 + $0xf8] sm:$0xff]
        %v579 = vld [vmem:[%s2 + $0x100] sm:$0xff]
        %v580 = vld [vmem:[%s2 + $0x108] sm:$0xff]
        %v581 = vld [vmem:[%s2 + $0x110] sm:$0xff]
        %v582 = vld [vmem:[%s2 + $0x118] sm:$0xff]
        %v583 = vld [vmem:[%s2 + $0x120] sm:$0xff]
        %v584 = vld [vmem:[%s2 + $0x128] sm:$0xff]
        %v585 = vld [vmem:[%s2 + $0x130] sm:$0xff]
        %v586 = vld [vmem:[%s2 + $0x138] sm:$0xff]
        %v587 = vld [vmem:[%s2 + $0x140] sm:$0xff]
        %v588 = vld [vmem:[%s2 + $0x148] sm:$0xff]
        %v589 = vld [vmem:[%s2 + $0x150] sm:$0xff]
        %v590 = vld [vmem:[%s2 + $0x158] sm:$0xff]
        %v591 = vld [vmem:[%s2 + $0x160] sm:$0xff]
        %v592 = vld [vmem:[%s2 + $0x168] sm:$0xff]
        %v593 = vld [vmem:[%s2 + $0x170] sm:$0xff]
        %v594 = vld [vmem:[%s2 + $0x178] sm:$0xff]
        %v595 = vld [vmem:[%s2 + $0x180] sm:$0xff]
        %v596 = vld [vmem:[%s2 + $0x188] sm:$0xff]
        %v597 = vld [vmem:[%s2 + $0x190] sm:$0xff]
        %v598 = vld [vmem:[%s2 + $0x198] sm:$0xff]
        %v599 = vld [vmem:[%s2 + $0x1a0] sm:$0xff]
        %v600 = vld [vmem:[%s2 + $0x1a8] sm:$0xff]
        %v601 = vld [vmem:[%s2 + $0x1b0] sm:$0xff]
        %v602 = vld [vmem:[%s2 + $0x1b8] sm:$0xff]
        %v603 = vld [vmem:[%s2 + $0x1c0] sm:$0xff]
        %v604 = vld [vmem:[%s2 + $0x1c8] sm:$0xff]
        %v605 = vld [vmem:[%s2 + $0x1d0] sm:$0xff]
        %v606 = vld [vmem:[%s2 + $0x1d8] sm:$0xff]
        %v607 = vld [vmem:[%s2 + $0x1e0] sm:$0xff]
        %v608 = vld [vmem:[%s2 + $0x1e8] sm:$0xff]
        %v609 = vld [vmem:[%s2 + $0x1f0] sm:$0xff]
        %v610 = vld [vmem:[%s2 + $0x1f8] sm:$0xff]
        %v611 = vld [vmem:[%s2 + $0x200] sm:$0xff]
        %v612 = vld [vmem:[%s2 + $0x208] sm:$0xff]
        %v613 = vld [vmem:[%s2 + $0x210] sm:$0xff]
        %v614 = vld [vmem:[%s2 + $0x218] sm:$0xff]
        %v615 = vld [vmem:[%s2 + $0x220] sm:$0xff]
        %v616 = vld [vmem:[%s2 + $0x228] sm:$0xff]
        %v617 = vld [vmem:[%s2 + $0x230] sm:$0xff]
        %v618 = vld [vmem:[%s2 + $0x238] sm:$0xff]
        %v619 = vld [vmem:[%s2 + $0x240] sm:$0xff]
        %v620 = vld [vmem:[%s2 + $0x248] sm:$0xff]
        %v621 = vld [vmem:[%s2 + $0x250] sm:$0xff]
        %v622 = vld [vmem:[%s2 + $0x258] sm:$0xff]
        %v623 = vld [vmem:[%s2 + $0x260] sm:$0xff]
        %v624 = vld [vmem:[%s2 + $0x268] sm:$0xff]
        %v625 = vld [vmem:[%s2 + $0x270] sm:$0xff]
        %v626 = vld [vmem:[%s2 + $0x278] sm:$0xff]
        %v627 = vld [vmem:[%s2 + $0x280] sm:$0xff]
        %v628 = vld [vmem:[%s2 + $0x288] sm:$0xff]
        %v629 = vld [vmem:[%s2 + $0x290] sm:$0xff]
        %v630 = vld [vmem:[%s2 + $0x298] sm:$0xff]
        %v631 = vld [vmem:[%s2 + $0x2a0] sm:$0xff]
        %v632 = vld [vmem:[%s2 + $0x2a8] sm:$0xff]
        %v633 = vld [vmem:[%s2 + $0x2b0] sm:$0xff]
        %v634 = vld [vmem:[%s2 + $0x2b8] sm:$0xff]
        %v635 = vld [vmem:[%s2 + $0x2c0] sm:$0xff]
        %v636 = vld [vmem:[%s2 + $0x2c8] sm:$0xff]
        %v637 = vld [vmem:[%s2 + $0x2d0] sm:$0xff]
        %v638 = vld [vmem:[%s2 + $0x2d8] sm:$0xff]
        %v639 = vld [vmem:[%s2 + $0x2e0] sm:$0xff]
        %v640 = vld [vmem:[%s2 + $0x2e8] sm:$0xff]
        %v641 = vld [vmem:[%s2 + $0x2f0] sm:$0xff]
        %v642 = vld [vmem:[%s2 + $0x2f8] sm:$0xff]
        %v643 = vld [vmem:[%s2 + $0x300] sm:$0xff]
        %v644 = vld [vmem:[%s2 + $0x308] sm:$0xff]
        %v645 = vld [vmem:[%s2 + $0x310] sm:$0xff]
        %v646 = vld [vmem:[%s2 + $0x318] sm:$0xff]
        %v647 = vld [vmem:[%s2 + $0x320] sm:$0xff]
        %v648 = vld [vmem:[%s2 + $0x328] sm:$0xff]
        %v649 = vld [vmem:[%s2 + $0x330] sm:$0xff]
        %v650 = vld [vmem:[%s2 + $0x338] sm:$0xff]
        %v651 = vld [vmem:[%s2 + $0x340] sm:$0xff]
        %v652 = vld [vmem:[%s2 + $0x348] sm:$0xff]
        %v653 = vld [vmem:[%s2 + $0x350] sm:$0xff]
        %v654 = vld [vmem:[%s2 + $0x358] sm:$0xff]
        %v655 = vld [vmem:[%s2 + $0x360] sm:$0xff]
        %v656 = vld [vmem:[%s2 + $0x368] sm:$0xff]
        %v657 = vld [vmem:[%s2 + $0x370] sm:$0xff]
        %v658 = vld [vmem:[%s2 + $0x378] sm:$0xff]
        %v667 = vunpack.c.l.b16 %v539
        %v668 = vunpack.c.h.b16 %v539
        %v669 = vunpack.c.l.b16 %v540
        %v670 = vunpack.c.h.b16 %v540
        %v671 = vunpack.c.l.b16 %v541
        %v672 = vunpack.c.h.b16 %v541
        %v673 = vunpack.c.l.b16 %v542
        %v674 = vunpack.c.h.b16 %v542
        %v675 = vunpack.c.l.b16 %v543
        %v676 = vunpack.c.h.b16 %v543
        %v677 = vunpack.c.l.b16 %v544
        %v678 = vunpack.c.h.b16 %v544
        %v679 = vunpack.c.l.b16 %v545
        %v680 = vunpack.c.h.b16 %v545
        %v681 = vunpack.c.l.b16 %v546
        %v682 = vunpack.c.h.b16 %v546
        %v683 = vpack.c.b16 %v671, %v667
        %v684 = vpack.c.b16 %v672, %v668
        %v685 = vpack.c.b16 %v673, %v669
        %v686 = vpack.c.b16 %v674, %v670
        %v687 = vpack.c.b16 %v679, %v675
        %v688 = vpack.c.b16 %v680, %v676
        %v689 = vpack.c.b16 %v681, %v677
        %v690 = vpack.c.b16 %v682, %v678
        %v809 = vunpack.c.l.b16 %v547
        %v810 = vunpack.c.h.b16 %v547
        %v811 = vunpack.c.l.b16 %v548
        %v812 = vunpack.c.h.b16 %v548
        %v813 = vunpack.c.l.b16 %v549
        %v814 = vunpack.c.h.b16 %v549
        %v815 = vunpack.c.l.b16 %v550
        %v816 = vunpack.c.h.b16 %v550
        %v817 = vunpack.c.l.b16 %v551
        %v818 = vunpack.c.h.b16 %v551
        %v819 = vunpack.c.l.b16 %v552
        %v820 = vunpack.c.h.b16 %v552
        %v821 = vunpack.c.l.b16 %v553
        %v822 = vunpack.c.h.b16 %v553
        %v823 = vunpack.c.l.b16 %v554
        %v824 = vunpack.c.h.b16 %v554
        %v825 = vunpack.c.l.b16 %v555
        %v826 = vunpack.c.h.b16 %v555
        %v827 = vunpack.c.l.b16 %v556
        %v828 = vunpack.c.h.b16 %v556
        %v829 = vunpack.c.l.b16 %v557
        %v830 = vunpack.c.h.b16 %v557
        %v831 = vunpack.c.l.b16 %v558
        %v832 = vunpack.c.h.b16 %v558
        %v833 = vunpack.c.l.b16 %v559
        %v834 = vunpack.c.h.b16 %v559
        %v835 = vunpack.c.l.b16 %v560
        %v836 = vunpack.c.h.b16 %v560
        %v837 = vunpack.c.l.b16 %v561
        %v838 = vunpack.c.h.b16 %v561
        %v839 = vunpack.c.l.b16 %v562
        %v840 = vunpack.c.h.b16 %v562
        %v841 = vunpack.c.l.b16 %v563
        %v842 = vunpack.c.h.b16 %v563
        %v843 = vunpack.c.l.b16 %v564
        %v844 = vunpack.c.h.b16 %v564
        %v845 = vunpack.c.l.b16 %v565
        %v846 = vunpack.c.h.b16 %v565
        %v847 = vunpack.c.l.b16 %v566
        %v848 = vunpack.c.h.b16 %v566
        %v849 = vunpack.c.l.b16 %v567
        %v850 = vunpack.c.h.b16 %v567
        %v851 = vunpack.c.l.b16 %v568
        %v852 = vunpack.c.h.b16 %v568
        %v853 = vunpack.c.l.b16 %v569
        %v854 = vunpack.c.h.b16 %v569
        %v855 = vunpack.c.l.b16 %v570
        %v856 = vunpack.c.h.b16 %v570
        %v857 = vunpack.c.l.b16 %v571
        %v858 = vunpack.c.h.b16 %v571
        %v859 = vunpack.c.l.b16 %v572
        %v860 = vunpack.c.h.b16 %v572
        %v861 = vunpack.c.l.b16 %v573
        %v862 = vunpack.c.h.b16 %v573
        %v863 = vunpack.c.l.b16 %v574
        %v864 = vunpack.c.h.b16 %v574
        %v865 = vunpack.c.l.b16 %v575
        %v866 = vunpack.c.h.b16 %v575
        %v867 = vunpack.c.l.b16 %v576
        %v868 = vunpack.c.h.b16 %v576
        %v869 = vunpack.c.l.b16 %v577
        %v870 = vunpack.c.h.b16 %v577
        %v871 = vunpack.c.l.b16 %v578
        %v872 = vunpack.c.h.b16 %v578
        %v873 = vunpack.c.l.b16 %v579
        %v874 = vunpack.c.h.b16 %v579
        %v875 = vunpack.c.l.b16 %v580
        %v876 = vunpack.c.h.b16 %v580
        %v877 = vunpack.c.l.b16 %v581
        %v878 = vunpack.c.h.b16 %v581
        %v879 = vunpack.c.l.b16 %v582
        %v880 = vunpack.c.h.b16 %v582
        %v881 = vunpack.c.l.b16 %v583
        %v882 = vunpack.c.h.b16 %v583
        %v883 = vunpack.c.l.b16 %v584
        %v884 = vunpack.c.h.b16 %v584
        %v885 = vunpack.c.l.b16 %v585
        %v886 = vunpack.c.h.b16 %v585
        %v887 = vunpack.c.l.b16 %v586
        %v888 = vunpack.c.h.b16 %v586
        %v889 = vunpack.c.l.b16 %v587
        %v890 = vunpack.c.h.b16 %v587
        %v891 = vunpack.c.l.b16 %v588
        %v892 = vunpack.c.h.b16 %v588
        %v893 = vunpack.c.l.b16 %v589
        %v894 = vunpack.c.h.b16 %v589
        %v895 = vunpack.c.l.b16 %v590
        %v896 = vunpack.c.h.b16 %v590
        %v897 = vunpack.c.l.b16 %v591
        %v898 = vunpack.c.h.b16 %v591
        %v899 = vunpack.c.l.b16 %v592
        %v900 = vunpack.c.h.b16 %v592
        %v901 = vunpack.c.l.b16 %v593
        %v902 = vunpack.c.h.b16 %v593
        %v903 = vunpack.c.l.b16 %v594
        %v904 = vunpack.c.h.b16 %v594
        %v905 = vunpack.c.l.b16 %v595
        %v906 = vunpack.c.h.b16 %v595
        %v907 = vunpack.c.l.b16 %v596
        %v908 = vunpack.c.h.b16 %v596
        %v909 = vunpack.c.l.b16 %v597
        %v910 = vunpack.c.h.b16 %v597
        %v911 = vunpack.c.l.b16 %v598
        %v912 = vunpack.c.h.b16 %v598
        %v913 = vunpack.c.l.b16 %v599
        %v914 = vunpack.c.h.b16 %v599
        %v915 = vunpack.c.l.b16 %v600
        %v916 = vunpack.c.h.b16 %v600
        %v917 = vunpack.c.l.b16 %v601
        %v918 = vunpack.c.h.b16 %v601
        %v919 = vunpack.c.l.b16 %v602
        %v920 = vunpack.c.h.b16 %v602
        %v921 = vunpack.c.l.b16 %v603
        %v922 = vunpack.c.h.b16 %v603
        %v923 = vunpack.c.l.b16 %v604
        %v924 = vunpack.c.h.b16 %v604
        %v925 = vunpack.c.l.b16 %v605
        %v926 = vunpack.c.h.b16 %v605
        %v927 = vunpack.c.l.b16 %v606
        %v928 = vunpack.c.h.b16 %v606
        %v929 = vunpack.c.l.b16 %v607
        %v930 = vunpack.c.h.b16 %v607
        %v931 = vunpack.c.l.b16 %v608
        %v932 = vunpack.c.h.b16 %v608
        %v933 = vunpack.c.l.b16 %v609
        %v934 = vunpack.c.h.b16 %v609
        %v935 = vunpack.c.l.b16 %v610
        %v936 = vunpack.c.h.b16 %v610
        %v937 = vunpack.c.l.b16 %v611
        %v938 = vunpack.c.h.b16 %v611
        %v939 = vunpack.c.l.b16 %v612
        %v940 = vunpack.c.h.b16 %v612
        %v941 = vunpack.c.l.b16 %v613
        %v942 = vunpack.c.h.b16 %v613
        %v943 = vunpack.c.l.b16 %v614
        %v944 = vunpack.c.h.b16 %v614
        %v945 = vunpack.c.l.b16 %v615
        %v946 = vunpack.c.h.b16 %v615
        %v947 = vunpack.c.l.b16 %v616
        %v948 = vunpack.c.h.b16 %v616
        %v949 = vunpack.c.l.b16 %v617
        %v950 = vunpack.c.h.b16 %v617
        %v951 = vunpack.c.l.b16 %v618
        %v952 = vunpack.c.h.b16 %v618
        %v953 = vunpack.c.l.b16 %v619
        %v954 = vunpack.c.h.b16 %v619
        %v955 = vunpack.c.l.b16 %v620
        %v956 = vunpack.c.h.b16 %v620
        %v957 = vunpack.c.l.b16 %v621
        %v958 = vunpack.c.h.b16 %v621
        %v959 = vunpack.c.l.b16 %v622
        %v960 = vunpack.c.h.b16 %v622
        %v961 = vunpack.c.l.b16 %v623
        %v962 = vunpack.c.h.b16 %v623
        %v963 = vunpack.c.l.b16 %v624
        %v964 = vunpack.c.h.b16 %v624
        %v965 = vunpack.c.l.b16 %v625
        %v966 = vunpack.c.h.b16 %v625
        %v967 = vunpack.c.l.b16 %v626
        %v968 = vunpack.c.h.b16 %v626
        %v969 = vunpack.c.l.b16 %v627
        %v970 = vunpack.c.h.b16 %v627
        %v971 = vunpack.c.l.b16 %v628
        %v972 = vunpack.c.h.b16 %v628
        %v973 = vunpack.c.l.b16 %v629
        %v974 = vunpack.c.h.b16 %v629
        %v975 = vunpack.c.l.b16 %v630
        %v976 = vunpack.c.h.b16 %v630
        %v977 = vunpack.c.l.b16 %v631
        %v978 = vunpack.c.h.b16 %v631
        %v979 = vunpack.c.l.b16 %v632
        %v980 = vunpack.c.h.b16 %v632
        %v981 = vunpack.c.l.b16 %v633
        %v982 = vunpack.c.h.b16 %v633
        %v983 = vunpack.c.l.b16 %v634
        %v984 = vunpack.c.h.b16 %v634
        %v985 = vunpack.c.l.b16 %v635
        %v986 = vunpack.c.h.b16 %v635
        %v987 = vunpack.c.l.b16 %v636
        %v988 = vunpack.c.h.b16 %v636
        %v989 = vunpack.c.l.b16 %v637
        %v990 = vunpack.c.h.b16 %v637
        %v991 = vunpack.c.l.b16 %v638
        %v992 = vunpack.c.h.b16 %v638
        %v993 = vunpack.c.l.b16 %v639
        %v994 = vunpack.c.h.b16 %v639
        %v995 = vunpack.c.l.b16 %v640
        %v996 = vunpack.c.h.b16 %v640
        %v997 = vunpack.c.l.b16 %v641
        %v998 = vunpack.c.h.b16 %v641
        %v999 = vunpack.c.l.b16 %v642
        %v1000 = vunpack.c.h.b16 %v642
        %v1001 = vunpack.c.l.b16 %v643
        %v1002 = vunpack.c.h.b16 %v643
        %v1003 = vunpack.c.l.b16 %v644
        %v1004 = vunpack.c.h.b16 %v644
        %v1005 = vunpack.c.l.b16 %v645
        %v1006 = vunpack.c.h.b16 %v645
        %v1007 = vunpack.c.l.b16 %v646
        %v1008 = vunpack.c.h.b16 %v646
        %v1009 = vunpack.c.l.b16 %v647
        %v1010 = vunpack.c.h.b16 %v647
        %v1011 = vunpack.c.l.b16 %v648
        %v1012 = vunpack.c.h.b16 %v648
        %v1013 = vunpack.c.l.b16 %v649
        %v1014 = vunpack.c.h.b16 %v649
        %v1015 = vunpack.c.l.b16 %v650
        %v1016 = vunpack.c.h.b16 %v650
        %v1017 = vunpack.c.l.b16 %v651
        %v1018 = vunpack.c.h.b16 %v651
        %v1019 = vunpack.c.l.b16 %v652
        %v1020 = vunpack.c.h.b16 %v652
        %v1021 = vunpack.c.l.b16 %v653
        %v1022 = vunpack.c.h.b16 %v653
        %v1023 = vunpack.c.l.b16 %v654
        %v1024 = vunpack.c.h.b16 %v654
        %v1025 = vunpack.c.l.b16 %v655
        %v1026 = vunpack.c.h.b16 %v655
        %v1027 = vunpack.c.l.b16 %v656
        %v1028 = vunpack.c.h.b16 %v656
        %v1029 = vunpack.c.l.b16 %v657
        %v1030 = vunpack.c.h.b16 %v657
        %v1031 = vunpack.c.l.b16 %v658
        %v1032 = vunpack.c.h.b16 %v658
        %v1033 = vpack.c.b16 %v813, %v809
        %v1034 = vpack.c.b16 %v814, %v810
        %v1035 = vpack.c.b16 %v815, %v811
        %v1036 = vpack.c.b16 %v816, %v812
        %v1037 = vpack.c.b16 %v821, %v817
        %v1038 = vpack.c.b16 %v822, %v818
        %v1039 = vpack.c.b16 %v823, %v819
        %v1040 = vpack.c.b16 %v824, %v820
        %v1041 = vpack.c.b16 %v829, %v825
        %v1042 = vpack.c.b16 %v830, %v826
        %v1043 = vpack.c.b16 %v831, %v827
        %v1044 = vpack.c.b16 %v832, %v828
        %v1045 = vpack.c.b16 %v837, %v833
        %v1046 = vpack.c.b16 %v838, %v834
        %v1047 = vpack.c.b16 %v839, %v835
        %v1048 = vpack.c.b16 %v840, %v836
        %v1049 = vpack.c.b16 %v845, %v841
        %v1050 = vpack.c.b16 %v846, %v842
        %v1051 = vpack.c.b16 %v847, %v843
        %v1052 = vpack.c.b16 %v848, %v844
        %v1053 = vpack.c.b16 %v853, %v849
        %v1054 = vpack.c.b16 %v854, %v850
        %v1055 = vpack.c.b16 %v855, %v851
        %v1056 = vpack.c.b16 %v856, %v852
        %v1057 = vpack.c.b16 %v861, %v857
        %v1058 = vpack.c.b16 %v862, %v858
        %v1059 = vpack.c.b16 %v863, %v859
        %v1060 = vpack.c.b16 %v864, %v860
        %v1061 = vpack.c.b16 %v869, %v865
        %v1062 = vpack.c.b16 %v870, %v866
        %v1063 = vpack.c.b16 %v871, %v867
        %v1064 = vpack.c.b16 %v872, %v868
        %v1065 = vpack.c.b16 %v877, %v873
        %v1066 = vpack.c.b16 %v878, %v874
        %v1067 = vpack.c.b16 %v879, %v875
        %v1068 = vpack.c.b16 %v880, %v876
        %v1069 = vpack.c.b16 %v885, %v881
        %v1070 = vpack.c.b16 %v886, %v882
        %v1071 = vpack.c.b16 %v887, %v883
        %v1072 = vpack.c.b16 %v888, %v884
        %v1073 = vpack.c.b16 %v893, %v889
        %v1074 = vpack.c.b16 %v894, %v890
        %v1075 = vpack.c.b16 %v895, %v891
        %v1076 = vpack.c.b16 %v896, %v892
        %v1077 = vpack.c.b16 %v901, %v897
        %v1078 = vpack.c.b16 %v902, %v898
        %v1079 = vpack.c.b16 %v903, %v899
        %v1080 = vpack.c.b16 %v904, %v900
        %v1081 = vpack.c.b16 %v909, %v905
        %v1082 = vpack.c.b16 %v910, %v906
        %v1083 = vpack.c.b16 %v911, %v907
        %v1084 = vpack.c.b16 %v912, %v908
        %v1085 = vpack.c.b16 %v917, %v913
        %v1086 = vpack.c.b16 %v918, %v914
        %v1087 = vpack.c.b16 %v919, %v915
        %v1088 = vpack.c.b16 %v920, %v916
        %v1089 = vpack.c.b16 %v925, %v921
        %v1090 = vpack.c.b16 %v926, %v922
        %v1091 = vpack.c.b16 %v927, %v923
        %v1092 = vpack.c.b16 %v928, %v924
        %v1093 = vpack.c.b16 %v933, %v929
        %v1094 = vpack.c.b16 %v934, %v930
        %v1095 = vpack.c.b16 %v935, %v931
        %v1096 = vpack.c.b16 %v936, %v932
        %v1097 = vpack.c.b16 %v941, %v937
        %v1098 = vpack.c.b16 %v942, %v938
        %v1099 = vpack.c.b16 %v943, %v939
        %v1100 = vpack.c.b16 %v944, %v940
        %v1101 = vpack.c.b16 %v949, %v945
        %v1102 = vpack.c.b16 %v950, %v946
        %v1103 = vpack.c.b16 %v951, %v947
        %v1104 = vpack.c.b16 %v952, %v948
        %v1105 = vpack.c.b16 %v957, %v953
        %v1106 = vpack.c.b16 %v958, %v954
        %v1107 = vpack.c.b16 %v959, %v955
        %v1108 = vpack.c.b16 %v960, %v956
        %v1109 = vpack.c.b16 %v965, %v961
        %v1110 = vpack.c.b16 %v966, %v962
        %v1111 = vpack.c.b16 %v967, %v963
        %v1112 = vpack.c.b16 %v968, %v964
        %v1113 = vpack.c.b16 %v973, %v969
        %v1114 = vpack.c.b16 %v974, %v970
        %v1115 = vpack.c.b16 %v975, %v971
        %v1116 = vpack.c.b16 %v976, %v972
        %v1117 = vpack.c.b16 %v981, %v977
        %v1118 = vpack.c.b16 %v982, %v978
        %v1119 = vpack.c.b16 %v983, %v979
        %v1120 = vpack.c.b16 %v984, %v980
        %v1121 = vpack.c.b16 %v989, %v985
        %v1122 = vpack.c.b16 %v990, %v986
        %v1123 = vpack.c.b16 %v991, %v987
        %v1124 = vpack.c.b16 %v992, %v988
        %v1125 = vpack.c.b16 %v997, %v993
        %v1126 = vpack.c.b16 %v998, %v994
        %v1127 = vpack.c.b16 %v999, %v995
        %v1128 = vpack.c.b16 %v1000, %v996
        %v1129 = vpack.c.b16 %v1005, %v1001
        %v1130 = vpack.c.b16 %v1006, %v1002
        %v1131 = vpack.c.b16 %v1007, %v1003
        %v1132 = vpack.c.b16 %v1008, %v1004
        %v1133 = vpack.c.b16 %v1013, %v1009
        %v1134 = vpack.c.b16 %v1014, %v1010
        %v1135 = vpack.c.b16 %v1015, %v1011
        %v1136 = vpack.c.b16 %v1016, %v1012
        %v1137 = vpack.c.b16 %v1021, %v1017
        %v1138 = vpack.c.b16 %v1022, %v1018
        %v1139 = vpack.c.b16 %v1023, %v1019
        %v1140 = vpack.c.b16 %v1024, %v1020
        %v1141 = vpack.c.b16 %v1029, %v1025
        %v1142 = vpack.c.b16 %v1030, %v1026
        %v1143 = vpack.c.b16 %v1031, %v1027
        %v1144 = vpack.c.b16 %v1032, %v1028
        %vm1257 = vcmask 523264
        %v1259 = vsel %vm1257, %v686, 0
        %v1262 = vsel %vm1257, %v690, 0
        %1264 = vmatprep.subr.bf16.mxu0 %v1034
        %1265 = vmatpush1.bf16.msra.mxu0 %v1033
        %1266 = vmatprep.subr.bf16.mxu0 %v1038
        %1267 = vmatpush1.bf16.msra.mxu0 %v1037
        %1268 = vmatprep.subr.bf16.mxu0 %v1042
        %1269 = vmatpush1.bf16.msra.mxu0 %v1041
        %1270 = vmatprep.subr.bf16.mxu0 %v1046
        %1271 = vmatpush1.bf16.msra.mxu0 %v1045
        %1272 = vmatprep.subr.bf16.mxu0 %v1050
        %1273 = vmatpush1.bf16.msra.mxu0 %v1049
        %1274 = vmatprep.subr.bf16.mxu0 %v1054
        %1275 = vmatpush1.bf16.msra.mxu0 %v1053
        %1276 = vmatprep.subr.bf16.mxu0 %v1058
        %1277 = vmatpush1.bf16.msra.mxu0 %v1057
        %1278 = vmatprep.subr.bf16.mxu0 %v1062
        %1279 = vmatpush1.bf16.msra.mxu0 %v1061
        %1280 = vmatprep.subr.bf16.mxu0 %v1066
        %1281 = vmatpush1.bf16.msra.mxu0 %v1065
        %1282 = vmatprep.subr.bf16.mxu0 %v1070
        %1283 = vmatpush1.bf16.msra.mxu0 %v1069
        %1284 = vmatprep.subr.bf16.mxu0 %v1074
        %1285 = vmatpush1.bf16.msra.mxu0 %v1073
        %1286 = vmatprep.subr.bf16.mxu0 %v1078
        %1287 = vmatpush1.bf16.msra.mxu0 %v1077
        %1288 = vmatprep.subr.bf16.mxu0 %v1082
        %1289 = vmatpush1.bf16.msra.mxu0 %v1081
        %1290 = vmatprep.subr.bf16.mxu0 %v1086
        %1291 = vmatpush1.bf16.msra.mxu0 %v1085
        %1292 = vmatprep.subr.bf16.mxu0 %v1090
        %1293 = vmatpush1.bf16.msra.mxu0 %v1089
        %1294 = vmatprep.subr.bf16.mxu0 %v1094
        %1295 = vmatpush1.bf16.msra.mxu0 %v1093
        %1296 = vmatprep.mubr.bf16.mxu0 %v684
        %1297 = vmatmul.mubr.bf16.gmra.mrb[0].mxu0 %v683
        %v1298 = vpop.f32.mrb[0].mxu0
        %v1299 = vadd.f32 0.0, %v1298
        %v1300 = vpop.f32.mrb[0].mxu0
        %v1301 = vadd.f32 0.0, %v1300
        %v1302 = vpop.f32.mrb[0].mxu0
        %v1303 = vadd.f32 0.0, %v1302
        %v1304 = vpop.f32.mrb[0].mxu0
        %v1305 = vadd.f32 0.0, %v1304
        %1306 = vmatprep.mubr.bf16.mxu0 %v688
        %1307 = vmatmul.mubr.bf16.gmra.mrb[0].mxu0 %v687
        %v1308 = vpop.f32.mrb[0].mxu0
        %v1309 = vadd.f32 0.0, %v1308
        %v1310 = vpop.f32.mrb[0].mxu0
        %v1311 = vadd.f32 0.0, %v1310
        %v1312 = vpop.f32.mrb[0].mxu0
        %v1313 = vadd.f32 0.0, %v1312
        %v1314 = vpop.f32.mrb[0].mxu0
        %v1315 = vadd.f32 0.0, %v1314
        %1316 = vdwg.mxu0
        %1317 = vmatprep.subr.bf16.mxu0 %v1098
        %1318 = vmatpush1.bf16.msra.mxu0 %v1097
        %1319 = vmatprep.subr.bf16.mxu0 %v1102
        %1320 = vmatpush1.bf16.msra.mxu0 %v1101
        %1321 = vmatprep.subr.bf16.mxu0 %v1106
        %1322 = vmatpush1.bf16.msra.mxu0 %v1105
        %1323 = vmatprep.subr.bf16.mxu0 %v1110
        %1324 = vmatpush1.bf16.msra.mxu0 %v1109
        %1325 = vmatprep.subr.bf16.mxu0 %v1114
        %1326 = vmatpush1.bf16.msra.mxu0 %v1113
        %1327 = vmatprep.subr.bf16.mxu0 %v1118
        %1328 = vmatpush1.bf16.msra.mxu0 %v1117
        %1329 = vmatprep.subr.bf16.mxu0 %v1122
        %1330 = vmatpush1.bf16.msra.mxu0 %v1121
        %1331 = vmatprep.subr.bf16.mxu0 %v1126
        %1332 = vmatpush1.bf16.msra.mxu0 %v1125
        %1333 = vmatprep.subr.bf16.mxu0 %v1130
        %1334 = vmatpush1.bf16.msra.mxu0 %v1129
        %1335 = vmatprep.subr.bf16.mxu0 %v1134
        %1336 = vmatpush1.bf16.msra.mxu0 %v1133
        %1337 = vmatprep.subr.bf16.mxu0 %v1138
        %1338 = vmatpush1.bf16.msra.mxu0 %v1137
        %1339 = vmatprep.subr.bf16.mxu0 %v1142
        %1340 = vmatpush1.bf16.msra.mxu0 %v1141
        %1341 = vmatprep.subr.bf16.mxu0 0
        %1342 = vmatpush1.bf16.msra.mxu0 0
        %1343 = vmatprep.subr.bf16.mxu0 0
        %1344 = vmatpush1.bf16.msra.mxu0 0
        %1345 = vmatprep.subr.bf16.mxu0 0
        %1346 = vmatpush1.bf16.msra.mxu0 0
        %1347 = vmatprep.subr.bf16.mxu0 0
        %1348 = vmatpush1.bf16.msra.mxu0 0
        %1349 = vmatprep.mubr.bf16.mxu0 %v1259
        %1350 = vmatmul.mubr.bf16.gmra.mrb[0].mxu0 %v685
        %v1351 = vpop.f32.mrb[0].mxu0
        %v1352 = vadd.f32 %v1299, %v1351
        %v1353 = vpop.f32.mrb[0].mxu0
        %v1354 = vadd.f32 %v1301, %v1353
        %v1355 = vpop.f32.mrb[0].mxu0
        %v1356 = vadd.f32 %v1303, %v1355
        %v1357 = vpop.f32.mrb[0].mxu0
        %v1358 = vadd.f32 %v1305, %v1357
        %1359 = vmatprep.mubr.bf16.mxu0 %v1262
        %1360 = vmatmul.mubr.bf16.gmra.mrb[0].mxu0 %v689
        %v1361 = vpop.f32.mrb[0].mxu0
        %v1362 = vadd.f32 %v1309, %v1361
        %v1363 = vpop.f32.mrb[0].mxu0
        %v1364 = vadd.f32 %v1311, %v1363
        %v1365 = vpop.f32.mrb[0].mxu0
        %v1366 = vadd.f32 %v1313, %v1365
        %v1367 = vpop.f32.mrb[0].mxu0
        %v1368 = vadd.f32 %v1315, %v1367
        %1369 = vdwg.mxu0
        %1370 = vmatprep.subr.bf16.mxu0 %v1036
        %1371 = vmatpush1.bf16.msra.mxu0 %v1035
        %1372 = vmatprep.subr.bf16.mxu0 %v1040
        %1373 = vmatpush1.bf16.msra.mxu0 %v1039
        %1374 = vmatprep.subr.bf16.mxu0 %v1044
        %1375 = vmatpush1.bf16.msra.mxu0 %v1043
        %1376 = vmatprep.subr.bf16.mxu0 %v1048
        %1377 = vmatpush1.bf16.msra.mxu0 %v1047
        %1378 = vmatprep.subr.bf16.mxu0 %v1052
        %1379 = vmatpush1.bf16.msra.mxu0 %v1051
        %1380 = vmatprep.subr.bf16.mxu0 %v1056
        %1381 = vmatpush1.bf16.msra.mxu0 %v1055
        %1382 = vmatprep.subr.bf16.mxu0 %v1060
        %1383 = vmatpush1.bf16.msra.mxu0 %v1059
        %1384 = vmatprep.subr.bf16.mxu0 %v1064
        %1385 = vmatpush1.bf16.msra.mxu0 %v1063
        %1386 = vmatprep.subr.bf16.mxu0 %v1068
        %1387 = vmatpush1.bf16.msra.mxu0 %v1067
        %1388 = vmatprep.subr.bf16.mxu0 %v1072
        %1389 = vmatpush1.bf16.msra.mxu0 %v1071
        %1390 = vmatprep.subr.bf16.mxu0 %v1076
        %1391 = vmatpush1.bf16.msra.mxu0 %v1075
        %1392 = vmatprep.subr.bf16.mxu0 %v1080
        %1393 = vmatpush1.bf16.msra.mxu0 %v1079
        %1394 = vmatprep.subr.bf16.mxu0 %v1084
        %1395 = vmatpush1.bf16.msra.mxu0 %v1083
        %1396 = vmatprep.subr.bf16.mxu0 %v1088
        %1397 = vmatpush1.bf16.msra.mxu0 %v1087
        %1398 = vmatprep.subr.bf16.mxu0 %v1092
        %1399 = vmatpush1.bf16.msra.mxu0 %v1091
        %1400 = vmatprep.subr.bf16.mxu0 %v1096
        %1401 = vmatpush1.bf16.msra.mxu0 %v1095
        %1402 = vmatprep.mubr.bf16.mxu0 %v684
        %1403 = vmatmul.mubr.bf16.gmra.mrb[0].mxu0 %v683
        %v1404 = vpop.f32.mrb[0].mxu0
        %v1405 = vadd.f32 0.0, %v1404
        %v1406 = vpop.f32.mrb[0].mxu0
        %v1407 = vadd.f32 0.0, %v1406
        %v1408 = vpop.f32.mrb[0].mxu0
        %v1409 = vadd.f32 0.0, %v1408
        %v1410 = vpop.f32.mrb[0].mxu0
        %v1411 = vadd.f32 0.0, %v1410
        %1412 = vmatprep.mubr.bf16.mxu0 %v688
        %1413 = vmatmul.mubr.bf16.gmra.mrb[0].mxu0 %v687
        %v1414 = vpop.f32.mrb[0].mxu0
        %v1415 = vadd.f32 0.0, %v1414
        %v1416 = vpop.f32.mrb[0].mxu0
        %v1417 = vadd.f32 0.0, %v1416
        %v1418 = vpop.f32.mrb[0].mxu0
        %v1419 = vadd.f32 0.0, %v1418
        %v1420 = vpop.f32.mrb[0].mxu0
        %v1421 = vadd.f32 0.0, %v1420
        %1422 = vdwg.mxu0
        %1423 = vmatprep.subr.bf16.mxu0 %v1100
        %1424 = vmatpush1.bf16.msra.mxu0 %v1099
        %1425 = vmatprep.subr.bf16.mxu0 %v1104
        %1426 = vmatpush1.bf16.msra.mxu0 %v1103
        %1427 = vmatprep.subr.bf16.mxu0 %v1108
        %1428 = vmatpush1.bf16.msra.mxu0 %v1107
        %1429 = vmatprep.subr.bf16.mxu0 %v1112
        %1430 = vmatpush1.bf16.msra.mxu0 %v1111
        %1431 = vmatprep.subr.bf16.mxu0 %v1116
        %1432 = vmatpush1.bf16.msra.mxu0 %v1115
        %1433 = vmatprep.subr.bf16.mxu0 %v1120
        %1434 = vmatpush1.bf16.msra.mxu0 %v1119
        %1435 = vmatprep.subr.bf16.mxu0 %v1124
        %1436 = vmatpush1.bf16.msra.mxu0 %v1123
        %1437 = vmatprep.subr.bf16.mxu0 %v1128
        %1438 = vmatpush1.bf16.msra.mxu0 %v1127
        %1439 = vmatprep.subr.bf16.mxu0 %v1132
        %1440 = vmatpush1.bf16.msra.mxu0 %v1131
        %1441 = vmatprep.subr.bf16.mxu0 %v1136
        %1442 = vmatpush1.bf16.msra.mxu0 %v1135
        %1443 = vmatprep.subr.bf16.mxu0 %v1140
        %1444 = vmatpush1.bf16.msra.mxu0 %v1139
        %1445 = vmatprep.subr.bf16.mxu0 %v1144
        %1446 = vmatpush1.bf16.msra.mxu0 %v1143
        %1447 = vmatprep.subr.bf16.mxu0 0
        %1448 = vmatpush1.bf16.msra.mxu0 0
        %1449 = vmatprep.subr.bf16.mxu0 0
        %1450 = vmatpush1.bf16.msra.mxu0 0
        %1451 = vmatprep.subr.bf16.mxu0 0
        %1452 = vmatpush1.bf16.msra.mxu0 0
        %1453 = vmatprep.subr.bf16.mxu0 0
        %1454 = vmatpush1.bf16.msra.mxu0 0
        %1455 = vmatprep.mubr.bf16.mxu0 %v1259
        %1456 = vmatmul.mubr.bf16.gmra.mrb[0].mxu0 %v685
        %v1457 = vpop.f32.mrb[0].mxu0
        %v1458 = vadd.f32 %v1405, %v1457
        %v1459 = vpop.f32.mrb[0].mxu0
        %v1460 = vadd.f32 %v1407, %v1459
        %v1461 = vpop.f32.mrb[0].mxu0
        %v1462 = vadd.f32 %v1409, %v1461
        %v1463 = vpop.f32.mrb[0].mxu0
        %v1464 = vadd.f32 %v1411, %v1463
        %1465 = vmatprep.mubr.bf16.mxu0 %v1262
        %1466 = vmatmul.mubr.bf16.gmra.mrb[0].mxu0 %v689
        %v1467 = vpop.f32.mrb[0].mxu0
        %v1468 = vadd.f32 %v1415, %v1467
        %v1469 = vpop.f32.mrb[0].mxu0
        %v1470 = vadd.f32 %v1417, %v1469
        %v1471 = vpop.f32.mrb[0].mxu0
        %v1472 = vadd.f32 %v1419, %v1471
        %v1473 = vpop.f32.mrb[0].mxu0
        %v1474 = vadd.f32 %v1421, %v1473
        %1475 = vdwg.mxu0
        %v1476 = vld [vmem:[%s0] sm:$0xff]
        %v1479 = vunpack.c.l.s4 1966171168
        %v1480 = vunpack.c.0.s8 %v1479
        %v1481 = vlaneseq
        %v1482 = vshrl.u32 %v1481, 7
        %v1483 = vsub.s32 %v1480, %v1482
        %v1484 = vrot.slane %v1476, %v1483
        %v1485 = vcombine.high %v1484, %v1484
        %v1486 = vlaneseq
        %v1487 = vshrl.u32 %v1486, 7
        %v1488 = vsub.s32 0, %v1487
        %v1489 = vrot.slane %v1484, %v1488
        %v1490 = vlaneseq
        %v1491 = vshrl.u32 %v1490, 7
        %v1492 = vsub.s32 1, %v1491
        %v1493 = vrot.slane %v1484, %v1492
        %v1494 = vlaneseq
        %v1495 = vshrl.u32 %v1494, 7
        %v1496 = vsub.s32 2, %v1495
        %v1497 = vrot.slane %v1484, %v1496
        %v1498 = vlaneseq
        %v1499 = vshrl.u32 %v1498, 7
        %v1500 = vsub.s32 3, %v1499
        %v1501 = vrot.slane %v1484, %v1500
        %v1502 = vlaneseq
        %v1503 = vshrl.u32 %v1502, 7
        %v1504 = vsub.s32 0, %v1503
        %v1505 = vrot.slane %v1485, %v1504
        %v1506 = vlaneseq
        %v1507 = vshrl.u32 %v1506, 7
        %v1508 = vsub.s32 1, %v1507
        %v1509 = vrot.slane %v1485, %v1508
        %v1510 = vlaneseq
        %v1511 = vshrl.u32 %v1510, 7
        %v1512 = vsub.s32 2, %v1511
        %v1513 = vrot.slane %v1485, %v1512
        %v1514 = vlaneseq
        %v1515 = vshrl.u32 %v1514, 7
        %v1516 = vsub.s32 3, %v1515
        %v1517 = vrot.slane %v1485, %v1516
        %v1526 = vadd.f32 %v1352, %v1489
        %v1527 = vadd.f32 %v1354, %v1493
        %v1528 = vadd.f32 %v1458, %v1497
        %v1529 = vadd.f32 %v1460, %v1501
        %v1530 = vadd.f32 %v1356, %v1489
        %v1531 = vadd.f32 %v1358, %v1493
        %v1532 = vadd.f32 %v1462, %v1497
        %v1533 = vadd.f32 %v1464, %v1501
        %v1534 = vadd.f32 %v1362, %v1505
        %v1535 = vadd.f32 %v1364, %v1509
        %v1536 = vadd.f32 %v1468, %v1513
        %v1537 = vadd.f32 %v1470, %v1517
        %v1538 = vadd.f32 %v1366, %v1505
        %v1539 = vadd.f32 %v1368, %v1509
        %v1540 = vadd.f32 %v1472, %v1513
        %v1541 = vadd.f32 %v1474, %v1517
        %v1542 = vld [vmem:[%s494] sm:$0xff]
        %v1543 = vld [vmem:[%s494 + $0x8] sm:$0xff]
        %v1544 = vld [vmem:[%s504] sm:$0xff]
        %v1545 = vld [vmem:[%s504 + $0x8] sm:$0xff]
        %v1546 = vadd.f32 %v1526, %v1527
        %v1547 = vadd.f32 %v1546, %v1528
        %v1548 = vadd.f32 %v1547, %v1529
        %v1549 = vadd.f32 %v1548, %v1534
        %v1550 = vadd.f32 %v1549, %v1535
        %v1551 = vadd.f32 %v1550, %v1536
        %v1552 = vadd.f32 %v1551, %v1537
        %1553 = vadd.xlane.f32.xlu0 %v1552
        %v1554 = vpop.xlane.xlu0 %1553
        %v1555 = vadd.f32 %v1530, %v1531
        %v1556 = vadd.f32 %v1555, %v1532
        %v1557 = vadd.f32 %v1556, %v1533
        %v1558 = vadd.f32 %v1557, %v1538
        %v1559 = vadd.f32 %v1558, %v1539
        %v1560 = vadd.f32 %v1559, %v1540
        %v1561 = vadd.f32 %v1560, %v1541
        %1562 = vadd.xlane.f32.xlu0 %v1561
        %v1563 = vpop.xlane.xlu0 %1562
        %v1564 = vmul.f32 %v1526, %v1526
        %v1565 = vmul.f32 %v1527, %v1527
        %v1566 = vmul.f32 %v1528, %v1528
        %v1567 = vmul.f32 %v1529, %v1529
        %v1568 = vmul.f32 %v1530, %v1530
        %v1569 = vmul.f32 %v1531, %v1531
        %v1570 = vmul.f32 %v1532, %v1532
        %v1571 = vmul.f32 %v1533, %v1533
        %v1572 = vmul.f32 %v1534, %v1534
        %v1573 = vmul.f32 %v1535, %v1535
        %v1574 = vmul.f32 %v1536, %v1536
        %v1575 = vmul.f32 %v1537, %v1537
        %v1576 = vmul.f32 %v1538, %v1538
        %v1577 = vmul.f32 %v1539, %v1539
        %v1578 = vmul.f32 %v1540, %v1540
        %v1579 = vmul.f32 %v1541, %v1541
        %v1580 = vadd.f32 %v1564, %v1565
        %v1581 = vadd.f32 %v1580, %v1566
        %v1582 = vadd.f32 %v1581, %v1567
        %v1583 = vadd.f32 %v1582, %v1572
        %v1584 = vadd.f32 %v1583, %v1573
        %v1585 = vadd.f32 %v1584, %v1574
        %v1586 = vadd.f32 %v1585, %v1575
        %1587 = vadd.xlane.f32.xlu0 %v1586
        %v1588 = vpop.xlane.xlu0 %1587
        %v1589 = vadd.f32 %v1568, %v1569
        %v1590 = vadd.f32 %v1589, %v1570
        %v1591 = vadd.f32 %v1590, %v1571
        %v1592 = vadd.f32 %v1591, %v1576
        %v1593 = vadd.f32 %v1592, %v1577
        %v1594 = vadd.f32 %v1593, %v1578
        %v1595 = vadd.f32 %v1594, %v1579
        %1596 = vadd.xlane.f32.xlu0 %v1595
        %v1597 = vpop.xlane.xlu0 %1596
        %v1598 = vmul.f32 %v1554, 0.0009765625
        %v1599 = vmul.f32 %v1563, 0.0009765625
        %v1600 = vmul.f32 %v1588, 0.0009765625
        %v1601 = vmul.f32 %v1597, 0.0009765625
        %v1602 = vmul.f32 %v1598, %v1598
        %v1603 = vmul.f32 %v1599, %v1599
        %v1604 = vsub.f32 %v1600, %v1602
        %v1605 = vsub.f32 %v1601, %v1603
        %v1606 = vmax.f32 %v1604, 0.0
        %v1607 = vmax.f32 %v1605, 0.0
        %v1608 = vadd.f32 %v1606, 1e-05
        %v1609 = vadd.f32 %v1607, 1e-05
        %v1610 = vrsqrt.pop %v1608
        %v1611 = vrsqrt.pop %v1609
        %v1612 = vmul.f32 %v1542, %v1610
        %v1613 = vmul.f32 %v1543, %v1611
        %v1614 = vmul.f32 %v1598, %v1612
        %v1615 = vmul.f32 %v1599, %v1613
        %v1616 = vsub.f32 %v1544, %v1614
        %v1617 = vsub.f32 %v1545, %v1615
        %1619 = vset.pattern.permute.xlu0 0
        %1620 = vperm.xlu0 %1619, %v1612
        %v1621 = vpop.permute.xlu0 %1620
        %1624 = vset.pattern.permute.xlu0 0
        %1625 = vperm.xlu0 %1624, %v1613
        %v1626 = vpop.permute.xlu0 %1625
        %v1628 = vmul.f32 %v1526, %v1621
        %v1629 = vmul.f32 %v1527, %v1621
        %v1630 = vmul.f32 %v1528, %v1621
        %v1631 = vmul.f32 %v1529, %v1621
        %v1632 = vmul.f32 %v1530, %v1626
        %v1633 = vmul.f32 %v1531, %v1626
        %v1634 = vmul.f32 %v1532, %v1626
        %v1635 = vmul.f32 %v1533, %v1626
        %v1636 = vmul.f32 %v1534, %v1621
        %v1637 = vmul.f32 %v1535, %v1621
        %v1638 = vmul.f32 %v1536, %v1621
        %v1639 = vmul.f32 %v1537, %v1621
        %v1640 = vmul.f32 %v1538, %v1626
        %v1641 = vmul.f32 %v1539, %v1626
        %v1642 = vmul.f32 %v1540, %v1626
        %v1643 = vmul.f32 %v1541, %v1626
        %1645 = vset.pattern.permute.xlu0 0
        %1646 = vperm.xlu0 %1645, %v1616
        %v1647 = vpop.permute.xlu0 %1646
        %1650 = vset.pattern.permute.xlu0 0
        %1651 = vperm.xlu0 %1650, %v1617
        %v1652 = vpop.permute.xlu0 %1651
        %v1654 = vadd.f32 %v1628, %v1647
        %v1655 = vadd.f32 %v1629, %v1647
        %v1656 = vadd.f32 %v1630, %v1647
        %v1657 = vadd.f32 %v1631, %v1647
        %v1658 = vadd.f32 %v1632, %v1652
        %v1659 = vadd.f32 %v1633, %v1652
        %v1660 = vadd.f32 %v1634, %v1652
        %v1661 = vadd.f32 %v1635, %v1652
        %v1662 = vadd.f32 %v1636, %v1647
        %v1663 = vadd.f32 %v1637, %v1647
        %v1664 = vadd.f32 %v1638, %v1647
        %v1665 = vadd.f32 %v1639, %v1647
        %v1666 = vadd.f32 %v1640, %v1652
        %v1667 = vadd.f32 %v1641, %v1652
        %v1668 = vadd.f32 %v1642, %v1652
        %v1669 = vadd.f32 %v1643, %v1652
        %v1670 = vmax.f32 %v1654, 0.0
        %v1671 = vmax.f32 %v1655, 0.0
        %v1672 = vmax.f32 %v1656, 0.0
        %v1673 = vmax.f32 %v1657, 0.0
        %v1674 = vmax.f32 %v1658, 0.0
        %v1675 = vmax.f32 %v1659, 0.0
        %v1676 = vmax.f32 %v1660, 0.0
        %v1677 = vmax.f32 %v1661, 0.0
        %v1678 = vmax.f32 %v1662, 0.0
        %v1679 = vmax.f32 %v1663, 0.0
        %v1680 = vmax.f32 %v1664, 0.0
        %v1681 = vmax.f32 %v1665, 0.0
        %v1682 = vmax.f32 %v1666, 0.0
        %v1683 = vmax.f32 %v1667, 0.0
        %v1684 = vmax.f32 %v1668, 0.0
        %v1685 = vmax.f32 %v1669, 0.0
        %v1686 = vld [vmem:[%s5] sm:$0xff]
        %v1687 = vld [vmem:[%s5 + $0x8] sm:$0xff]
        %v1688 = vld [vmem:[%s5 + $0x10] sm:$0xff]
        %v1689 = vld [vmem:[%s5 + $0x18] sm:$0xff]
        %v1690 = vld [vmem:[%s5 + $0x20] sm:$0xff]
        %v1691 = vld [vmem:[%s5 + $0x28] sm:$0xff]
        %v1692 = vld [vmem:[%s5 + $0x30] sm:$0xff]
        %v1693 = vld [vmem:[%s5 + $0x38] sm:$0xff]
        %v1694 = vld [vmem:[%s5 + $0x40] sm:$0xff]
        %v1695 = vld [vmem:[%s5 + $0x48] sm:$0xff]
        %v1696 = vld [vmem:[%s5 + $0x50] sm:$0xff]
        %v1697 = vld [vmem:[%s5 + $0x58] sm:$0xff]
        %v1698 = vld [vmem:[%s5 + $0x60] sm:$0xff]
        %v1699 = vld [vmem:[%s5 + $0x68] sm:$0xff]
        %v1700 = vld [vmem:[%s5 + $0x70] sm:$0xff]
        %v1701 = vld [vmem:[%s5 + $0x78] sm:$0xff]
        %v1702 = vld [vmem:[%s5 + $0x80] sm:$0xff]
        %v1703 = vld [vmem:[%s5 + $0x88] sm:$0xff]
        %v1704 = vld [vmem:[%s5 + $0x90] sm:$0xff]
        %v1705 = vld [vmem:[%s5 + $0x98] sm:$0xff]
        %v1706 = vld [vmem:[%s5 + $0xa0] sm:$0xff]
        %v1707 = vld [vmem:[%s5 + $0xa8] sm:$0xff]
        %v1708 = vld [vmem:[%s5 + $0xb0] sm:$0xff]
        %v1709 = vld [vmem:[%s5 + $0xb8] sm:$0xff]
        %v1710 = vld [vmem:[%s5 + $0xc0] sm:$0xff]
        %v1711 = vld [vmem:[%s5 + $0xc8] sm:$0xff]
        %v1712 = vld [vmem:[%s5 + $0xd0] sm:$0xff]
        %v1713 = vld [vmem:[%s5 + $0xd8] sm:$0xff]
        %v1714 = vld [vmem:[%s5 + $0xe0] sm:$0xff]
        %v1715 = vld [vmem:[%s5 + $0xe8] sm:$0xff]
        %v1716 = vld [vmem:[%s5 + $0xf0] sm:$0xff]
        %v1717 = vld [vmem:[%s5 + $0xf8] sm:$0xff]
        %v1718 = vld [vmem:[%s5 + $0x100] sm:$0xff]
        %v1719 = vld [vmem:[%s5 + $0x108] sm:$0xff]
        %v1720 = vld [vmem:[%s5 + $0x110] sm:$0xff]
        %v1721 = vld [vmem:[%s5 + $0x118] sm:$0xff]
        %v1722 = vld [vmem:[%s5 + $0x120] sm:$0xff]
        %v1723 = vld [vmem:[%s5 + $0x128] sm:$0xff]
        %v1724 = vld [vmem:[%s5 + $0x130] sm:$0xff]
        %v1725 = vld [vmem:[%s5 + $0x138] sm:$0xff]
        %v1726 = vld [vmem:[%s5 + $0x140] sm:$0xff]
        %v1727 = vld [vmem:[%s5 + $0x148] sm:$0xff]
        %v1728 = vld [vmem:[%s5 + $0x150] sm:$0xff]
        %v1729 = vld [vmem:[%s5 + $0x158] sm:$0xff]
        %v1730 = vld [vmem:[%s5 + $0x160] sm:$0xff]
        %v1731 = vld [vmem:[%s5 + $0x168] sm:$0xff]
        %v1732 = vld [vmem:[%s5 + $0x170] sm:$0xff]
        %v1733 = vld [vmem:[%s5 + $0x178] sm:$0xff]
        %v1734 = vld [vmem:[%s5 + $0x180] sm:$0xff]
        %v1735 = vld [vmem:[%s5 + $0x188] sm:$0xff]
        %v1736 = vld [vmem:[%s5 + $0x190] sm:$0xff]
        %v1737 = vld [vmem:[%s5 + $0x198] sm:$0xff]
        %v1738 = vld [vmem:[%s5 + $0x1a0] sm:$0xff]
        %v1739 = vld [vmem:[%s5 + $0x1a8] sm:$0xff]
        %v1740 = vld [vmem:[%s5 + $0x1b0] sm:$0xff]
        %v1741 = vld [vmem:[%s5 + $0x1b8] sm:$0xff]
        %v1742 = vld [vmem:[%s5 + $0x1c0] sm:$0xff]
        %v1743 = vld [vmem:[%s5 + $0x1c8] sm:$0xff]
        %v1744 = vld [vmem:[%s5 + $0x1d0] sm:$0xff]
        %v1745 = vld [vmem:[%s5 + $0x1d8] sm:$0xff]
        %v1746 = vld [vmem:[%s5 + $0x1e0] sm:$0xff]
        %v1747 = vld [vmem:[%s5 + $0x1e8] sm:$0xff]
        %v1748 = vld [vmem:[%s5 + $0x1f0] sm:$0xff]
        %v1749 = vld [vmem:[%s5 + $0x1f8] sm:$0xff]
        %v1750 = vld [vmem:[%s5 + $0x200] sm:$0xff]
        %v1751 = vld [vmem:[%s5 + $0x208] sm:$0xff]
        %v1752 = vld [vmem:[%s5 + $0x210] sm:$0xff]
        %v1753 = vld [vmem:[%s5 + $0x218] sm:$0xff]
        %v1754 = vld [vmem:[%s5 + $0x220] sm:$0xff]
        %v1755 = vld [vmem:[%s5 + $0x228] sm:$0xff]
        %v1756 = vld [vmem:[%s5 + $0x230] sm:$0xff]
        %v1757 = vld [vmem:[%s5 + $0x238] sm:$0xff]
        %v1758 = vld [vmem:[%s5 + $0x240] sm:$0xff]
        %v1759 = vld [vmem:[%s5 + $0x248] sm:$0xff]
        %v1760 = vld [vmem:[%s5 + $0x250] sm:$0xff]
        %v1761 = vld [vmem:[%s5 + $0x258] sm:$0xff]
        %v1762 = vld [vmem:[%s5 + $0x260] sm:$0xff]
        %v1763 = vld [vmem:[%s5 + $0x268] sm:$0xff]
        %v1764 = vld [vmem:[%s5 + $0x270] sm:$0xff]
        %v1765 = vld [vmem:[%s5 + $0x278] sm:$0xff]
        %v1766 = vld [vmem:[%s5 + $0x280] sm:$0xff]
        %v1767 = vld [vmem:[%s5 + $0x288] sm:$0xff]
        %v1768 = vld [vmem:[%s5 + $0x290] sm:$0xff]
        %v1769 = vld [vmem:[%s5 + $0x298] sm:$0xff]
        %v1770 = vld [vmem:[%s5 + $0x2a0] sm:$0xff]
        %v1771 = vld [vmem:[%s5 + $0x2a8] sm:$0xff]
        %v1772 = vld [vmem:[%s5 + $0x2b0] sm:$0xff]
        %v1773 = vld [vmem:[%s5 + $0x2b8] sm:$0xff]
        %v1774 = vld [vmem:[%s5 + $0x2c0] sm:$0xff]
        %v1775 = vld [vmem:[%s5 + $0x2c8] sm:$0xff]
        %v1776 = vld [vmem:[%s5 + $0x2d0] sm:$0xff]
        %v1777 = vld [vmem:[%s5 + $0x2d8] sm:$0xff]
        %v1778 = vld [vmem:[%s5 + $0x2e0] sm:$0xff]
        %v1779 = vld [vmem:[%s5 + $0x2e8] sm:$0xff]
        %v1780 = vld [vmem:[%s5 + $0x2f0] sm:$0xff]
        %v1781 = vld [vmem:[%s5 + $0x2f8] sm:$0xff]
        %v1782 = vld [vmem:[%s5 + $0x300] sm:$0xff]
        %v1783 = vld [vmem:[%s5 + $0x308] sm:$0xff]
        %v1784 = vld [vmem:[%s5 + $0x310] sm:$0xff]
        %v1785 = vld [vmem:[%s5 + $0x318] sm:$0xff]
        %v1786 = vld [vmem:[%s5 + $0x320] sm:$0xff]
        %v1787 = vld [vmem:[%s5 + $0x328] sm:$0xff]
        %v1788 = vld [vmem:[%s5 + $0x330] sm:$0xff]
        %v1789 = vld [vmem:[%s5 + $0x338] sm:$0xff]
        %v1790 = vld [vmem:[%s5 + $0x340] sm:$0xff]
        %v1791 = vld [vmem:[%s5 + $0x348] sm:$0xff]
        %v1792 = vld [vmem:[%s5 + $0x350] sm:$0xff]
        %v1793 = vld [vmem:[%s5 + $0x358] sm:$0xff]
        %v1794 = vld [vmem:[%s5 + $0x360] sm:$0xff]
        %v1795 = vld [vmem:[%s5 + $0x368] sm:$0xff]
        %v1796 = vld [vmem:[%s5 + $0x370] sm:$0xff]
        %v1797 = vld [vmem:[%s5 + $0x378] sm:$0xff]
        %v1798 = vld [vmem:[%s5 + $0x380] sm:$0xff]
        %v1799 = vld [vmem:[%s5 + $0x388] sm:$0xff]
        %v1800 = vld [vmem:[%s5 + $0x390] sm:$0xff]
        %v1801 = vld [vmem:[%s5 + $0x398] sm:$0xff]
        %v1802 = vld [vmem:[%s5 + $0x3a0] sm:$0xff]
        %v1803 = vld [vmem:[%s5 + $0x3a8] sm:$0xff]
        %v1804 = vld [vmem:[%s5 + $0x3b0] sm:$0xff]
        %v1805 = vld [vmem:[%s5 + $0x3b8] sm:$0xff]
        %v1806 = vld [vmem:[%s5 + $0x3c0] sm:$0xff]
        %v1807 = vld [vmem:[%s5 + $0x3c8] sm:$0xff]
        %v1808 = vld [vmem:[%s5 + $0x3d0] sm:$0xff]
        %v1809 = vld [vmem:[%s5 + $0x3d8] sm:$0xff]
        %v1810 = vld [vmem:[%s5 + $0x3e0] sm:$0xff]
        %v1811 = vld [vmem:[%s5 + $0x3e8] sm:$0xff]
        %v1812 = vld [vmem:[%s5 + $0x3f0] sm:$0xff]
        %v1813 = vld [vmem:[%s5 + $0x3f8] sm:$0xff]
        %v1814 = vpack.c.bf16 %v1674, %v1670
        %v1815 = vpack.c.bf16 %v1675, %v1671
        %v1816 = vpack.c.bf16 %v1676, %v1672
        %v1817 = vpack.c.bf16 %v1677, %v1673
        %v1818 = vpack.c.bf16 %v1682, %v1678
        %v1819 = vpack.c.bf16 %v1683, %v1679
        %v1820 = vpack.c.bf16 %v1684, %v1680
        %v1821 = vpack.c.bf16 %v1685, %v1681
        %v1822 = vld [vmem:[%s6] sm:$0xf]
        %v1824 = vlaneseq
        %v1825 = vshrl.u32 %v1824, 7
        %v1826 = vsub.s32 0, %v1825
        %v1827 = vrot.slane %v1822, %v1826
        %v1828 = vlaneseq
        %v1829 = vshrl.u32 %v1828, 7
        %v1830 = vsub.s32 1, %v1829
        %v1831 = vrot.slane %v1822, %v1830
        %v1832 = vlaneseq
        %v1833 = vshrl.u32 %v1832, 7
        %v1834 = vsub.s32 2, %v1833
        %v1835 = vrot.slane %v1822, %v1834
        %v1836 = vlaneseq
        %v1837 = vshrl.u32 %v1836, 7
        %v1838 = vsub.s32 3, %v1837
        %v1839 = vrot.slane %v1822, %v1838
        %v1972 = vunpack.c.l.b16 %v1686
        %v1973 = vunpack.c.h.b16 %v1686
        %v1974 = vunpack.c.l.b16 %v1687
        %v1975 = vunpack.c.h.b16 %v1687
        %v1976 = vunpack.c.l.b16 %v1688
        %v1977 = vunpack.c.h.b16 %v1688
        %v1978 = vunpack.c.l.b16 %v1689
        %v1979 = vunpack.c.h.b16 %v1689
        %v1980 = vunpack.c.l.b16 %v1690
        %v1981 = vunpack.c.h.b16 %v1690
        %v1982 = vunpack.c.l.b16 %v1691
        %v1983 = vunpack.c.h.b16 %v1691
        %v1984 = vunpack.c.l.b16 %v1692
        %v1985 = vunpack.c.h.b16 %v1692
        %v1986 = vunpack.c.l.b16 %v1693
        %v1987 = vunpack.c.h.b16 %v1693
        %v1988 = vunpack.c.l.b16 %v1694
        %v1989 = vunpack.c.h.b16 %v1694
        %v1990 = vunpack.c.l.b16 %v1695
        %v1991 = vunpack.c.h.b16 %v1695
        %v1992 = vunpack.c.l.b16 %v1696
        %v1993 = vunpack.c.h.b16 %v1696
        %v1994 = vunpack.c.l.b16 %v1697
        %v1995 = vunpack.c.h.b16 %v1697
        %v1996 = vunpack.c.l.b16 %v1698
        %v1997 = vunpack.c.h.b16 %v1698
        %v1998 = vunpack.c.l.b16 %v1699
        %v1999 = vunpack.c.h.b16 %v1699
        %v2000 = vunpack.c.l.b16 %v1700
        %v2001 = vunpack.c.h.b16 %v1700
        %v2002 = vunpack.c.l.b16 %v1701
        %v2003 = vunpack.c.h.b16 %v1701
        %v2004 = vunpack.c.l.b16 %v1702
        %v2005 = vunpack.c.h.b16 %v1702
        %v2006 = vunpack.c.l.b16 %v1703
        %v2007 = vunpack.c.h.b16 %v1703
        %v2008 = vunpack.c.l.b16 %v1704
        %v2009 = vunpack.c.h.b16 %v1704
        %v2010 = vunpack.c.l.b16 %v1705
        %v2011 = vunpack.c.h.b16 %v1705
        %v2012 = vunpack.c.l.b16 %v1706
        %v2013 = vunpack.c.h.b16 %v1706
        %v2014 = vunpack.c.l.b16 %v1707
        %v2015 = vunpack.c.h.b16 %v1707
        %v2016 = vunpack.c.l.b16 %v1708
        %v2017 = vunpack.c.h.b16 %v1708
        %v2018 = vunpack.c.l.b16 %v1709
        %v2019 = vunpack.c.h.b16 %v1709
        %v2020 = vunpack.c.l.b16 %v1710
        %v2021 = vunpack.c.h.b16 %v1710
        %v2022 = vunpack.c.l.b16 %v1711
        %v2023 = vunpack.c.h.b16 %v1711
        %v2024 = vunpack.c.l.b16 %v1712
        %v2025 = vunpack.c.h.b16 %v1712
        %v2026 = vunpack.c.l.b16 %v1713
        %v2027 = vunpack.c.h.b16 %v1713
        %v2028 = vunpack.c.l.b16 %v1714
        %v2029 = vunpack.c.h.b16 %v1714
        %v2030 = vunpack.c.l.b16 %v1715
        %v2031 = vunpack.c.h.b16 %v1715
        %v2032 = vunpack.c.l.b16 %v1716
        %v2033 = vunpack.c.h.b16 %v1716
        %v2034 = vunpack.c.l.b16 %v1717
        %v2035 = vunpack.c.h.b16 %v1717
        %v2036 = vunpack.c.l.b16 %v1718
        %v2037 = vunpack.c.h.b16 %v1718
        %v2038 = vunpack.c.l.b16 %v1719
        %v2039 = vunpack.c.h.b16 %v1719
        %v2040 = vunpack.c.l.b16 %v1720
        %v2041 = vunpack.c.h.b16 %v1720
        %v2042 = vunpack.c.l.b16 %v1721
        %v2043 = vunpack.c.h.b16 %v1721
        %v2044 = vunpack.c.l.b16 %v1722
        %v2045 = vunpack.c.h.b16 %v1722
        %v2046 = vunpack.c.l.b16 %v1723
        %v2047 = vunpack.c.h.b16 %v1723
        %v2048 = vunpack.c.l.b16 %v1724
        %v2049 = vunpack.c.h.b16 %v1724
        %v2050 = vunpack.c.l.b16 %v1725
        %v2051 = vunpack.c.h.b16 %v1725
        %v2052 = vunpack.c.l.b16 %v1726
        %v2053 = vunpack.c.h.b16 %v1726
        %v2054 = vunpack.c.l.b16 %v1727
        %v2055 = vunpack.c.h.b16 %v1727
        %v2056 = vunpack.c.l.b16 %v1728
        %v2057 = vunpack.c.h.b16 %v1728
        %v2058 = vunpack.c.l.b16 %v1729
        %v2059 = vunpack.c.h.b16 %v1729
        %v2060 = vunpack.c.l.b16 %v1730
        %v2061 = vunpack.c.h.b16 %v1730
        %v2062 = vunpack.c.l.b16 %v1731
        %v2063 = vunpack.c.h.b16 %v1731
        %v2064 = vunpack.c.l.b16 %v1732
        %v2065 = vunpack.c.h.b16 %v1732
        %v2066 = vunpack.c.l.b16 %v1733
        %v2067 = vunpack.c.h.b16 %v1733
        %v2068 = vunpack.c.l.b16 %v1734
        %v2069 = vunpack.c.h.b16 %v1734
        %v2070 = vunpack.c.l.b16 %v1735
        %v2071 = vunpack.c.h.b16 %v1735
        %v2072 = vunpack.c.l.b16 %v1736
        %v2073 = vunpack.c.h.b16 %v1736
        %v2074 = vunpack.c.l.b16 %v1737
        %v2075 = vunpack.c.h.b16 %v1737
        %v2076 = vunpack.c.l.b16 %v1738
        %v2077 = vunpack.c.h.b16 %v1738
        %v2078 = vunpack.c.l.b16 %v1739
        %v2079 = vunpack.c.h.b16 %v1739
        %v2080 = vunpack.c.l.b16 %v1740
        %v2081 = vunpack.c.h.b16 %v1740
        %v2082 = vunpack.c.l.b16 %v1741
        %v2083 = vunpack.c.h.b16 %v1741
        %v2084 = vunpack.c.l.b16 %v1742
        %v2085 = vunpack.c.h.b16 %v1742
        %v2086 = vunpack.c.l.b16 %v1743
        %v2087 = vunpack.c.h.b16 %v1743
        %v2088 = vunpack.c.l.b16 %v1744
        %v2089 = vunpack.c.h.b16 %v1744
        %v2090 = vunpack.c.l.b16 %v1745
        %v2091 = vunpack.c.h.b16 %v1745
        %v2092 = vunpack.c.l.b16 %v1746
        %v2093 = vunpack.c.h.b16 %v1746
        %v2094 = vunpack.c.l.b16 %v1747
        %v2095 = vunpack.c.h.b16 %v1747
        %v2096 = vunpack.c.l.b16 %v1748
        %v2097 = vunpack.c.h.b16 %v1748
        %v2098 = vunpack.c.l.b16 %v1749
        %v2099 = vunpack.c.h.b16 %v1749
        %v2100 = vunpack.c.l.b16 %v1750
        %v2101 = vunpack.c.h.b16 %v1750
        %v2102 = vunpack.c.l.b16 %v1751
        %v2103 = vunpack.c.h.b16 %v1751
        %v2104 = vunpack.c.l.b16 %v1752
        %v2105 = vunpack.c.h.b16 %v1752
        %v2106 = vunpack.c.l.b16 %v1753
        %v2107 = vunpack.c.h.b16 %v1753
        %v2108 = vunpack.c.l.b16 %v1754
        %v2109 = vunpack.c.h.b16 %v1754
        %v2110 = vunpack.c.l.b16 %v1755
        %v2111 = vunpack.c.h.b16 %v1755
        %v2112 = vunpack.c.l.b16 %v1756
        %v2113 = vunpack.c.h.b16 %v1756
        %v2114 = vunpack.c.l.b16 %v1757
        %v2115 = vunpack.c.h.b16 %v1757
        %v2116 = vunpack.c.l.b16 %v1758
        %v2117 = vunpack.c.h.b16 %v1758
        %v2118 = vunpack.c.l.b16 %v1759
        %v2119 = vunpack.c.h.b16 %v1759
        %v2120 = vunpack.c.l.b16 %v1760
        %v2121 = vunpack.c.h.b16 %v1760
        %v2122 = vunpack.c.l.b16 %v1761
        %v2123 = vunpack.c.h.b16 %v1761
        %v2124 = vunpack.c.l.b16 %v1762
        %v2125 = vunpack.c.h.b16 %v1762
        %v2126 = vunpack.c.l.b16 %v1763
        %v2127 = vunpack.c.h.b16 %v1763
        %v2128 = vunpack.c.l.b16 %v1764
        %v2129 = vunpack.c.h.b16 %v1764
        %v2130 = vunpack.c.l.b16 %v1765
        %v2131 = vunpack.c.h.b16 %v1765
        %v2132 = vunpack.c.l.b16 %v1766
        %v2133 = vunpack.c.h.b16 %v1766
        %v2134 = vunpack.c.l.b16 %v1767
        %v2135 = vunpack.c.h.b16 %v1767
        %v2136 = vunpack.c.l.b16 %v1768
        %v2137 = vunpack.c.h.b16 %v1768
        %v2138 = vunpack.c.l.b16 %v1769
        %v2139 = vunpack.c.h.b16 %v1769
        %v2140 = vunpack.c.l.b16 %v1770
        %v2141 = vunpack.c.h.b16 %v1770
        %v2142 = vunpack.c.l.b16 %v1771
        %v2143 = vunpack.c.h.b16 %v1771
        %v2144 = vunpack.c.l.b16 %v1772
        %v2145 = vunpack.c.h.b16 %v1772
        %v2146 = vunpack.c.l.b16 %v1773
        %v2147 = vunpack.c.h.b16 %v1773
        %v2148 = vunpack.c.l.b16 %v1774
        %v2149 = vunpack.c.h.b16 %v1774
        %v2150 = vunpack.c.l.b16 %v1775
        %v2151 = vunpack.c.h.b16 %v1775
        %v2152 = vunpack.c.l.b16 %v1776
        %v2153 = vunpack.c.h.b16 %v1776
        %v2154 = vunpack.c.l.b16 %v1777
        %v2155 = vunpack.c.h.b16 %v1777
        %v2156 = vunpack.c.l.b16 %v1778
        %v2157 = vunpack.c.h.b16 %v1778
        %v2158 = vunpack.c.l.b16 %v1779
        %v2159 = vunpack.c.h.b16 %v1779
        %v2160 = vunpack.c.l.b16 %v1780
        %v2161 = vunpack.c.h.b16 %v1780
        %v2162 = vunpack.c.l.b16 %v1781
        %v2163 = vunpack.c.h.b16 %v1781
        %v2164 = vunpack.c.l.b16 %v1782
        %v2165 = vunpack.c.h.b16 %v1782
        %v2166 = vunpack.c.l.b16 %v1783
        %v2167 = vunpack.c.h.b16 %v1783
        %v2168 = vunpack.c.l.b16 %v1784
        %v2169 = vunpack.c.h.b16 %v1784
        %v2170 = vunpack.c.l.b16 %v1785
        %v2171 = vunpack.c.h.b16 %v1785
        %v2172 = vunpack.c.l.b16 %v1786
        %v2173 = vunpack.c.h.b16 %v1786
        %v2174 = vunpack.c.l.b16 %v1787
        %v2175 = vunpack.c.h.b16 %v1787
        %v2176 = vunpack.c.l.b16 %v1788
        %v2177 = vunpack.c.h.b16 %v1788
        %v2178 = vunpack.c.l.b16 %v1789
        %v2179 = vunpack.c.h.b16 %v1789
        %v2180 = vunpack.c.l.b16 %v1790
        %v2181 = vunpack.c.h.b16 %v1790
        %v2182 = vunpack.c.l.b16 %v1791
        %v2183 = vunpack.c.h.b16 %v1791
        %v2184 = vunpack.c.l.b16 %v1792
        %v2185 = vunpack.c.h.b16 %v1792
        %v2186 = vunpack.c.l.b16 %v1793
        %v2187 = vunpack.c.h.b16 %v1793
        %v2188 = vunpack.c.l.b16 %v1794
        %v2189 = vunpack.c.h.b16 %v1794
        %v2190 = vunpack.c.l.b16 %v1795
        %v2191 = vunpack.c.h.b16 %v1795
        %v2192 = vunpack.c.l.b16 %v1796
        %v2193 = vunpack.c.h.b16 %v1796
        %v2194 = vunpack.c.l.b16 %v1797
        %v2195 = vunpack.c.h.b16 %v1797
        %v2196 = vunpack.c.l.b16 %v1798
        %v2197 = vunpack.c.h.b16 %v1798
        %v2198 = vunpack.c.l.b16 %v1799
        %v2199 = vunpack.c.h.b16 %v1799
        %v2200 = vunpack.c.l.b16 %v1800
        %v2201 = vunpack.c.h.b16 %v1800
        %v2202 = vunpack.c.l.b16 %v1801
        %v2203 = vunpack.c.h.b16 %v1801
        %v2204 = vunpack.c.l.b16 %v1802
        %v2205 = vunpack.c.h.b16 %v1802
        %v2206 = vunpack.c.l.b16 %v1803
        %v2207 = vunpack.c.h.b16 %v1803
        %v2208 = vunpack.c.l.b16 %v1804
        %v2209 = vunpack.c.h.b16 %v1804
        %v2210 = vunpack.c.l.b16 %v1805
        %v2211 = vunpack.c.h.b16 %v1805
        %v2212 = vunpack.c.l.b16 %v1806
        %v2213 = vunpack.c.h.b16 %v1806
        %v2214 = vunpack.c.l.b16 %v1807
        %v2215 = vunpack.c.h.b16 %v1807
        %v2216 = vunpack.c.l.b16 %v1808
        %v2217 = vunpack.c.h.b16 %v1808
        %v2218 = vunpack.c.l.b16 %v1809
        %v2219 = vunpack.c.h.b16 %v1809
        %v2220 = vunpack.c.l.b16 %v1810
        %v2221 = vunpack.c.h.b16 %v1810
        %v2222 = vunpack.c.l.b16 %v1811
        %v2223 = vunpack.c.h.b16 %v1811
        %v2224 = vunpack.c.l.b16 %v1812
        %v2225 = vunpack.c.h.b16 %v1812
        %v2226 = vunpack.c.l.b16 %v1813
        %v2227 = vunpack.c.h.b16 %v1813
        %v2228 = vpack.c.b16 %v1976, %v1972
        %v2229 = vpack.c.b16 %v1977, %v1973
        %v2230 = vpack.c.b16 %v1978, %v1974
        %v2231 = vpack.c.b16 %v1979, %v1975
        %v2232 = vpack.c.b16 %v1984, %v1980
        %v2233 = vpack.c.b16 %v1985, %v1981
        %v2234 = vpack.c.b16 %v1986, %v1982
        %v2235 = vpack.c.b16 %v1987, %v1983
        %v2236 = vpack.c.b16 %v1992, %v1988
        %v2237 = vpack.c.b16 %v1993, %v1989
        %v2238 = vpack.c.b16 %v1994, %v1990
        %v2239 = vpack.c.b16 %v1995, %v1991
        %v2240 = vpack.c.b16 %v2000, %v1996
        %v2241 = vpack.c.b16 %v2001, %v1997
        %v2242 = vpack.c.b16 %v2002, %v1998
        %v2243 = vpack.c.b16 %v2003, %v1999
        %v2244 = vpack.c.b16 %v2008, %v2004
        %v2245 = vpack.c.b16 %v2009, %v2005
        %v2246 = vpack.c.b16 %v2010, %v2006
        %v2247 = vpack.c.b16 %v2011, %v2007
        %v2248 = vpack.c.b16 %v2016, %v2012
        %v2249 = vpack.c.b16 %v2017, %v2013
        %v2250 = vpack.c.b16 %v2018, %v2014
        %v2251 = vpack.c.b16 %v2019, %v2015
        %v2252 = vpack.c.b16 %v2024, %v2020
        %v2253 = vpack.c.b16 %v2025, %v2021
        %v2254 = vpack.c.b16 %v2026, %v2022
        %v2255 = vpack.c.b16 %v2027, %v2023
        %v2256 = vpack.c.b16 %v2032, %v2028
        %v2257 = vpack.c.b16 %v2033, %v2029
        %v2258 = vpack.c.b16 %v2034, %v2030
        %v2259 = vpack.c.b16 %v2035, %v2031
        %v2260 = vpack.c.b16 %v2040, %v2036
        %v2261 = vpack.c.b16 %v2041, %v2037
        %v2262 = vpack.c.b16 %v2042, %v2038
        %v2263 = vpack.c.b16 %v2043, %v2039
        %v2264 = vpack.c.b16 %v2048, %v2044
        %v2265 = vpack.c.b16 %v2049, %v2045
        %v2266 = vpack.c.b16 %v2050, %v2046
        %v2267 = vpack.c.b16 %v2051, %v2047
        %v2268 = vpack.c.b16 %v2056, %v2052
        %v2269 = vpack.c.b16 %v2057, %v2053
        %v2270 = vpack.c.b16 %v2058, %v2054
        %v2271 = vpack.c.b16 %v2059, %v2055
        %v2272 = vpack.c.b16 %v2064, %v2060
        %v2273 = vpack.c.b16 %v2065, %v2061
        %v2274 = vpack.c.b16 %v2066, %v2062
        %v2275 = vpack.c.b16 %v2067, %v2063
        %v2276 = vpack.c.b16 %v2072, %v2068
        %v2277 = vpack.c.b16 %v2073, %v2069
        %v2278 = vpack.c.b16 %v2074, %v2070
        %v2279 = vpack.c.b16 %v2075, %v2071
        %v2280 = vpack.c.b16 %v2080, %v2076
        %v2281 = vpack.c.b16 %v2081, %v2077
        %v2282 = vpack.c.b16 %v2082, %v2078
        %v2283 = vpack.c.b16 %v2083, %v2079
        %v2284 = vpack.c.b16 %v2088, %v2084
        %v2285 = vpack.c.b16 %v2089, %v2085
        %v2286 = vpack.c.b16 %v2090, %v2086
        %v2287 = vpack.c.b16 %v2091, %v2087
        %v2288 = vpack.c.b16 %v2096, %v2092
        %v2289 = vpack.c.b16 %v2097, %v2093
        %v2290 = vpack.c.b16 %v2098, %v2094
        %v2291 = vpack.c.b16 %v2099, %v2095
        %v2292 = vpack.c.b16 %v2104, %v2100
        %v2293 = vpack.c.b16 %v2105, %v2101
        %v2294 = vpack.c.b16 %v2106, %v2102
        %v2295 = vpack.c.b16 %v2107, %v2103
        %v2296 = vpack.c.b16 %v2112, %v2108
        %v2297 = vpack.c.b16 %v2113, %v2109
        %v2298 = vpack.c.b16 %v2114, %v2110
        %v2299 = vpack.c.b16 %v2115, %v2111
        %v2300 = vpack.c.b16 %v2120, %v2116
        %v2301 = vpack.c.b16 %v2121, %v2117
        %v2302 = vpack.c.b16 %v2122, %v2118
        %v2303 = vpack.c.b16 %v2123, %v2119
        %v2304 = vpack.c.b16 %v2128, %v2124
        %v2305 = vpack.c.b16 %v2129, %v2125
        %v2306 = vpack.c.b16 %v2130, %v2126
        %v2307 = vpack.c.b16 %v2131, %v2127
        %v2308 = vpack.c.b16 %v2136, %v2132
        %v2309 = vpack.c.b16 %v2137, %v2133
        %v2310 = vpack.c.b16 %v2138, %v2134
        %v2311 = vpack.c.b16 %v2139, %v2135
        %v2312 = vpack.c.b16 %v2144, %v2140
        %v2313 = vpack.c.b16 %v2145, %v2141
        %v2314 = vpack.c.b16 %v2146, %v2142
        %v2315 = vpack.c.b16 %v2147, %v2143
        %v2316 = vpack.c.b16 %v2152, %v2148
        %v2317 = vpack.c.b16 %v2153, %v2149
        %v2318 = vpack.c.b16 %v2154, %v2150
        %v2319 = vpack.c.b16 %v2155, %v2151
        %v2320 = vpack.c.b16 %v2160, %v2156
        %v2321 = vpack.c.b16 %v2161, %v2157
        %v2322 = vpack.c.b16 %v2162, %v2158
        %v2323 = vpack.c.b16 %v2163, %v2159
        %v2324 = vpack.c.b16 %v2168, %v2164
        %v2325 = vpack.c.b16 %v2169, %v2165
        %v2326 = vpack.c.b16 %v2170, %v2166
        %v2327 = vpack.c.b16 %v2171, %v2167
        %v2328 = vpack.c.b16 %v2176, %v2172
        %v2329 = vpack.c.b16 %v2177, %v2173
        %v2330 = vpack.c.b16 %v2178, %v2174
        %v2331 = vpack.c.b16 %v2179, %v2175
        %v2332 = vpack.c.b16 %v2184, %v2180
        %v2333 = vpack.c.b16 %v2185, %v2181
        %v2334 = vpack.c.b16 %v2186, %v2182
        %v2335 = vpack.c.b16 %v2187, %v2183
        %v2336 = vpack.c.b16 %v2192, %v2188
        %v2337 = vpack.c.b16 %v2193, %v2189
        %v2338 = vpack.c.b16 %v2194, %v2190
        %v2339 = vpack.c.b16 %v2195, %v2191
        %v2340 = vpack.c.b16 %v2200, %v2196
        %v2341 = vpack.c.b16 %v2201, %v2197
        %v2342 = vpack.c.b16 %v2202, %v2198
        %v2343 = vpack.c.b16 %v2203, %v2199
        %v2344 = vpack.c.b16 %v2208, %v2204
        %v2345 = vpack.c.b16 %v2209, %v2205
        %v2346 = vpack.c.b16 %v2210, %v2206
        %v2347 = vpack.c.b16 %v2211, %v2207
        %v2348 = vpack.c.b16 %v2216, %v2212
        %v2349 = vpack.c.b16 %v2217, %v2213
        %v2350 = vpack.c.b16 %v2218, %v2214
        %v2351 = vpack.c.b16 %v2219, %v2215
        %v2352 = vpack.c.b16 %v2224, %v2220
        %v2353 = vpack.c.b16 %v2225, %v2221
        %v2354 = vpack.c.b16 %v2226, %v2222
        %v2355 = vpack.c.b16 %v2227, %v2223
        %2484 = vmatprep.subr.bf16.mxu0 %v2229
        %2485 = vmatpush1.bf16.msra.mxu0 %v2228
        %2486 = vmatprep.subr.bf16.mxu0 %v2233
        %2487 = vmatpush1.bf16.msra.mxu0 %v2232
        %2488 = vmatprep.subr.bf16.mxu0 %v2237
        %2489 = vmatpush1.bf16.msra.mxu0 %v2236
        %2490 = vmatprep.subr.bf16.mxu0 %v2241
        %2491 = vmatpush1.bf16.msra.mxu0 %v2240
        %2492 = vmatprep.subr.bf16.mxu0 %v2245
        %2493 = vmatpush1.bf16.msra.mxu0 %v2244
        %2494 = vmatprep.subr.bf16.mxu0 %v2249
        %2495 = vmatpush1.bf16.msra.mxu0 %v2248
        %2496 = vmatprep.subr.bf16.mxu0 %v2253
        %2497 = vmatpush1.bf16.msra.mxu0 %v2252
        %2498 = vmatprep.subr.bf16.mxu0 %v2257
        %2499 = vmatpush1.bf16.msra.mxu0 %v2256
        %2500 = vmatprep.subr.bf16.mxu0 %v2261
        %2501 = vmatpush1.bf16.msra.mxu0 %v2260
        %2502 = vmatprep.subr.bf16.mxu0 %v2265
        %2503 = vmatpush1.bf16.msra.mxu0 %v2264
        %2504 = vmatprep.subr.bf16.mxu0 %v2269
        %2505 = vmatpush1.bf16.msra.mxu0 %v2268
        %2506 = vmatprep.subr.bf16.mxu0 %v2273
        %2507 = vmatpush1.bf16.msra.mxu0 %v2272
        %2508 = vmatprep.subr.bf16.mxu0 %v2277
        %2509 = vmatpush1.bf16.msra.mxu0 %v2276
        %2510 = vmatprep.subr.bf16.mxu0 %v2281
        %2511 = vmatpush1.bf16.msra.mxu0 %v2280
        %2512 = vmatprep.subr.bf16.mxu0 %v2285
        %2513 = vmatpush1.bf16.msra.mxu0 %v2284
        %2514 = vmatprep.subr.bf16.mxu0 %v2289
        %2515 = vmatpush1.bf16.msra.mxu0 %v2288
        %2516 = vmatprep.mubr.bf16.mxu0 %v1815
        %2517 = vmatmul.mubr.bf16.gmra.mrb[0].mxu0 %v1814
        %v2518 = vpop.f32.mrb[0].mxu0
        %v2519 = vadd.f32 %v1827, %v2518
        %v2520 = vpop.f32.mrb[0].mxu0
        %v2521 = vadd.f32 %v1831, %v2520
        %v2522 = vpop.f32.mrb[0].mxu0
        %v2523 = vadd.f32 %v1827, %v2522
        %v2524 = vpop.f32.mrb[0].mxu0
        %v2525 = vadd.f32 %v1831, %v2524
        %2526 = vmatprep.mubr.bf16.mxu0 %v1819
        %2527 = vmatmul.mubr.bf16.gmra.mrb[0].mxu0 %v1818
        %v2528 = vpop.f32.mrb[0].mxu0
        %v2529 = vadd.f32 %v1827, %v2528
        %v2530 = vpop.f32.mrb[0].mxu0
        %v2531 = vadd.f32 %v1831, %v2530
        %v2532 = vpop.f32.mrb[0].mxu0
        %v2533 = vadd.f32 %v1827, %v2532
        %v2534 = vpop.f32.mrb[0].mxu0
        %v2535 = vadd.f32 %v1831, %v2534
        %2536 = vdwg.mxu0
        %2537 = vmatprep.subr.bf16.mxu0 %v2293
        %2538 = vmatpush1.bf16.msra.mxu0 %v2292
        %2539 = vmatprep.subr.bf16.mxu0 %v2297
        %2540 = vmatpush1.bf16.msra.mxu0 %v2296
        %2541 = vmatprep.subr.bf16.mxu0 %v2301
        %2542 = vmatpush1.bf16.msra.mxu0 %v2300
        %2543 = vmatprep.subr.bf16.mxu0 %v2305
        %2544 = vmatpush1.bf16.msra.mxu0 %v2304
        %2545 = vmatprep.subr.bf16.mxu0 %v2309
        %2546 = vmatpush1.bf16.msra.mxu0 %v2308
        %2547 = vmatprep.subr.bf16.mxu0 %v2313
        %2548 = vmatpush1.bf16.msra.mxu0 %v2312
        %2549 = vmatprep.subr.bf16.mxu0 %v2317
        %2550 = vmatpush1.bf16.msra.mxu0 %v2316
        %2551 = vmatprep.subr.bf16.mxu0 %v2321
        %2552 = vmatpush1.bf16.msra.mxu0 %v2320
        %2553 = vmatprep.subr.bf16.mxu0 %v2325
        %2554 = vmatpush1.bf16.msra.mxu0 %v2324
        %2555 = vmatprep.subr.bf16.mxu0 %v2329
        %2556 = vmatpush1.bf16.msra.mxu0 %v2328
        %2557 = vmatprep.subr.bf16.mxu0 %v2333
        %2558 = vmatpush1.bf16.msra.mxu0 %v2332
        %2559 = vmatprep.subr.bf16.mxu0 %v2337
        %2560 = vmatpush1.bf16.msra.mxu0 %v2336
        %2561 = vmatprep.subr.bf16.mxu0 %v2341
        %2562 = vmatpush1.bf16.msra.mxu0 %v2340
        %2563 = vmatprep.subr.bf16.mxu0 %v2345
        %2564 = vmatpush1.bf16.msra.mxu0 %v2344
        %2565 = vmatprep.subr.bf16.mxu0 %v2349
        %2566 = vmatpush1.bf16.msra.mxu0 %v2348
        %2567 = vmatprep.subr.bf16.mxu0 %v2353
        %2568 = vmatpush1.bf16.msra.mxu0 %v2352
        %2569 = vmatprep.mubr.bf16.mxu0 %v1817
        %2570 = vmatmul.mubr.bf16.gmra.mrb[0].mxu0 %v1816
        %v2571 = vpop.f32.mrb[0].mxu0
        %v2572 = vadd.f32 %v2519, %v2571
        %v2573 = vpop.f32.mrb[0].mxu0
        %v2574 = vadd.f32 %v2521, %v2573
        %v2575 = vpop.f32.mrb[0].mxu0
        %v2576 = vadd.f32 %v2523, %v2575
        %v2577 = vpop.f32.mrb[0].mxu0
        %v2578 = vadd.f32 %v2525, %v2577
        %2579 = vmatprep.mubr.bf16.mxu0 %v1821
        %2580 = vmatmul.mubr.bf16.gmra.mrb[0].mxu0 %v1820
        %v2581 = vpop.f32.mrb[0].mxu0
        %v2582 = vadd.f32 %v2529, %v2581
        %v2583 = vpop.f32.mrb[0].mxu0
        %v2584 = vadd.f32 %v2531, %v2583
        %v2585 = vpop.f32.mrb[0].mxu0
        %v2586 = vadd.f32 %v2533, %v2585
        %v2587 = vpop.f32.mrb[0].mxu0
        %v2588 = vadd.f32 %v2535, %v2587
        %2589 = vdwg.mxu0
        %2590 = vmatprep.subr.bf16.mxu0 %v2231
        %2591 = vmatpush1.bf16.msra.mxu0 %v2230
        %2592 = vmatprep.subr.bf16.mxu0 %v2235
        %2593 = vmatpush1.bf16.msra.mxu0 %v2234
        %2594 = vmatprep.subr.bf16.mxu0 %v2239
        %2595 = vmatpush1.bf16.msra.mxu0 %v2238
        %2596 = vmatprep.subr.bf16.mxu0 %v2243
        %2597 = vmatpush1.bf16.msra.mxu0 %v2242
        %2598 = vmatprep.subr.bf16.mxu0 %v2247
        %2599 = vmatpush1.bf16.msra.mxu0 %v2246
        %2600 = vmatprep.subr.bf16.mxu0 %v2251
        %2601 = vmatpush1.bf16.msra.mxu0 %v2250
        %2602 = vmatprep.subr.bf16.mxu0 %v2255
        %2603 = vmatpush1.bf16.msra.mxu0 %v2254
        %2604 = vmatprep.subr.bf16.mxu0 %v2259
        %2605 = vmatpush1.bf16.msra.mxu0 %v2258
        %2606 = vmatprep.subr.bf16.mxu0 %v2263
        %2607 = vmatpush1.bf16.msra.mxu0 %v2262
        %2608 = vmatprep.subr.bf16.mxu0 %v2267
        %2609 = vmatpush1.bf16.msra.mxu0 %v2266
        %2610 = vmatprep.subr.bf16.mxu0 %v2271
        %2611 = vmatpush1.bf16.msra.mxu0 %v2270
        %2612 = vmatprep.subr.bf16.mxu0 %v2275
        %2613 = vmatpush1.bf16.msra.mxu0 %v2274
        %2614 = vmatprep.subr.bf16.mxu0 %v2279
        %2615 = vmatpush1.bf16.msra.mxu0 %v2278
        %2616 = vmatprep.subr.bf16.mxu0 %v2283
        %2617 = vmatpush1.bf16.msra.mxu0 %v2282
        %2618 = vmatprep.subr.bf16.mxu0 %v2287
        %2619 = vmatpush1.bf16.msra.mxu0 %v2286
        %2620 = vmatprep.subr.bf16.mxu0 %v2291
        %2621 = vmatpush1.bf16.msra.mxu0 %v2290
        %2622 = vmatprep.mubr.bf16.mxu0 %v1815
        %2623 = vmatmul.mubr.bf16.gmra.mrb[0].mxu0 %v1814
        %v2624 = vpop.f32.mrb[0].mxu0
        %v2625 = vadd.f32 %v1835, %v2624
        %v2626 = vpop.f32.mrb[0].mxu0
        %v2627 = vadd.f32 %v1839, %v2626
        %v2628 = vpop.f32.mrb[0].mxu0
        %v2629 = vadd.f32 %v1835, %v2628
        %v2630 = vpop.f32.mrb[0].mxu0
        %v2631 = vadd.f32 %v1839, %v2630
        %2632 = vmatprep.mubr.bf16.mxu0 %v1819
        %2633 = vmatmul.mubr.bf16.gmra.mrb[0].mxu0 %v1818
        %v2634 = vpop.f32.mrb[0].mxu0
        %v2635 = vadd.f32 %v1835, %v2634
        %v2636 = vpop.f32.mrb[0].mxu0
        %v2637 = vadd.f32 %v1839, %v2636
        %v2638 = vpop.f32.mrb[0].mxu0
        %v2639 = vadd.f32 %v1835, %v2638
        %v2640 = vpop.f32.mrb[0].mxu0
        %v2641 = vadd.f32 %v1839, %v2640
        %2642 = vdwg.mxu0
        %2643 = vmatprep.subr.bf16.mxu0 %v2295
        %2644 = vmatpush1.bf16.msra.mxu0 %v2294
        %2645 = vmatprep.subr.bf16.mxu0 %v2299
        %2646 = vmatpush1.bf16.msra.mxu0 %v2298
        %2647 = vmatprep.subr.bf16.mxu0 %v2303
        %2648 = vmatpush1.bf16.msra.mxu0 %v2302
        %2649 = vmatprep.subr.bf16.mxu0 %v2307
        %2650 = vmatpush1.bf16.msra.mxu0 %v2306
        %2651 = vmatprep.subr.bf16.mxu0 %v2311
        %2652 = vmatpush1.bf16.msra.mxu0 %v2310
        %2653 = vmatprep.subr.bf16.mxu0 %v2315
        %2654 = vmatpush1.bf16.msra.mxu0 %v2314
        %2655 = vmatprep.subr.bf16.mxu0 %v2319
        %2656 = vmatpush1.bf16.msra.mxu0 %v2318
        %2657 = vmatprep.subr.bf16.mxu0 %v2323
        %2658 = vmatpush1.bf16.msra.mxu0 %v2322
        %2659 = vmatprep.subr.bf16.mxu0 %v2327
        %2660 = vmatpush1.bf16.msra.mxu0 %v2326
        %2661 = vmatprep.subr.bf16.mxu0 %v2331
        %2662 = vmatpush1.bf16.msra.mxu0 %v2330
        %2663 = vmatprep.subr.bf16.mxu0 %v2335
        %2664 = vmatpush1.bf16.msra.mxu0 %v2334
        %2665 = vmatprep.subr.bf16.mxu0 %v2339
        %2666 = vmatpush1.bf16.msra.mxu0 %v2338
        %2667 = vmatprep.subr.bf16.mxu0 %v2343
        %2668 = vmatpush1.bf16.msra.mxu0 %v2342
        %2669 = vmatprep.subr.bf16.mxu0 %v2347
        %2670 = vmatpush1.bf16.msra.mxu0 %v2346
        %2671 = vmatprep.subr.bf16.mxu0 %v2351
        %2672 = vmatpush1.bf16.msra.mxu0 %v2350
        %2673 = vmatprep.subr.bf16.mxu0 %v2355
        %2674 = vmatpush1.bf16.msra.mxu0 %v2354
        %2675 = vmatprep.mubr.bf16.mxu0 %v1817
        %2676 = vmatmul.mubr.bf16.gmra.mrb[0].mxu0 %v1816
        %v2677 = vpop.f32.mrb[0].mxu0
        %v2678 = vadd.f32 %v2625, %v2677
        %v2679 = vpop.f32.mrb[0].mxu0
        %v2680 = vadd.f32 %v2627, %v2679
        %v2681 = vpop.f32.mrb[0].mxu0
        %v2682 = vadd.f32 %v2629, %v2681
        %v2683 = vpop.f32.mrb[0].mxu0
        %v2684 = vadd.f32 %v2631, %v2683
        %2685 = vmatprep.mubr.bf16.mxu0 %v1821
        %2686 = vmatmul.mubr.bf16.gmra.mrb[0].mxu0 %v1820
        %v2687 = vpop.f32.mrb[0].mxu0
        %v2688 = vadd.f32 %v2635, %v2687
        %v2689 = vpop.f32.mrb[0].mxu0
        %v2690 = vadd.f32 %v2637, %v2689
        %v2691 = vpop.f32.mrb[0].mxu0
        %v2692 = vadd.f32 %v2639, %v2691
        %v2693 = vpop.f32.mrb[0].mxu0
        %v2694 = vadd.f32 %v2641, %v2693
        %2695 = vdwg.mxu0
        %v2696 = vld [vmem:[%s514] sm:$0xff]
        %v2697 = vld [vmem:[%s514 + $0x8] sm:$0xff]
        %v2698 = vld [vmem:[%s524] sm:$0xff]
        %v2699 = vld [vmem:[%s524 + $0x8] sm:$0xff]
        %v2700 = vadd.f32 %v2572, %v2574
        %v2701 = vadd.f32 %v2700, %v2678
        %v2702 = vadd.f32 %v2701, %v2680
        %v2703 = vadd.f32 %v2702, %v2582
        %v2704 = vadd.f32 %v2703, %v2584
        %v2705 = vadd.f32 %v2704, %v2688
        %v2706 = vadd.f32 %v2705, %v2690
        %2707 = vadd.xlane.f32.xlu0 %v2706
        %v2708 = vpop.xlane.xlu0 %2707
        %v2709 = vadd.f32 %v2576, %v2578
        %v2710 = vadd.f32 %v2709, %v2682
        %v2711 = vadd.f32 %v2710, %v2684
        %v2712 = vadd.f32 %v2711, %v2586
        %v2713 = vadd.f32 %v2712, %v2588
        %v2714 = vadd.f32 %v2713, %v2692
        %v2715 = vadd.f32 %v2714, %v2694
        %2716 = vadd.xlane.f32.xlu0 %v2715
        %v2717 = vpop.xlane.xlu0 %2716
        %v2718 = vmul.f32 %v2572, %v2572
        %v2719 = vmul.f32 %v2574, %v2574
        %v2720 = vmul.f32 %v2678, %v2678
        %v2721 = vmul.f32 %v2680, %v2680
        %v2722 = vmul.f32 %v2576, %v2576
        %v2723 = vmul.f32 %v2578, %v2578
        %v2724 = vmul.f32 %v2682, %v2682
        %v2725 = vmul.f32 %v2684, %v2684
        %v2726 = vmul.f32 %v2582, %v2582
        %v2727 = vmul.f32 %v2584, %v2584
        %v2728 = vmul.f32 %v2688, %v2688
        %v2729 = vmul.f32 %v2690, %v2690
        %v2730 = vmul.f32 %v2586, %v2586
        %v2731 = vmul.f32 %v2588, %v2588
        %v2732 = vmul.f32 %v2692, %v2692
        %v2733 = vmul.f32 %v2694, %v2694
        %v2734 = vadd.f32 %v2718, %v2719
        %v2735 = vadd.f32 %v2734, %v2720
        %v2736 = vadd.f32 %v2735, %v2721
        %v2737 = vadd.f32 %v2736, %v2726
        %v2738 = vadd.f32 %v2737, %v2727
        %v2739 = vadd.f32 %v2738, %v2728
        %v2740 = vadd.f32 %v2739, %v2729
        %2741 = vadd.xlane.f32.xlu0 %v2740
        %v2742 = vpop.xlane.xlu0 %2741
        %v2743 = vadd.f32 %v2722, %v2723
        %v2744 = vadd.f32 %v2743, %v2724
        %v2745 = vadd.f32 %v2744, %v2725
        %v2746 = vadd.f32 %v2745, %v2730
        %v2747 = vadd.f32 %v2746, %v2731
        %v2748 = vadd.f32 %v2747, %v2732
        %v2749 = vadd.f32 %v2748, %v2733
        %2750 = vadd.xlane.f32.xlu0 %v2749
        %v2751 = vpop.xlane.xlu0 %2750
        %v2752 = vmul.f32 %v2708, 0.0009765625
        %v2753 = vmul.f32 %v2717, 0.0009765625
        %v2754 = vmul.f32 %v2742, 0.0009765625
        %v2755 = vmul.f32 %v2751, 0.0009765625
        %v2756 = vmul.f32 %v2752, %v2752
        %v2757 = vmul.f32 %v2753, %v2753
        %v2758 = vsub.f32 %v2754, %v2756
        %v2759 = vsub.f32 %v2755, %v2757
        %v2760 = vmax.f32 %v2758, 0.0
        %v2761 = vmax.f32 %v2759, 0.0
        %v2762 = vadd.f32 %v2760, 1e-05
        %v2763 = vadd.f32 %v2761, 1e-05
        %v2764 = vrsqrt.pop %v2762
        %v2765 = vrsqrt.pop %v2763
        %v2766 = vmul.f32 %v2696, %v2764
        %v2767 = vmul.f32 %v2697, %v2765
        %v2768 = vmul.f32 %v2752, %v2766
        %v2769 = vmul.f32 %v2753, %v2767
        %v2770 = vsub.f32 %v2698, %v2768
        %v2771 = vsub.f32 %v2699, %v2769
        %2773 = vset.pattern.permute.xlu0 0
        %2774 = vperm.xlu0 %2773, %v2766
        %v2775 = vpop.permute.xlu0 %2774
        %2778 = vset.pattern.permute.xlu0 0
        %2779 = vperm.xlu0 %2778, %v2767
        %v2780 = vpop.permute.xlu0 %2779
        %v2782 = vmul.f32 %v2572, %v2775
        %v2783 = vmul.f32 %v2574, %v2775
        %v2784 = vmul.f32 %v2678, %v2775
        %v2785 = vmul.f32 %v2680, %v2775
        %v2786 = vmul.f32 %v2576, %v2780
        %v2787 = vmul.f32 %v2578, %v2780
        %v2788 = vmul.f32 %v2682, %v2780
        %v2789 = vmul.f32 %v2684, %v2780
        %v2790 = vmul.f32 %v2582, %v2775
        %v2791 = vmul.f32 %v2584, %v2775
        %v2792 = vmul.f32 %v2688, %v2775
        %v2793 = vmul.f32 %v2690, %v2775
        %v2794 = vmul.f32 %v2586, %v2780
        %v2795 = vmul.f32 %v2588, %v2780
        %v2796 = vmul.f32 %v2692, %v2780
        %v2797 = vmul.f32 %v2694, %v2780
        %2799 = vset.pattern.permute.xlu0 0
        %2800 = vperm.xlu0 %2799, %v2770
        %v2801 = vpop.permute.xlu0 %2800
        %2804 = vset.pattern.permute.xlu0 0
        %2805 = vperm.xlu0 %2804, %v2771
        %v2806 = vpop.permute.xlu0 %2805
        %v2808 = vadd.f32 %v2782, %v2801
        %v2809 = vadd.f32 %v2783, %v2801
        %v2810 = vadd.f32 %v2784, %v2801
        %v2811 = vadd.f32 %v2785, %v2801
        %v2812 = vadd.f32 %v2786, %v2806
        %v2813 = vadd.f32 %v2787, %v2806
        %v2814 = vadd.f32 %v2788, %v2806
        %v2815 = vadd.f32 %v2789, %v2806
        %v2816 = vadd.f32 %v2790, %v2801
        %v2817 = vadd.f32 %v2791, %v2801
        %v2818 = vadd.f32 %v2792, %v2801
        %v2819 = vadd.f32 %v2793, %v2801
        %v2820 = vadd.f32 %v2794, %v2806
        %v2821 = vadd.f32 %v2795, %v2806
        %v2822 = vadd.f32 %v2796, %v2806
        %v2823 = vadd.f32 %v2797, %v2806
        %v2824 = vmax.f32 %v2808, 0.0
        %v2825 = vmax.f32 %v2809, 0.0
        %v2826 = vmax.f32 %v2810, 0.0
        %v2827 = vmax.f32 %v2811, 0.0
        %v2828 = vmax.f32 %v2812, 0.0
        %v2829 = vmax.f32 %v2813, 0.0
        %v2830 = vmax.f32 %v2814, 0.0
        %v2831 = vmax.f32 %v2815, 0.0
        %v2832 = vmax.f32 %v2816, 0.0
        %v2833 = vmax.f32 %v2817, 0.0
        %v2834 = vmax.f32 %v2818, 0.0
        %v2835 = vmax.f32 %v2819, 0.0
        %v2836 = vmax.f32 %v2820, 0.0
        %v2837 = vmax.f32 %v2821, 0.0
        %v2838 = vmax.f32 %v2822, 0.0
        %v2839 = vmax.f32 %v2823, 0.0
        %v2840 = vld [vmem:[%s532] sm:$0xff]
        %v2841 = vmax.f32 %v2824, %v2828
        %v2842 = vrot.slane %v2841, 4
        %v2843 = vmax.f32 %v2841, %v2842
        %v2844 = vrot.slane %v2843, 2
        %v2845 = vmax.f32 %v2843, %v2844
        %v2846 = vrot.slane %v2845, 1
        %v2847 = vmax.f32 %v2845, %v2846
        %v2848 = vmax.f32 %v2825, %v2829
        %v2849 = vrot.slane %v2848, 4
        %v2850 = vmax.f32 %v2848, %v2849
        %v2851 = vrot.slane %v2850, 2
        %v2852 = vmax.f32 %v2850, %v2851
        %v2853 = vrot.slane %v2852, 1
        %v2854 = vmax.f32 %v2852, %v2853
        %v2855 = vmax.f32 %v2826, %v2830
        %v2856 = vrot.slane %v2855, 4
        %v2857 = vmax.f32 %v2855, %v2856
        %v2858 = vrot.slane %v2857, 2
        %v2859 = vmax.f32 %v2857, %v2858
        %v2860 = vrot.slane %v2859, 1
        %v2861 = vmax.f32 %v2859, %v2860
        %v2862 = vmax.f32 %v2827, %v2831
        %v2863 = vrot.slane %v2862, 4
        %v2864 = vmax.f32 %v2862, %v2863
        %v2865 = vrot.slane %v2864, 2
        %v2866 = vmax.f32 %v2864, %v2865
        %v2867 = vrot.slane %v2866, 1
        %v2868 = vmax.f32 %v2866, %v2867
        %v2869 = vmax.f32 %v2832, %v2836
        %v2870 = vrot.slane %v2869, 4
        %v2871 = vmax.f32 %v2869, %v2870
        %v2872 = vrot.slane %v2871, 2
        %v2873 = vmax.f32 %v2871, %v2872
        %v2874 = vrot.slane %v2873, 1
        %v2875 = vmax.f32 %v2873, %v2874
        %v2876 = vmax.f32 %v2833, %v2837
        %v2877 = vrot.slane %v2876, 4
        %v2878 = vmax.f32 %v2876, %v2877
        %v2879 = vrot.slane %v2878, 2
        %v2880 = vmax.f32 %v2878, %v2879
        %v2881 = vrot.slane %v2880, 1
        %v2882 = vmax.f32 %v2880, %v2881
        %v2883 = vmax.f32 %v2834, %v2838
        %v2884 = vrot.slane %v2883, 4
        %v2885 = vmax.f32 %v2883, %v2884
        %v2886 = vrot.slane %v2885, 2
        %v2887 = vmax.f32 %v2885, %v2886
        %v2888 = vrot.slane %v2887, 1
        %v2889 = vmax.f32 %v2887, %v2888
        %v2890 = vmax.f32 %v2835, %v2839
        %v2891 = vrot.slane %v2890, 4
        %v2892 = vmax.f32 %v2890, %v2891
        %v2893 = vrot.slane %v2892, 2
        %v2894 = vmax.f32 %v2892, %v2893
        %v2895 = vrot.slane %v2894, 1
        %v2896 = vmax.f32 %v2894, %v2895
        %v2905 = vcombine.low %v2847, %v2854
        %v2906 = vcombine.low %v2861, %v2868
        %v2908 = vunpack.c.l.s4 1983009808
        %v2909 = vunpack.c.0.s8 %v2908
        %v2910 = vlaneseq
        %v2911 = vshrl.u32 %v2910, 7
        %v2912 = vsub.s32 %v2909, %v2911
        %v2913 = vrot.slane %v2905, %v2912
        %v2915 = vunpack.c.l.s4 1983009808
        %v2916 = vunpack.c.0.s8 %v2915
        %v2917 = vlaneseq
        %v2918 = vshrl.u32 %v2917, 7
        %v2919 = vsub.s32 %v2916, %v2918
        %v2920 = vrot.slane %v2906, %v2919
        %v2921 = vcombine.low %v2913, %v2920
        %v2922 = vcombine.low %v2875, %v2882
        %v2923 = vcombine.low %v2889, %v2896
        %v2925 = vunpack.c.l.s4 1983009808
        %v2926 = vunpack.c.0.s8 %v2925
        %v2927 = vlaneseq
        %v2928 = vshrl.u32 %v2927, 7
        %v2929 = vsub.s32 %v2926, %v2928
        %v2930 = vrot.slane %v2922, %v2929
        %v2932 = vunpack.c.l.s4 1983009808
        %v2933 = vunpack.c.0.s8 %v2932
        %v2934 = vlaneseq
        %v2935 = vshrl.u32 %v2934, 7
        %v2936 = vsub.s32 %v2933, %v2935
        %v2937 = vrot.slane %v2923, %v2936
        %v2938 = vcombine.low %v2930, %v2937
        %vm2939 = vcmask 1044484
        %v2940 = vsel %vm2939, %v2921, %v2921
        %vm2941 = vcmask 1046534
        %v2942 = vsel %vm2941, %v2921, %v2940
        %v2943 = vrot.slane %v2938, 7
        %vm2944 = vcmask 1041409
        %v2945 = vsel %vm2944, %v2943, %v2942
        %vm2946 = vcmask 1043459
        %v2947 = vsel %vm2946, %v2943, %v2945
        %vm2948 = vcmask 1045509
        %v2949 = vsel %vm2948, %v2943, %v2947
        %vm2950 = vcmask 1047559
        %v2951 = vsel %vm2950, %v2943, %v2949
        %v2953 = vmax.f32 %v2840, %v2951
        %2954 = vst [vmem:[%s532] sm:$0xff] %v2953
        %p2955 = scmp.lt.s32.totalorder %s24, 1
        %s2956 = scalar_select %p2955, %s24, 1
        %s2957 = smul.addr %s2956, 4
        %s2958 = smul.addr %s2957, 2
        %s2959 = scalar_lea.vmem %s9, %s2958
        // Predicated region
        $region84: #{_lambda_.4} parent=74 // pred_check
          %p2960 = pneg %p284
        $region85: #{_lambda_.4} parent=74 // pred_check_branch
          %2962 = sbr.rel (%p2960) target = $region87
        $region86: #{_lambda_.4} parent=74 // pred_region
          _
        $region87: #{_lambda_.4} parent=74 // pred_fallthru
          _
      $region75: #{_lambda_.4} parent=5 // pred_fallthru
        _
      %p2963 = scmp.le.s32.totalorder 2, %s15
      // Predicated region
      $region88: #{_lambda_.4} parent=5 // pred_check
        %p2964 = pneg %p2963
      $region89: #{_lambda_.4} parent=5 // pred_check_branch
        %2966 = sbr.rel (%p2964) target = $region91
      $region90: #{_lambda_.4} parent=5 // pred_region
        %s2967 = ssub.s32 %s15, 2
        // Predicated region
        $region92: #{_lambda_.4} parent=90 // pred_check
          %p2968 = pneg %p290
        $region93: #{_lambda_.4} parent=90 // pred_check_branch
          %2970 = sbr.rel (%p2968) target = $region95
        $region94: #{_lambda_.4} parent=90 // pred_region
          %p2971 = scmp.lt.s32.totalorder %s26, 1
          %s2972 = scalar_select %p2971, %s26, 1
          %s2973 = smul.addr %s2972, 4
          %s2974 = smul.addr %s2973, 2
          %s2975 = scalar_lea.vmem %s9, %s2974
        $region95: #{_lambda_.4} parent=90 // pred_fallthru
          _
      $region91: #{_lambda_.4} parent=5 // pred_fallthru
        _
    $region6: #{_lambda_.4} parent=1 // loop_footer
      %s19 = sadd.s32 1, %s15
    $region7: #{_lambda_.4} parent=1 // loop_footer_branch
      %14 = sbr.rel target = $region3
    $region8: #{_lambda_.4} parent=1 // loop_exit
      _

// kernel: _lambda_.5
$region0: #{_lambda_.5}
  #allocation0 [shape = 'u32[]', space=smem, size = 0x4, offset = 0x4, fixed_abs, tag = 'smem constant byte address 0x4 - core index']
  #allocation1 [shape = 'u32[144,128]{1,0:T(1,128)}', space=vmem, size = 0x12000, scoped, tag = 'internal scratch']
  %s0 = inlined_call_operand.smem [shape: u32[41], index: -1, kind: input, shape index: {}]
  %s1 = sld [smem:[%s0]]
  %s2 = scalar_lea.smem %s0, 1
  %s3 = sld [smem:[%s2]]
  %s4 = scalar_lea.smem %s0, 2
  %s5 = sld [smem:[%s4]]
  %s6 = scalar_lea.smem %s0, 3
  %s7 = sld [smem:[%s6]]
  %s8 = scalar_lea.smem %s0, 4
  %s9 = sld [smem:[%s8]]
  %s10 = scalar_lea.smem %s0, 5
  %s11 = sld [smem:[%s10]]
  %s12 = scalar_lea.smem %s0, 6
  %s13 = sld [smem:[%s12]]
  %s14 = scalar_lea.smem %s0, 7
  %s15 = sld [smem:[%s14]]
  %s16 = scalar_lea.smem %s0, 8
  %s17 = sld [smem:[%s16]]
  %s18 = scalar_lea.smem %s0, 9
  %s19 = sld [smem:[%s18]]
  %s20 = scalar_lea.smem %s0, 10
  %s21 = sld [smem:[%s20]]
  %s22 = scalar_lea.smem %s0, 11
  %s23 = sld [smem:[%s22]]
  %s24 = scalar_lea.smem %s0, 12
  %s25 = sld [smem:[%s24]]
  %s26 = scalar_lea.smem %s0, 13
  %s27 = sld [smem:[%s26]]
  %s28 = scalar_lea.smem %s0, 14
  %s29 = sld [smem:[%s28]]
  %s30 = scalar_lea.smem %s0, 15
  %s31 = sld [smem:[%s30]]
  %s32 = scalar_lea.smem %s0, 16
  %s33 = sld [smem:[%s32]]
  %s34 = scalar_lea.smem %s0, 17
  %s35 = sld [smem:[%s34]]
  %s36 = scalar_lea.smem %s0, 18
  %s37 = sld [smem:[%s36]]
  %s38 = scalar_lea.smem %s0, 19
  %s39 = sld [smem:[%s38]]
  %s40 = scalar_lea.smem %s0, 20
  %s41 = sld [smem:[%s40]]
  %s42 = scalar_lea.smem %s0, 21
  %s43 = sld [smem:[%s42]]
  %s44 = scalar_lea.smem %s0, 22
  %s45 = sld [smem:[%s44]]
  %s46 = scalar_lea.smem %s0, 23
  %s47 = sld [smem:[%s46]]
  %s48 = scalar_lea.smem %s0, 24
  %s49 = sld [smem:[%s48]]
  %s50 = scalar_lea.smem %s0, 25
  %s51 = sld [smem:[%s50]]
  %s52 = scalar_lea.smem %s0, 26
  %s53 = sld [smem:[%s52]]
  %s54 = scalar_lea.smem %s0, 27
  %s55 = sld [smem:[%s54]]
  %s56 = scalar_lea.smem %s0, 28
  %s57 = sld [smem:[%s56]]
  %s58 = scalar_lea.smem %s0, 29
  %s59 = sld [smem:[%s58]]
  %s60 = scalar_lea.smem %s0, 30
  %s61 = sld [smem:[%s60]]
  %s62 = scalar_lea.smem %s0, 31
  %s63 = sld [smem:[%s62]]
  %s64 = scalar_lea.smem %s0, 32
  %s65 = sld [smem:[%s64]]
  %s66 = scalar_lea.smem %s0, 33
  %s67 = sld [smem:[%s66]]
  %s68 = scalar_lea.smem %s0, 34
  %s69 = sld [smem:[%s68]]
  %s70 = scalar_lea.smem %s0, 35
  %s71 = sld [smem:[%s70]]
  %s72 = scalar_lea.smem %s0, 36
  %s73 = sld [smem:[%s72]]
  %s74 = scalar_lea.smem %s0, 37
  %s75 = sld [smem:[%s74]]
  %s76 = scalar_lea.smem %s0, 38
  %s77 = sld [smem:[%s76]]
  %s78 = scalar_lea.smem %s0, 39
  %s79 = sld [smem:[%s78]]
  %s80 = scalar_lea.smem %s0, 40
  %s81 = sld [smem:[%s80]]
  %s82 = sld [smem:[#allocation0]]
  $region227: #{_lambda_.5} parent=0
    _
  %s84 = ssub.s32 1, %s82
  %s85 = scalar_select 0, %s84, %s82
  $region1: #{_lambda_.5} parent=0
    #allocation2 [shape = 'u8[32768]{0}', space=vmem, size = 0x8000, scoped, tag = 'output window, operand 0']
    loop: start=0, step=1, limit=6
    $region2: #{_lambda_.5} parent=1 // loop_pre_header
      _
    $region3: #{_lambda_.5} parent=1 // loop_header
      %s87 = sphi 0, %s91
      %p88 = scmp.ge.s32.totalorder %s87, 6
      %s95 = sphi 0, %s95
      %s97 = sphi 0, %s95
      %s98 = sphi 0, %s97
      %s112 = sphi 0, %s98
      %s116 = sphi 0, %s116
      %s118 = sphi 0, %s116
      %s119 = sphi 0, %s118
      %s133 = sphi 0, %s119
      %s139 = sphi 0, %s141
      %s142 = sphi 0, %s139
      %s143 = sphi 0, %s142
      %s159 = sphi 0, %s143
      %s165 = sphi 0, %s167
      %s168 = sphi 0, %s165
      %s169 = sphi 0, %s168
      %s185 = sphi 0, %s169
      %s191 = sphi 0, %s193
      %s194 = sphi 0, %s191
      %s195 = sphi 0, %s194
      %s211 = sphi 0, %s195
      %s215 = sphi 0, %s215
      %s217 = sphi 0, %s215
      %s218 = sphi 0, %s217
      %s232 = sphi 0, %s218
      %s236 = sphi 0, %s236
      %s238 = sphi 0, %s236
      %s239 = sphi 0, %s238
      %s253 = sphi 0, %s239
      %s259 = sphi 0, %s261
      %s262 = sphi 0, %s259
      %s263 = sphi 0, %s262
      %s279 = sphi 0, %s263
      %s285 = sphi 0, %s287
      %s288 = sphi 0, %s285
      %s289 = sphi 0, %s288
      %s305 = sphi 0, %s289
      %s309 = sphi 0, %s309
      %s311 = sphi 0, %s309
      %s312 = sphi 0, %s311
      %s326 = sphi 0, %s312
      %s330 = sphi 0, %s330
      %s332 = sphi 0, %s330
      %s333 = sphi 0, %s332
      %s347 = sphi 0, %s333
      %s353 = sphi 0, %s355
      %s356 = sphi 0, %s353
      %s357 = sphi 0, %s356
      %s373 = sphi 0, %s357
      %s379 = sphi 0, %s381
      %s382 = sphi 0, %s379
      %s383 = sphi 0, %s382
      %s399 = sphi 0, %s383
      %s403 = sphi 0, %s403
      %s405 = sphi 0, %s403
      %s406 = sphi 0, %s405
      %s420 = sphi 0, %s406
      %s424 = sphi 0, %s424
      %s426 = sphi 0, %s424
      %s427 = sphi 0, %s426
      %s441 = sphi 0, %s427
      %s447 = sphi 0, %s449
      %s450 = sphi 0, %s447
      %s451 = sphi 0, %s450
      %s467 = sphi 0, %s451
      %s473 = sphi 0, %s475
      %s476 = sphi 0, %s473
      %s477 = sphi 0, %s476
      %s493 = sphi 0, %s477
      %s497 = sphi 0, %s497
      %s499 = sphi 0, %s497
      %s500 = sphi 0, %s499
      %s514 = sphi 0, %s500
      %s518 = sphi 0, %s518
      %s520 = sphi 0, %s518
      %s521 = sphi 0, %s520
      %s535 = sphi 0, %s521
      %s541 = sphi 0, %s543
      %s544 = sphi 0, %s541
      %s545 = sphi 0, %s544
      %s561 = sphi 0, %s545
      %s567 = sphi 0, %s569
      %s570 = sphi 0, %s567
      %s571 = sphi 0, %s570
      %s587 = sphi 0, %s571
      %s591 = sphi 0, %s591
      %s593 = sphi 0, %s591
      %s594 = sphi 0, %s593
      %s608 = sphi 0, %s594
      %s614 = sphi 0, %s616
      %s617 = sphi 0, %s614
      %s618 = sphi 0, %s617
      %s634 = sphi 0, %s618
      %s640 = sphi 0, %s642
      %s643 = sphi 0, %s640
      %s644 = sphi 0, %s643
      %s660 = sphi 0, %s644
      %s664 = sphi 0, %s664
      %s666 = sphi 0, %s664
      %s667 = sphi 0, %s666
      %s681 = sphi 0, %s667
      %s685 = sphi 0, %s685
      %s687 = sphi 0, %s685
      %s688 = sphi 0, %s687
      %s702 = sphi 0, %s688
      %s708 = sphi 0, %s710
      %s711 = sphi 0, %s708
      %s712 = sphi 0, %s711
      %s728 = sphi 0, %s712
      %s734 = sphi 0, %s736
      %s737 = sphi 0, %s734
      %s738 = sphi 0, %s737
      %s754 = sphi 0, %s738
      %s758 = sphi 0, %s758
      %s760 = sphi 0, %s758
      %s761 = sphi 0, %s760
      %s775 = sphi 0, %s761
      %s779 = sphi 0, %s779
      %s781 = sphi 0, %s779
      %s782 = sphi 0, %s781
      %s796 = sphi 0, %s782
      %s802 = sphi 0, %s804
      %s805 = sphi 0, %s802
      %s806 = sphi 0, %s805
      %s822 = sphi 0, %s806
      %s828 = sphi 0, %s830
      %s831 = sphi 0, %s828
      %s832 = sphi 0, %s831
      %s848 = sphi 0, %s832
      %s852 = sphi 0, %s852
      %s854 = sphi 0, %s852
      %s855 = sphi 0, %s854
      %s869 = sphi 0, %s855
      %s873 = sphi 0, %s873
      %s875 = sphi 0, %s873
      %s876 = sphi 0, %s875
      %s890 = sphi 0, %s876
      %s896 = sphi 0, %s898
      %s899 = sphi 0, %s896
      %s900 = sphi 0, %s899
      %s916 = sphi 0, %s900
      %s922 = sphi 0, %s924
      %s925 = sphi 0, %s922
      %s926 = sphi 0, %s925
      %s942 = sphi 0, %s926
      %s946 = sphi 0, %s946
      %s948 = sphi 0, %s946
      %s949 = sphi 0, %s948
      %s963 = sphi 0, %s949
      %s967 = sphi 0, %s967
      %s969 = sphi 0, %s967
      %s970 = sphi 0, %s969
      %s984 = sphi 0, %s970
      %s990 = sphi 0, %s992
      %s993 = sphi 0, %s990
      %s994 = sphi 0, %s993
      %s1010 = sphi 0, %s994
      %s1016 = sphi 0, %s1018
      %s1019 = sphi 0, %s1016
      %s1020 = sphi 0, %s1019
      %s1036 = sphi 0, %s1020
      %s1042 = sphi 0, %s1044
      %s1045 = sphi 0, %s1042
      %s1046 = sphi 0, %s1045
      %s1062 = sphi 0, %s1046
    $region4: #{_lambda_.5} parent=1 // loop_header_branch
      %90 = sbr.rel (%p88) target = $region8
    $region5: #{_lambda_.5} parent=1 // loop_body
      %s92 = ssub.s32 %s87, 1
      %s93 = ssub.s32 %s87, 2
      %s94 = sadd.s32 %s87, 1
      %s96 = sadd.s32 %s95, 1
      %p99 = scmp.eq.s32.totalorder %s87, 3
      %p100 = scmp.ne.s32.totalorder %s95, %s97
      %p101 = scmp.eq.s32.totalorder %s87, 0
      %p102 = por %p100, %p101
      %p103 = scmp.ne.s32.totalorder %s95, %s97
      %p104 = scmp.eq.s32.totalorder %s92, 3
      %p105 = por %p103, %p104
      %p106 = scmp.ne.s32.totalorder %s97, %s98
      %p107 = scmp.eq.s32.totalorder %s92, 0
      %p108 = por %p106, %p107
      %p109 = scmp.ne.s32.totalorder %s97, %s98
      %p110 = scmp.eq.s32.totalorder %s93, 3
      %p111 = por %p109, %p110
      %p113 = scmp.ne.s32.totalorder %s98, %s112
      %p114 = scmp.eq.s32.totalorder %s93, 0
      %p115 = por %p113, %p114
      %s117 = sadd.s32 %s116, 1
      %p120 = scmp.eq.s32.totalorder %s87, 3
      %p121 = scmp.ne.s32.totalorder %s116, %s118
      %p122 = scmp.eq.s32.totalorder %s87, 0
      %p123 = por %p121, %p122
      %p124 = scmp.ne.s32.totalorder %s116, %s118
      %p125 = scmp.eq.s32.totalorder %s92, 3
      %p126 = por %p124, %p125
      %p127 = scmp.ne.s32.totalorder %s118, %s119
      %p128 = scmp.eq.s32.totalorder %s92, 0
      %p129 = por %p127, %p128
      %p130 = scmp.ne.s32.totalorder %s118, %s119
      %p131 = scmp.eq.s32.totalorder %s93, 3
      %p132 = por %p130, %p131
      %p134 = scmp.ne.s32.totalorder %s119, %s133
      %p135 = scmp.eq.s32.totalorder %s93, 0
      %p136 = por %p134, %p135
      %s137 = ssub.s32 %s87, %s94
      %p138 = scmp.eq.s32.totalorder %s137, 0
      %s140 = sadd.s32 %s139, 1
      %s141 = scalar_select %p138, %s139, %s140
      %p144 = pneg %p138
      %p145 = scmp.eq.s32.totalorder %s87, 3
      %p146 = por %p144, %p145
      %p147 = scmp.ne.s32.totalorder %s139, %s142
      %p148 = scmp.eq.s32.totalorder %s87, 0
      %p149 = por %p147, %p148
      %p150 = scmp.ne.s32.totalorder %s139, %s142
      %p151 = scmp.eq.s32.totalorder %s92, 3
      %p152 = por %p150, %p151
      %p153 = scmp.ne.s32.totalorder %s142, %s143
      %p154 = scmp.eq.s32.totalorder %s92, 0
      %p155 = por %p153, %p154
      %p156 = scmp.ne.s32.totalorder %s142, %s143
      %p157 = scmp.eq.s32.totalorder %s93, 3
      %p158 = por %p156, %p157
      %p160 = scmp.ne.s32.totalorder %s143, %s159
      %p161 = scmp.eq.s32.totalorder %s93, 0
      %p162 = por %p160, %p161
      %s163 = ssub.s32 %s87, %s94
      %p164 = scmp.eq.s32.totalorder %s163, 0
      %s166 = sadd.s32 %s165, 1
      %s167 = scalar_select %p164, %s165, %s166
      %p170 = pneg %p164
      %p171 = scmp.eq.s32.totalorder %s87, 3
      %p172 = por %p170, %p171
      %p173 = scmp.ne.s32.totalorder %s165, %s168
      %p174 = scmp.eq.s32.totalorder %s87, 0
      %p175 = por %p173, %p174
      %p176 = scmp.ne.s32.totalorder %s165, %s168
      %p177 = scmp.eq.s32.totalorder %s92, 3
      %p178 = por %p176, %p177
      %p179 = scmp.ne.s32.totalorder %s168, %s169
      %p180 = scmp.eq.s32.totalorder %s92, 0
      %p181 = por %p179, %p180
      %p182 = scmp.ne.s32.totalorder %s168, %s169
      %p183 = scmp.eq.s32.totalorder %s93, 3
      %p184 = por %p182, %p183
      %p186 = scmp.ne.s32.totalorder %s169, %s185
      %p187 = scmp.eq.s32.totalorder %s93, 0
      %p188 = por %p186, %p187
      %s189 = ssub.s32 %s87, %s94
      %p190 = scmp.eq.s32.totalorder %s189, 0
      %s192 = sadd.s32 %s191, 1
      %s193 = scalar_select %p190, %s191, %s192
      %p196 = pneg %p190
      %p197 = scmp.eq.s32.totalorder %s87, 3
      %p198 = por %p196, %p197
      %p199 = scmp.ne.s32.totalorder %s191, %s194
      %p200 = scmp.eq.s32.totalorder %s87, 0
      %p201 = por %p199, %p200
      %p202 = scmp.ne.s32.totalorder %s191, %s194
      %p203 = scmp.eq.s32.totalorder %s92, 3
      %p204 = por %p202, %p203
      %p205 = scmp.ne.s32.totalorder %s194, %s195
      %p206 = scmp.eq.s32.totalorder %s92, 0
      %p207 = por %p205, %p206
      %p208 = scmp.ne.s32.totalorder %s194, %s195
      %p209 = scmp.eq.s32.totalorder %s93, 3
      %p210 = por %p208, %p209
      %p212 = scmp.ne.s32.totalorder %s195, %s211
      %p213 = scmp.eq.s32.totalorder %s93, 0
      %p214 = por %p212, %p213
      %s216 = sadd.s32 %s215, 1
      %p219 = scmp.eq.s32.totalorder %s87, 3
      %p220 = scmp.ne.s32.totalorder %s215, %s217
      %p221 = scmp.eq.s32.totalorder %s87, 0
      %p222 = por %p220, %p221
      %p223 = scmp.ne.s32.totalorder %s215, %s217
      %p224 = scmp.eq.s32.totalorder %s92, 3
      %p225 = por %p223, %p224
      %p226 = scmp.ne.s32.totalorder %s217, %s218
      %p227 = scmp.eq.s32.totalorder %s92, 0
      %p228 = por %p226, %p227
      %p229 = scmp.ne.s32.totalorder %s217, %s218
      %p230 = scmp.eq.s32.totalorder %s93, 3
      %p231 = por %p229, %p230
      %p233 = scmp.ne.s32.totalorder %s218, %s232
      %p234 = scmp.eq.s32.totalorder %s93, 0
      %p235 = por %p233, %p234
      %s237 = sadd.s32 %s236, 1
      %p240 = scmp.eq.s32.totalorder %s87, 3
      %p241 = scmp.ne.s32.totalorder %s236, %s238
      %p242 = scmp.eq.s32.totalorder %s87, 0
      %p243 = por %p241, %p242
      %p244 = scmp.ne.s32.totalorder %s236, %s238
      %p245 = scmp.eq.s32.totalorder %s92, 3
      %p246 = por %p244, %p245
      %p247 = scmp.ne.s32.totalorder %s238, %s239
      %p248 = scmp.eq.s32.totalorder %s92, 0
      %p249 = por %p247, %p248
      %p250 = scmp.ne.s32.totalorder %s238, %s239
      %p251 = scmp.eq.s32.totalorder %s93, 3
      %p252 = por %p250, %p251
      %p254 = scmp.ne.s32.totalorder %s239, %s253
      %p255 = scmp.eq.s32.totalorder %s93, 0
      %p256 = por %p254, %p255
      %s257 = ssub.s32 %s87, %s94
      %p258 = scmp.eq.s32.totalorder %s257, 0
      %s260 = sadd.s32 %s259, 1
      %s261 = scalar_select %p258, %s259, %s260
      %p264 = pneg %p258
      %p265 = scmp.eq.s32.totalorder %s87, 3
      %p266 = por %p264, %p265
      %p267 = scmp.ne.s32.totalorder %s259, %s262
      %p268 = scmp.eq.s32.totalorder %s87, 0
      %p269 = por %p267, %p268
      %p270 = scmp.ne.s32.totalorder %s259, %s262
      %p271 = scmp.eq.s32.totalorder %s92, 3
      %p272 = por %p270, %p271
      %p273 = scmp.ne.s32.totalorder %s262, %s263
      %p274 = scmp.eq.s32.totalorder %s92, 0
      %p275 = por %p273, %p274
      %p276 = scmp.ne.s32.totalorder %s262, %s263
      %p277 = scmp.eq.s32.totalorder %s93, 3
      %p278 = por %p276, %p277
      %p280 = scmp.ne.s32.totalorder %s263, %s279
      %p281 = scmp.eq.s32.totalorder %s93, 0
      %p282 = por %p280, %p281
      %s283 = ssub.s32 %s87, %s94
      %p284 = scmp.eq.s32.totalorder %s283, 0
      %s286 = sadd.s32 %s285, 1
      %s287 = scalar_select %p284, %s285, %s286
      %p290 = pneg %p284
      %p291 = scmp.eq.s32.totalorder %s87, 3
      %p292 = por %p290, %p291
      %p293 = scmp.ne.s32.totalorder %s285, %s288
      %p294 = scmp.eq.s32.totalorder %s87, 0
      %p295 = por %p293, %p294
      %p296 = scmp.ne.s32.totalorder %s285, %s288
      %p297 = scmp.eq.s32.totalorder %s92, 3
      %p298 = por %p296, %p297
      %p299 = scmp.ne.s32.totalorder %s288, %s289
      %p300 = scmp.eq.s32.totalorder %s92, 0
      %p301 = por %p299, %p300
      %p302 = scmp.ne.s32.totalorder %s288, %s289
      %p303 = scmp.eq.s32.totalorder %s93, 3
      %p304 = por %p302, %p303
      %p306 = scmp.ne.s32.totalorder %s289, %s305
      %p307 = scmp.eq.s32.totalorder %s93, 0
      %p308 = por %p306, %p307
      %s310 = sadd.s32 %s309, 1
      %p313 = scmp.eq.s32.totalorder %s87, 3
      %p314 = scmp.ne.s32.totalorder %s309, %s311
      %p315 = scmp.eq.s32.totalorder %s87, 0
      %p316 = por %p314, %p315
      %p317 = scmp.ne.s32.totalorder %s309, %s311
      %p318 = scmp.eq.s32.totalorder %s92, 3
      %p319 = por %p317, %p318
      %p320 = scmp.ne.s32.totalorder %s311, %s312
      %p321 = scmp.eq.s32.totalorder %s92, 0
      %p322 = por %p320, %p321
      %p323 = scmp.ne.s32.totalorder %s311, %s312
      %p324 = scmp.eq.s32.totalorder %s93, 3
      %p325 = por %p323, %p324
      %p327 = scmp.ne.s32.totalorder %s312, %s326
      %p328 = scmp.eq.s32.totalorder %s93, 0
      %p329 = por %p327, %p328
      %s331 = sadd.s32 %s330, 1
      %p334 = scmp.eq.s32.totalorder %s87, 3
      %p335 = scmp.ne.s32.totalorder %s330, %s332
      %p336 = scmp.eq.s32.totalorder %s87, 0
      %p337 = por %p335, %p336
      %p338 = scmp.ne.s32.totalorder %s330, %s332
      %p339 = scmp.eq.s32.totalorder %s92, 3
      %p340 = por %p338, %p339
      %p341 = scmp.ne.s32.totalorder %s332, %s333
      %p342 = scmp.eq.s32.totalorder %s92, 0
      %p343 = por %p341, %p342
      %p344 = scmp.ne.s32.totalorder %s332, %s333
      %p345 = scmp.eq.s32.totalorder %s93, 3
      %p346 = por %p344, %p345
      %p348 = scmp.ne.s32.totalorder %s333, %s347
      %p349 = scmp.eq.s32.totalorder %s93, 0
      %p350 = por %p348, %p349
      %s351 = ssub.s32 %s87, %s94
      %p352 = scmp.eq.s32.totalorder %s351, 0
      %s354 = sadd.s32 %s353, 1
      %s355 = scalar_select %p352, %s353, %s354
      %p358 = pneg %p352
      %p359 = scmp.eq.s32.totalorder %s87, 3
      %p360 = por %p358, %p359
      %p361 = scmp.ne.s32.totalorder %s353, %s356
      %p362 = scmp.eq.s32.totalorder %s87, 0
      %p363 = por %p361, %p362
      %p364 = scmp.ne.s32.totalorder %s353, %s356
      %p365 = scmp.eq.s32.totalorder %s92, 3
      %p366 = por %p364, %p365
      %p367 = scmp.ne.s32.totalorder %s356, %s357
      %p368 = scmp.eq.s32.totalorder %s92, 0
      %p369 = por %p367, %p368
      %p370 = scmp.ne.s32.totalorder %s356, %s357
      %p371 = scmp.eq.s32.totalorder %s93, 3
      %p372 = por %p370, %p371
      %p374 = scmp.ne.s32.totalorder %s357, %s373
      %p375 = scmp.eq.s32.totalorder %s93, 0
      %p376 = por %p374, %p375
      %s377 = ssub.s32 %s87, %s94
      %p378 = scmp.eq.s32.totalorder %s377, 0
      %s380 = sadd.s32 %s379, 1
      %s381 = scalar_select %p378, %s379, %s380
      %p384 = pneg %p378
      %p385 = scmp.eq.s32.totalorder %s87, 3
      %p386 = por %p384, %p385
      %p387 = scmp.ne.s32.totalorder %s379, %s382
      %p388 = scmp.eq.s32.totalorder %s87, 0
      %p389 = por %p387, %p388
      %p390 = scmp.ne.s32.totalorder %s379, %s382
      %p391 = scmp.eq.s32.totalorder %s92, 3
      %p392 = por %p390, %p391
      %p393 = scmp.ne.s32.totalorder %s382, %s383
      %p394 = scmp.eq.s32.totalorder %s92, 0
      %p395 = por %p393, %p394
      %p396 = scmp.ne.s32.totalorder %s382, %s383
      %p397 = scmp.eq.s32.totalorder %s93, 3
      %p398 = por %p396, %p397
      %p400 = scmp.ne.s32.totalorder %s383, %s399
      %p401 = scmp.eq.s32.totalorder %s93, 0
      %p402 = por %p400, %p401
      %s404 = sadd.s32 %s403, 1
      %p407 = scmp.eq.s32.totalorder %s87, 3
      %p408 = scmp.ne.s32.totalorder %s403, %s405
      %p409 = scmp.eq.s32.totalorder %s87, 0
      %p410 = por %p408, %p409
      %p411 = scmp.ne.s32.totalorder %s403, %s405
      %p412 = scmp.eq.s32.totalorder %s92, 3
      %p413 = por %p411, %p412
      %p414 = scmp.ne.s32.totalorder %s405, %s406
      %p415 = scmp.eq.s32.totalorder %s92, 0
      %p416 = por %p414, %p415
      %p417 = scmp.ne.s32.totalorder %s405, %s406
      %p418 = scmp.eq.s32.totalorder %s93, 3
      %p419 = por %p417, %p418
      %p421 = scmp.ne.s32.totalorder %s406, %s420
      %p422 = scmp.eq.s32.totalorder %s93, 0
      %p423 = por %p421, %p422
      %s425 = sadd.s32 %s424, 1
      %p428 = scmp.eq.s32.totalorder %s87, 3
      %p429 = scmp.ne.s32.totalorder %s424, %s426
      %p430 = scmp.eq.s32.totalorder %s87, 0
      %p431 = por %p429, %p430
      %p432 = scmp.ne.s32.totalorder %s424, %s426
      %p433 = scmp.eq.s32.totalorder %s92, 3
      %p434 = por %p432, %p433
      %p435 = scmp.ne.s32.totalorder %s426, %s427
      %p436 = scmp.eq.s32.totalorder %s92, 0
      %p437 = por %p435, %p436
      %p438 = scmp.ne.s32.totalorder %s426, %s427
      %p439 = scmp.eq.s32.totalorder %s93, 3
      %p440 = por %p438, %p439
      %p442 = scmp.ne.s32.totalorder %s427, %s441
      %p443 = scmp.eq.s32.totalorder %s93, 0
      %p444 = por %p442, %p443
      %s445 = ssub.s32 %s87, %s94
      %p446 = scmp.eq.s32.totalorder %s445, 0
      %s448 = sadd.s32 %s447, 1
      %s449 = scalar_select %p446, %s447, %s448
      %p452 = pneg %p446
      %p453 = scmp.eq.s32.totalorder %s87, 3
      %p454 = por %p452, %p453
      %p455 = scmp.ne.s32.totalorder %s447, %s450
      %p456 = scmp.eq.s32.totalorder %s87, 0
      %p457 = por %p455, %p456
      %p458 = scmp.ne.s32.totalorder %s447, %s450
      %p459 = scmp.eq.s32.totalorder %s92, 3
      %p460 = por %p458, %p459
      %p461 = scmp.ne.s32.totalorder %s450, %s451
      %p462 = scmp.eq.s32.totalorder %s92, 0
      %p463 = por %p461, %p462
      %p464 = scmp.ne.s32.totalorder %s450, %s451
      %p465 = scmp.eq.s32.totalorder %s93, 3
      %p466 = por %p464, %p465
      %p468 = scmp.ne.s32.totalorder %s451, %s467
      %p469 = scmp.eq.s32.totalorder %s93, 0
      %p470 = por %p468, %p469
      %s471 = ssub.s32 %s87, %s94
      %p472 = scmp.eq.s32.totalorder %s471, 0
      %s474 = sadd.s32 %s473, 1
      %s475 = scalar_select %p472, %s473, %s474
      %p478 = pneg %p472
      %p479 = scmp.eq.s32.totalorder %s87, 3
      %p480 = por %p478, %p479
      %p481 = scmp.ne.s32.totalorder %s473, %s476
      %p482 = scmp.eq.s32.totalorder %s87, 0
      %p483 = por %p481, %p482
      %p484 = scmp.ne.s32.totalorder %s473, %s476
      %p485 = scmp.eq.s32.totalorder %s92, 3
      %p486 = por %p484, %p485
      %p487 = scmp.ne.s32.totalorder %s476, %s477
      %p488 = scmp.eq.s32.totalorder %s92, 0
      %p489 = por %p487, %p488
      %p490 = scmp.ne.s32.totalorder %s476, %s477
      %p491 = scmp.eq.s32.totalorder %s93, 3
      %p492 = por %p490, %p491
      %p494 = scmp.ne.s32.totalorder %s477, %s493
      %p495 = scmp.eq.s32.totalorder %s93, 0
      %p496 = por %p494, %p495
      %s498 = sadd.s32 %s497, 1
      %p501 = scmp.eq.s32.totalorder %s87, 3
      %p502 = scmp.ne.s32.totalorder %s497, %s499
      %p503 = scmp.eq.s32.totalorder %s87, 0
      %p504 = por %p502, %p503
      %p505 = scmp.ne.s32.totalorder %s497, %s499
      %p506 = scmp.eq.s32.totalorder %s92, 3
      %p507 = por %p505, %p506
      %p508 = scmp.ne.s32.totalorder %s499, %s500
      %p509 = scmp.eq.s32.totalorder %s92, 0
      %p510 = por %p508, %p509
      %p511 = scmp.ne.s32.totalorder %s499, %s500
      %p512 = scmp.eq.s32.totalorder %s93, 3
      %p513 = por %p511, %p512
      %p515 = scmp.ne.s32.totalorder %s500, %s514
      %p516 = scmp.eq.s32.totalorder %s93, 0
      %p517 = por %p515, %p516
      %s519 = sadd.s32 %s518, 1
      %p522 = scmp.eq.s32.totalorder %s87, 3
      %p523 = scmp.ne.s32.totalorder %s518, %s520
      %p524 = scmp.eq.s32.totalorder %s87, 0
      %p525 = por %p523, %p524
      %p526 = scmp.ne.s32.totalorder %s518, %s520
      %p527 = scmp.eq.s32.totalorder %s92, 3
      %p528 = por %p526, %p527
      %p529 = scmp.ne.s32.totalorder %s520, %s521
      %p530 = scmp.eq.s32.totalorder %s92, 0
      %p531 = por %p529, %p530
      %p532 = scmp.ne.s32.totalorder %s520, %s521
      %p533 = scmp.eq.s32.totalorder %s93, 3
      %p534 = por %p532, %p533
      %p536 = scmp.ne.s32.totalorder %s521, %s535
      %p537 = scmp.eq.s32.totalorder %s93, 0
      %p538 = por %p536, %p537
      %s539 = ssub.s32 %s87, %s94
      %p540 = scmp.eq.s32.totalorder %s539, 0
      %s542 = sadd.s32 %s541, 1
      %s543 = scalar_select %p540, %s541, %s542
      %p546 = pneg %p540
      %p547 = scmp.eq.s32.totalorder %s87, 3
      %p548 = por %p546, %p547
      %p549 = scmp.ne.s32.totalorder %s541, %s544
      %p550 = scmp.eq.s32.totalorder %s87, 0
      %p551 = por %p549, %p550
      %p552 = scmp.ne.s32.totalorder %s541, %s544
      %p553 = scmp.eq.s32.totalorder %s92, 3
      %p554 = por %p552, %p553
      %p555 = scmp.ne.s32.totalorder %s544, %s545
      %p556 = scmp.eq.s32.totalorder %s92, 0
      %p557 = por %p555, %p556
      %p558 = scmp.ne.s32.totalorder %s544, %s545
      %p559 = scmp.eq.s32.totalorder %s93, 3
      %p560 = por %p558, %p559
      %p562 = scmp.ne.s32.totalorder %s545, %s561
      %p563 = scmp.eq.s32.totalorder %s93, 0
      %p564 = por %p562, %p563
      %s565 = ssub.s32 %s87, %s94
      %p566 = scmp.eq.s32.totalorder %s565, 0
      %s568 = sadd.s32 %s567, 1
      %s569 = scalar_select %p566, %s567, %s568
      %p572 = pneg %p566
      %p573 = scmp.eq.s32.totalorder %s87, 3
      %p574 = por %p572, %p573
      %p575 = scmp.ne.s32.totalorder %s567, %s570
      %p576 = scmp.eq.s32.totalorder %s87, 0
      %p577 = por %p575, %p576
      %p578 = scmp.ne.s32.totalorder %s567, %s570
      %p579 = scmp.eq.s32.totalorder %s92, 3
      %p580 = por %p578, %p579
      %p581 = scmp.ne.s32.totalorder %s570, %s571
      %p582 = scmp.eq.s32.totalorder %s92, 0
      %p583 = por %p581, %p582
      %p584 = scmp.ne.s32.totalorder %s570, %s571
      %p585 = scmp.eq.s32.totalorder %s93, 3
      %p586 = por %p584, %p585
      %p588 = scmp.ne.s32.totalorder %s571, %s587
      %p589 = scmp.eq.s32.totalorder %s93, 0
      %p590 = por %p588, %p589
      %s592 = sadd.s32 %s591, 1
      %p595 = scmp.eq.s32.totalorder %s87, 3
      %p596 = scmp.ne.s32.totalorder %s591, %s593
      %p597 = scmp.eq.s32.totalorder %s87, 0
      %p598 = por %p596, %p597
      %p599 = scmp.ne.s32.totalorder %s591, %s593
      %p600 = scmp.eq.s32.totalorder %s92, 3
      %p601 = por %p599, %p600
      %p602 = scmp.ne.s32.totalorder %s593, %s594
      %p603 = scmp.eq.s32.totalorder %s92, 0
      %p604 = por %p602, %p603
      %p605 = scmp.ne.s32.totalorder %s593, %s594
      %p606 = scmp.eq.s32.totalorder %s93, 3
      %p607 = por %p605, %p606
      %p609 = scmp.ne.s32.totalorder %s594, %s608
      %p610 = scmp.eq.s32.totalorder %s93, 0
      %p611 = por %p609, %p610
      %s612 = ssub.s32 %s87, %s94
      %p613 = scmp.eq.s32.totalorder %s612, 0
      %s615 = sadd.s32 %s614, 1
      %s616 = scalar_select %p613, %s614, %s615
      %p619 = pneg %p613
      %p620 = scmp.eq.s32.totalorder %s87, 3
      %p621 = por %p619, %p620
      %p622 = scmp.ne.s32.totalorder %s614, %s617
      %p623 = scmp.eq.s32.totalorder %s87, 0
      %p624 = por %p622, %p623
      %p625 = scmp.ne.s32.totalorder %s614, %s617
      %p626 = scmp.eq.s32.totalorder %s92, 3
      %p627 = por %p625, %p626
      %p628 = scmp.ne.s32.totalorder %s617, %s618
      %p629 = scmp.eq.s32.totalorder %s92, 0
      %p630 = por %p628, %p629
      %p631 = scmp.ne.s32.totalorder %s617, %s618
      %p632 = scmp.eq.s32.totalorder %s93, 3
      %p633 = por %p631, %p632
      %p635 = scmp.ne.s32.totalorder %s618, %s634
      %p636 = scmp.eq.s32.totalorder %s93, 0
      %p637 = por %p635, %p636
      %s638 = ssub.s32 %s87, %s94
      %p639 = scmp.eq.s32.totalorder %s638, 0
      %s641 = sadd.s32 %s640, 1
      %s642 = scalar_select %p639, %s640, %s641
      %p645 = pneg %p639
      %p646 = scmp.eq.s32.totalorder %s87, 3
      %p647 = por %p645, %p646
      %p648 = scmp.ne.s32.totalorder %s640, %s643
      %p649 = scmp.eq.s32.totalorder %s87, 0
      %p650 = por %p648, %p649
      %p651 = scmp.ne.s32.totalorder %s640, %s643
      %p652 = scmp.eq.s32.totalorder %s92, 3
      %p653 = por %p651, %p652
      %p654 = scmp.ne.s32.totalorder %s643, %s644
      %p655 = scmp.eq.s32.totalorder %s92, 0
      %p656 = por %p654, %p655
      %p657 = scmp.ne.s32.totalorder %s643, %s644
      %p658 = scmp.eq.s32.totalorder %s93, 3
      %p659 = por %p657, %p658
      %p661 = scmp.ne.s32.totalorder %s644, %s660
      %p662 = scmp.eq.s32.totalorder %s93, 0
      %p663 = por %p661, %p662
      %s665 = sadd.s32 %s664, 1
      %p668 = scmp.eq.s32.totalorder %s87, 3
      %p669 = scmp.ne.s32.totalorder %s664, %s666
      %p670 = scmp.eq.s32.totalorder %s87, 0
      %p671 = por %p669, %p670
      %p672 = scmp.ne.s32.totalorder %s664, %s666
      %p673 = scmp.eq.s32.totalorder %s92, 3
      %p674 = por %p672, %p673
      %p675 = scmp.ne.s32.totalorder %s666, %s667
      %p676 = scmp.eq.s32.totalorder %s92, 0
      %p677 = por %p675, %p676
      %p678 = scmp.ne.s32.totalorder %s666, %s667
      %p679 = scmp.eq.s32.totalorder %s93, 3
      %p680 = por %p678, %p679
      %p682 = scmp.ne.s32.totalorder %s667, %s681
      %p683 = scmp.eq.s32.totalorder %s93, 0
      %p684 = por %p682, %p683
      %s686 = sadd.s32 %s685, 1
      %p689 = scmp.eq.s32.totalorder %s87, 3
      %p690 = scmp.ne.s32.totalorder %s685, %s687
      %p691 = scmp.eq.s32.totalorder %s87, 0
      %p692 = por %p690, %p691
      %p693 = scmp.ne.s32.totalorder %s685, %s687
      %p694 = scmp.eq.s32.totalorder %s92, 3
      %p695 = por %p693, %p694
      %p696 = scmp.ne.s32.totalorder %s687, %s688
      %p697 = scmp.eq.s32.totalorder %s92, 0
      %p698 = por %p696, %p697
      %p699 = scmp.ne.s32.totalorder %s687, %s688
      %p700 = scmp.eq.s32.totalorder %s93, 3
      %p701 = por %p699, %p700
      %p703 = scmp.ne.s32.totalorder %s688, %s702
      %p704 = scmp.eq.s32.totalorder %s93, 0
      %p705 = por %p703, %p704
      %s706 = ssub.s32 %s87, %s94
      %p707 = scmp.eq.s32.totalorder %s706, 0
      %s709 = sadd.s32 %s708, 1
      %s710 = scalar_select %p707, %s708, %s709
      %p713 = pneg %p707
      %p714 = scmp.eq.s32.totalorder %s87, 3
      %p715 = por %p713, %p714
      %p716 = scmp.ne.s32.totalorder %s708, %s711
      %p717 = scmp.eq.s32.totalorder %s87, 0
      %p718 = por %p716, %p717
      %p719 = scmp.ne.s32.totalorder %s708, %s711
      %p720 = scmp.eq.s32.totalorder %s92, 3
      %p721 = por %p719, %p720
      %p722 = scmp.ne.s32.totalorder %s711, %s712
      %p723 = scmp.eq.s32.totalorder %s92, 0
      %p724 = por %p722, %p723
      %p725 = scmp.ne.s32.totalorder %s711, %s712
      %p726 = scmp.eq.s32.totalorder %s93, 3
      %p727 = por %p725, %p726
      %p729 = scmp.ne.s32.totalorder %s712, %s728
      %p730 = scmp.eq.s32.totalorder %s93, 0
      %p731 = por %p729, %p730
      %s732 = ssub.s32 %s87, %s94
      %p733 = scmp.eq.s32.totalorder %s732, 0
      %s735 = sadd.s32 %s734, 1
      %s736 = scalar_select %p733, %s734, %s735
      %p739 = pneg %p733
      %p740 = scmp.eq.s32.totalorder %s87, 3
      %p741 = por %p739, %p740
      %p742 = scmp.ne.s32.totalorder %s734, %s737
      %p743 = scmp.eq.s32.totalorder %s87, 0
      %p744 = por %p742, %p743
      %p745 = scmp.ne.s32.totalorder %s734, %s737
      %p746 = scmp.eq.s32.totalorder %s92, 3
      %p747 = por %p745, %p746
      %p748 = scmp.ne.s32.totalorder %s737, %s738
      %p749 = scmp.eq.s32.totalorder %s92, 0
      %p750 = por %p748, %p749
      %p751 = scmp.ne.s32.totalorder %s737, %s738
      %p752 = scmp.eq.s32.totalorder %s93, 3
      %p753 = por %p751, %p752
      %p755 = scmp.ne.s32.totalorder %s738, %s754
      %p756 = scmp.eq.s32.totalorder %s93, 0
      %p757 = por %p755, %p756
      %s759 = sadd.s32 %s758, 1
      %p762 = scmp.eq.s32.totalorder %s87, 3
      %p763 = scmp.ne.s32.totalorder %s758, %s760
      %p764 = scmp.eq.s32.totalorder %s87, 0
      %p765 = por %p763, %p764
      %p766 = scmp.ne.s32.totalorder %s758, %s760
      %p767 = scmp.eq.s32.totalorder %s92, 3
      %p768 = por %p766, %p767
      %p769 = scmp.ne.s32.totalorder %s760, %s761
      %p770 = scmp.eq.s32.totalorder %s92, 0
      %p771 = por %p769, %p770
      %p772 = scmp.ne.s32.totalorder %s760, %s761
      %p773 = scmp.eq.s32.totalorder %s93, 3
      %p774 = por %p772, %p773
      %p776 = scmp.ne.s32.totalorder %s761, %s775
      %p777 = scmp.eq.s32.totalorder %s93, 0
      %p778 = por %p776, %p777
      %s780 = sadd.s32 %s779, 1
      %p783 = scmp.eq.s32.totalorder %s87, 3
      %p784 = scmp.ne.s32.totalorder %s779, %s781
      %p785 = scmp.eq.s32.totalorder %s87, 0
      %p786 = por %p784, %p785
      %p787 = scmp.ne.s32.totalorder %s779, %s781
      %p788 = scmp.eq.s32.totalorder %s92, 3
      %p789 = por %p787, %p788
      %p790 = scmp.ne.s32.totalorder %s781, %s782
      %p791 = scmp.eq.s32.totalorder %s92, 0
      %p792 = por %p790, %p791
      %p793 = scmp.ne.s32.totalorder %s781, %s782
      %p794 = scmp.eq.s32.totalorder %s93, 3
      %p795 = por %p793, %p794
      %p797 = scmp.ne.s32.totalorder %s782, %s796
      %p798 = scmp.eq.s32.totalorder %s93, 0
      %p799 = por %p797, %p798
      %s800 = ssub.s32 %s87, %s94
      %p801 = scmp.eq.s32.totalorder %s800, 0
      %s803 = sadd.s32 %s802, 1
      %s804 = scalar_select %p801, %s802, %s803
      %p807 = pneg %p801
      %p808 = scmp.eq.s32.totalorder %s87, 3
      %p809 = por %p807, %p808
      %p810 = scmp.ne.s32.totalorder %s802, %s805
      %p811 = scmp.eq.s32.totalorder %s87, 0
      %p812 = por %p810, %p811
      %p813 = scmp.ne.s32.totalorder %s802, %s805
      %p814 = scmp.eq.s32.totalorder %s92, 3
      %p815 = por %p813, %p814
      %p816 = scmp.ne.s32.totalorder %s805, %s806
      %p817 = scmp.eq.s32.totalorder %s92, 0
      %p818 = por %p816, %p817
      %p819 = scmp.ne.s32.totalorder %s805, %s806
      %p820 = scmp.eq.s32.totalorder %s93, 3
      %p821 = por %p819, %p820
      %p823 = scmp.ne.s32.totalorder %s806, %s822
      %p824 = scmp.eq.s32.totalorder %s93, 0
      %p825 = por %p823, %p824
      %s826 = ssub.s32 %s87, %s94
      %p827 = scmp.eq.s32.totalorder %s826, 0
      %s829 = sadd.s32 %s828, 1
      %s830 = scalar_select %p827, %s828, %s829
      %p833 = pneg %p827
      %p834 = scmp.eq.s32.totalorder %s87, 3
      %p835 = por %p833, %p834
      %p836 = scmp.ne.s32.totalorder %s828, %s831
      %p837 = scmp.eq.s32.totalorder %s87, 0
      %p838 = por %p836, %p837
      %p839 = scmp.ne.s32.totalorder %s828, %s831
      %p840 = scmp.eq.s32.totalorder %s92, 3
      %p841 = por %p839, %p840
      %p842 = scmp.ne.s32.totalorder %s831, %s832
      %p843 = scmp.eq.s32.totalorder %s92, 0
      %p844 = por %p842, %p843
      %p845 = scmp.ne.s32.totalorder %s831, %s832
      %p846 = scmp.eq.s32.totalorder %s93, 3
      %p847 = por %p845, %p846
      %p849 = scmp.ne.s32.totalorder %s832, %s848
      %p850 = scmp.eq.s32.totalorder %s93, 0
      %p851 = por %p849, %p850
      %s853 = sadd.s32 %s852, 1
      %p856 = scmp.eq.s32.totalorder %s87, 3
      %p857 = scmp.ne.s32.totalorder %s852, %s854
      %p858 = scmp.eq.s32.totalorder %s87, 0
      %p859 = por %p857, %p858
      %p860 = scmp.ne.s32.totalorder %s852, %s854
      %p861 = scmp.eq.s32.totalorder %s92, 3
      %p862 = por %p860, %p861
      %p863 = scmp.ne.s32.totalorder %s854, %s855
      %p864 = scmp.eq.s32.totalorder %s92, 0
      %p865 = por %p863, %p864
      %p866 = scmp.ne.s32.totalorder %s854, %s855
      %p867 = scmp.eq.s32.totalorder %s93, 3
      %p868 = por %p866, %p867
      %p870 = scmp.ne.s32.totalorder %s855, %s869
      %p871 = scmp.eq.s32.totalorder %s93, 0
      %p872 = por %p870, %p871
      %s874 = sadd.s32 %s873, 1
      %p877 = scmp.eq.s32.totalorder %s87, 3
      %p878 = scmp.ne.s32.totalorder %s873, %s875
      %p879 = scmp.eq.s32.totalorder %s87, 0
      %p880 = por %p878, %p879
      %p881 = scmp.ne.s32.totalorder %s873, %s875
      %p882 = scmp.eq.s32.totalorder %s92, 3
      %p883 = por %p881, %p882
      %p884 = scmp.ne.s32.totalorder %s875, %s876
      %p885 = scmp.eq.s32.totalorder %s92, 0
      %p886 = por %p884, %p885
      %p887 = scmp.ne.s32.totalorder %s875, %s876
      %p888 = scmp.eq.s32.totalorder %s93, 3
      %p889 = por %p887, %p888
      %p891 = scmp.ne.s32.totalorder %s876, %s890
      %p892 = scmp.eq.s32.totalorder %s93, 0
      %p893 = por %p891, %p892
      %s894 = ssub.s32 %s87, %s94
      %p895 = scmp.eq.s32.totalorder %s894, 0
      %s897 = sadd.s32 %s896, 1
      %s898 = scalar_select %p895, %s896, %s897
      %p901 = pneg %p895
      %p902 = scmp.eq.s32.totalorder %s87, 3
      %p903 = por %p901, %p902
      %p904 = scmp.ne.s32.totalorder %s896, %s899
      %p905 = scmp.eq.s32.totalorder %s87, 0
      %p906 = por %p904, %p905
      %p907 = scmp.ne.s32.totalorder %s896, %s899
      %p908 = scmp.eq.s32.totalorder %s92, 3
      %p909 = por %p907, %p908
      %p910 = scmp.ne.s32.totalorder %s899, %s900
      %p911 = scmp.eq.s32.totalorder %s92, 0
      %p912 = por %p910, %p911
      %p913 = scmp.ne.s32.totalorder %s899, %s900
      %p914 = scmp.eq.s32.totalorder %s93, 3
      %p915 = por %p913, %p914
      %p917 = scmp.ne.s32.totalorder %s900, %s916
      %p918 = scmp.eq.s32.totalorder %s93, 0
      %p919 = por %p917, %p918
      %s920 = ssub.s32 %s87, %s94
      %p921 = scmp.eq.s32.totalorder %s920, 0
      %s923 = sadd.s32 %s922, 1
      %s924 = scalar_select %p921, %s922, %s923
      %p927 = pneg %p921
      %p928 = scmp.eq.s32.totalorder %s87, 3
      %p929 = por %p927, %p928
      %p930 = scmp.ne.s32.totalorder %s922, %s925
      %p931 = scmp.eq.s32.totalorder %s87, 0
      %p932 = por %p930, %p931
      %p933 = scmp.ne.s32.totalorder %s922, %s925
      %p934 = scmp.eq.s32.totalorder %s92, 3
      %p935 = por %p933, %p934
      %p936 = scmp.ne.s32.totalorder %s925, %s926
      %p937 = scmp.eq.s32.totalorder %s92, 0
      %p938 = por %p936, %p937
      %p939 = scmp.ne.s32.totalorder %s925, %s926
      %p940 = scmp.eq.s32.totalorder %s93, 3
      %p941 = por %p939, %p940
      %p943 = scmp.ne.s32.totalorder %s926, %s942
      %p944 = scmp.eq.s32.totalorder %s93, 0
      %p945 = por %p943, %p944
      %s947 = sadd.s32 %s946, 1
      %p950 = scmp.eq.s32.totalorder %s87, 3
      %p951 = scmp.ne.s32.totalorder %s946, %s948
      %p952 = scmp.eq.s32.totalorder %s87, 0
      %p953 = por %p951, %p952
      %p954 = scmp.ne.s32.totalorder %s946, %s948
      %p955 = scmp.eq.s32.totalorder %s92, 3
      %p956 = por %p954, %p955
      %p957 = scmp.ne.s32.totalorder %s948, %s949
      %p958 = scmp.eq.s32.totalorder %s92, 0
      %p959 = por %p957, %p958
      %p960 = scmp.ne.s32.totalorder %s948, %s949
      %p961 = scmp.eq.s32.totalorder %s93, 3
      %p962 = por %p960, %p961
      %p964 = scmp.ne.s32.totalorder %s949, %s963
      %p965 = scmp.eq.s32.totalorder %s93, 0
      %p966 = por %p964, %p965
      %s968 = sadd.s32 %s967, 1
      %p971 = scmp.eq.s32.totalorder %s87, 3
      %p972 = scmp.ne.s32.totalorder %s967, %s969
      %p973 = scmp.eq.s32.totalorder %s87, 0
      %p974 = por %p972, %p973
      %p975 = scmp.ne.s32.totalorder %s967, %s969
      %p976 = scmp.eq.s32.totalorder %s92, 3
      %p977 = por %p975, %p976
      %p978 = scmp.ne.s32.totalorder %s969, %s970
      %p979 = scmp.eq.s32.totalorder %s92, 0
      %p980 = por %p978, %p979
      %p981 = scmp.ne.s32.totalorder %s969, %s970
      %p982 = scmp.eq.s32.totalorder %s93, 3
      %p983 = por %p981, %p982
      %p985 = scmp.ne.s32.totalorder %s970, %s984
      %p986 = scmp.eq.s32.totalorder %s93, 0
      %p987 = por %p985, %p986
      %s988 = ssub.s32 %s87, %s94
      %p989 = scmp.eq.s32.totalorder %s988, 0
      %s991 = sadd.s32 %s990, 1
      %s992 = scalar_select %p989, %s990, %s991
      %p995 = pneg %p989
      %p996 = scmp.eq.s32.totalorder %s87, 3
      %p997 = por %p995, %p996
      %p998 = scmp.ne.s32.totalorder %s990, %s993
      %p999 = scmp.eq.s32.totalorder %s87, 0
      %p1000 = por %p998, %p999
      %p1001 = scmp.ne.s32.totalorder %s990, %s993
      %p1002 = scmp.eq.s32.totalorder %s92, 3
      %p1003 = por %p1001, %p1002
      %p1004 = scmp.ne.s32.totalorder %s993, %s994
      %p1005 = scmp.eq.s32.totalorder %s92, 0
      %p1006 = por %p1004, %p1005
      %p1007 = scmp.ne.s32.totalorder %s993, %s994
      %p1008 = scmp.eq.s32.totalorder %s93, 3
      %p1009 = por %p1007, %p1008
      %p1011 = scmp.ne.s32.totalorder %s994, %s1010
      %p1012 = scmp.eq.s32.totalorder %s93, 0
      %p1013 = por %p1011, %p1012
      %s1014 = ssub.s32 %s87, %s94
      %p1015 = scmp.eq.s32.totalorder %s1014, 0
      %s1017 = sadd.s32 %s1016, 1
      %s1018 = scalar_select %p1015, %s1016, %s1017
      %p1021 = pneg %p1015
      %p1022 = scmp.eq.s32.totalorder %s87, 3
      %p1023 = por %p1021, %p1022
      %p1024 = scmp.ne.s32.totalorder %s1016, %s1019
      %p1025 = scmp.eq.s32.totalorder %s87, 0
      %p1026 = por %p1024, %p1025
      %p1027 = scmp.ne.s32.totalorder %s1016, %s1019
      %p1028 = scmp.eq.s32.totalorder %s92, 3
      %p1029 = por %p1027, %p1028
      %p1030 = scmp.ne.s32.totalorder %s1019, %s1020
      %p1031 = scmp.eq.s32.totalorder %s92, 0
      %p1032 = por %p1030, %p1031
      %p1033 = scmp.ne.s32.totalorder %s1019, %s1020
      %p1034 = scmp.eq.s32.totalorder %s93, 3
      %p1035 = por %p1033, %p1034
      %p1037 = scmp.ne.s32.totalorder %s1020, %s1036
      %p1038 = scmp.eq.s32.totalorder %s93, 0
      %p1039 = por %p1037, %p1038
      %s1040 = ssub.s32 %s87, %s94
      %p1041 = scmp.eq.s32.totalorder %s1040, 0
      %s1043 = sadd.s32 %s1042, 1
      %s1044 = scalar_select %p1041, %s1042, %s1043
      %p1047 = pneg %p1041
      %p1048 = scmp.eq.s32.totalorder %s87, 3
      %p1049 = por %p1047, %p1048
      %p1050 = scmp.ne.s32.totalorder %s1042, %s1045
      %p1051 = scmp.eq.s32.totalorder %s87, 0
      %p1052 = por %p1050, %p1051
      %p1053 = scmp.ne.s32.totalorder %s1042, %s1045
      %p1054 = scmp.eq.s32.totalorder %s92, 3
      %p1055 = por %p1053, %p1054
      %p1056 = scmp.ne.s32.totalorder %s1045, %s1046
      %p1057 = scmp.eq.s32.totalorder %s92, 0
      %p1058 = por %p1056, %p1057
      %p1059 = scmp.ne.s32.totalorder %s1045, %s1046
      %p1060 = scmp.eq.s32.totalorder %s93, 3
      %p1061 = por %p1059, %p1060
      %p1063 = scmp.ne.s32.totalorder %s1046, %s1062
      %p1064 = scmp.eq.s32.totalorder %s93, 0
      %p1065 = por %p1063, %p1064
      %p1066 = scmp.le.s32.totalorder 1, %s87
      %p1067 = scmp.lt.s32.totalorder %s87, 5
      %p1068 = pnand %p1066, %p1067
      %p1069 = pneg %p1068
      // Predicated region
      $region9: #{_lambda_.5} parent=5 // pred_check
        _
      $region10: #{_lambda_.5} parent=5 // pred_check_branch
        %1071 = sbr.rel (%p1068) target = $region12
      $region11: #{_lambda_.5} parent=5 // pred_region
        %s1072 = ssub.s32 %s87, 1
        // Predicated region
        $region13: #{_lambda_.5} parent=11 // pred_check
          %p1073 = pneg %p108
        $region14: #{_lambda_.5} parent=11 // pred_check_branch
          %1075 = sbr.rel (%p1073) target = $region16
        $region15: #{_lambda_.5} parent=11 // pred_region
          _
        $region16: #{_lambda_.5} parent=11 // pred_fallthru
          _
        // Predicated region
        $region17: #{_lambda_.5} parent=11 // pred_check
          %p1076 = pneg %p129
        $region18: #{_lambda_.5} parent=11 // pred_check_branch
          %1078 = sbr.rel (%p1076) target = $region20
        $region19: #{_lambda_.5} parent=11 // pred_region
          _
        $region20: #{_lambda_.5} parent=11 // pred_fallthru
          _
        // Predicated region
        $region21: #{_lambda_.5} parent=11 // pred_check
          %p1079 = pneg %p228
        $region22: #{_lambda_.5} parent=11 // pred_check_branch
          %1081 = sbr.rel (%p1079) target = $region24
        $region23: #{_lambda_.5} parent=11 // pred_region
          _
        $region24: #{_lambda_.5} parent=11 // pred_fallthru
          _
        // Predicated region
        $region25: #{_lambda_.5} parent=11 // pred_check
          %p1082 = pneg %p249
        $region26: #{_lambda_.5} parent=11 // pred_check_branch
          %1084 = sbr.rel (%p1082) target = $region28
        $region27: #{_lambda_.5} parent=11 // pred_region
          _
        $region28: #{_lambda_.5} parent=11 // pred_fallthru
          _
        // Predicated region
        $region29: #{_lambda_.5} parent=11 // pred_check
          %p1085 = pneg %p322
        $region30: #{_lambda_.5} parent=11 // pred_check_branch
          %1087 = sbr.rel (%p1085) target = $region32
        $region31: #{_lambda_.5} parent=11 // pred_region
          _
        $region32: #{_lambda_.5} parent=11 // pred_fallthru
          _
        // Predicated region
        $region33: #{_lambda_.5} parent=11 // pred_check
          %p1088 = pneg %p343
        $region34: #{_lambda_.5} parent=11 // pred_check_branch
          %1090 = sbr.rel (%p1088) target = $region36
        $region35: #{_lambda_.5} parent=11 // pred_region
          _
        $region36: #{_lambda_.5} parent=11 // pred_fallthru
          _
        // Predicated region
        $region37: #{_lambda_.5} parent=11 // pred_check
          %p1091 = pneg %p416
        $region38: #{_lambda_.5} parent=11 // pred_check_branch
          %1093 = sbr.rel (%p1091) target = $region40
        $region39: #{_lambda_.5} parent=11 // pred_region
          _
        $region40: #{_lambda_.5} parent=11 // pred_fallthru
          _
        // Predicated region
        $region41: #{_lambda_.5} parent=11 // pred_check
          %p1094 = pneg %p437
        $region42: #{_lambda_.5} parent=11 // pred_check_branch
          %1096 = sbr.rel (%p1094) target = $region44
        $region43: #{_lambda_.5} parent=11 // pred_region
          _
        $region44: #{_lambda_.5} parent=11 // pred_fallthru
          _
        // Predicated region
        $region45: #{_lambda_.5} parent=11 // pred_check
          %p1097 = pneg %p510
        $region46: #{_lambda_.5} parent=11 // pred_check_branch
          %1099 = sbr.rel (%p1097) target = $region48
        $region47: #{_lambda_.5} parent=11 // pred_region
          _
        $region48: #{_lambda_.5} parent=11 // pred_fallthru
          _
        // Predicated region
        $region49: #{_lambda_.5} parent=11 // pred_check
          %p1100 = pneg %p531
        $region50: #{_lambda_.5} parent=11 // pred_check_branch
          %1102 = sbr.rel (%p1100) target = $region52
        $region51: #{_lambda_.5} parent=11 // pred_region
          _
        $region52: #{_lambda_.5} parent=11 // pred_fallthru
          _
        // Predicated region
        $region53: #{_lambda_.5} parent=11 // pred_check
          %p1103 = pneg %p604
        $region54: #{_lambda_.5} parent=11 // pred_check_branch
          %1105 = sbr.rel (%p1103) target = $region56
        $region55: #{_lambda_.5} parent=11 // pred_region
          _
        $region56: #{_lambda_.5} parent=11 // pred_fallthru
          _
        // Predicated region
        $region57: #{_lambda_.5} parent=11 // pred_check
          %p1106 = pneg %p677
        $region58: #{_lambda_.5} parent=11 // pred_check_branch
          %1108 = sbr.rel (%p1106) target = $region60
        $region59: #{_lambda_.5} parent=11 // pred_region
          _
        $region60: #{_lambda_.5} parent=11 // pred_fallthru
          _
        // Predicated region
        $region61: #{_lambda_.5} parent=11 // pred_check
          %p1109 = pneg %p698
        $region62: #{_lambda_.5} parent=11 // pred_check_branch
          %1111 = sbr.rel (%p1109) target = $region64
        $region63: #{_lambda_.5} parent=11 // pred_region
          _
        $region64: #{_lambda_.5} parent=11 // pred_fallthru
          _
        // Predicated region
        $region65: #{_lambda_.5} parent=11 // pred_check
          %p1112 = pneg %p771
        $region66: #{_lambda_.5} parent=11 // pred_check_branch
          %1114 = sbr.rel (%p1112) target = $region68
        $region67: #{_lambda_.5} parent=11 // pred_region
          _
        $region68: #{_lambda_.5} parent=11 // pred_fallthru
          _
        // Predicated region
        $region69: #{_lambda_.5} parent=11 // pred_check
          %p1115 = pneg %p792
        $region70: #{_lambda_.5} parent=11 // pred_check_branch
          %1117 = sbr.rel (%p1115) target = $region72
        $region71: #{_lambda_.5} parent=11 // pred_region
          _
        $region72: #{_lambda_.5} parent=11 // pred_fallthru
          _
        // Predicated region
        $region73: #{_lambda_.5} parent=11 // pred_check
          %p1118 = pneg %p865
        $region74: #{_lambda_.5} parent=11 // pred_check_branch
          %1120 = sbr.rel (%p1118) target = $region76
        $region75: #{_lambda_.5} parent=11 // pred_region
          _
        $region76: #{_lambda_.5} parent=11 // pred_fallthru
          _
        // Predicated region
        $region77: #{_lambda_.5} parent=11 // pred_check
          %p1121 = pneg %p886
        $region78: #{_lambda_.5} parent=11 // pred_check_branch
          %1123 = sbr.rel (%p1121) target = $region80
        $region79: #{_lambda_.5} parent=11 // pred_region
          _
        $region80: #{_lambda_.5} parent=11 // pred_fallthru
          _
        // Predicated region
        $region81: #{_lambda_.5} parent=11 // pred_check
          %p1124 = pneg %p959
        $region82: #{_lambda_.5} parent=11 // pred_check_branch
          %1126 = sbr.rel (%p1124) target = $region84
        $region83: #{_lambda_.5} parent=11 // pred_region
          _
        $region84: #{_lambda_.5} parent=11 // pred_fallthru
          _
        // Predicated region
        $region85: #{_lambda_.5} parent=11 // pred_check
          %p1127 = pneg %p980
        $region86: #{_lambda_.5} parent=11 // pred_check_branch
          %1129 = sbr.rel (%p1127) target = $region88
        $region87: #{_lambda_.5} parent=11 // pred_region
          _
        $region88: #{_lambda_.5} parent=11 // pred_fallthru
          _
      $region12: #{_lambda_.5} parent=5 // pred_fallthru
        _
      %p1130 = scmp.lt.s32.totalorder %s87, 4
      // Predicated region
      $region89: #{_lambda_.5} parent=5 // pred_check
        %p1131 = pneg %p1130
      $region90: #{_lambda_.5} parent=5 // pred_check_branch
        %1133 = sbr.rel (%p1131) target = $region92
      $region91: #{_lambda_.5} parent=5 // pred_region
        // Predicated region
        $region93: #{_lambda_.5} parent=91 // pred_check
          %p1134 = pneg %p149
        $region94: #{_lambda_.5} parent=91 // pred_check_branch
          %1136 = sbr.rel (%p1134) target = $region96
        $region95: #{_lambda_.5} parent=91 // pred_region
          %s1137 = smul.u32 2, %s87
          %p1138 = scmp.lt.s32.totalorder %s1137, 7
          %s1139 = scalar_select %p1138, %s1137, 7
          %s1140 = smul.addr %s1139, 2
          %s1141 = smul.addr %s1140, 8
          %s1142 = scalar_lea.vmem %s5, %s1141
          %s1143 = smul.u32 2, %s87
        $region96: #{_lambda_.5} parent=91 // pred_fallthru
          _
        // Predicated region
        $region97: #{_lambda_.5} parent=91 // pred_check
          %p1144 = pneg %p175
        $region98: #{_lambda_.5} parent=91 // pred_check_branch
          %1146 = sbr.rel (%p1144) target = $region100
        $region99: #{_lambda_.5} parent=91 // pred_region
          %s1147 = smul.u32 2, %s87
          %p1148 = scmp.lt.s32.totalorder %s1147, 7
          %s1149 = scalar_select %p1148, %s1147, 7
          %s1150 = smul.addr %s1149, 8
          %s1151 = scalar_lea.vmem %s7, %s1150
          %s1152 = smul.u32 2, %s87
        $region100: #{_lambda_.5} parent=91 // pred_fallthru
          _
        // Predicated region
        $region101: #{_lambda_.5} parent=91 // pred_check
          %p1153 = pneg %p201
        $region102: #{_lambda_.5} parent=91 // pred_check_branch
          %1155 = sbr.rel (%p1153) target = $region104
        $region103: #{_lambda_.5} parent=91 // pred_region
          %s1156 = smul.u32 2, %s87
          %p1157 = scmp.lt.s32.totalorder %s1156, 7
          %s1158 = scalar_select %p1157, %s1156, 7
          %s1159 = smul.addr %s1158, 8
          %s1160 = scalar_lea.vmem %s9, %s1159
          %s1161 = smul.u32 2, %s87
        $region104: #{_lambda_.5} parent=91 // pred_fallthru
          _
        // Predicated region
        $region105: #{_lambda_.5} parent=91 // pred_check
          %p1162 = pneg %p269
        $region106: #{_lambda_.5} parent=91 // pred_check_branch
          %1164 = sbr.rel (%p1162) target = $region108
        $region107: #{_lambda_.5} parent=91 // pred_region
          %s1165 = smul.u32 2, %s87
          %p1166 = scmp.lt.s32.totalorder %s1165, 7
          %s1167 = scalar_select %p1166, %s1165, 7
          %s1168 = smul.addr %s1167, 8
          %s1169 = scalar_lea.vmem %s15, %s1168
          %s1170 = smul.u32 2, %s87
        $region108: #{_lambda_.5} parent=91 // pred_fallthru
          _
        // Predicated region
        $region109: #{_lambda_.5} parent=91 // pred_check
          %p1171 = pneg %p295
        $region110: #{_lambda_.5} parent=91 // pred_check_branch
          %1173 = sbr.rel (%p1171) target = $region112
        $region111: #{_lambda_.5} parent=91 // pred_region
          %s1174 = smul.u32 2, %s87
          %p1175 = scmp.lt.s32.totalorder %s1174, 7
          %s1176 = scalar_select %p1175, %s1174, 7
          %s1177 = smul.addr %s1176, 8
          %s1178 = scalar_lea.vmem %s17, %s1177
          %s1179 = smul.u32 2, %s87
        $region112: #{_lambda_.5} parent=91 // pred_fallthru
          _
        // Predicated region
        $region113: #{_lambda_.5} parent=91 // pred_check
          %p1180 = pneg %p363
        $region114: #{_lambda_.5} parent=91 // pred_check_branch
          %1182 = sbr.rel (%p1180) target = $region116
        $region115: #{_lambda_.5} parent=91 // pred_region
          %s1183 = smul.u32 2, %s87
          %p1184 = scmp.lt.s32.totalorder %s1183, 7
          %s1185 = scalar_select %p1184, %s1183, 7
          %s1186 = smul.addr %s1185, 8
          %s1187 = scalar_lea.vmem %s23, %s1186
          %s1188 = smul.u32 2, %s87
        $region116: #{_lambda_.5} parent=91 // pred_fallthru
          _
        // Predicated region
        $region117: #{_lambda_.5} parent=91 // pred_check
          %p1189 = pneg %p389
        $region118: #{_lambda_.5} parent=91 // pred_check_branch
          %1191 = sbr.rel (%p1189) target = $region120
        $region119: #{_lambda_.5} parent=91 // pred_region
          %s1192 = smul.u32 2, %s87
          %p1193 = scmp.lt.s32.totalorder %s1192, 7
          %s1194 = scalar_select %p1193, %s1192, 7
          %s1195 = smul.addr %s1194, 8
          %s1196 = scalar_lea.vmem %s25, %s1195
          %s1197 = smul.u32 2, %s87
        $region120: #{_lambda_.5} parent=91 // pred_fallthru
          _
        // Predicated region
        $region121: #{_lambda_.5} parent=91 // pred_check
          %p1198 = pneg %p457
        $region122: #{_lambda_.5} parent=91 // pred_check_branch
          %1200 = sbr.rel (%p1198) target = $region124
        $region123: #{_lambda_.5} parent=91 // pred_region
          %s1201 = smul.u32 2, %s87
          %p1202 = scmp.lt.s32.totalorder %s1201, 7
          %s1203 = scalar_select %p1202, %s1201, 7
          %s1204 = smul.addr %s1203, 8
          %s1205 = scalar_lea.vmem %s31, %s1204
          %s1206 = smul.u32 2, %s87
        $region124: #{_lambda_.5} parent=91 // pred_fallthru
          _
        // Predicated region
        $region125: #{_lambda_.5} parent=91 // pred_check
          %p1207 = pneg %p483
        $region126: #{_lambda_.5} parent=91 // pred_check_branch
          %1209 = sbr.rel (%p1207) target = $region128
        $region127: #{_lambda_.5} parent=91 // pred_region
          %s1210 = smul.u32 2, %s87
          %p1211 = scmp.lt.s32.totalorder %s1210, 7
          %s1212 = scalar_select %p1211, %s1210, 7
          %s1213 = smul.addr %s1212, 8
          %s1214 = scalar_lea.vmem %s33, %s1213
          %s1215 = smul.u32 2, %s87
        $region128: #{_lambda_.5} parent=91 // pred_fallthru
          _
        // Predicated region
        $region129: #{_lambda_.5} parent=91 // pred_check
          %p1216 = pneg %p551
        $region130: #{_lambda_.5} parent=91 // pred_check_branch
          %1218 = sbr.rel (%p1216) target = $region132
        $region131: #{_lambda_.5} parent=91 // pred_region
          %s1219 = smul.u32 2, %s87
          %p1220 = scmp.lt.s32.totalorder %s1219, 7
          %s1221 = scalar_select %p1220, %s1219, 7
          %s1222 = smul.addr %s1221, 8
          %s1223 = scalar_lea.vmem %s39, %s1222
          %s1224 = smul.u32 2, %s87
        $region132: #{_lambda_.5} parent=91 // pred_fallthru
          _
        // Predicated region
        $region133: #{_lambda_.5} parent=91 // pred_check
          %p1225 = pneg %p577
        $region134: #{_lambda_.5} parent=91 // pred_check_branch
          %1227 = sbr.rel (%p1225) target = $region136
        $region135: #{_lambda_.5} parent=91 // pred_region
          %s1228 = smul.u32 2, %s87
          %p1229 = scmp.lt.s32.totalorder %s1228, 7
          %s1230 = scalar_select %p1229, %s1228, 7
          %s1231 = smul.addr %s1230, 8
          %s1232 = scalar_lea.vmem %s41, %s1231
          %s1233 = smul.u32 2, %s87
        $region136: #{_lambda_.5} parent=91 // pred_fallthru
          _
        // Predicated region
        $region137: #{_lambda_.5} parent=91 // pred_check
          %p1234 = pneg %p624
        $region138: #{_lambda_.5} parent=91 // pred_check_branch
          %1236 = sbr.rel (%p1234) target = $region140
        $region139: #{_lambda_.5} parent=91 // pred_region
          %s1237 = smul.u32 2, %s87
          %p1238 = scmp.lt.s32.totalorder %s1237, 7
          %s1239 = scalar_select %p1238, %s1237, 7
          %s1240 = smul.addr %s1239, 8
          %s1241 = scalar_lea.vmem %s45, %s1240
          %s1242 = smul.u32 2, %s87
        $region140: #{_lambda_.5} parent=91 // pred_fallthru
          _
        // Predicated region
        $region141: #{_lambda_.5} parent=91 // pred_check
          %p1243 = pneg %p650
        $region142: #{_lambda_.5} parent=91 // pred_check_branch
          %1245 = sbr.rel (%p1243) target = $region144
        $region143: #{_lambda_.5} parent=91 // pred_region
          %s1246 = smul.u32 2, %s87
          %p1247 = scmp.lt.s32.totalorder %s1246, 7
          %s1248 = scalar_select %p1247, %s1246, 7
          %s1249 = smul.addr %s1248, 8
          %s1250 = scalar_lea.vmem %s47, %s1249
          %s1251 = smul.u32 2, %s87
        $region144: #{_lambda_.5} parent=91 // pred_fallthru
          _
        // Predicated region
        $region145: #{_lambda_.5} parent=91 // pred_check
          %p1252 = pneg %p718
        $region146: #{_lambda_.5} parent=91 // pred_check_branch
          %1254 = sbr.rel (%p1252) target = $region148
        $region147: #{_lambda_.5} parent=91 // pred_region
          %s1255 = smul.u32 2, %s87
          %p1256 = scmp.lt.s32.totalorder %s1255, 7
          %s1257 = scalar_select %p1256, %s1255, 7
          %s1258 = smul.addr %s1257, 8
          %s1259 = scalar_lea.vmem %s53, %s1258
          %s1260 = smul.u32 2, %s87
        $region148: #{_lambda_.5} parent=91 // pred_fallthru
          _
        // Predicated region
        $region149: #{_lambda_.5} parent=91 // pred_check
          %p1261 = pneg %p744
        $region150: #{_lambda_.5} parent=91 // pred_check_branch
          %1263 = sbr.rel (%p1261) target = $region152
        $region151: #{_lambda_.5} parent=91 // pred_region
          %s1264 = smul.u32 2, %s87
          %p1265 = scmp.lt.s32.totalorder %s1264, 7
          %s1266 = scalar_select %p1265, %s1264, 7
          %s1267 = smul.addr %s1266, 8
          %s1268 = scalar_lea.vmem %s55, %s1267
          %s1269 = smul.u32 2, %s87
        $region152: #{_lambda_.5} parent=91 // pred_fallthru
          _
        // Predicated region
        $region153: #{_lambda_.5} parent=91 // pred_check
          %p1270 = pneg %p812
        $region154: #{_lambda_.5} parent=91 // pred_check_branch
          %1272 = sbr.rel (%p1270) target = $region156
        $region155: #{_lambda_.5} parent=91 // pred_region
          %s1273 = smul.u32 2, %s87
          %p1274 = scmp.lt.s32.totalorder %s1273, 7
          %s1275 = scalar_select %p1274, %s1273, 7
          %s1276 = smul.addr %s1275, 8
          %s1277 = scalar_lea.vmem %s61, %s1276
          %s1278 = smul.u32 2, %s87
        $region156: #{_lambda_.5} parent=91 // pred_fallthru
          _
        // Predicated region
        $region157: #{_lambda_.5} parent=91 // pred_check
          %p1279 = pneg %p838
        $region158: #{_lambda_.5} parent=91 // pred_check_branch
          %1281 = sbr.rel (%p1279) target = $region160
        $region159: #{_lambda_.5} parent=91 // pred_region
          %s1282 = smul.u32 2, %s87
          %p1283 = scmp.lt.s32.totalorder %s1282, 7
          %s1284 = scalar_select %p1283, %s1282, 7
          %s1285 = smul.addr %s1284, 8
          %s1286 = scalar_lea.vmem %s63, %s1285
          %s1287 = smul.u32 2, %s87
        $region160: #{_lambda_.5} parent=91 // pred_fallthru
          _
        // Predicated region
        $region161: #{_lambda_.5} parent=91 // pred_check
          %p1288 = pneg %p906
        $region162: #{_lambda_.5} parent=91 // pred_check_branch
          %1290 = sbr.rel (%p1288) target = $region164
        $region163: #{_lambda_.5} parent=91 // pred_region
          %s1291 = smul.u32 2, %s87
          %p1292 = scmp.lt.s32.totalorder %s1291, 7
          %s1293 = scalar_select %p1292, %s1291, 7
          %s1294 = smul.addr %s1293, 8
          %s1295 = scalar_lea.vmem %s69, %s1294
          %s1296 = smul.u32 2, %s87
        $region164: #{_lambda_.5} parent=91 // pred_fallthru
          _
        // Predicated region
        $region165: #{_lambda_.5} parent=91 // pred_check
          %p1297 = pneg %p932
        $region166: #{_lambda_.5} parent=91 // pred_check_branch
          %1299 = sbr.rel (%p1297) target = $region168
        $region167: #{_lambda_.5} parent=91 // pred_region
          %s1300 = smul.u32 2, %s87
          %p1301 = scmp.lt.s32.totalorder %s1300, 7
          %s1302 = scalar_select %p1301, %s1300, 7
          %s1303 = smul.addr %s1302, 8
          %s1304 = scalar_lea.vmem %s71, %s1303
          %s1305 = smul.u32 2, %s87
        $region168: #{_lambda_.5} parent=91 // pred_fallthru
          _
        // Predicated region
        $region169: #{_lambda_.5} parent=91 // pred_check
          %p1306 = pneg %p1000
        $region170: #{_lambda_.5} parent=91 // pred_check_branch
          %1308 = sbr.rel (%p1306) target = $region172
        $region171: #{_lambda_.5} parent=91 // pred_region
          %s1309 = smul.u32 2, %s87
          %p1310 = scmp.lt.s32.totalorder %s1309, 7
          %s1311 = scalar_select %p1310, %s1309, 7
          %s1312 = smul.addr %s1311, 8
          %s1313 = scalar_lea.vmem %s77, %s1312
          %s1314 = smul.u32 2, %s87
        $region172: #{_lambda_.5} parent=91 // pred_fallthru
          _
        // Predicated region
        $region173: #{_lambda_.5} parent=91 // pred_check
          %p1315 = pneg %p1026
        $region174: #{_lambda_.5} parent=91 // pred_check_branch
          %1317 = sbr.rel (%p1315) target = $region176
        $region175: #{_lambda_.5} parent=91 // pred_region
          %s1318 = smul.u32 2, %s87
          %p1319 = scmp.lt.s32.totalorder %s1318, 7
          %s1320 = scalar_select %p1319, %s1318, 7
          %s1321 = smul.addr %s1320, 8
          %s1322 = scalar_lea.vmem %s79, %s1321
          %s1323 = smul.u32 2, %s87
        $region176: #{_lambda_.5} parent=91 // pred_fallthru
          _
      $region92: #{_lambda_.5} parent=5 // pred_fallthru
        _
      %p1324 = scmp.le.s32.totalorder 1, %s87
      %p1325 = scmp.lt.s32.totalorder %s87, 5
      %p1326 = pnand %p1324, %p1325
      %p1327 = pneg %p1326
      // Predicated region
      $region177: #{_lambda_.5} parent=5 // pred_check
        _
      $region178: #{_lambda_.5} parent=5 // pred_check_branch
        %1329 = sbr.rel (%p1326) target = $region180
      $region179: #{_lambda_.5} parent=5 // pred_region
        %s1330 = ssub.s32 %s87, 1
        %p1331 = pneg %p108
        %p1332 = pneg %p105
        %p1333 = pneg %p129
        %p1334 = pneg %p126
        %s1335 = smul.u32 2, %s92
        %p1336 = scmp.lt.s32.totalorder %s1335, 7
        %s1337 = scalar_select %p1336, %s1335, 7
        %s1338 = smul.addr %s1337, 2
        %s1339 = smul.addr %s1338, 8
        %s1340 = scalar_lea.vmem %s5, %s1339
        %p1341 = pneg %p155
        %p1342 = pneg %p152
        %s1343 = smul.u32 2, %s92
        %p1344 = scmp.lt.s32.totalorder %s1343, 7
        %s1345 = scalar_select %p1344, %s1343, 7
        %s1346 = smul.addr %s1345, 8
        %s1347 = scalar_lea.vmem %s7, %s1346
        %p1348 = pneg %p181
        %p1349 = pneg %p178
        %s1350 = smul.u32 2, %s92
        %p1351 = scmp.lt.s32.totalorder %s1350, 7
        %s1352 = scalar_select %p1351, %s1350, 7
        %s1353 = smul.addr %s1352, 8
        %s1354 = scalar_lea.vmem %s9, %s1353
        %p1355 = pneg %p207
        %p1356 = pneg %p204
        %p1357 = pneg %p228
        %p1358 = pneg %p225
        %p1359 = pneg %p249
        %p1360 = pneg %p246
        %s1361 = smul.u32 2, %s92
        %p1362 = scmp.lt.s32.totalorder %s1361, 7
        %s1363 = scalar_select %p1362, %s1361, 7
        %s1364 = smul.addr %s1363, 8
        %s1365 = scalar_lea.vmem %s15, %s1364
        %p1366 = pneg %p275
        %p1367 = pneg %p272
        %s1368 = smul.u32 2, %s92
        %p1369 = scmp.lt.s32.totalorder %s1368, 7
        %s1370 = scalar_select %p1369, %s1368, 7
        %s1371 = smul.addr %s1370, 8
        %s1372 = scalar_lea.vmem %s17, %s1371
        %p1373 = pneg %p301
        %p1374 = pneg %p298
        %p1375 = pneg %p322
        %p1376 = pneg %p319
        %p1377 = pneg %p343
        %p1378 = pneg %p340
        %s1379 = smul.u32 2, %s92
        %p1380 = scmp.lt.s32.totalorder %s1379, 7
        %s1381 = scalar_select %p1380, %s1379, 7
        %s1382 = smul.addr %s1381, 8
        %s1383 = scalar_lea.vmem %s23, %s1382
        %p1384 = pneg %p369
        %p1385 = pneg %p366
        %s1386 = smul.u32 2, %s92
        %p1387 = scmp.lt.s32.totalorder %s1386, 7
        %s1388 = scalar_select %p1387, %s1386, 7
        %s1389 = smul.addr %s1388, 8
        %s1390 = scalar_lea.vmem %s25, %s1389
        %p1391 = pneg %p395
        %p1392 = pneg %p392
        %p1393 = pneg %p416
        %p1394 = pneg %p413
        %p1395 = pneg %p437
        %p1396 = pneg %p434
        %s1397 = smul.u32 2, %s92
        %p1398 = scmp.lt.s32.totalorder %s1397, 7
        %s1399 = scalar_select %p1398, %s1397, 7
        %s1400 = smul.addr %s1399, 8
        %s1401 = scalar_lea.vmem %s31, %s1400
        %p1402 = pneg %p463
        %p1403 = pneg %p460
        %s1404 = smul.u32 2, %s92
        %p1405 = scmp.lt.s32.totalorder %s1404, 7
        %s1406 = scalar_select %p1405, %s1404, 7
        %s1407 = smul.addr %s1406, 8
        %s1408 = scalar_lea.vmem %s33, %s1407
        %p1409 = pneg %p489
        %p1410 = pneg %p486
        %p1411 = pneg %p510
        %p1412 = pneg %p507
        %p1413 = pneg %p531
        %p1414 = pneg %p528
        %s1415 = smul.u32 2, %s92
        %p1416 = scmp.lt.s32.totalorder %s1415, 7
        %s1417 = scalar_select %p1416, %s1415, 7
        %s1418 = smul.addr %s1417, 8
        %s1419 = scalar_lea.vmem %s39, %s1418
        %p1420 = pneg %p557
        %p1421 = pneg %p554
        %s1422 = smul.u32 2, %s92
        %p1423 = scmp.lt.s32.totalorder %s1422, 7
        %s1424 = scalar_select %p1423, %s1422, 7
        %s1425 = smul.addr %s1424, 8
        %s1426 = scalar_lea.vmem %s41, %s1425
        %p1427 = pneg %p583
        %p1428 = pneg %p580
        %p1429 = pneg %p604
        %p1430 = pneg %p601
        %s1431 = smul.u32 2, %s92
        %p1432 = scmp.lt.s32.totalorder %s1431, 7
        %s1433 = scalar_select %p1432, %s1431, 7
        %s1434 = smul.addr %s1433, 8
        %s1435 = scalar_lea.vmem %s45, %s1434
        %p1436 = pneg %p630
        %p1437 = pneg %p627
        %s1438 = smul.u32 2, %s92
        %p1439 = scmp.lt.s32.totalorder %s1438, 7
        %s1440 = scalar_select %p1439, %s1438, 7
        %s1441 = smul.addr %s1440, 8
        %s1442 = scalar_lea.vmem %s47, %s1441
        %p1443 = pneg %p656
        %p1444 = pneg %p653
        %p1445 = pneg %p677
        %p1446 = pneg %p674
        %p1447 = pneg %p698
        %p1448 = pneg %p695
        %s1449 = smul.u32 2, %s92
        %p1450 = scmp.lt.s32.totalorder %s1449, 7
        %s1451 = scalar_select %p1450, %s1449, 7
        %s1452 = smul.addr %s1451, 8
        %s1453 = scalar_lea.vmem %s53, %s1452
        %p1454 = pneg %p724
        %p1455 = pneg %p721
        %s1456 = smul.u32 2, %s92
        %p1457 = scmp.lt.s32.totalorder %s1456, 7
        %s1458 = scalar_select %p1457, %s1456, 7
        %s1459 = smul.addr %s1458, 8
        %s1460 = scalar_lea.vmem %s55, %s1459
        %p1461 = pneg %p750
        %p1462 = pneg %p747
        %p1463 = pneg %p771
        %p1464 = pneg %p768
        %p1465 = pneg %p792
        %p1466 = pneg %p789
        %s1467 = smul.u32 2, %s92
        %p1468 = scmp.lt.s32.totalorder %s1467, 7
        %s1469 = scalar_select %p1468, %s1467, 7
        %s1470 = smul.addr %s1469, 8
        %s1471 = scalar_lea.vmem %s61, %s1470
        %p1472 = pneg %p818
        %p1473 = pneg %p815
        %s1474 = smul.u32 2, %s92
        %p1475 = scmp.lt.s32.totalorder %s1474, 7
        %s1476 = scalar_select %p1475, %s1474, 7
        %s1477 = smul.addr %s1476, 8
        %s1478 = scalar_lea.vmem %s63, %s1477
        %p1479 = pneg %p844
        %p1480 = pneg %p841
        %p1481 = pneg %p865
        %p1482 = pneg %p862
        %p1483 = pneg %p886
        %p1484 = pneg %p883
        %s1485 = smul.u32 2, %s92
        %p1486 = scmp.lt.s32.totalorder %s1485, 7
        %s1487 = scalar_select %p1486, %s1485, 7
        %s1488 = smul.addr %s1487, 8
        %s1489 = scalar_lea.vmem %s69, %s1488
        %p1490 = pneg %p912
        %p1491 = pneg %p909
        %s1492 = smul.u32 2, %s92
        %p1493 = scmp.lt.s32.totalorder %s1492, 7
        %s1494 = scalar_select %p1493, %s1492, 7
        %s1495 = smul.addr %s1494, 8
        %s1496 = scalar_lea.vmem %s71, %s1495
        %p1497 = pneg %p938
        %p1498 = pneg %p935
        %p1499 = pneg %p959
        %p1500 = pneg %p956
        %p1501 = pneg %p980
        %p1502 = pneg %p977
        %s1503 = smul.u32 2, %s92
        %p1504 = scmp.lt.s32.totalorder %s1503, 7
        %s1505 = scalar_select %p1504, %s1503, 7
        %s1506 = smul.addr %s1505, 8
        %s1507 = scalar_lea.vmem %s77, %s1506
        %p1508 = pneg %p1006
        %p1509 = pneg %p1003
        %s1510 = smul.u32 2, %s92
        %p1511 = scmp.lt.s32.totalorder %s1510, 7
        %s1512 = scalar_select %p1511, %s1510, 7
        %s1513 = smul.addr %s1512, 8
        %s1514 = scalar_lea.vmem %s79, %s1513
        %p1515 = pneg %p1032
        %p1516 = pneg %p1029
        %p1517 = pneg %p1058
        %p1518 = pneg %p1055
        %s1519 = sand.u32 %s1045, 1
        %s1520 = sand.u32 %s1045, 1
        %s1521 = smul.addr %s1520, 32
        %s1522 = scalar_lea.vmem [#allocation2], %s1521
        %s1523 = smul.u32 2, %s92
        %p1524 = scmp.lt.s32.totalorder %s1523, 7
        %s1525 = scalar_select %p1524, %s1523, 7
        %s1526 = smul.addr %s1525, 2
        %s1527 = smul.addr %s1526, 8
        %s1528 = scalar_lea.vmem %s5, %s1527
        %s1529 = smul.u32 2, %s92
        %s1530 = smul.u32 2, %s92
        %p1531 = scmp.lt.s32.totalorder %s1530, 7
        %s1532 = scalar_select %p1531, %s1530, 7
        %s1533 = smul.addr %s1532, 8
        %s1534 = scalar_lea.vmem %s7, %s1533
        %s1535 = smul.u32 2, %s92
        %s1536 = smul.u32 2, %s92
        %p1537 = scmp.lt.s32.totalorder %s1536, 7
        %s1538 = scalar_select %p1537, %s1536, 7
        %s1539 = smul.addr %s1538, 8
        %s1540 = scalar_lea.vmem %s9, %s1539
        %s1541 = smul.u32 2, %s92
        %s1542 = smul.u32 2, %s92
        %p1543 = scmp.lt.s32.totalorder %s1542, 7
        %s1544 = scalar_select %p1543, %s1542, 7
        %s1545 = smul.addr %s1544, 8
        %s1546 = scalar_lea.vmem %s15, %s1545
        %s1547 = smul.u32 2, %s92
        %s1548 = smul.u32 2, %s92
        %p1549 = scmp.lt.s32.totalorder %s1548, 7
        %s1550 = scalar_select %p1549, %s1548, 7
        %s1551 = smul.addr %s1550, 8
        %s1552 = scalar_lea.vmem %s17, %s1551
        %s1553 = smul.u32 2, %s92
        %s1554 = smul.u32 2, %s92
        %p1555 = scmp.lt.s32.totalorder %s1554, 7
        %s1556 = scalar_select %p1555, %s1554, 7
        %s1557 = smul.addr %s1556, 8
        %s1558 = scalar_lea.vmem %s23, %s1557
        %s1559 = smul.u32 2, %s92
        %s1560 = smul.u32 2, %s92
        %p1561 = scmp.lt.s32.totalorder %s1560, 7
        %s1562 = scalar_select %p1561, %s1560, 7
        %s1563 = smul.addr %s1562, 8
        %s1564 = scalar_lea.vmem %s25, %s1563
        %s1565 = smul.u32 2, %s92
        %s1566 = smul.u32 2, %s92
        %p1567 = scmp.lt.s32.totalorder %s1566, 7
        %s1568 = scalar_select %p1567, %s1566, 7
        %s1569 = smul.addr %s1568, 8
        %s1570 = scalar_lea.vmem %s31, %s1569
        %s1571 = smul.u32 2, %s92
        %s1572 = smul.u32 2, %s92
        %p1573 = scmp.lt.s32.totalorder %s1572, 7
        %s1574 = scalar_select %p1573, %s1572, 7
        %s1575 = smul.addr %s1574, 8
        %s1576 = scalar_lea.vmem %s33, %s1575
        %s1577 = smul.u32 2, %s92
        %s1578 = smul.u32 2, %s92
        %p1579 = scmp.lt.s32.totalorder %s1578, 7
        %s1580 = scalar_select %p1579, %s1578, 7
        %s1581 = smul.addr %s1580, 8
        %s1582 = scalar_lea.vmem %s39, %s1581
        %s1583 = smul.u32 2, %s92
        %s1584 = smul.u32 2, %s92
        %p1585 = scmp.lt.s32.totalorder %s1584, 7
        %s1586 = scalar_select %p1585, %s1584, 7
        %s1587 = smul.addr %s1586, 8
        %s1588 = scalar_lea.vmem %s41, %s1587
        %s1589 = smul.u32 2, %s92
        %s1590 = smul.u32 2, %s92
        %p1591 = scmp.lt.s32.totalorder %s1590, 7
        %s1592 = scalar_select %p1591, %s1590, 7
        %s1593 = smul.addr %s1592, 8
        %s1594 = scalar_lea.vmem %s45, %s1593
        %s1595 = smul.u32 2, %s92
        %s1596 = smul.u32 2, %s92
        %p1597 = scmp.lt.s32.totalorder %s1596, 7
        %s1598 = scalar_select %p1597, %s1596, 7
        %s1599 = smul.addr %s1598, 8
        %s1600 = scalar_lea.vmem %s47, %s1599
        %s1601 = smul.u32 2, %s92
        %s1602 = smul.u32 2, %s92
        %p1603 = scmp.lt.s32.totalorder %s1602, 7
        %s1604 = scalar_select %p1603, %s1602, 7
        %s1605 = smul.addr %s1604, 8
        %s1606 = scalar_lea.vmem %s53, %s1605
        %s1607 = smul.u32 2, %s92
        %s1608 = smul.u32 2, %s92
        %p1609 = scmp.lt.s32.totalorder %s1608, 7
        %s1610 = scalar_select %p1609, %s1608, 7
        %s1611 = smul.addr %s1610, 8
        %s1612 = scalar_lea.vmem %s55, %s1611
        %s1613 = smul.u32 2, %s92
        %s1614 = smul.u32 2, %s92
        %p1615 = scmp.lt.s32.totalorder %s1614, 7
        %s1616 = scalar_select %p1615, %s1614, 7
        %s1617 = smul.addr %s1616, 8
        %s1618 = scalar_lea.vmem %s61, %s1617
        %s1619 = smul.u32 2, %s92
        %s1620 = smul.u32 2, %s92
        %p1621 = scmp.lt.s32.totalorder %s1620, 7
        %s1622 = scalar_select %p1621, %s1620, 7
        %s1623 = smul.addr %s1622, 8
        %s1624 = scalar_lea.vmem %s63, %s1623
        %s1625 = smul.u32 2, %s92
        %s1626 = smul.u32 2, %s92
        %p1627 = scmp.lt.s32.totalorder %s1626, 7
        %s1628 = scalar_select %p1627, %s1626, 7
        %s1629 = smul.addr %s1628, 8
        %s1630 = scalar_lea.vmem %s69, %s1629
        %s1631 = smul.u32 2, %s92
        %s1632 = smul.u32 2, %s92
        %p1633 = scmp.lt.s32.totalorder %s1632, 7
        %s1634 = scalar_select %p1633, %s1632, 7
        %s1635 = smul.addr %s1634, 8
        %s1636 = scalar_lea.vmem %s71, %s1635
        %s1637 = smul.u32 2, %s92
        %s1638 = smul.u32 2, %s92
        %p1639 = scmp.lt.s32.totalorder %s1638, 7
        %s1640 = scalar_select %p1639, %s1638, 7
        %s1641 = smul.addr %s1640, 8
        %s1642 = scalar_lea.vmem %s77, %s1641
        %s1643 = smul.u32 2, %s92
        %s1644 = smul.u32 2, %s92
        %p1645 = scmp.lt.s32.totalorder %s1644, 7
        %s1646 = scalar_select %p1645, %s1644, 7
        %s1647 = smul.addr %s1646, 8
        %s1648 = scalar_lea.vmem %s79, %s1647
        %s1649 = smul.u32 2, %s92
        %s1650 = smul.u32 2, %s92
        %v1652 = vld [vmem:[%s1] sm:$0xf]
        %v1655 = vunpack.c.l.s4 1966171168
        %v1656 = vunpack.c.0.s8 %v1655
        %v1657 = vlaneseq
        %v1658 = vshrl.u32 %v1657, 7
        %v1659 = vsub.s32 %v1656, %v1658
        %v1660 = vrot.slane %v1652, %v1659
        %v1661 = vcombine.high %v1660, %v1660
        %v1662 = vld [vmem:[%s1528] sm:$0xff]
        %v1663 = vld [vmem:[%s1528 + $0x8] sm:$0xff]
        %v1664 = vld [vmem:[%s1528 + $0x10] sm:$0xff]
        %v1665 = vld [vmem:[%s1528 + $0x18] sm:$0xff]
        %v1666 = vlaneseq
        %v1667 = vshrl.u32 %v1666, 7
        %v1668 = vsub.s32 0, %v1667
        %v1669 = vrot.slane %v1660, %v1668
        %v1670 = vlaneseq
        %v1671 = vshrl.u32 %v1670, 7
        %v1672 = vsub.s32 1, %v1671
        %v1673 = vrot.slane %v1660, %v1672
        %v1674 = vlaneseq
        %v1675 = vshrl.u32 %v1674, 7
        %v1676 = vsub.s32 0, %v1675
        %v1677 = vrot.slane %v1661, %v1676
        %v1678 = vlaneseq
        %v1679 = vshrl.u32 %v1678, 7
        %v1680 = vsub.s32 1, %v1679
        %v1681 = vrot.slane %v1661, %v1680
        %v1686 = vadd.f32 %v1669, %v1662
        %v1687 = vadd.f32 %v1673, %v1663
        %v1688 = vadd.f32 %v1669, %v1664
        %v1689 = vadd.f32 %v1673, %v1665
        %v1690 = vadd.f32 %v1677, %v1662
        %v1691 = vadd.f32 %v1681, %v1663
        %v1692 = vadd.f32 %v1677, %v1664
        %v1693 = vadd.f32 %v1681, %v1665
        %v1694 = vld [vmem:[%s1534] sm:$0xff]
        %v1695 = vld [vmem:[%s1534 + $0x8] sm:$0xff]
        %v1696 = vld [vmem:[%s1540] sm:$0xff]
        %v1697 = vld [vmem:[%s1540 + $0x8] sm:$0xff]
        %v1698 = vadd.f32 %v1686, %v1687
        %v1699 = vadd.f32 %v1698, %v1690
        %v1700 = vadd.f32 %v1699, %v1691
        %1701 = vadd.xlane.f32.xlu0 %v1700
        %v1702 = vpop.xlane.xlu0 %1701
        %v1703 = vadd.f32 %v1688, %v1689
        %v1704 = vadd.f32 %v1703, %v1692
        %v1705 = vadd.f32 %v1704, %v1693
        %1706 = vadd.xlane.f32.xlu0 %v1705
        %v1707 = vpop.xlane.xlu0 %1706
        %v1708 = vmul.f32 %v1686, %v1686
        %v1709 = vmul.f32 %v1687, %v1687
        %v1710 = vmul.f32 %v1688, %v1688
        %v1711 = vmul.f32 %v1689, %v1689
        %v1712 = vmul.f32 %v1690, %v1690
        %v1713 = vmul.f32 %v1691, %v1691
        %v1714 = vmul.f32 %v1692, %v1692
        %v1715 = vmul.f32 %v1693, %v1693
        %v1716 = vadd.f32 %v1708, %v1709
        %v1717 = vadd.f32 %v1716, %v1712
        %v1718 = vadd.f32 %v1717, %v1713
        %1719 = vadd.xlane.f32.xlu0 %v1718
        %v1720 = vpop.xlane.xlu0 %1719
        %v1721 = vadd.f32 %v1710, %v1711
        %v1722 = vadd.f32 %v1721, %v1714
        %v1723 = vadd.f32 %v1722, %v1715
        %1724 = vadd.xlane.f32.xlu0 %v1723
        %v1725 = vpop.xlane.xlu0 %1724
        %v1726 = vmul.f32 %v1702, 0.001953125
        %v1727 = vmul.f32 %v1707, 0.001953125
        %v1728 = vmul.f32 %v1720, 0.001953125
        %v1729 = vmul.f32 %v1725, 0.001953125
        %v1730 = vmul.f32 %v1726, %v1726
        %v1731 = vmul.f32 %v1727, %v1727
        %v1732 = vsub.f32 %v1728, %v1730
        %v1733 = vsub.f32 %v1729, %v1731
        %v1734 = vmax.f32 %v1732, 0.0
        %v1735 = vmax.f32 %v1733, 0.0
        %v1736 = vadd.f32 %v1734, 1e-05
        %v1737 = vadd.f32 %v1735, 1e-05
        %v1738 = vrsqrt.pop %v1736
        %v1739 = vrsqrt.pop %v1737
        %v1740 = vmul.f32 %v1694, %v1738
        %v1741 = vmul.f32 %v1695, %v1739
        %v1742 = vmul.f32 %v1726, %v1740
        %v1743 = vmul.f32 %v1727, %v1741
        %v1744 = vsub.f32 %v1696, %v1742
        %v1745 = vsub.f32 %v1697, %v1743
        %1747 = vset.pattern.permute.xlu0 0
        %1748 = vperm.xlu0 %1747, %v1740
        %v1749 = vpop.permute.xlu0 %1748
        %1752 = vset.pattern.permute.xlu0 0
        %1753 = vperm.xlu0 %1752, %v1741
        %v1754 = vpop.permute.xlu0 %1753
        %v1756 = vmul.f32 %v1686, %v1749
        %v1757 = vmul.f32 %v1687, %v1749
        %v1758 = vmul.f32 %v1688, %v1754
        %v1759 = vmul.f32 %v1689, %v1754
        %v1760 = vmul.f32 %v1690, %v1749
        %v1761 = vmul.f32 %v1691, %v1749
        %v1762 = vmul.f32 %v1692, %v1754
        %v1763 = vmul.f32 %v1693, %v1754
        %1765 = vset.pattern.permute.xlu0 0
        %1766 = vperm.xlu0 %1765, %v1744
        %v1767 = vpop.permute.xlu0 %1766
        %1770 = vset.pattern.permute.xlu0 0
        %1771 = vperm.xlu0 %1770, %v1745
        %v1772 = vpop.permute.xlu0 %1771
        %v1774 = vadd.f32 %v1756, %v1767
        %v1775 = vadd.f32 %v1757, %v1767
        %v1776 = vadd.f32 %v1758, %v1772
        %v1777 = vadd.f32 %v1759, %v1772
        %v1778 = vadd.f32 %v1760, %v1767
        %v1779 = vadd.f32 %v1761, %v1767
        %v1780 = vadd.f32 %v1762, %v1772
        %v1781 = vadd.f32 %v1763, %v1772
        %v1782 = vmax.f32 %v1774, 0.0
        %v1783 = vmax.f32 %v1775, 0.0
        %v1784 = vmax.f32 %v1776, 0.0
        %v1785 = vmax.f32 %v1777, 0.0
        %v1786 = vmax.f32 %v1778, 0.0
        %v1787 = vmax.f32 %v1779, 0.0
        %v1788 = vmax.f32 %v1780, 0.0
        %v1789 = vmax.f32 %v1781, 0.0
        %v1790 = vld [vmem:[%s11] sm:$0xf]
        %v1791 = vld [vmem:[%s11 + $0x4] sm:$0xf]
        %v1792 = vld [vmem:[%s11 + $0x8] sm:$0xf]
        %v1793 = vld [vmem:[%s11 + $0xc] sm:$0xf]
        %v1794 = vld [vmem:[%s11 + $0x10] sm:$0xf]
        %v1795 = vld [vmem:[%s11 + $0x14] sm:$0xf]
        %v1796 = vld [vmem:[%s11 + $0x18] sm:$0xf]
        %v1797 = vld [vmem:[%s11 + $0x1c] sm:$0xf]
        %v1798 = vld [vmem:[%s11 + $0x20] sm:$0xf]
        %v1799 = vld [vmem:[%s11 + $0x24] sm:$0xf]
        %v1800 = vld [vmem:[%s11 + $0x28] sm:$0xf]
        %v1801 = vld [vmem:[%s11 + $0x2c] sm:$0xf]
        %v1802 = vld [vmem:[%s11 + $0x30] sm:$0xf]
        %v1803 = vld [vmem:[%s11 + $0x34] sm:$0xf]
        %v1804 = vld [vmem:[%s11 + $0x38] sm:$0xf]
        %v1805 = vld [vmem:[%s11 + $0x3c] sm:$0xf]
        %v1806 = vld [vmem:[%s11 + $0x40] sm:$0xf]
        %v1807 = vld [vmem:[%s11 + $0x44] sm:$0xf]
        %v1808 = vld [vmem:[%s11 + $0x48] sm:$0xf]
        %v1809 = vld [vmem:[%s11 + $0x4c] sm:$0xf]
        %v1810 = vld [vmem:[%s11 + $0x50] sm:$0xf]
        %v1811 = vld [vmem:[%s11 + $0x54] sm:$0xf]
        %v1812 = vld [vmem:[%s11 + $0x58] sm:$0xf]
        %v1813 = vld [vmem:[%s11 + $0x5c] sm:$0xf]
        %v1814 = vld [vmem:[%s11 + $0x60] sm:$0xf]
        %v1815 = vld [vmem:[%s11 + $0x64] sm:$0xf]
        %v1816 = vld [vmem:[%s11 + $0x68] sm:$0xf]
        %v1817 = vld [vmem:[%s11 + $0x6c] sm:$0xf]
        %v1818 = vld [vmem:[%s11 + $0x70] sm:$0xf]
        %v1819 = vld [vmem:[%s11 + $0x74] sm:$0xf]
        %v1820 = vld [vmem:[%s11 + $0x78] sm:$0xf]
        %v1821 = vld [vmem:[%s11 + $0x7c] sm:$0xf]
        %v1822 = vpack.c.bf16 %v1784, %v1782
        %v1823 = vpack.c.bf16 %v1785, %v1783
        %v1824 = vpack.c.bf16 %v1788, %v1786
        %v1825 = vpack.c.bf16 %v1789, %v1787
        %v1826 = vld [vmem:[%s13] sm:$0x1]
        %v1828 = vlaneseq
        %v1829 = vshrl.u32 %v1828, 7
        %v1830 = vsub.s32 0, %v1829
        %v1831 = vrot.slane %v1826, %v1830
        %v1865 = vunpack.c.l.b16 %v1790
        %v1866 = vunpack.c.l.b16 %v1791
        %v1867 = vunpack.c.l.b16 %v1792
        %v1868 = vunpack.c.l.b16 %v1793
        %v1869 = vunpack.c.l.b16 %v1794
        %v1870 = vunpack.c.l.b16 %v1795
        %v1871 = vunpack.c.l.b16 %v1796
        %v1872 = vunpack.c.l.b16 %v1797
        %v1873 = vunpack.c.l.b16 %v1798
        %v1874 = vunpack.c.l.b16 %v1799
        %v1875 = vunpack.c.l.b16 %v1800
        %v1876 = vunpack.c.l.b16 %v1801
        %v1877 = vunpack.c.l.b16 %v1802
        %v1878 = vunpack.c.l.b16 %v1803
        %v1879 = vunpack.c.l.b16 %v1804
        %v1880 = vunpack.c.l.b16 %v1805
        %v1881 = vunpack.c.l.b16 %v1806
        %v1882 = vunpack.c.l.b16 %v1807
        %v1883 = vunpack.c.l.b16 %v1808
        %v1884 = vunpack.c.l.b16 %v1809
        %v1885 = vunpack.c.l.b16 %v1810
        %v1886 = vunpack.c.l.b16 %v1811
        %v1887 = vunpack.c.l.b16 %v1812
        %v1888 = vunpack.c.l.b16 %v1813
        %v1889 = vunpack.c.l.b16 %v1814
        %v1890 = vunpack.c.l.b16 %v1815
        %v1891 = vunpack.c.l.b16 %v1816
        %v1892 = vunpack.c.l.b16 %v1817
        %v1893 = vunpack.c.l.b16 %v1818
        %v1894 = vunpack.c.l.b16 %v1819
        %v1895 = vunpack.c.l.b16 %v1820
        %v1896 = vunpack.c.l.b16 %v1821
        %v1897 = vpack.c.b16 %v1866, %v1865
        %v1898 = vpack.c.b16 %v1868, %v1867
        %v1899 = vpack.c.b16 %v1870, %v1869
        %v1900 = vpack.c.b16 %v1872, %v1871
        %v1901 = vpack.c.b16 %v1874, %v1873
        %v1902 = vpack.c.b16 %v1876, %v1875
        %v1903 = vpack.c.b16 %v1878, %v1877
        %v1904 = vpack.c.b16 %v1880, %v1879
        %v1905 = vpack.c.b16 %v1882, %v1881
        %v1906 = vpack.c.b16 %v1884, %v1883
        %v1907 = vpack.c.b16 %v1886, %v1885
        %v1908 = vpack.c.b16 %v1888, %v1887
        %v1909 = vpack.c.b16 %v1890, %v1889
        %v1910 = vpack.c.b16 %v1892, %v1891
        %v1911 = vpack.c.b16 %v1894, %v1893
        %v1912 = vpack.c.b16 %v1896, %v1895
        %1929 = vmatprep.subr.bf16.mxu0 0
        %1930 = vmatpush1.bf16.msra.mxu0 %v1897
        %1931 = vmatprep.subr.bf16.mxu0 0
        %1932 = vmatpush1.bf16.msra.mxu0 %v1898
        %1933 = vmatprep.subr.bf16.mxu0 0
        %1934 = vmatpush1.bf16.msra.mxu0 %v1899
        %1935 = vmatprep.subr.bf16.mxu0 0
        %1936 = vmatpush1.bf16.msra.mxu0 %v1900
        %1937 = vmatprep.subr.bf16.mxu0 0
        %1938 = vmatpush1.bf16.msra.mxu0 %v1901
        %1939 = vmatprep.subr.bf16.mxu0 0
        %1940 = vmatpush1.bf16.msra.mxu0 %v1902
        %1941 = vmatprep.subr.bf16.mxu0 0
        %1942 = vmatpush1.bf16.msra.mxu0 %v1903
        %1943 = vmatprep.subr.bf16.mxu0 0
        %1944 = vmatpush1.bf16.msra.mxu0 %v1904
        %1945 = vmatprep.subr.bf16.mxu0 0
        %1946 = vmatpush1.bf16.msra.mxu0 %v1905
        %1947 = vmatprep.subr.bf16.mxu0 0
        %1948 = vmatpush1.bf16.msra.mxu0 %v1906
        %1949 = vmatprep.subr.bf16.mxu0 0
        %1950 = vmatpush1.bf16.msra.mxu0 %v1907
        %1951 = vmatprep.subr.bf16.mxu0 0
        %1952 = vmatpush1.bf16.msra.mxu0 %v1908
        %1953 = vmatprep.subr.bf16.mxu0 0
        %1954 = vmatpush1.bf16.msra.mxu0 %v1909
        %1955 = vmatprep.subr.bf16.mxu0 0
        %1956 = vmatpush1.bf16.msra.mxu0 %v1910
        %1957 = vmatprep.subr.bf16.mxu0 0
        %1958 = vmatpush1.bf16.msra.mxu0 %v1911
        %1959 = vmatprep.subr.bf16.mxu0 0
        %1960 = vmatpush1.bf16.msra.mxu0 %v1912
        %1961 = vmatprep.mubr.bf16.mxu0 %v1823
        %1962 = vmatmul.mubr.bf16.gmra.mrb[0].mxu0 %v1822
        %v1963 = vpop.f32.mrb[0].mxu0
        %v1964 = vadd.f32 %v1831, %v1963
        %v1965 = vpop.f32.mrb[0].mxu0
        %v1966 = vpop.f32.mrb[0].mxu0
        %v1967 = vadd.f32 %v1831, %v1966
        %v1968 = vpop.f32.mrb[0].mxu0
        %1969 = vmatprep.mubr.bf16.mxu0 %v1825
        %1970 = vmatmul.mubr.bf16.gmra.mrb[0].mxu0 %v1824
        %v1971 = vpop.f32.mrb[0].mxu0
        %v1972 = vadd.f32 %v1831, %v1971
        %v1973 = vpop.f32.mrb[0].mxu0
        %v1974 = vpop.f32.mrb[0].mxu0
        %v1975 = vadd.f32 %v1831, %v1974
        %v1976 = vpop.f32.mrb[0].mxu0
        %1977 = vdwg.mxu0
        %v1978 = vld [vmem:[%s1546] sm:$0xff]
        %v1979 = vld [vmem:[%s1546 + $0x8] sm:$0xff]
        %v1980 = vld [vmem:[%s1552] sm:$0xff]
        %v1981 = vld [vmem:[%s1552 + $0x8] sm:$0xff]
        %v1982 = vadd.f32 %v1964, %v1972
        %1983 = vadd.xlane.f32.xlu0 %v1982
        %v1984 = vpop.xlane.xlu0 %1983
        %v1985 = vadd.f32 %v1967, %v1975
        %1986 = vadd.xlane.f32.xlu0 %v1985
        %v1987 = vpop.xlane.xlu0 %1986
        %v1988 = vmul.f32 %v1964, %v1964
        %v1989 = vmul.f32 %v1967, %v1967
        %v1990 = vmul.f32 %v1972, %v1972
        %v1991 = vmul.f32 %v1975, %v1975
        %v1992 = vadd.f32 %v1988, %v1990
        %1993 = vadd.xlane.f32.xlu0 %v1992
        %v1994 = vpop.xlane.xlu0 %1993
        %v1995 = vadd.f32 %v1989, %v1991
        %1996 = vadd.xlane.f32.xlu0 %v1995
        %v1997 = vpop.xlane.xlu0 %1996
        %v1998 = vmul.f32 %v1984, 0.00390625
        %v1999 = vmul.f32 %v1987, 0.00390625
        %v2000 = vmul.f32 %v1994, 0.00390625
        %v2001 = vmul.f32 %v1997, 0.00390625
        %v2002 = vmul.f32 %v1998, %v1998
        %v2003 = vmul.f32 %v1999, %v1999
        %v2004 = vsub.f32 %v2000, %v2002
        %v2005 = vsub.f32 %v2001, %v2003
        %v2006 = vmax.f32 %v2004, 0.0
        %v2007 = vmax.f32 %v2005, 0.0
        %v2008 = vadd.f32 %v2006, 1e-05
        %v2009 = vadd.f32 %v2007, 1e-05
        %v2010 = vrsqrt.pop %v2008
        %v2011 = vrsqrt.pop %v2009
        %v2012 = vmul.f32 %v1978, %v2010
        %v2013 = vmul.f32 %v1979, %v2011
        %v2014 = vmul.f32 %v1998, %v2012
        %v2015 = vmul.f32 %v1999, %v2013
        %v2016 = vsub.f32 %v1980, %v2014
        %v2017 = vsub.f32 %v1981, %v2015
        %2019 = vset.pattern.permute.xlu0 0
        %2020 = vperm.xlu0 %2019, %v2012
        %v2021 = vpop.permute.xlu0 %2020
        %2024 = vset.pattern.permute.xlu0 0
        %2025 = vperm.xlu0 %2024, %v2013
        %v2026 = vpop.permute.xlu0 %2025
        %v2028 = vmul.f32 %v1964, %v2021
        %v2029 = vmul.f32 %v1967, %v2026
        %v2030 = vmul.f32 %v1972, %v2021
        %v2031 = vmul.f32 %v1975, %v2026
        %2033 = vset.pattern.permute.xlu0 0
        %2034 = vperm.xlu0 %2033, %v2016
        %v2035 = vpop.permute.xlu0 %2034
        %2038 = vset.pattern.permute.xlu0 0
        %2039 = vperm.xlu0 %2038, %v2017
        %v2040 = vpop.permute.xlu0 %2039
        %v2042 = vadd.f32 %v2028, %v2035
        %v2043 = vadd.f32 %v2029, %v2040
        %v2044 = vadd.f32 %v2030, %v2035
        %v2045 = vadd.f32 %v2031, %v2040
        %v2046 = vmax.f32 %v2042, 0.0
        %v2047 = vmax.f32 %v2043, 0.0
        %v2048 = vmax.f32 %v2044, 0.0
        %v2049 = vmax.f32 %v2045, 0.0
        %v2050 = vld [vmem:[%s19] sm:$0xf]
        %v2051 = vld [vmem:[%s19 + $0x4] sm:$0xf]
        %v2052 = vld [vmem:[%s19 + $0x8] sm:$0xf]
        %v2053 = vld [vmem:[%s19 + $0xc] sm:$0xf]
        %v2054 = vld [vmem:[%s19 + $0x10] sm:$0xf]
        %v2055 = vld [vmem:[%s19 + $0x14] sm:$0xf]
        %v2056 = vld [vmem:[%s19 + $0x18] sm:$0xf]
        %v2057 = vld [vmem:[%s19 + $0x1c] sm:$0xf]
        %v2058 = vld [vmem:[%s19 + $0x20] sm:$0xf]
        %v2059 = vld [vmem:[%s19 + $0x24] sm:$0xf]
        %v2060 = vld [vmem:[%s19 + $0x28] sm:$0xf]
        %v2061 = vld [vmem:[%s19 + $0x2c] sm:$0xf]
        %v2062 = vld [vmem:[%s19 + $0x30] sm:$0xf]
        %v2063 = vld [vmem:[%s19 + $0x34] sm:$0xf]
        %v2064 = vld [vmem:[%s19 + $0x38] sm:$0xf]
        %v2065 = vld [vmem:[%s19 + $0x3c] sm:$0xf]
        %v2066 = vpack.c.bf16 %v2047, %v2046
        %v2067 = vpack.c.bf16 %v2049, %v2048
        %v2068 = vld [vmem:[%s21] sm:$0x1]
        %v2070 = vlaneseq
        %v2071 = vshrl.u32 %v2070, 7
        %v2072 = vsub.s32 0, %v2071
        %v2073 = vrot.slane %v2068, %v2072
        %v2091 = vunpack.c.l.b16 %v2050
        %v2092 = vunpack.c.l.b16 %v2051
        %v2093 = vunpack.c.l.b16 %v2052
        %v2094 = vunpack.c.l.b16 %v2053
        %v2095 = vunpack.c.l.b16 %v2054
        %v2096 = vunpack.c.l.b16 %v2055
        %v2097 = vunpack.c.l.b16 %v2056
        %v2098 = vunpack.c.l.b16 %v2057
        %v2099 = vunpack.c.l.b16 %v2058
        %v2100 = vunpack.c.l.b16 %v2059
        %v2101 = vunpack.c.l.b16 %v2060
        %v2102 = vunpack.c.l.b16 %v2061
        %v2103 = vunpack.c.l.b16 %v2062
        %v2104 = vunpack.c.l.b16 %v2063
        %v2105 = vunpack.c.l.b16 %v2064
        %v2106 = vunpack.c.l.b16 %v2065
        %v2107 = vpack.c.b16 %v2092, %v2091
        %v2108 = vpack.c.b16 %v2094, %v2093
        %v2109 = vpack.c.b16 %v2096, %v2095
        %v2110 = vpack.c.b16 %v2098, %v2097
        %v2111 = vpack.c.b16 %v2100, %v2099
        %v2112 = vpack.c.b16 %v2102, %v2101
        %v2113 = vpack.c.b16 %v2104, %v2103
        %v2114 = vpack.c.b16 %v2106, %v2105
        %2123 = vmatprep.subr.bf16.mxu0 0
        %2124 = vmatpush1.bf16.msra.mxu0 %v2107
        %2125 = vmatprep.subr.bf16.mxu0 0
        %2126 = vmatpush1.bf16.msra.mxu0 %v2108
        %2127 = vmatprep.subr.bf16.mxu0 0
        %2128 = vmatpush1.bf16.msra.mxu0 %v2109
        %2129 = vmatprep.subr.bf16.mxu0 0
        %2130 = vmatpush1.bf16.msra.mxu0 %v2110
        %2131 = vmatprep.subr.bf16.mxu0 0
        %2132 = vmatpush1.bf16.msra.mxu0 %v2111
        %2133 = vmatprep.subr.bf16.mxu0 0
        %2134 = vmatpush1.bf16.msra.mxu0 %v2112
        %2135 = vmatprep.subr.bf16.mxu0 0
        %2136 = vmatpush1.bf16.msra.mxu0 %v2113
        %2137 = vmatprep.subr.bf16.mxu0 0
        %2138 = vmatpush1.bf16.msra.mxu0 %v2114
        %2139 = vmatprep.subr.bf16.mxu0 0
        %2140 = vmatpush1.bf16.msra.mxu0 0
        %2141 = vmatprep.subr.bf16.mxu0 0
        %2142 = vmatpush1.bf16.msra.mxu0 0
        %2143 = vmatprep.subr.bf16.mxu0 0
        %2144 = vmatpush1.bf16.msra.mxu0 0
        %2145 = vmatprep.subr.bf16.mxu0 0
        %2146 = vmatpush1.bf16.msra.mxu0 0
        %2147 = vmatprep.subr.bf16.mxu0 0
        %2148 = vmatpush1.bf16.msra.mxu0 0
        %2149 = vmatprep.subr.bf16.mxu0 0
        %2150 = vmatpush1.bf16.msra.mxu0 0
        %2151 = vmatprep.subr.bf16.mxu0 0
        %2152 = vmatpush1.bf16.msra.mxu0 0
        %2153 = vmatprep.subr.bf16.mxu0 0
        %2154 = vmatpush1.bf16.msra.mxu0 0
        %2155 = vmatprep.mubr.bf16.mxu0 0
        %2156 = vmatmul.mubr.bf16.gmra.mrb[0].mxu0 %v2066
        %v2157 = vpop.f32.mrb[0].mxu0
        %v2158 = vadd.f32 %v2073, %v2157
        %v2159 = vpop.f32.mrb[0].mxu0
        %v2160 = vpop.f32.mrb[0].mxu0
        %v2161 = vadd.f32 %v2073, %v2160
        %v2162 = vpop.f32.mrb[0].mxu0
        %2163 = vmatprep.mubr.bf16.mxu0 0
        %2164 = vmatmul.mubr.bf16.gmra.mrb[0].mxu0 %v2067
        %v2165 = vpop.f32.mrb[0].mxu0
        %v2166 = vadd.f32 %v2073, %v2165
        %v2167 = vpop.f32.mrb[0].mxu0
        %v2168 = vpop.f32.mrb[0].mxu0
        %v2169 = vadd.f32 %v2073, %v2168
        %v2170 = vpop.f32.mrb[0].mxu0
        %2171 = vdwg.mxu0
        %v2172 = vld [vmem:[%s1558] sm:$0xff]
        %v2173 = vld [vmem:[%s1558 + $0x8] sm:$0xff]
        %v2174 = vld [vmem:[%s1564] sm:$0xff]
        %v2175 = vld [vmem:[%s1564 + $0x8] sm:$0xff]
        %vm2176 = vcmask 523264
        %v2177 = vsel %vm2176, %v2158, 0.0
        %v2178 = vsel %vm2176, %v2166, 0.0
        %v2179 = vadd.f32 %v2177, %v2178
        %2180 = vadd.xlane.f32.xlu0 %v2179
        %v2181 = vpop.xlane.xlu0 %2180
        %v2182 = vsel %vm2176, %v2161, 0.0
        %v2183 = vsel %vm2176, %v2169, 0.0
        %v2184 = vadd.f32 %v2182, %v2183
        %2185 = vadd.xlane.f32.xlu0 %v2184
        %v2186 = vpop.xlane.xlu0 %2185
        %v2187 = vmul.f32 %v2158, %v2158
        %v2188 = vmul.f32 %v2161, %v2161
        %v2189 = vmul.f32 %v2166, %v2166
        %v2190 = vmul.f32 %v2169, %v2169
        %v2191 = vsel %vm2176, %v2187, 0.0
        %v2192 = vsel %vm2176, %v2189, 0.0
        %v2193 = vadd.f32 %v2191, %v2192
        %2194 = vadd.xlane.f32.xlu0 %v2193
        %v2195 = vpop.xlane.xlu0 %2194
        %v2196 = vsel %vm2176, %v2188, 0.0
        %v2197 = vsel %vm2176, %v2190, 0.0
        %v2198 = vadd.f32 %v2196, %v2197
        %2199 = vadd.xlane.f32.xlu0 %v2198
        %v2200 = vpop.xlane.xlu0 %2199
        %v2201 = vmul.f32 %v2181, 0.0078125
        %v2202 = vmul.f32 %v2186, 0.0078125
        %v2203 = vmul.f32 %v2195, 0.0078125
        %v2204 = vmul.f32 %v2200, 0.0078125
        %v2205 = vmul.f32 %v2201, %v2201
        %v2206 = vmul.f32 %v2202, %v2202
        %v2207 = vsub.f32 %v2203, %v2205
        %v2208 = vsub.f32 %v2204, %v2206
        %v2209 = vmax.f32 %v2207, 0.0
        %v2210 = vmax.f32 %v2208, 0.0
        %v2211 = vadd.f32 %v2209, 1e-05
        %v2212 = vadd.f32 %v2210, 1e-05
        %v2213 = vrsqrt.pop %v2211
        %v2214 = vrsqrt.pop %v2212
        %v2215 = vmul.f32 %v2172, %v2213
        %v2216 = vmul.f32 %v2173, %v2214
        %v2217 = vmul.f32 %v2201, %v2215
        %v2218 = vmul.f32 %v2202, %v2216
        %v2219 = vsub.f32 %v2174, %v2217
        %v2220 = vsub.f32 %v2175, %v2218
        %2222 = vset.pattern.permute.xlu0 0
        %2223 = vperm.xlu0 %2222, %v2215
        %v2224 = vpop.permute.xlu0 %2223
        %2227 = vset.pattern.permute.xlu0 0
        %2228 = vperm.xlu0 %2227, %v2216
        %v2229 = vpop.permute.xlu0 %2228
        %v2231 = vmul.f32 %v2158, %v2224
        %v2232 = vmul.f32 %v2161, %v2229
        %v2233 = vmul.f32 %v2166, %v2224
        %v2234 = vmul.f32 %v2169, %v2229
        %2236 = vset.pattern.permute.xlu0 0
        %2237 = vperm.xlu0 %2236, %v2219
        %v2238 = vpop.permute.xlu0 %2237
        %2241 = vset.pattern.permute.xlu0 0
        %2242 = vperm.xlu0 %2241, %v2220
        %v2243 = vpop.permute.xlu0 %2242
        %v2245 = vadd.f32 %v2231, %v2238
        %v2246 = vadd.f32 %v2232, %v2243
        %v2247 = vadd.f32 %v2233, %v2238
        %v2248 = vadd.f32 %v2234, %v2243
        %v2249 = vmax.f32 %v2245, 0.0
        %v2250 = vmax.f32 %v2246, 0.0
        %v2251 = vmax.f32 %v2247, 0.0
        %v2252 = vmax.f32 %v2248, 0.0
        %v2253 = vld [vmem:[%s27] sm:$0xf]
        %v2254 = vld [vmem:[%s27 + $0x4] sm:$0xf]
        %v2255 = vld [vmem:[%s27 + $0x8] sm:$0xf]
        %v2256 = vld [vmem:[%s27 + $0xc] sm:$0xf]
        %v2257 = vld [vmem:[%s27 + $0x10] sm:$0xf]
        %v2258 = vld [vmem:[%s27 + $0x14] sm:$0xf]
        %v2259 = vld [vmem:[%s27 + $0x18] sm:$0xf]
        %v2260 = vld [vmem:[%s27 + $0x1c] sm:$0xf]
        %v2261 = vpack.c.bf16 %v2250, %v2249
        %v2262 = vpack.c.bf16 %v2252, %v2251
        %v2263 = vld [vmem:[%s29] sm:$0x1]
        %v2265 = vlaneseq
        %v2266 = vshrl.u32 %v2265, 7
        %v2267 = vsub.s32 0, %v2266
        %v2268 = vrot.slane %v2263, %v2267
        %v2278 = vunpack.c.l.b16 %v2253
        %v2279 = vunpack.c.l.b16 %v2254
        %v2280 = vunpack.c.l.b16 %v2255
        %v2281 = vunpack.c.l.b16 %v2256
        %v2282 = vunpack.c.l.b16 %v2257
        %v2283 = vunpack.c.l.b16 %v2258
        %v2284 = vunpack.c.l.b16 %v2259
        %v2285 = vunpack.c.l.b16 %v2260
        %v2286 = vpack.c.b16 %v2279, %v2278
        %v2287 = vpack.c.b16 %v2281, %v2280
        %v2288 = vpack.c.b16 %v2283, %v2282
        %v2289 = vpack.c.b16 %v2285, %v2284
        %v2295 = vsel %vm2176, %v2261, 0
        %v2298 = vsel %vm2176, %v2262, 0
        %2300 = vmatprep.subr.bf16.mxu0 0
        %2301 = vmatpush1.bf16.msra.mxu0 %v2286
        %2302 = vmatprep.subr.bf16.mxu0 0
        %2303 = vmatpush1.bf16.msra.mxu0 %v2287
        %2304 = vmatprep.subr.bf16.mxu0 0
        %2305 = vmatpush1.bf16.msra.mxu0 %v2288
        %2306 = vmatprep.subr.bf16.mxu0 0
        %2307 = vmatpush1.bf16.msra.mxu0 %v2289
        %2308 = vmatprep.subr.bf16.mxu0 0
        %2309 = vmatpush1.bf16.msra.mxu0 0
        %2310 = vmatprep.subr.bf16.mxu0 0
        %2311 = vmatpush1.bf16.msra.mxu0 0
        %2312 = vmatprep.subr.bf16.mxu0 0
        %2313 = vmatpush1.bf16.msra.mxu0 0
        %2314 = vmatprep.subr.bf16.mxu0 0
        %2315 = vmatpush1.bf16.msra.mxu0 0
        %2316 = vmatprep.subr.bf16.mxu0 0
        %2317 = vmatpush1.bf16.msra.mxu0 0
        %2318 = vmatprep.subr.bf16.mxu0 0
        %2319 = vmatpush1.bf16.msra.mxu0 0
        %2320 = vmatprep.subr.bf16.mxu0 0
        %2321 = vmatpush1.bf16.msra.mxu0 0
        %2322 = vmatprep.subr.bf16.mxu0 0
        %2323 = vmatpush1.bf16.msra.mxu0 0
        %2324 = vmatprep.subr.bf16.mxu0 0
        %2325 = vmatpush1.bf16.msra.mxu0 0
        %2326 = vmatprep.subr.bf16.mxu0 0
        %2327 = vmatpush1.bf16.msra.mxu0 0
        %2328 = vmatprep.subr.bf16.mxu0 0
        %2329 = vmatpush1.bf16.msra.mxu0 0
        %2330 = vmatprep.subr.bf16.mxu0 0
        %2331 = vmatpush1.bf16.msra.mxu0 0
        %2332 = vmatprep.mubr.bf16.mxu0 0
        %2333 = vmatmul.mubr.bf16.gmra.mrb[0].mxu0 %v2295
        %v2334 = vpop.f32.mrb[0].mxu0
        %v2335 = vadd.f32 %v2268, %v2334
        %v2336 = vpop.f32.mrb[0].mxu0
        %v2337 = vpop.f32.mrb[0].mxu0
        %v2338 = vadd.f32 %v2268, %v2337
        %v2339 = vpop.f32.mrb[0].mxu0
        %2340 = vmatprep.mubr.bf16.mxu0 0
        %2341 = vmatmul.mubr.bf16.gmra.mrb[0].mxu0 %v2298
        %v2342 = vpop.f32.mrb[0].mxu0
        %v2343 = vadd.f32 %v2268, %v2342
        %v2344 = vpop.f32.mrb[0].mxu0
        %v2345 = vpop.f32.mrb[0].mxu0
        %v2346 = vadd.f32 %v2268, %v2345
        %v2347 = vpop.f32.mrb[0].mxu0
        %2348 = vdwg.mxu0
        %v2349 = vld [vmem:[%s1570] sm:$0xff]
        %v2350 = vld [vmem:[%s1570 + $0x8] sm:$0xff]
        %v2351 = vld [vmem:[%s1576] sm:$0xff]
        %v2352 = vld [vmem:[%s1576 + $0x8] sm:$0xff]
        %vm2353 = vcmask 261120
        %v2354 = vsel %vm2353, %v2335, 0.0
        %v2355 = vsel %vm2353, %v2343, 0.0
        %v2356 = vadd.f32 %v2354, %v2355
        %2357 = vadd.xlane.f32.xlu0 %v2356
        %v2358 = vpop.xlane.xlu0 %2357
        %v2359 = vsel %vm2353, %v2338, 0.0
        %v2360 = vsel %vm2353, %v2346, 0.0
        %v2361 = vadd.f32 %v2359, %v2360
        %2362 = vadd.xlane.f32.xlu0 %v2361
        %v2363 = vpop.xlane.xlu0 %2362
        %v2364 = vmul.f32 %v2335, %v2335
        %v2365 = vmul.f32 %v2338, %v2338
        %v2366 = vmul.f32 %v2343, %v2343
        %v2367 = vmul.f32 %v2346, %v2346
        %v2368 = vsel %vm2353, %v2364, 0.0
        %v2369 = vsel %vm2353, %v2366, 0.0
        %v2370 = vadd.f32 %v2368, %v2369
        %2371 = vadd.xlane.f32.xlu0 %v2370
        %v2372 = vpop.xlane.xlu0 %2371
        %v2373 = vsel %vm2353, %v2365, 0.0
        %v2374 = vsel %vm2353, %v2367, 0.0
        %v2375 = vadd.f32 %v2373, %v2374
        %2376 = vadd.xlane.f32.xlu0 %v2375
        %v2377 = vpop.xlane.xlu0 %2376
        %v2378 = vmul.f32 %v2358, 0.015625
        %v2379 = vmul.f32 %v2363, 0.015625
        %v2380 = vmul.f32 %v2372, 0.015625
        %v2381 = vmul.f32 %v2377, 0.015625
        %v2382 = vmul.f32 %v2378, %v2378
        %v2383 = vmul.f32 %v2379, %v2379
        %v2384 = vsub.f32 %v2380, %v2382
        %v2385 = vsub.f32 %v2381, %v2383
        %v2386 = vmax.f32 %v2384, 0.0
        %v2387 = vmax.f32 %v2385, 0.0
        %v2388 = vadd.f32 %v2386, 1e-05
        %v2389 = vadd.f32 %v2387, 1e-05
        %v2390 = vrsqrt.pop %v2388
        %v2391 = vrsqrt.pop %v2389
        %v2392 = vmul.f32 %v2349, %v2390
        %v2393 = vmul.f32 %v2350, %v2391
        %v2394 = vmul.f32 %v2378, %v2392
        %v2395 = vmul.f32 %v2379, %v2393
        %v2396 = vsub.f32 %v2351, %v2394
        %v2397 = vsub.f32 %v2352, %v2395
        %2399 = vset.pattern.permute.xlu0 0
        %2400 = vperm.xlu0 %2399, %v2392
        %v2401 = vpop.permute.xlu0 %2400
        %2404 = vset.pattern.permute.xlu0 0
        %2405 = vperm.xlu0 %2404, %v2393
        %v2406 = vpop.permute.xlu0 %2405
        %v2408 = vmul.f32 %v2335, %v2401
        %v2409 = vmul.f32 %v2338, %v2406
        %v2410 = vmul.f32 %v2343, %v2401
        %v2411 = vmul.f32 %v2346, %v2406
        %2413 = vset.pattern.permute.xlu0 0
        %2414 = vperm.xlu0 %2413, %v2396
        %v2415 = vpop.permute.xlu0 %2414
        %2418 = vset.pattern.permute.xlu0 0
        %2419 = vperm.xlu0 %2418, %v2397
        %v2420 = vpop.permute.xlu0 %2419
        %v2422 = vadd.f32 %v2408, %v2415
        %v2423 = vadd.f32 %v2409, %v2420
        %v2424 = vadd.f32 %v2410, %v2415
        %v2425 = vadd.f32 %v2411, %v2420
        %v2426 = vmax.f32 %v2422, 0.0
        %v2427 = vmax.f32 %v2423, 0.0
        %v2428 = vmax.f32 %v2424, 0.0
        %v2429 = vmax.f32 %v2425, 0.0
        %v2430 = vld [vmem:[%s35] sm:$0xf]
        %v2431 = vld [vmem:[%s35 + $0x4] sm:$0xf]
        %v2432 = vld [vmem:[%s35 + $0x8] sm:$0xf]
        %v2433 = vld [vmem:[%s35 + $0xc] sm:$0xf]
        %v2434 = vpack.c.bf16 %v2427, %v2426
        %v2435 = vpack.c.bf16 %v2429, %v2428
        %v2436 = vld [vmem:[%s37] sm:$0x1]
        %v2438 = vlaneseq
        %v2439 = vshrl.u32 %v2438, 7
        %v2440 = vsub.s32 0, %v2439
        %v2441 = vrot.slane %v2436, %v2440
        %v2447 = vunpack.c.l.b16 %v2430
        %v2448 = vunpack.c.l.b16 %v2431
        %v2449 = vunpack.c.l.b16 %v2432
        %v2450 = vunpack.c.l.b16 %v2433
        %v2451 = vpack.c.b16 %v2448, %v2447
        %v2452 = vpack.c.b16 %v2450, %v2449
        %v2456 = vsel %vm2353, %v2434, 0
        %v2459 = vsel %vm2353, %v2435, 0
        %2461 = vmatprep.subr.bf16.mxu0 0
        %2462 = vmatpush1.bf16.msra.mxu0 %v2451
        %2463 = vmatprep.subr.bf16.mxu0 0
        %2464 = vmatpush1.bf16.msra.mxu0 %v2452
        %2465 = vmatprep.subr.bf16.mxu0 0
        %2466 = vmatpush1.bf16.msra.mxu0 0
        %2467 = vmatprep.subr.bf16.mxu0 0
        %2468 = vmatpush1.bf16.msra.mxu0 0
        %2469 = vmatprep.subr.bf16.mxu0 0
        %2470 = vmatpush1.bf16.msra.mxu0 0
        %2471 = vmatprep.subr.bf16.mxu0 0
        %2472 = vmatpush1.bf16.msra.mxu0 0
        %2473 = vmatprep.subr.bf16.mxu0 0
        %2474 = vmatpush1.bf16.msra.mxu0 0
        %2475 = vmatprep.subr.bf16.mxu0 0
        %2476 = vmatpush1.bf16.msra.mxu0 0
        %2477 = vmatprep.subr.bf16.mxu0 0
        %2478 = vmatpush1.bf16.msra.mxu0 0
        %2479 = vmatprep.subr.bf16.mxu0 0
        %2480 = vmatpush1.bf16.msra.mxu0 0
        %2481 = vmatprep.subr.bf16.mxu0 0
        %2482 = vmatpush1.bf16.msra.mxu0 0
        %2483 = vmatprep.subr.bf16.mxu0 0
        %2484 = vmatpush1.bf16.msra.mxu0 0
        %2485 = vmatprep.subr.bf16.mxu0 0
        %2486 = vmatpush1.bf16.msra.mxu0 0
        %2487 = vmatprep.subr.bf16.mxu0 0
        %2488 = vmatpush1.bf16.msra.mxu0 0
        %2489 = vmatprep.subr.bf16.mxu0 0
        %2490 = vmatpush1.bf16.msra.mxu0 0
        %2491 = vmatprep.subr.bf16.mxu0 0
        %2492 = vmatpush1.bf16.msra.mxu0 0
        %2493 = vmatprep.mubr.bf16.mxu0 0
        %2494 = vmatmul.mubr.bf16.gmra.mrb[0].mxu0 %v2456
        %v2495 = vpop.f32.mrb[0].mxu0
        %v2496 = vadd.f32 %v2441, %v2495
        %v2497 = vpop.f32.mrb[0].mxu0
        %v2498 = vpop.f32.mrb[0].mxu0
        %v2499 = vadd.f32 %v2441, %v2498
        %v2500 = vpop.f32.mrb[0].mxu0
        %2501 = vmatprep.mubr.bf16.mxu0 0
        %2502 = vmatmul.mubr.bf16.gmra.mrb[0].mxu0 %v2459
        %v2503 = vpop.f32.mrb[0].mxu0
        %v2504 = vadd.f32 %v2441, %v2503
        %v2505 = vpop.f32.mrb[0].mxu0
        %v2506 = vpop.f32.mrb[0].mxu0
        %v2507 = vadd.f32 %v2441, %v2506
        %v2508 = vpop.f32.mrb[0].mxu0
        %2509 = vdwg.mxu0
        %v2510 = vld [vmem:[%s1582] sm:$0xff]
        %v2511 = vld [vmem:[%s1582 + $0x8] sm:$0xff]
        %v2512 = vld [vmem:[%s1588] sm:$0xff]
        %v2513 = vld [vmem:[%s1588 + $0x8] sm:$0xff]
        %vm2514 = vcmask 31744
        %v2515 = vsel %vm2514, %v2496, 0.0
        %v2516 = vsel %vm2514, %v2504, 0.0
        %v2517 = vadd.f32 %v2515, %v2516
        %2518 = vadd.xlane.f32.xlu0 %v2517
        %v2519 = vpop.xlane.xlu0 %2518
        %v2520 = vsel %vm2514, %v2499, 0.0
        %v2521 = vsel %vm2514, %v2507, 0.0
        %v2522 = vadd.f32 %v2520, %v2521
        %2523 = vadd.xlane.f32.xlu0 %v2522
        %v2524 = vpop.xlane.xlu0 %2523
        %v2525 = vmul.f32 %v2496, %v2496
        %v2526 = vmul.f32 %v2499, %v2499
        %v2527 = vmul.f32 %v2504, %v2504
        %v2528 = vmul.f32 %v2507, %v2507
        %v2529 = vsel %vm2514, %v2525, 0.0
        %v2530 = vsel %vm2514, %v2527, 0.0
        %v2531 = vadd.f32 %v2529, %v2530
        %2532 = vadd.xlane.f32.xlu0 %v2531
        %v2533 = vpop.xlane.xlu0 %2532
        %v2534 = vsel %vm2514, %v2526, 0.0
        %v2535 = vsel %vm2514, %v2528, 0.0
        %v2536 = vadd.f32 %v2534, %v2535
        %2537 = vadd.xlane.f32.xlu0 %v2536
        %v2538 = vpop.xlane.xlu0 %2537
        %v2539 = vmul.f32 %v2519, 0.125
        %v2540 = vmul.f32 %v2524, 0.125
        %v2541 = vmul.f32 %v2533, 0.125
        %v2542 = vmul.f32 %v2538, 0.125
        %v2543 = vmul.f32 %v2539, %v2539
        %v2544 = vmul.f32 %v2540, %v2540
        %v2545 = vsub.f32 %v2541, %v2543
        %v2546 = vsub.f32 %v2542, %v2544
        %v2547 = vmax.f32 %v2545, 0.0
        %v2548 = vmax.f32 %v2546, 0.0
        %v2549 = vadd.f32 %v2547, 1e-05
        %v2550 = vadd.f32 %v2548, 1e-05
        %v2551 = vrsqrt.pop %v2549
        %v2552 = vrsqrt.pop %v2550
        %v2553 = vmul.f32 %v2510, %v2551
        %v2554 = vmul.f32 %v2511, %v2552
        %v2555 = vmul.f32 %v2539, %v2553
        %v2556 = vmul.f32 %v2540, %v2554
        %v2557 = vsub.f32 %v2512, %v2555
        %v2558 = vsub.f32 %v2513, %v2556
        %2560 = vset.pattern.permute.xlu0 0
        %2561 = vperm.xlu0 %2560, %v2553
        %v2562 = vpop.permute.xlu0 %2561
        %2565 = vset.pattern.permute.xlu0 0
        %2566 = vperm.xlu0 %2565, %v2554
        %v2567 = vpop.permute.xlu0 %2566
        %v2569 = vmul.f32 %v2496, %v2562
        %v2570 = vmul.f32 %v2499, %v2567
        %v2571 = vmul.f32 %v2504, %v2562
        %v2572 = vmul.f32 %v2507, %v2567
        %2574 = vset.pattern.permute.xlu0 0
        %2575 = vperm.xlu0 %2574, %v2557
        %v2576 = vpop.permute.xlu0 %2575
        %2579 = vset.pattern.permute.xlu0 0
        %2580 = vperm.xlu0 %2579, %v2558
        %v2581 = vpop.permute.xlu0 %2580
        %v2583 = vadd.f32 %v2569, %v2576
        %v2584 = vadd.f32 %v2570, %v2581
        %v2585 = vadd.f32 %v2571, %v2576
        %v2586 = vadd.f32 %v2572, %v2581
        %v2587 = vmax.f32 %v2583, 0.0
        %v2588 = vmax.f32 %v2584, 0.0
        %v2589 = vmax.f32 %v2585, 0.0
        %v2590 = vmax.f32 %v2586, 0.0
        %v2591 = vpack.c.bf16 %v2588, %v2587
        %v2592 = vpack.c.bf16 %v2590, %v2589
        %v2593 = vld [vmem:[%s43] sm:$0xf]
        %v2596 = vunpack.c.l.s4 1983009808
        %v2597 = vunpack.c.0.s8 %v2596
        %v2598 = vlaneseq
        %v2599 = vshrl.u32 %v2598, 7
        %v2600 = vsub.s32 %v2597, %v2599
        %v2601 = vrot.slane %v2593, %v2600
        %v2602 = vcombine.high %v2601, %v2601
        %v2604 = vsel %vm2514, %v2591, 0
        %v2607 = vsel %vm2514, %v2592, 0
        %vm2609 = vcmask 1041408
        %v2611 = vsel %vm2609, %v2601, 0
        %v2614 = vsel %vm2609, %v2602, 0
        %2616 = vmatprep.subr.bf16.mxu0 %v2614
        %2617 = vmatpush1.bf16.msra.mxu0 %v2611
        %2618 = vmatprep.subr.bf16.mxu0 0
        %2619 = vmatpush1.bf16.msra.mxu0 0
        %2620 = vmatprep.subr.bf16.mxu0 0
        %2621 = vmatpush1.bf16.msra.mxu0 0
        %2622 = vmatprep.subr.bf16.mxu0 0
        %2623 = vmatpush1.bf16.msra.mxu0 0
        %2624 = vmatprep.subr.bf16.mxu0 0
        %2625 = vmatpush1.bf16.msra.mxu0 0
        %2626 = vmatprep.subr.bf16.mxu0 0
        %2627 = vmatpush1.bf16.msra.mxu0 0
        %2628 = vmatprep.subr.bf16.mxu0 0
        %2629 = vmatpush1.bf16.msra.mxu0 0
        %2630 = vmatprep.subr.bf16.mxu0 0
        %2631 = vmatpush1.bf16.msra.mxu0 0
        %2632 = vmatprep.subr.bf16.mxu0 0
        %2633 = vmatpush1.bf16.msra.mxu0 0
        %2634 = vmatprep.subr.bf16.mxu0 0
        %2635 = vmatpush1.bf16.msra.mxu0 0
        %2636 = vmatprep.subr.bf16.mxu0 0
        %2637 = vmatpush1.bf16.msra.mxu0 0
        %2638 = vmatprep.subr.bf16.mxu0 0
        %2639 = vmatpush1.bf16.msra.mxu0 0
        %2640 = vmatprep.subr.bf16.mxu0 0
        %2641 = vmatpush1.bf16.msra.mxu0 0
        %2642 = vmatprep.subr.bf16.mxu0 0
        %2643 = vmatpush1.bf16.msra.mxu0 0
        %2644 = vmatprep.subr.bf16.mxu0 0
        %2645 = vmatpush1.bf16.msra.mxu0 0
        %2646 = vmatprep.subr.bf16.mxu0 0
        %2647 = vmatpush1.bf16.msra.mxu0 0
        %2648 = vmatprep.mubr.bf16.mxu0 0
        %2649 = vmatmul.mubr.bf16.gmra.mrb[0].mxu0 %v2604
        %v2650 = vpop.f32.mrb[0].mxu0
        %v2651 = vadd.f32 0.0, %v2650
        %v2652 = vpop.f32.mrb[0].mxu0
        %v2653 = vadd.f32 0.0, %v2652
        %v2654 = vpop.f32.mrb[0].mxu0
        %v2655 = vadd.f32 0.0, %v2654
        %v2656 = vpop.f32.mrb[0].mxu0
        %v2657 = vadd.f32 0.0, %v2656
        %2658 = vmatprep.mubr.bf16.mxu0 0
        %2659 = vmatmul.mubr.bf16.gmra.mrb[0].mxu0 %v2607
        %v2660 = vpop.f32.mrb[0].mxu0
        %v2661 = vadd.f32 0.0, %v2660
        %v2662 = vpop.f32.mrb[0].mxu0
        %v2663 = vadd.f32 0.0, %v2662
        %v2664 = vpop.f32.mrb[0].mxu0
        %v2665 = vadd.f32 0.0, %v2664
        %v2666 = vpop.f32.mrb[0].mxu0
        %v2667 = vadd.f32 0.0, %v2666
        %2668 = vdwg.mxu0
        %v2669 = vld [vmem:[%s3] sm:$0xf]
        %v2672 = vunpack.c.l.s4 1966171168
        %v2673 = vunpack.c.0.s8 %v2672
        %v2674 = vlaneseq
        %v2675 = vshrl.u32 %v2674, 7
        %v2676 = vsub.s32 %v2673, %v2675
        %v2677 = vrot.slane %v2669, %v2676
        %v2678 = vcombine.high %v2677, %v2677
        %v2679 = vlaneseq
        %v2680 = vshrl.u32 %v2679, 7
        %v2681 = vsub.s32 0, %v2680
        %v2682 = vrot.slane %v2677, %v2681
        %v2683 = vlaneseq
        %v2684 = vshrl.u32 %v2683, 7
        %v2685 = vsub.s32 1, %v2684
        %v2686 = vrot.slane %v2677, %v2685
        %v2687 = vlaneseq
        %v2688 = vshrl.u32 %v2687, 7
        %v2689 = vsub.s32 0, %v2688
        %v2690 = vrot.slane %v2678, %v2689
        %v2691 = vlaneseq
        %v2692 = vshrl.u32 %v2691, 7
        %v2693 = vsub.s32 1, %v2692
        %v2694 = vrot.slane %v2678, %v2693
        %v2699 = vadd.f32 %v2651, %v2682
        %v2700 = vadd.f32 %v2653, %v2686
        %v2701 = vadd.f32 %v2655, %v2682
        %v2702 = vadd.f32 %v2657, %v2686
        %v2703 = vadd.f32 %v2661, %v2690
        %v2704 = vadd.f32 %v2663, %v2694
        %v2705 = vadd.f32 %v2665, %v2690
        %v2706 = vadd.f32 %v2667, %v2694
        %v2707 = vld [vmem:[%s1594] sm:$0xff]
        %v2708 = vld [vmem:[%s1594 + $0x8] sm:$0xff]
        %v2709 = vld [vmem:[%s1600] sm:$0xff]
        %v2710 = vld [vmem:[%s1600 + $0x8] sm:$0xff]
        %v2711 = vadd.f32 %v2699, %v2700
        %v2712 = vadd.f32 %v2711, %v2703
        %v2713 = vadd.f32 %v2712, %v2704
        %2714 = vadd.xlane.f32.xlu0 %v2713
        %v2715 = vpop.xlane.xlu0 %2714
        %v2716 = vadd.f32 %v2701, %v2702
        %v2717 = vadd.f32 %v2716, %v2705
        %v2718 = vadd.f32 %v2717, %v2706
        %2719 = vadd.xlane.f32.xlu0 %v2718
        %v2720 = vpop.xlane.xlu0 %2719
        %v2721 = vmul.f32 %v2699, %v2699
        %v2722 = vmul.f32 %v2700, %v2700
        %v2723 = vmul.f32 %v2701, %v2701
        %v2724 = vmul.f32 %v2702, %v2702
        %v2725 = vmul.f32 %v2703, %v2703
        %v2726 = vmul.f32 %v2704, %v2704
        %v2727 = vmul.f32 %v2705, %v2705
        %v2728 = vmul.f32 %v2706, %v2706
        %v2729 = vadd.f32 %v2721, %v2722
        %v2730 = vadd.f32 %v2729, %v2725
        %v2731 = vadd.f32 %v2730, %v2726
        %2732 = vadd.xlane.f32.xlu0 %v2731
        %v2733 = vpop.xlane.xlu0 %2732
        %v2734 = vadd.f32 %v2723, %v2724
        %v2735 = vadd.f32 %v2734, %v2727
        %v2736 = vadd.f32 %v2735, %v2728
        %2737 = vadd.xlane.f32.xlu0 %v2736
        %v2738 = vpop.xlane.xlu0 %2737
        %v2739 = vmul.f32 %v2715, 0.001953125
        %v2740 = vmul.f32 %v2720, 0.001953125
        %v2741 = vmul.f32 %v2733, 0.001953125
        %v2742 = vmul.f32 %v2738, 0.001953125
        %v2743 = vmul.f32 %v2739, %v2739
        %v2744 = vmul.f32 %v2740, %v2740
        %v2745 = vsub.f32 %v2741, %v2743
        %v2746 = vsub.f32 %v2742, %v2744
        %v2747 = vmax.f32 %v2745, 0.0
        %v2748 = vmax.f32 %v2746, 0.0
        %v2749 = vadd.f32 %v2747, 1e-05
        %v2750 = vadd.f32 %v2748, 1e-05
        %v2751 = vrsqrt.pop %v2749
        %v2752 = vrsqrt.pop %v2750
        %v2753 = vmul.f32 %v2707, %v2751
        %v2754 = vmul.f32 %v2708, %v2752
        %v2755 = vmul.f32 %v2739, %v2753
        %v2756 = vmul.f32 %v2740, %v2754
        %v2757 = vsub.f32 %v2709, %v2755
        %v2758 = vsub.f32 %v2710, %v2756
        %2760 = vset.pattern.permute.xlu0 0
        %2761 = vperm.xlu0 %2760, %v2753
        %v2762 = vpop.permute.xlu0 %2761
        %2765 = vset.pattern.permute.xlu0 0
        %2766 = vperm.xlu0 %2765, %v2754
        %v2767 = vpop.permute.xlu0 %2766
        %v2769 = vmul.f32 %v2699, %v2762
        %v2770 = vmul.f32 %v2700, %v2762
        %v2771 = vmul.f32 %v2701, %v2767
        %v2772 = vmul.f32 %v2702, %v2767
        %v2773 = vmul.f32 %v2703, %v2762
        %v2774 = vmul.f32 %v2704, %v2762
        %v2775 = vmul.f32 %v2705, %v2767
        %v2776 = vmul.f32 %v2706, %v2767
        %2778 = vset.pattern.permute.xlu0 0
        %2779 = vperm.xlu0 %2778, %v2757
        %v2780 = vpop.permute.xlu0 %2779
        %2783 = vset.pattern.permute.xlu0 0
        %2784 = vperm.xlu0 %2783, %v2758
        %v2785 = vpop.permute.xlu0 %2784
        %v2787 = vadd.f32 %v2769, %v2780
        %v2788 = vadd.f32 %v2770, %v2780
        %v2789 = vadd.f32 %v2771, %v2785
        %v2790 = vadd.f32 %v2772, %v2785
        %v2791 = vadd.f32 %v2773, %v2780
        %v2792 = vadd.f32 %v2774, %v2780
        %v2793 = vadd.f32 %v2775, %v2785
        %v2794 = vadd.f32 %v2776, %v2785
        %v2795 = vmax.f32 %v2787, 0.0
        %v2796 = vmax.f32 %v2788, 0.0
        %v2797 = vmax.f32 %v2789, 0.0
        %v2798 = vmax.f32 %v2790, 0.0
        %v2799 = vmax.f32 %v2791, 0.0
        %v2800 = vmax.f32 %v2792, 0.0
        %v2801 = vmax.f32 %v2793, 0.0
        %v2802 = vmax.f32 %v2794, 0.0
        %v2803 = vld [vmem:[%s49] sm:$0xf]
        %v2804 = vld [vmem:[%s49 + $0x4] sm:$0xf]
        %v2805 = vld [vmem:[%s49 + $0x8] sm:$0xf]
        %v2806 = vld [vmem:[%s49 + $0xc] sm:$0xf]
        %v2807 = vld [vmem:[%s49 + $0x10] sm:$0xf]
        %v2808 = vld [vmem:[%s49 + $0x14] sm:$0xf]
        %v2809 = vld [vmem:[%s49 + $0x18] sm:$0xf]
        %v2810 = vld [vmem:[%s49 + $0x1c] sm:$0xf]
        %v2811 = vld [vmem:[%s49 + $0x20] sm:$0xf]
        %v2812 = vld [vmem:[%s49 + $0x24] sm:$0xf]
        %v2813 = vld [vmem:[%s49 + $0x28] sm:$0xf]
        %v2814 = vld [vmem:[%s49 + $0x2c] sm:$0xf]
        %v2815 = vld [vmem:[%s49 + $0x30] sm:$0xf]
        %v2816 = vld [vmem:[%s49 + $0x34] sm:$0xf]
        %v2817 = vld [vmem:[%s49 + $0x38] sm:$0xf]
        %v2818 = vld [vmem:[%s49 + $0x3c] sm:$0xf]
        %v2819 = vld [vmem:[%s49 + $0x40] sm:$0xf]
        %v2820 = vld [vmem:[%s49 + $0x44] sm:$0xf]
        %v2821 = vld [vmem:[%s49 + $0x48] sm:$0xf]
        %v2822 = vld [vmem:[%s49 + $0x4c] sm:$0xf]
        %v2823 = vld [vmem:[%s49 + $0x50] sm:$0xf]
        %v2824 = vld [vmem:[%s49 + $0x54] sm:$0xf]
        %v2825 = vld [vmem:[%s49 + $0x58] sm:$0xf]
        %v2826 = vld [vmem:[%s49 + $0x5c] sm:$0xf]
        %v2827 = vld [vmem:[%s49 + $0x60] sm:$0xf]
        %v2828 = vld [vmem:[%s49 + $0x64] sm:$0xf]
        %v2829 = vld [vmem:[%s49 + $0x68] sm:$0xf]
        %v2830 = vld [vmem:[%s49 + $0x6c] sm:$0xf]
        %v2831 = vld [vmem:[%s49 + $0x70] sm:$0xf]
        %v2832 = vld [vmem:[%s49 + $0x74] sm:$0xf]
        %v2833 = vld [vmem:[%s49 + $0x78] sm:$0xf]
        %v2834 = vld [vmem:[%s49 + $0x7c] sm:$0xf]
        %v2835 = vpack.c.bf16 %v2797, %v2795
        %v2836 = vpack.c.bf16 %v2798, %v2796
        %v2837 = vpack.c.bf16 %v2801, %v2799
        %v2838 = vpack.c.bf16 %v2802, %v2800
        %v2839 = vld [vmem:[%s51] sm:$0x1]
        %v2841 = vlaneseq
        %v2842 = vshrl.u32 %v2841, 7
        %v2843 = vsub.s32 0, %v2842
        %v2844 = vrot.slane %v2839, %v2843
        %v2878 = vunpack.c.l.b16 %v2803
        %v2879 = vunpack.c.l.b16 %v2804
        %v2880 = vunpack.c.l.b16 %v2805
        %v2881 = vunpack.c.l.b16 %v2806
        %v2882 = vunpack.c.l.b16 %v2807
        %v2883 = vunpack.c.l.b16 %v2808
        %v2884 = vunpack.c.l.b16 %v2809
        %v2885 = vunpack.c.l.b16 %v2810
        %v2886 = vunpack.c.l.b16 %v2811
        %v2887 = vunpack.c.l.b16 %v2812
        %v2888 = vunpack.c.l.b16 %v2813
        %v2889 = vunpack.c.l.b16 %v2814
        %v2890 = vunpack.c.l.b16 %v2815
        %v2891 = vunpack.c.l.b16 %v2816
        %v2892 = vunpack.c.l.b16 %v2817
        %v2893 = vunpack.c.l.b16 %v2818
        %v2894 = vunpack.c.l.b16 %v2819
        %v2895 = vunpack.c.l.b16 %v2820
        %v2896 = vunpack.c.l.b16 %v2821
        %v2897 = vunpack.c.l.b16 %v2822
        %v2898 = vunpack.c.l.b16 %v2823
        %v2899 = vunpack.c.l.b16 %v2824
        %v2900 = vunpack.c.l.b16 %v2825
        %v2901 = vunpack.c.l.b16 %v2826
        %v2902 = vunpack.c.l.b16 %v2827
        %v2903 = vunpack.c.l.b16 %v2828
        %v2904 = vunpack.c.l.b16 %v2829
        %v2905 = vunpack.c.l.b16 %v2830
        %v2906 = vunpack.c.l.b16 %v2831
        %v2907 = vunpack.c.l.b16 %v2832
        %v2908 = vunpack.c.l.b16 %v2833
        %v2909 = vunpack.c.l.b16 %v2834
        %v2910 = vpack.c.b16 %v2879, %v2878
        %v2911 = vpack.c.b16 %v2881, %v2880
        %v2912 = vpack.c.b16 %v2883, %v2882
        %v2913 = vpack.c.b16 %v2885, %v2884
        %v2914 = vpack.c.b16 %v2887, %v2886
        %v2915 = vpack.c.b16 %v2889, %v2888
        %v2916 = vpack.c.b16 %v2891, %v2890
        %v2917 = vpack.c.b16 %v2893, %v2892
        %v2918 = vpack.c.b16 %v2895, %v2894
        %v2919 = vpack.c.b16 %v2897, %v2896
        %v2920 = vpack.c.b16 %v2899, %v2898
        %v2921 = vpack.c.b16 %v2901, %v2900
        %v2922 = vpack.c.b16 %v2903, %v2902
        %v2923 = vpack.c.b16 %v2905, %v2904
        %v2924 = vpack.c.b16 %v2907, %v2906
        %v2925 = vpack.c.b16 %v2909, %v2908
        %2942 = vmatprep.subr.bf16.mxu0 0
        %2943 = vmatpush1.bf16.msra.mxu0 %v2910
        %2944 = vmatprep.subr.bf16.mxu0 0
        %2945 = vmatpush1.bf16.msra.mxu0 %v2911
        %2946 = vmatprep.subr.bf16.mxu0 0
        %2947 = vmatpush1.bf16.msra.mxu0 %v2912
        %2948 = vmatprep.subr.bf16.mxu0 0
        %2949 = vmatpush1.bf16.msra.mxu0 %v2913
        %2950 = vmatprep.subr.bf16.mxu0 0
        %2951 = vmatpush1.bf16.msra.mxu0 %v2914
        %2952 = vmatprep.subr.bf16.mxu0 0
        %2953 = vmatpush1.bf16.msra.mxu0 %v2915
        %2954 = vmatprep.subr.bf16.mxu0 0
        %2955 = vmatpush1.bf16.msra.mxu0 %v2916
        %2956 = vmatprep.subr.bf16.mxu0 0
        %2957 = vmatpush1.bf16.msra.mxu0 %v2917
        %2958 = vmatprep.subr.bf16.mxu0 0
        %2959 = vmatpush1.bf16.msra.mxu0 %v2918
        %2960 = vmatprep.subr.bf16.mxu0 0
        %2961 = vmatpush1.bf16.msra.mxu0 %v2919
        %2962 = vmatprep.subr.bf16.mxu0 0
        %2963 = vmatpush1.bf16.msra.mxu0 %v2920
        %2964 = vmatprep.subr.bf16.mxu0 0
        %2965 = vmatpush1.bf16.msra.mxu0 %v2921
        %2966 = vmatprep.subr.bf16.mxu0 0
        %2967 = vmatpush1.bf16.msra.mxu0 %v2922
        %2968 = vmatprep.subr.bf16.mxu0 0
        %2969 = vmatpush1.bf16.msra.mxu0 %v2923
        %2970 = vmatprep.subr.bf16.mxu0 0
        %2971 = vmatpush1.bf16.msra.mxu0 %v2924
        %2972 = vmatprep.subr.bf16.mxu0 0
        %2973 = vmatpush1.bf16.msra.mxu0 %v2925
        %2974 = vmatprep.mubr.bf16.mxu0 %v2836
        %2975 = vmatmul.mubr.bf16.gmra.mrb[0].mxu0 %v2835
        %v2976 = vpop.f32.mrb[0].mxu0
        %v2977 = vadd.f32 %v2844, %v2976
        %v2978 = vpop.f32.mrb[0].mxu0
        %v2979 = vpop.f32.mrb[0].mxu0
        %v2980 = vadd.f32 %v2844, %v2979
        %v2981 = vpop.f32.mrb[0].mxu0
        %2982 = vmatprep.mubr.bf16.mxu0 %v2838
        %2983 = vmatmul.mubr.bf16.gmra.mrb[0].mxu0 %v2837
        %v2984 = vpop.f32.mrb[0].mxu0
        %v2985 = vadd.f32 %v2844, %v2984
        %v2986 = vpop.f32.mrb[0].mxu0
        %v2987 = vpop.f32.mrb[0].mxu0
        %v2988 = vadd.f32 %v2844, %v2987
        %v2989 = vpop.f32.mrb[0].mxu0
        %2990 = vdwg.mxu0
        %v2991 = vld [vmem:[%s1606] sm:$0xff]
        %v2992 = vld [vmem:[%s1606 + $0x8] sm:$0xff]
        %v2993 = vld [vmem:[%s1612] sm:$0xff]
        %v2994 = vld [vmem:[%s1612 + $0x8] sm:$0xff]
        %v2995 = vadd.f32 %v2977, %v2985
        %2996 = vadd.xlane.f32.xlu0 %v2995
        %v2997 = vpop.xlane.xlu0 %2996
        %v2998 = vadd.f32 %v2980, %v2988
        %2999 = vadd.xlane.f32.xlu0 %v2998
        %v3000 = vpop.xlane.xlu0 %2999
        %v3001 = vmul.f32 %v2977, %v2977
        %v3002 = vmul.f32 %v2980, %v2980
        %v3003 = vmul.f32 %v2985, %v2985
        %v3004 = vmul.f32 %v2988, %v2988
        %v3005 = vadd.f32 %v3001, %v3003
        %3006 = vadd.xlane.f32.xlu0 %v3005
        %v3007 = vpop.xlane.xlu0 %3006
        %v3008 = vadd.f32 %v3002, %v3004
        %3009 = vadd.xlane.f32.xlu0 %v3008
        %v3010 = vpop.xlane.xlu0 %3009
        %v3011 = vmul.f32 %v2997, 0.00390625
        %v3012 = vmul.f32 %v3000, 0.00390625
        %v3013 = vmul.f32 %v3007, 0.00390625
        %v3014 = vmul.f32 %v3010, 0.00390625
        %v3015 = vmul.f32 %v3011, %v3011
        %v3016 = vmul.f32 %v3012, %v3012
        %v3017 = vsub.f32 %v3013, %v3015
        %v3018 = vsub.f32 %v3014, %v3016
        %v3019 = vmax.f32 %v3017, 0.0
        %v3020 = vmax.f32 %v3018, 0.0
        %v3021 = vadd.f32 %v3019, 1e-05
        %v3022 = vadd.f32 %v3020, 1e-05
        %v3023 = vrsqrt.pop %v3021
        %v3024 = vrsqrt.pop %v3022
        %v3025 = vmul.f32 %v2991, %v3023
        %v3026 = vmul.f32 %v2992, %v3024
        %v3027 = vmul.f32 %v3011, %v3025
        %v3028 = vmul.f32 %v3012, %v3026
        %v3029 = vsub.f32 %v2993, %v3027
        %v3030 = vsub.f32 %v2994, %v3028
        %3032 = vset.pattern.permute.xlu0 0
        %3033 = vperm.xlu0 %3032, %v3025
        %v3034 = vpop.permute.xlu0 %3033
        %3037 = vset.pattern.permute.xlu0 0
        %3038 = vperm.xlu0 %3037, %v3026
        %v3039 = vpop.permute.xlu0 %3038
        %v3041 = vmul.f32 %v2977, %v3034
        %v3042 = vmul.f32 %v2980, %v3039
        %v3043 = vmul.f32 %v2985, %v3034
        %v3044 = vmul.f32 %v2988, %v3039
        %3046 = vset.pattern.permute.xlu0 0
        %3047 = vperm.xlu0 %3046, %v3029
        %v3048 = vpop.permute.xlu0 %3047
        %3051 = vset.pattern.permute.xlu0 0
        %3052 = vperm.xlu0 %3051, %v3030
        %v3053 = vpop.permute.xlu0 %3052
        %v3055 = vadd.f32 %v3041, %v3048
        %v3056 = vadd.f32 %v3042, %v3053
        %v3057 = vadd.f32 %v3043, %v3048
        %v3058 = vadd.f32 %v3044, %v3053
        %v3059 = vmax.f32 %v3055, 0.0
        %v3060 = vmax.f32 %v3056, 0.0
        %v3061 = vmax.f32 %v3057, 0.0
        %v3062 = vmax.f32 %v3058, 0.0
        %v3063 = vld [vmem:[%s57] sm:$0xf]
        %v3064 = vld [vmem:[%s57 + $0x4] sm:$0xf]
        %v3065 = vld [vmem:[%s57 + $0x8] sm:$0xf]
        %v3066 = vld [vmem:[%s57 + $0xc] sm:$0xf]
        %v3067 = vld [vmem:[%s57 + $0x10] sm:$0xf]
        %v3068 = vld [vmem:[%s57 + $0x14] sm:$0xf]
        %v3069 = vld [vmem:[%s57 + $0x18] sm:$0xf]
        %v3070 = vld [vmem:[%s57 + $0x1c] sm:$0xf]
        %v3071 = vld [vmem:[%s57 + $0x20] sm:$0xf]
        %v3072 = vld [vmem:[%s57 + $0x24] sm:$0xf]
        %v3073 = vld [vmem:[%s57 + $0x28] sm:$0xf]
        %v3074 = vld [vmem:[%s57 + $0x2c] sm:$0xf]
        %v3075 = vld [vmem:[%s57 + $0x30] sm:$0xf]
        %v3076 = vld [vmem:[%s57 + $0x34] sm:$0xf]
        %v3077 = vld [vmem:[%s57 + $0x38] sm:$0xf]
        %v3078 = vld [vmem:[%s57 + $0x3c] sm:$0xf]
        %v3079 = vpack.c.bf16 %v3060, %v3059
        %v3080 = vpack.c.bf16 %v3062, %v3061
        %v3081 = vld [vmem:[%s59] sm:$0x1]
        %v3083 = vlaneseq
        %v3084 = vshrl.u32 %v3083, 7
        %v3085 = vsub.s32 0, %v3084
        %v3086 = vrot.slane %v3081, %v3085
        %v3104 = vunpack.c.l.b16 %v3063
        %v3105 = vunpack.c.l.b16 %v3064
        %v3106 = vunpack.c.l.b16 %v3065
        %v3107 = vunpack.c.l.b16 %v3066
        %v3108 = vunpack.c.l.b16 %v3067
        %v3109 = vunpack.c.l.b16 %v3068
        %v3110 = vunpack.c.l.b16 %v3069
        %v3111 = vunpack.c.l.b16 %v3070
        %v3112 = vunpack.c.l.b16 %v3071
        %v3113 = vunpack.c.l.b16 %v3072
        %v3114 = vunpack.c.l.b16 %v3073
        %v3115 = vunpack.c.l.b16 %v3074
        %v3116 = vunpack.c.l.b16 %v3075
        %v3117 = vunpack.c.l.b16 %v3076
        %v3118 = vunpack.c.l.b16 %v3077
        %v3119 = vunpack.c.l.b16 %v3078
        %v3120 = vpack.c.b16 %v3105, %v3104
        %v3121 = vpack.c.b16 %v3107, %v3106
        %v3122 = vpack.c.b16 %v3109, %v3108
        %v3123 = vpack.c.b16 %v3111, %v3110
        %v3124 = vpack.c.b16 %v3113, %v3112
        %v3125 = vpack.c.b16 %v3115, %v3114
        %v3126 = vpack.c.b16 %v3117, %v3116
        %v3127 = vpack.c.b16 %v3119, %v3118
        %3136 = vmatprep.subr.bf16.mxu0 0
        %3137 = vmatpush1.bf16.msra.mxu0 %v3120
        %3138 = vmatprep.subr.bf16.mxu0 0
        %3139 = vmatpush1.bf16.msra.mxu0 %v3121
        %3140 = vmatprep.subr.bf16.mxu0 0
        %3141 = vmatpush1.bf16.msra.mxu0 %v3122
        %3142 = vmatprep.subr.bf16.mxu0 0
        %3143 = vmatpush1.bf16.msra.mxu0 %v3123
        %3144 = vmatprep.subr.bf16.mxu0 0
        %3145 = vmatpush1.bf16.msra.mxu0 %v3124
        %3146 = vmatprep.subr.bf16.mxu0 0
        %3147 = vmatpush1.bf16.msra.mxu0 %v3125
        %3148 = vmatprep.subr.bf16.mxu0 0
        %3149 = vmatpush1.bf16.msra.mxu0 %v3126
        %3150 = vmatprep.subr.bf16.mxu0 0
        %3151 = vmatpush1.bf16.msra.mxu0 %v3127
        %3152 = vmatprep.subr.bf16.mxu0 0
        %3153 = vmatpush1.bf16.msra.mxu0 0
        %3154 = vmatprep.subr.bf16.mxu0 0
        %3155 = vmatpush1.bf16.msra.mxu0 0
        %3156 = vmatprep.subr.bf16.mxu0 0
        %3157 = vmatpush1.bf16.msra.mxu0 0
        %3158 = vmatprep.subr.bf16.mxu0 0
        %3159 = vmatpush1.bf16.msra.mxu0 0
        %3160 = vmatprep.subr.bf16.mxu0 0
        %3161 = vmatpush1.bf16.msra.mxu0 0
        %3162 = vmatprep.subr.bf16.mxu0 0
        %3163 = vmatpush1.bf16.msra.mxu0 0
        %3164 = vmatprep.subr.bf16.mxu0 0
        %3165 = vmatpush1.bf16.msra.mxu0 0
        %3166 = vmatprep.subr.bf16.mxu0 0
        %3167 = vmatpush1.bf16.msra.mxu0 0
        %3168 = vmatprep.mubr.bf16.mxu0 0
        %3169 = vmatmul.mubr.bf16.gmra.mrb[0].mxu0 %v3079
        %v3170 = vpop.f32.mrb[0].mxu0
        %v3171 = vadd.f32 %v3086, %v3170
        %v3172 = vpop.f32.mrb[0].mxu0
        %v3173 = vpop.f32.mrb[0].mxu0
        %v3174 = vadd.f32 %v3086, %v3173
        %v3175 = vpop.f32.mrb[0].mxu0
        %3176 = vmatprep.mubr.bf16.mxu0 0
        %3177 = vmatmul.mubr.bf16.gmra.mrb[0].mxu0 %v3080
        %v3178 = vpop.f32.mrb[0].mxu0
        %v3179 = vadd.f32 %v3086, %v3178
        %v3180 = vpop.f32.mrb[0].mxu0
        %v3181 = vpop.f32.mrb[0].mxu0
        %v3182 = vadd.f32 %v3086, %v3181
        %v3183 = vpop.f32.mrb[0].mxu0
        %3184 = vdwg.mxu0
        %v3185 = vld [vmem:[%s1618] sm:$0xff]
        %v3186 = vld [vmem:[%s1618 + $0x8] sm:$0xff]
        %v3187 = vld [vmem:[%s1624] sm:$0xff]
        %v3188 = vld [vmem:[%s1624 + $0x8] sm:$0xff]
        %v3189 = vsel %vm2176, %v3171, 0.0
        %v3190 = vsel %vm2176, %v3179, 0.0
        %v3191 = vadd.f32 %v3189, %v3190
        %3192 = vadd.xlane.f32.xlu0 %v3191
        %v3193 = vpop.xlane.xlu0 %3192
        %v3194 = vsel %vm2176, %v3174, 0.0
        %v3195 = vsel %vm2176, %v3182, 0.0
        %v3196 = vadd.f32 %v3194, %v3195
        %3197 = vadd.xlane.f32.xlu0 %v3196
        %v3198 = vpop.xlane.xlu0 %3197
        %v3199 = vmul.f32 %v3171, %v3171
        %v3200 = vmul.f32 %v3174, %v3174
        %v3201 = vmul.f32 %v3179, %v3179
        %v3202 = vmul.f32 %v3182, %v3182
        %v3203 = vsel %vm2176, %v3199, 0.0
        %v3204 = vsel %vm2176, %v3201, 0.0
        %v3205 = vadd.f32 %v3203, %v3204
        %3206 = vadd.xlane.f32.xlu0 %v3205
        %v3207 = vpop.xlane.xlu0 %3206
        %v3208 = vsel %vm2176, %v3200, 0.0
        %v3209 = vsel %vm2176, %v3202, 0.0
        %v3210 = vadd.f32 %v3208, %v3209
        %3211 = vadd.xlane.f32.xlu0 %v3210
        %v3212 = vpop.xlane.xlu0 %3211
        %v3213 = vmul.f32 %v3193, 0.0078125
        %v3214 = vmul.f32 %v3198, 0.0078125
        %v3215 = vmul.f32 %v3207, 0.0078125
        %v3216 = vmul.f32 %v3212, 0.0078125
        %v3217 = vmul.f32 %v3213, %v3213
        %v3218 = vmul.f32 %v3214, %v3214
        %v3219 = vsub.f32 %v3215, %v3217
        %v3220 = vsub.f32 %v3216, %v3218
        %v3221 = vmax.f32 %v3219, 0.0
        %v3222 = vmax.f32 %v3220, 0.0
        %v3223 = vadd.f32 %v3221, 1e-05
        %v3224 = vadd.f32 %v3222, 1e-05
        %v3225 = vrsqrt.pop %v3223
        %v3226 = vrsqrt.pop %v3224
        %v3227 = vmul.f32 %v3185, %v3225
        %v3228 = vmul.f32 %v3186, %v3226
        %v3229 = vmul.f32 %v3213, %v3227
        %v3230 = vmul.f32 %v3214, %v3228
        %v3231 = vsub.f32 %v3187, %v3229
        %v3232 = vsub.f32 %v3188, %v3230
        %3234 = vset.pattern.permute.xlu0 0
        %3235 = vperm.xlu0 %3234, %v3227
        %v3236 = vpop.permute.xlu0 %3235
        %3239 = vset.pattern.permute.xlu0 0
        %3240 = vperm.xlu0 %3239, %v3228
        %v3241 = vpop.permute.xlu0 %3240
        %v3243 = vmul.f32 %v3171, %v3236
        %v3244 = vmul.f32 %v3174, %v3241
        %v3245 = vmul.f32 %v3179, %v3236
        %v3246 = vmul.f32 %v3182, %v3241
        %3248 = vset.pattern.permute.xlu0 0
        %3249 = vperm.xlu0 %3248, %v3231
        %v3250 = vpop.permute.xlu0 %3249
        %3253 = vset.pattern.permute.xlu0 0
        %3254 = vperm.xlu0 %3253, %v3232
        %v3255 = vpop.permute.xlu0 %3254
        %v3257 = vadd.f32 %v3243, %v3250
        %v3258 = vadd.f32 %v3244, %v3255
        %v3259 = vadd.f32 %v3245, %v3250
        %v3260 = vadd.f32 %v3246, %v3255
        %v3261 = vmax.f32 %v3257, 0.0
        %v3262 = vmax.f32 %v3258, 0.0
        %v3263 = vmax.f32 %v3259, 0.0
        %v3264 = vmax.f32 %v3260, 0.0
        %v3265 = vld [vmem:[%s65] sm:$0xf]
        %v3266 = vld [vmem:[%s65 + $0x4] sm:$0xf]
        %v3267 = vld [vmem:[%s65 + $0x8] sm:$0xf]
        %v3268 = vld [vmem:[%s65 + $0xc] sm:$0xf]
        %v3269 = vld [vmem:[%s65 + $0x10] sm:$0xf]
        %v3270 = vld [vmem:[%s65 + $0x14] sm:$0xf]
        %v3271 = vld [vmem:[%s65 + $0x18] sm:$0xf]
        %v3272 = vld [vmem:[%s65 + $0x1c] sm:$0xf]
        %v3273 = vpack.c.bf16 %v3262, %v3261
        %v3274 = vpack.c.bf16 %v3264, %v3263
        %v3275 = vld [vmem:[%s67] sm:$0x1]
        %v3277 = vlaneseq
        %v3278 = vshrl.u32 %v3277, 7
        %v3279 = vsub.s32 0, %v3278
        %v3280 = vrot.slane %v3275, %v3279
        %v3290 = vunpack.c.l.b16 %v3265
        %v3291 = vunpack.c.l.b16 %v3266
        %v3292 = vunpack.c.l.b16 %v3267
        %v3293 = vunpack.c.l.b16 %v3268
        %v3294 = vunpack.c.l.b16 %v3269
        %v3295 = vunpack.c.l.b16 %v3270
        %v3296 = vunpack.c.l.b16 %v3271
        %v3297 = vunpack.c.l.b16 %v3272
        %v3298 = vpack.c.b16 %v3291, %v3290
        %v3299 = vpack.c.b16 %v3293, %v3292
        %v3300 = vpack.c.b16 %v3295, %v3294
        %v3301 = vpack.c.b16 %v3297, %v3296
        %v3307 = vsel %vm2176, %v3273, 0
        %v3310 = vsel %vm2176, %v3274, 0
        %3312 = vmatprep.subr.bf16.mxu0 0
        %3313 = vmatpush1.bf16.msra.mxu0 %v3298
        %3314 = vmatprep.subr.bf16.mxu0 0
        %3315 = vmatpush1.bf16.msra.mxu0 %v3299
        %3316 = vmatprep.subr.bf16.mxu0 0
        %3317 = vmatpush1.bf16.msra.mxu0 %v3300
        %3318 = vmatprep.subr.bf16.mxu0 0
        %3319 = vmatpush1.bf16.msra.mxu0 %v3301
        %3320 = vmatprep.subr.bf16.mxu0 0
        %3321 = vmatpush1.bf16.msra.mxu0 0
        %3322 = vmatprep.subr.bf16.mxu0 0
        %3323 = vmatpush1.bf16.msra.mxu0 0
        %3324 = vmatprep.subr.bf16.mxu0 0
        %3325 = vmatpush1.bf16.msra.mxu0 0
        %3326 = vmatprep.subr.bf16.mxu0 0
        %3327 = vmatpush1.bf16.msra.mxu0 0
        %3328 = vmatprep.subr.bf16.mxu0 0
        %3329 = vmatpush1.bf16.msra.mxu0 0
        %3330 = vmatprep.subr.bf16.mxu0 0
        %3331 = vmatpush1.bf16.msra.mxu0 0
        %3332 = vmatprep.subr.bf16.mxu0 0
        %3333 = vmatpush1.bf16.msra.mxu0 0
        %3334 = vmatprep.subr.bf16.mxu0 0
        %3335 = vmatpush1.bf16.msra.mxu0 0
        %3336 = vmatprep.subr.bf16.mxu0 0
        %3337 = vmatpush1.bf16.msra.mxu0 0
        %3338 = vmatprep.subr.bf16.mxu0 0
        %3339 = vmatpush1.bf16.msra.mxu0 0
        %3340 = vmatprep.subr.bf16.mxu0 0
        %3341 = vmatpush1.bf16.msra.mxu0 0
        %3342 = vmatprep.subr.bf16.mxu0 0
        %3343 = vmatpush1.bf16.msra.mxu0 0
        %3344 = vmatprep.mubr.bf16.mxu0 0
        %3345 = vmatmul.mubr.bf16.gmra.mrb[0].mxu0 %v3307
        %v3346 = vpop.f32.mrb[0].mxu0
        %v3347 = vadd.f32 %v3280, %v3346
        %v3348 = vpop.f32.mrb[0].mxu0
        %v3349 = vpop.f32.mrb[0].mxu0
        %v3350 = vadd.f32 %v3280, %v3349
        %v3351 = vpop.f32.mrb[0].mxu0
        %3352 = vmatprep.mubr.bf16.mxu0 0
        %3353 = vmatmul.mubr.bf16.gmra.mrb[0].mxu0 %v3310
        %v3354 = vpop.f32.mrb[0].mxu0
        %v3355 = vadd.f32 %v3280, %v3354
        %v3356 = vpop.f32.mrb[0].mxu0
        %v3357 = vpop.f32.mrb[0].mxu0
        %v3358 = vadd.f32 %v3280, %v3357
        %v3359 = vpop.f32.mrb[0].mxu0
        %3360 = vdwg.mxu0
        %v3361 = vld [vmem:[%s1630] sm:$0xff]
        %v3362 = vld [vmem:[%s1630 + $0x8] sm:$0xff]
        %v3363 = vld [vmem:[%s1636] sm:$0xff]
        %v3364 = vld [vmem:[%s1636 + $0x8] sm:$0xff]
        %v3365 = vsel %vm2353, %v3347, 0.0
        %v3366 = vsel %vm2353, %v3355, 0.0
        %v3367 = vadd.f32 %v3365, %v3366
        %3368 = vadd.xlane.f32.xlu0 %v3367
        %v3369 = vpop.xlane.xlu0 %3368
        %v3370 = vsel %vm2353, %v3350, 0.0
        %v3371 = vsel %vm2353, %v3358, 0.0
        %v3372 = vadd.f32 %v3370, %v3371
        %3373 = vadd.xlane.f32.xlu0 %v3372
        %v3374 = vpop.xlane.xlu0 %3373
        %v3375 = vmul.f32 %v3347, %v3347
        %v3376 = vmul.f32 %v3350, %v3350
        %v3377 = vmul.f32 %v3355, %v3355
        %v3378 = vmul.f32 %v3358, %v3358
        %v3379 = vsel %vm2353, %v3375, 0.0
        %v3380 = vsel %vm2353, %v3377, 0.0
        %v3381 = vadd.f32 %v3379, %v3380
        %3382 = vadd.xlane.f32.xlu0 %v3381
        %v3383 = vpop.xlane.xlu0 %3382
        %v3384 = vsel %vm2353, %v3376, 0.0
        %v3385 = vsel %vm2353, %v3378, 0.0
        %v3386 = vadd.f32 %v3384, %v3385
        %3387 = vadd.xlane.f32.xlu0 %v3386
        %v3388 = vpop.xlane.xlu0 %3387
        %v3389 = vmul.f32 %v3369, 0.015625
        %v3390 = vmul.f32 %v3374, 0.015625
        %v3391 = vmul.f32 %v3383, 0.015625
        %v3392 = vmul.f32 %v3388, 0.015625
        %v3393 = vmul.f32 %v3389, %v3389
        %v3394 = vmul.f32 %v3390, %v3390
        %v3395 = vsub.f32 %v3391, %v3393
        %v3396 = vsub.f32 %v3392, %v3394
        %v3397 = vmax.f32 %v3395, 0.0
        %v3398 = vmax.f32 %v3396, 0.0
        %v3399 = vadd.f32 %v3397, 1e-05
        %v3400 = vadd.f32 %v3398, 1e-05
        %v3401 = vrsqrt.pop %v3399
        %v3402 = vrsqrt.pop %v3400
        %v3403 = vmul.f32 %v3361, %v3401
        %v3404 = vmul.f32 %v3362, %v3402
        %v3405 = vmul.f32 %v3389, %v3403
        %v3406 = vmul.f32 %v3390, %v3404
        %v3407 = vsub.f32 %v3363, %v3405
        %v3408 = vsub.f32 %v3364, %v3406
        %3410 = vset.pattern.permute.xlu0 0
        %3411 = vperm.xlu0 %3410, %v3403
        %v3412 = vpop.permute.xlu0 %3411
        %3415 = vset.pattern.permute.xlu0 0
        %3416 = vperm.xlu0 %3415, %v3404
        %v3417 = vpop.permute.xlu0 %3416
        %v3419 = vmul.f32 %v3347, %v3412
        %v3420 = vmul.f32 %v3350, %v3417
        %v3421 = vmul.f32 %v3355, %v3412
        %v3422 = vmul.f32 %v3358, %v3417
        %3424 = vset.pattern.permute.xlu0 0
        %3425 = vperm.xlu0 %3424, %v3407
        %v3426 = vpop.permute.xlu0 %3425
        %3429 = vset.pattern.permute.xlu0 0
        %3430 = vperm.xlu0 %3429, %v3408
        %v3431 = vpop.permute.xlu0 %3430
        %v3433 = vadd.f32 %v3419, %v3426
        %v3434 = vadd.f32 %v3420, %v3431
        %v3435 = vadd.f32 %v3421, %v3426
        %v3436 = vadd.f32 %v3422, %v3431
        %v3437 = vmax.f32 %v3433, 0.0
        %v3438 = vmax.f32 %v3434, 0.0
        %v3439 = vmax.f32 %v3435, 0.0
        %v3440 = vmax.f32 %v3436, 0.0
        %v3441 = vld [vmem:[%s73] sm:$0xf]
        %v3442 = vld [vmem:[%s73 + $0x4] sm:$0xf]
        %v3443 = vld [vmem:[%s73 + $0x8] sm:$0xf]
        %v3444 = vld [vmem:[%s73 + $0xc] sm:$0xf]
        %v3445 = vpack.c.bf16 %v3438, %v3437
        %v3446 = vpack.c.bf16 %v3440, %v3439
        %v3447 = vld [vmem:[%s75] sm:$0x1]
        %v3449 = vlaneseq
        %v3450 = vshrl.u32 %v3449, 7
        %v3451 = vsub.s32 0, %v3450
        %v3452 = vrot.slane %v3447, %v3451
        %v3458 = vunpack.c.l.b16 %v3441
        %v3459 = vunpack.c.l.b16 %v3442
        %v3460 = vunpack.c.l.b16 %v3443
        %v3461 = vunpack.c.l.b16 %v3444
        %v3462 = vpack.c.b16 %v3459, %v3458
        %v3463 = vpack.c.b16 %v3461, %v3460
        %v3467 = vsel %vm2353, %v3445, 0
        %v3470 = vsel %vm2353, %v3446, 0
        %3472 = vmatprep.subr.bf16.mxu0 0
        %3473 = vmatpush1.bf16.msra.mxu0 %v3462
        %3474 = vmatprep.subr.bf16.mxu0 0
        %3475 = vmatpush1.bf16.msra.mxu0 %v3463
        %3476 = vmatprep.subr.bf16.mxu0 0
        %3477 = vmatpush1.bf16.msra.mxu0 0
        %3478 = vmatprep.subr.bf16.mxu0 0
        %3479 = vmatpush1.bf16.msra.mxu0 0
        %3480 = vmatprep.subr.bf16.mxu0 0
        %3481 = vmatpush1.bf16.msra.mxu0 0
        %3482 = vmatprep.subr.bf16.mxu0 0
        %3483 = vmatpush1.bf16.msra.mxu0 0
        %3484 = vmatprep.subr.bf16.mxu0 0
        %3485 = vmatpush1.bf16.msra.mxu0 0
        %3486 = vmatprep.subr.bf16.mxu0 0
        %3487 = vmatpush1.bf16.msra.mxu0 0
        %3488 = vmatprep.subr.bf16.mxu0 0
        %3489 = vmatpush1.bf16.msra.mxu0 0
        %3490 = vmatprep.subr.bf16.mxu0 0
        %3491 = vmatpush1.bf16.msra.mxu0 0
        %3492 = vmatprep.subr.bf16.mxu0 0
        %3493 = vmatpush1.bf16.msra.mxu0 0
        %3494 = vmatprep.subr.bf16.mxu0 0
        %3495 = vmatpush1.bf16.msra.mxu0 0
        %3496 = vmatprep.subr.bf16.mxu0 0
        %3497 = vmatpush1.bf16.msra.mxu0 0
        %3498 = vmatprep.subr.bf16.mxu0 0
        %3499 = vmatpush1.bf16.msra.mxu0 0
        %3500 = vmatprep.subr.bf16.mxu0 0
        %3501 = vmatpush1.bf16.msra.mxu0 0
        %3502 = vmatprep.subr.bf16.mxu0 0
        %3503 = vmatpush1.bf16.msra.mxu0 0
        %3504 = vmatprep.mubr.bf16.mxu0 0
        %3505 = vmatmul.mubr.bf16.gmra.mrb[0].mxu0 %v3467
        %v3506 = vpop.f32.mrb[0].mxu0
        %v3507 = vadd.f32 %v3452, %v3506
        %v3508 = vpop.f32.mrb[0].mxu0
        %v3509 = vpop.f32.mrb[0].mxu0
        %v3510 = vadd.f32 %v3452, %v3509
        %v3511 = vpop.f32.mrb[0].mxu0
        %3512 = vmatprep.mubr.bf16.mxu0 0
        %3513 = vmatmul.mubr.bf16.gmra.mrb[0].mxu0 %v3470
        %v3514 = vpop.f32.mrb[0].mxu0
        %v3515 = vadd.f32 %v3452, %v3514
        %v3516 = vpop.f32.mrb[0].mxu0
        %v3517 = vpop.f32.mrb[0].mxu0
        %v3518 = vadd.f32 %v3452, %v3517
        %v3519 = vpop.f32.mrb[0].mxu0
        %3520 = vdwg.mxu0
        %v3521 = vld [vmem:[%s1642] sm:$0xff]
        %v3522 = vld [vmem:[%s1642 + $0x8] sm:$0xff]
        %v3523 = vld [vmem:[%s1648] sm:$0xff]
        %v3524 = vld [vmem:[%s1648 + $0x8] sm:$0xff]
        %v3525 = vsel %vm2514, %v3507, 0.0
        %v3526 = vsel %vm2514, %v3515, 0.0
        %v3527 = vadd.f32 %v3525, %v3526
        %3528 = vadd.xlane.f32.xlu0 %v3527
        %v3529 = vpop.xlane.xlu0 %3528
        %v3530 = vsel %vm2514, %v3510, 0.0
        %v3531 = vsel %vm2514, %v3518, 0.0
        %v3532 = vadd.f32 %v3530, %v3531
        %3533 = vadd.xlane.f32.xlu0 %v3532
        %v3534 = vpop.xlane.xlu0 %3533
        %v3535 = vmul.f32 %v3507, %v3507
        %v3536 = vmul.f32 %v3510, %v3510
        %v3537 = vmul.f32 %v3515, %v3515
        %v3538 = vmul.f32 %v3518, %v3518
        %v3539 = vsel %vm2514, %v3535, 0.0
        %v3540 = vsel %vm2514, %v3537, 0.0
        %v3541 = vadd.f32 %v3539, %v3540
        %3542 = vadd.xlane.f32.xlu0 %v3541
        %v3543 = vpop.xlane.xlu0 %3542
        %v3544 = vsel %vm2514, %v3536, 0.0
        %v3545 = vsel %vm2514, %v3538, 0.0
        %v3546 = vadd.f32 %v3544, %v3545
        %3547 = vadd.xlane.f32.xlu0 %v3546
        %v3548 = vpop.xlane.xlu0 %3547
        %v3549 = vmul.f32 %v3529, 0.125
        %v3550 = vmul.f32 %v3534, 0.125
        %v3551 = vmul.f32 %v3543, 0.125
        %v3552 = vmul.f32 %v3548, 0.125
        %v3553 = vmul.f32 %v3549, %v3549
        %v3554 = vmul.f32 %v3550, %v3550
        %v3555 = vsub.f32 %v3551, %v3553
        %v3556 = vsub.f32 %v3552, %v3554
        %v3557 = vmax.f32 %v3555, 0.0
        %v3558 = vmax.f32 %v3556, 0.0
        %v3559 = vadd.f32 %v3557, 1e-05
        %v3560 = vadd.f32 %v3558, 1e-05
        %v3561 = vrsqrt.pop %v3559
        %v3562 = vrsqrt.pop %v3560
        %v3563 = vmul.f32 %v3521, %v3561
        %v3564 = vmul.f32 %v3522, %v3562
        %v3565 = vmul.f32 %v3549, %v3563
        %v3566 = vmul.f32 %v3550, %v3564
        %v3567 = vsub.f32 %v3523, %v3565
        %v3568 = vsub.f32 %v3524, %v3566
        %3570 = vset.pattern.permute.xlu0 0
        %3571 = vperm.xlu0 %3570, %v3563
        %v3572 = vpop.permute.xlu0 %3571
        %3575 = vset.pattern.permute.xlu0 0
        %3576 = vperm.xlu0 %3575, %v3564
        %v3577 = vpop.permute.xlu0 %3576
        %v3579 = vmul.f32 %v3507, %v3572
        %v3580 = vmul.f32 %v3510, %v3577
        %v3581 = vmul.f32 %v3515, %v3572
        %v3582 = vmul.f32 %v3518, %v3577
        %3584 = vset.pattern.permute.xlu0 0
        %3585 = vperm.xlu0 %3584, %v3567
        %v3586 = vpop.permute.xlu0 %3585
        %3589 = vset.pattern.permute.xlu0 0
        %3590 = vperm.xlu0 %3589, %v3568
        %v3591 = vpop.permute.xlu0 %3590
        %v3593 = vadd.f32 %v3579, %v3586
        %v3594 = vadd.f32 %v3580, %v3591
        %v3595 = vadd.f32 %v3581, %v3586
        %v3596 = vadd.f32 %v3582, %v3591
        %v3597 = vmax.f32 %v3593, 0.0
        %v3598 = vmax.f32 %v3594, 0.0
        %v3599 = vmax.f32 %v3595, 0.0
        %v3600 = vmax.f32 %v3596, 0.0
        %3601 = vst.msk [vmem:[%s1522] sm:$0xff] %vm2514, %v3597
        %3602 = vst.msk [vmem:[%s1522 + $0x8] sm:$0xff] %vm2514, %v3598
        %3603 = vst.msk [vmem:[%s1522 + $0x10] sm:$0xff] %vm2514, %v3599
        %3604 = vst.msk [vmem:[%s1522 + $0x18] sm:$0xff] %vm2514, %v3600
        %s3605 = sand.u32 %s1045, 1
        %s3606 = sand.u32 %s1045, 1
        %s3607 = smul.addr %s3606, 32
        %s3608 = scalar_lea.vmem [#allocation2], %s3607
        // Predicated region
        $region181: #{_lambda_.5} parent=179 // pred_check
          %p3609 = pneg %p1055
        $region182: #{_lambda_.5} parent=179 // pred_check_branch
          %3611 = sbr.rel (%p3609) target = $region184
        $region183: #{_lambda_.5} parent=179 // pred_region
          %s3612 = smul.u32 2, %s92
          %s3613 = smul.addr %s3612, 8
          %s3614 = scalar_lea.vmem %s81, %s3613
          // Predicated region
          $region185: #{_lambda_.5} parent=183 // pred_check
            _
          $region186: #{_lambda_.5} parent=183 // pred_check_branch
            %3616 = sbr.rel (0) target = $region188
          $region187: #{_lambda_.5} parent=183 // pred_region
            // Predicated region
            $region189: #{_lambda_.5} parent=187 // pred_check
              _
            $region190: #{_lambda_.5} parent=187 // pred_check_branch
              %3618 = sbr.rel (0) target = $region192
            $region191: #{_lambda_.5} parent=187 // pred_region
              // Predicated region
              $region204: #{_lambda_.5} parent=191 // pred_check
                _
              $region205: #{_lambda_.5} parent=191 // pred_check_branch
                %3639 = sbr.rel (0) target = $region207
              $region206: #{_lambda_.5} parent=191 // pred_region
                loop: start=0, step=1, limit=1
                $region208: #{_lambda_.5} parent=206 // loop_pre_header
                  _
                $region209: #{_lambda_.5} parent=206 // loop_header
                  %s3641 = sphi 0, %s3645
                  %p3642 = scmp.ge.s32.totalorder %s3641, 1
                  %s3646 = sphi %s3608, %s3608
                  %s3647 = sphi %s3614, %s3614
                $region210: #{_lambda_.5} parent=206 // loop_header_branch
                  %3644 = sbr.rel (%p3642) target = $region214
                $region211: #{_lambda_.5} parent=206 // loop_body
                  %v3648 = vld [vmem:[%s3646] sm:$0xff]
                  %3649 = vst [vmem:[%s3647] sm:$0xff] %v3648
                  %v3650 = vld [vmem:[%s3646 + $0x8] sm:$0xff]
                  %3651 = vst [vmem:[%s3647 + $0x8] sm:$0xff] %v3650
                  %v3652 = vld [vmem:[%s3646 + $0x10] sm:$0xff]
                  %3653 = vst [vmem:[%s3647 + $0x40] sm:$0xff] %v3652
                  %v3654 = vld [vmem:[%s3646 + $0x18] sm:$0xff]
                  %3655 = vst [vmem:[%s3647 + $0x48] sm:$0xff] %v3654
                $region212: #{_lambda_.5} parent=206 // loop_footer
                  %s3645 = sadd.s32 1, %s3641
                $region213: #{_lambda_.5} parent=206 // loop_footer_branch
                  %3640 = sbr.rel target = $region209
                $region214: #{_lambda_.5} parent=206 // loop_exit
                  _
              $region207: #{_lambda_.5} parent=191 // pred_fallthru
                _
              // Predicated region
              $region215: #{_lambda_.5} parent=191 // pred_check
                _
              $region216: #{_lambda_.5} parent=191 // pred_check_branch
                %3657 = sbr.rel target = $region218
              $region217: #{_lambda_.5} parent=191 // pred_region
                _
              $region218: #{_lambda_.5} parent=191 // pred_fallthru
                _
            $region192: #{_lambda_.5} parent=187 // pred_fallthru
              _
            // Predicated region
            $region193: #{_lambda_.5} parent=187 // pred_check
              _
            $region194: #{_lambda_.5} parent=187 // pred_check_branch
              %3620 = sbr.rel target = $region196
            $region195: #{_lambda_.5} parent=187 // pred_region
              loop: start=0, step=1, limit=1
              $region197: #{_lambda_.5} parent=195 // loop_pre_header
                _
              $region198: #{_lambda_.5} parent=195 // loop_header
                %s3623 = sphi 0, %s3627
                %p3624 = scmp.ge.s32.totalorder %s3623, 1
                %s3628 = sphi %s3608, %s3608
                %s3629 = sphi %s3614, %s3614
              $region199: #{_lambda_.5} parent=195 // loop_header_branch
                %3626 = sbr.rel (%p3624) target = $region203
              $region200: #{_lambda_.5} parent=195 // loop_body
                %v3630 = vld [vmem:[%s3628] sm:$0xff]
                %3631 = vst [vmem:[%s3629] sm:$0xff] %v3630
                %v3632 = vld [vmem:[%s3628 + $0x8] sm:$0xff]
                %3633 = vst [vmem:[%s3629 + $0x8] sm:$0xff] %v3632
                %v3634 = vld [vmem:[%s3628 + $0x10] sm:$0xff]
                %3635 = vst [vmem:[%s3629 + $0x40] sm:$0xff] %v3634
                %v3636 = vld [vmem:[%s3628 + $0x18] sm:$0xff]
                %3637 = vst [vmem:[%s3629 + $0x48] sm:$0xff] %v3636
              $region201: #{_lambda_.5} parent=195 // loop_footer
                %s3627 = sadd.s32 1, %s3623
              $region202: #{_lambda_.5} parent=195 // loop_footer_branch
                %3622 = sbr.rel target = $region198
              $region203: #{_lambda_.5} parent=195 // loop_exit
                _
            $region196: #{_lambda_.5} parent=187 // pred_fallthru
              _
          $region188: #{_lambda_.5} parent=183 // pred_fallthru
            _
          %3658 = vnop
        $region184: #{_lambda_.5} parent=179 // pred_fallthru
          _
      $region180: #{_lambda_.5} parent=5 // pred_fallthru
        _
      %p3659 = scmp.le.s32.totalorder 2, %s87
      // Predicated region
      $region219: #{_lambda_.5} parent=5 // pred_check
        %p3660 = pneg %p3659
      $region220: #{_lambda_.5} parent=5 // pred_check_branch
        %3662 = sbr.rel (%p3660) target = $region222
      $region221: #{_lambda_.5} parent=5 // pred_region
        %s3663 = ssub.s32 %s87, 2
        // Predicated region
        $region223: #{_lambda_.5} parent=221 // pred_check
          %p3664 = pneg %p1061
        $region224: #{_lambda_.5} parent=221 // pred_check_branch
          %3666 = sbr.rel (%p3664) target = $region226
        $region225: #{_lambda_.5} parent=221 // pred_region
          %s3667 = sand.u32 %s1046, 1
          %s3668 = sand.u32 %s1046, 1
          %s3669 = smul.addr %s3668, 32
          %s3670 = scalar_lea.vmem [#allocation2], %s3669
        $region226: #{_lambda_.5} parent=221 // pred_fallthru
          _
      $region222: #{_lambda_.5} parent=5 // pred_fallthru
        _
    $region6: #{_lambda_.5} parent=1 // loop_footer
      %s91 = sadd.s32 1, %s87
    $region7: #{_lambda_.5} parent=1 // loop_footer_branch
      %86 = sbr.rel target = $region3
    $region8: #{_lambda_.5} parent=1 // loop_exit
      _

</llo_original>
